<compile_context>
chip_gen: v5e
topology: v5e:2x2
jax: 0.10.0
libtpu: 0.0.40
codegen_flags: <defaults>
</compile_context>

<pallas_src>
import functools

import jax
import jax.numpy as jnp
from jax import lax
from jax.experimental import pallas as pl
from jax.experimental.pallas import tpu as pltpu


def _fused_cnn_kernel(x_ref, w1_ref, b1_ref, w2_ref, b2_ref, w3_ref, b3_ref,
                      o_ref, *, H, W, C1, C2, C3):
    """Whole CNNBlock for one batch item.

      x_ref : (1, H+4, W+2)       zero-padded input, freq on lanes
      w1_ref: (H*C1, 15*H)        stage-1 block-diag weights (BN scale folded)
      b1_ref: (H*C1, 1)           stage-1 shift (bias+BN folded), row = h*C1+c
      w2_ref: (C2, 12*C1)         stage-2 weights, col = kw*C1+c (scale folded)
      b2_ref: (C2, 1)
      w3_ref: (18*C2, C3)         stage-3 weights, row = (kh*6+kw)*C2+c
      b3_ref: (1, C3)
      o_ref : (1, H, C3)
    """
    # ---------------- Stage 1: Conv2d(1,C1,(5,3),pad=(2,1)) + BN + ReLU + MaxPool(1,3)
    x = x_ref[0]                                              # (H+4, W+2)
    taps = []
    for kh in range(5):
        for kw in range(3):
            taps.append(x[kh:kh + H, kw:kw + W])              # (H, W), lane-aligned-ish slices
    t_stack = jnp.concatenate(taps, axis=0)                   # (15*H, W)  sublane concat
    # One MXU matmul; output rows = h*C1 + c, lanes = w (lane-dense).
    y1 = jnp.dot(w1_ref[...], t_stack,
                 preferred_element_type=jnp.float32)          # (H*C1, W)
    y1 = jnp.maximum(y1 + b1_ref[...], 0.0)
    # MaxPool over W: move W to sublanes, pool with reshape+max, move back.
    y1 = jnp.transpose(y1)                                    # (W, H*C1)
    W1p = W // 3
    y1 = y1[:W1p * 3, :].reshape(W1p, 3, H * C1).max(axis=1)  # (W1p, H*C1)
    y1 = jnp.transpose(y1)                                    # (H*C1, W1p)
    y1 = y1.reshape(H, C1, W1p)                               # (h, c, w)

    # ---------------- Stage 2: Conv2d(C1,C2,(1,12)) + BN + ReLU + MaxPool(1,3)
    W2 = W1p - 11
    # im2col: rows = (kw, c_in), cols = (h, w2)  -> single matmul with K=12*C1.
    a2_h = jnp.concatenate([y1[:, :, kw:kw + W2] for kw in range(12)],
                           axis=1)                            # (H, 12*C1, W2)
    a2 = jnp.concatenate([a2_h[h] for h in range(H)], axis=1)  # (12*C1, H*W2)
    y2 = jnp.dot(w2_ref[...], a2,
                 preferred_element_type=jnp.float32)          # (C2, H*W2)
    y2 = jnp.maximum(y2 + b2_ref[...], 0.0)
    y2 = jnp.transpose(y2)                                    # (H*W2, C2)
    y2 = y2.reshape(H, W2, C2)
    W2p = W2 // 3
    y2 = y2[:, :W2p * 3, :].reshape(H, W2p, 3, C2).max(axis=2)  # (H, W2p, C2)

    # ---------------- Stage 3: Conv2d(C2,C3,(3,6),pad=(1,0)) + BN + ReLU + MaxPool(1,3)
    zrow = jnp.zeros((1, W2p, C2), jnp.float32)
    y2p = jnp.concatenate([zrow, y2, zrow], axis=0)           # (H+2, W2p, C2)  pad_h=1
    W3 = W2p - 5
    pieces = []
    for kh in range(3):
        for kw in range(6):
            pieces.append(y2p[kh:kh + H, kw:kw + W3, :].reshape(H * W3, C2))
    a3 = jnp.concatenate(pieces, axis=1)                      # (H*W3, 18*C2)
    y3 = jnp.dot(a3, w3_ref[...],
                 preferred_element_type=jnp.float32)          # (H*W3, C3)
    y3 = jnp.maximum(y3 + b3_ref[...], 0.0)
    y3 = y3.reshape(H, W3, C3)
    W3p = W3 // 3
    y3 = y3[:, :W3p * 3, :].reshape(H, W3p, 3, C3).max(axis=2)  # (H, W3p, C3)
    # AdaptiveAvgPool2d((None, 1)): mean over remaining width (W3p == 1 here).
    y3 = jnp.mean(y3, axis=1)                                 # (H, C3)
    o_ref[0] = y3.astype(o_ref.dtype)


def init_conv_bn(key, C_in, C_out, KH, KW):
    """Deterministic Conv2d + BatchNorm2d (inference running stats) parameters."""
    k = jax.random.split(key, 6)
    w = jax.random.normal(k[0], (C_out, C_in, KH, KW), jnp.float32)
    w = w * (1.0 / jnp.sqrt(float(C_in * KH * KW)))
    b = 0.05 * jax.random.normal(k[1], (C_out,), jnp.float32)
    gamma = 1.0 + 0.1 * jax.random.normal(k[2], (C_out,), jnp.float32)
    beta = 0.1 * jax.random.normal(k[3], (C_out,), jnp.float32)
    mean = 0.05 * jax.random.normal(k[4], (C_out,), jnp.float32)
    var = jax.random.uniform(k[5], (C_out,), jnp.float32, 0.5, 1.5)
    return dict(w=w, b=b, gamma=gamma, beta=beta, mean=mean, var=var)


def prepare_fused(params, H, eps=1e-5):
    """Fold inference BatchNorm + conv bias into the weights / a per-channel shift."""
    def fold(p):
        scale = p['gamma'] / jnp.sqrt(p['var'] + eps)
        shift = p['beta'] + scale * (p['b'] - p['mean'])
        return scale, shift

    s1, t1 = fold(params[0])
    s2, t2 = fold(params[1])
    s3, t3 = fold(params[2])
    C1 = params[0]['w'].shape[0]
    C2 = params[1]['w'].shape[0]
    C3 = params[2]['w'].shape[0]

    # Stage 1: block-diagonal-over-h weight so the kernel's (15*H, W) tap stack
    # is consumed by a single matmul with lanes = W.
    w1 = params[0]['w'].reshape(C1, 15) * s1[:, None]          # [c, kh*3+kw]
    eye = jnp.eye(H, dtype=jnp.float32)
    w1big = jnp.einsum('ct,hk->hctk', w1, eye).reshape(H * C1, 15 * H)
    b1 = jnp.tile(t1, H)[:, None]                              # (H*C1, 1)

    # Stage 2: columns ordered (kw, c_in) to match the kernel's im2col concat.
    w2 = params[1]['w'][:, :, 0, :]                            # (C2, C1, 12)
    w2cm = jnp.transpose(w2, (0, 2, 1)).reshape(C2, 12 * C1) * s2[:, None]
    b2 = t2[:, None]                                           # (C2, 1)

    # Stage 3: rows ordered (kh, kw, c_in).
    w3 = params[2]['w']                                        # (C3, C2, 3, 6)
    w3f = jnp.transpose(w3, (2, 3, 1, 0)).reshape(3 * 6 * C2, C3) * s3[None, :]
    b3 = t3[None, :]                                           # (1, C3)
    return w1big, b1, w2cm, b2, w3f, b3


def cnn_block_forward(x, params):
    """x: (B, seq, freq) exactly like the PyTorch module's forward; -> (B, seq, hidden)."""
    B, H, W = x.shape
    C1 = params[0]['w'].shape[0]
    C2 = params[1]['w'].shape[0]
    C3 = params[2]['w'].shape[0]
    w1big, b1, w2cm, b2, w3f, b3 = prepare_fused(params, H)
    xp = jnp.pad(x, ((0, 0), (2, 2), (1, 1)))                  # conv1 padding (2, 1)

    kernel = functools.partial(_fused_cnn_kernel, H=H, W=W, C1=C1, C2=C2, C3=C3)
    return pl.pallas_call(
        kernel,
        out_shape=jax.ShapeDtypeStruct((B, H, C3), jnp.float32),
        grid=(B,),
        in_specs=[
            pl.BlockSpec((1, H + 4, W + 2), lambda b: (b, 0, 0)),
            pl.BlockSpec(w1big.shape, lambda b: (0, 0)),
            pl.BlockSpec(b1.shape, lambda b: (0, 0)),
            pl.BlockSpec(w2cm.shape, lambda b: (0, 0)),
            pl.BlockSpec(b2.shape, lambda b: (0, 0)),
            pl.BlockSpec(w3f.shape, lambda b: (0, 0)),
            pl.BlockSpec(b3.shape, lambda b: (0, 0)),
        ],
        out_specs=pl.BlockSpec((1, H, C3), lambda b: (b, 0, 0)),
        compiler_params=pltpu.CompilerParams(dimension_semantics=("parallel",)),
    )(xp, w1big, b1, w2cm, b2, w3f, b3)


def _ref_stage(x_nhwc, p, pad_h, pad_w, pool, gap, eps=1e-5):
    """Pure-JAX reference for one CNN stage (correctness check)."""
    w_hwio = jnp.transpose(p['w'], (2, 3, 1, 0))
    y = lax.conv_general_dilated(x_nhwc, w_hwio, (1, 1),
                                 ((pad_h, pad_h), (pad_w, pad_w)),
                                 dimension_numbers=('NHWC', 'HWIO', 'NHWC'))
    y = y + p['b'][None, None, None, :]
    y = (y - p['mean']) / jnp.sqrt(p['var'] + eps) * p['gamma'] + p['beta']
    y = jnp.maximum(y, 0.0)
    B, H, W, C = y.shape
    Wp = W // pool
    y = y[:, :, :Wp * pool, :].reshape(B, H, Wp, pool, C).max(axis=3)
    if gap:
        y = y.mean(axis=2, keepdims=True)
    return y


if __name__ == "__main__":
    B, SEQ, FREQ, HIDDEN = 2, 8, 128, 64
    key = jax.random.PRNGKey(0)
    kx, k1, k2, k3 = jax.random.split(key, 4)
    x = jax.random.normal(kx, (B, SEQ, FREQ), jnp.float32)

    params = [
        init_conv_bn(k1, 1, 32, 5, 3),        # conv1
        init_conv_bn(k2, 32, 64, 1, 12),      # conv2
        init_conv_bn(k3, 64, HIDDEN, 3, 6),   # conv3
    ]

    out = jax.jit(cnn_block_forward)(x, params)
    out = jax.block_until_ready(out)
    assert out.shape == (B, SEQ, HIDDEN), out.shape

    # Pure-JAX reference check.
    r = x[..., None]
    r = _ref_stage(r, params[0], 2, 1, 3, False)
    r = _ref_stage(r, params[1], 0, 0, 3, False)
    r = _ref_stage(r, params[2], 1, 0, 3, True)
    r = r[:, :, 0, :]
    max_err = float(jnp.max(jnp.abs(out - r)))
    assert jnp.allclose(out, r, rtol=1e-3, atol=1e-3), max_err

    print("KERNEL_OK")
</pallas_src>

<mosaic_0001>
module attributes {stable_mosaic.version = 11 : i64} {
  func.func @_fused_cnn_kernel(%arg0: i32, %arg1: memref<1x12x130xf32, #tpu.memory_space<vmem>>, %arg2: memref<256x120xf32, #tpu.memory_space<vmem>>, %arg3: memref<256x1xf32, #tpu.memory_space<vmem>>, %arg4: memref<64x384xf32, #tpu.memory_space<vmem>>, %arg5: memref<64x1xf32, #tpu.memory_space<vmem>>, %arg6: memref<1152x64xf32, #tpu.memory_space<vmem>>, %arg7: memref<1x64xf32, #tpu.memory_space<vmem>>, %arg8: memref<1x8x64xf32, #tpu.memory_space<vmem>>) attributes {dimension_semantics = [#tpu.dimension_semantics<parallel>], iteration_bounds = array<i64: 2>, scalar_prefetch = 0 : i64, scratch_operands = 0 : i64, tpu.core_type = #tpu.core_type<tc>, window_params = [{transform_indices = @transform_0, window_bounds = array<i64: 1, 12, 130>}, {pipeline_mode = #tpu.pipeline_mode<synchronous>, transform_indices = @transform_1, window_bounds = array<i64: 256, 120>}, {pipeline_mode = #tpu.pipeline_mode<synchronous>, transform_indices = @transform_2, window_bounds = array<i64: 256, 1>}, {pipeline_mode = #tpu.pipeline_mode<synchronous>, transform_indices = @transform_3, window_bounds = array<i64: 64, 384>}, {pipeline_mode = #tpu.pipeline_mode<synchronous>, transform_indices = @transform_4, window_bounds = array<i64: 64, 1>}, {pipeline_mode = #tpu.pipeline_mode<synchronous>, transform_indices = @transform_5, window_bounds = array<i64: 1152, 64>}, {pipeline_mode = #tpu.pipeline_mode<synchronous>, transform_indices = @transform_6, window_bounds = array<i64: 1, 64>}, {transform_indices = @transform_7, window_bounds = array<i64: 1, 8, 64>}]} {
    %c0 = arith.constant 0 : index
    %c0_0 = arith.constant 0 : index
    %c0_1 = arith.constant 0 : index
    %0 = vector.load %arg1[%c0, %c0_0, %c0_1] : memref<1x12x130xf32, #tpu.memory_space<vmem>>, vector<1x12x130xf32>
    %1 = vector.shape_cast %0 : vector<1x12x130xf32> to vector<12x130xf32>
    %2 = vector.extract_strided_slice %1 {offsets = [0, 0], sizes = [8, 128], strides = [1, 1]} : vector<12x130xf32> to vector<8x128xf32>
    %3 = vector.extract_strided_slice %1 {offsets = [0, 1], sizes = [8, 128], strides = [1, 1]} : vector<12x130xf32> to vector<8x128xf32>
    %4 = vector.extract_strided_slice %1 {offsets = [0, 2], sizes = [8, 128], strides = [1, 1]} : vector<12x130xf32> to vector<8x128xf32>
    %5 = vector.extract_strided_slice %1 {offsets = [1, 0], sizes = [8, 128], strides = [1, 1]} : vector<12x130xf32> to vector<8x128xf32>
    %6 = vector.extract_strided_slice %1 {offsets = [1, 1], sizes = [8, 128], strides = [1, 1]} : vector<12x130xf32> to vector<8x128xf32>
    %7 = vector.extract_strided_slice %1 {offsets = [1, 2], sizes = [8, 128], strides = [1, 1]} : vector<12x130xf32> to vector<8x128xf32>
    %8 = vector.extract_strided_slice %1 {offsets = [2, 0], sizes = [8, 128], strides = [1, 1]} : vector<12x130xf32> to vector<8x128xf32>
    %9 = vector.extract_strided_slice %1 {offsets = [2, 1], sizes = [8, 128], strides = [1, 1]} : vector<12x130xf32> to vector<8x128xf32>
    %10 = vector.extract_strided_slice %1 {offsets = [2, 2], sizes = [8, 128], strides = [1, 1]} : vector<12x130xf32> to vector<8x128xf32>
    %11 = vector.extract_strided_slice %1 {offsets = [3, 0], sizes = [8, 128], strides = [1, 1]} : vector<12x130xf32> to vector<8x128xf32>
    %12 = vector.extract_strided_slice %1 {offsets = [3, 1], sizes = [8, 128], strides = [1, 1]} : vector<12x130xf32> to vector<8x128xf32>
    %13 = vector.extract_strided_slice %1 {offsets = [3, 2], sizes = [8, 128], strides = [1, 1]} : vector<12x130xf32> to vector<8x128xf32>
    %14 = vector.extract_strided_slice %1 {offsets = [4, 0], sizes = [8, 128], strides = [1, 1]} : vector<12x130xf32> to vector<8x128xf32>
    %15 = vector.extract_strided_slice %1 {offsets = [4, 1], sizes = [8, 128], strides = [1, 1]} : vector<12x130xf32> to vector<8x128xf32>
    %16 = vector.extract_strided_slice %1 {offsets = [4, 2], sizes = [8, 128], strides = [1, 1]} : vector<12x130xf32> to vector<8x128xf32>
    %17 = tpu.concatenate %2, %3, %4, %5, %6, %7, %8, %9, %10, %11, %12, %13, %14, %15, %16 in 0 : vector<8x128xf32>, vector<8x128xf32>, vector<8x128xf32>, vector<8x128xf32>, vector<8x128xf32>, vector<8x128xf32>, vector<8x128xf32>, vector<8x128xf32>, vector<8x128xf32>, vector<8x128xf32>, vector<8x128xf32>, vector<8x128xf32>, vector<8x128xf32>, vector<8x128xf32>, vector<8x128xf32> -> vector<120x128xf32>
    %c0_2 = arith.constant 0 : index
    %c0_3 = arith.constant 0 : index
    %18 = vector.load %arg2[%c0_2, %c0_3] : memref<256x120xf32, #tpu.memory_space<vmem>>, vector<256x120xf32>
    %cst = arith.constant dense<0.000000e+00> : vector<256x128xf32>
    %19 = tpu.matmul %18, %17, %cst {dimension_numbers = #tpu.dot_dimension_numbers<[1], [0], [0], [1], [0, 0, 1, 1], [], []>} : vector<256x120xf32>, vector<120x128xf32>, vector<256x128xf32> -> vector<256x128xf32>
    %c0_4 = arith.constant 0 : index
    %c0_5 = arith.constant 0 : index
    %20 = vector.load %arg3[%c0_4, %c0_5] : memref<256x1xf32, #tpu.memory_space<vmem>>, vector<256x1xf32>
    %21 = vector.broadcast %20 : vector<256x1xf32> to vector<256x128xf32>
    %22 = arith.addf %19, %21 : vector<256x128xf32>
    %cst_6 = arith.constant 0.000000e+00 : f32
    %23 = vector.broadcast %cst_6 : f32 to vector<256x128xf32>
    %24 = arith.maximumf %22, %23 : vector<256x128xf32>
    %25 = tpu.transpose %24, [1, 0] : vector<256x128xf32> -> vector<128x256xf32>
    %26 = vector.extract_strided_slice %25 {offsets = [0, 0], sizes = [126, 256], strides = [1, 1]} : vector<128x256xf32> to vector<126x256xf32>
    %27 = vector.shape_cast %26 : vector<126x256xf32> to vector<42x3x256xf32>
    %cst_7 = arith.constant dense<0xFF800000> : vector<42x256xf32>
    %28 = vector.multi_reduction <maximumf>, %27, %cst_7 [1] : vector<42x3x256xf32> to vector<42x256xf32>
    %29 = tpu.transpose %28, [1, 0] : vector<42x256xf32> -> vector<256x42xf32>
    %30 = vector.shape_cast %29 : vector<256x42xf32> to vector<8x32x42xf32>
    %31 = vector.extract_strided_slice %30 {offsets = [0, 0, 0], sizes = [8, 32, 31], strides = [1, 1, 1]} : vector<8x32x42xf32> to vector<8x32x31xf32>
    %32 = vector.extract_strided_slice %30 {offsets = [0, 0, 1], sizes = [8, 32, 31], strides = [1, 1, 1]} : vector<8x32x42xf32> to vector<8x32x31xf32>
    %33 = vector.extract_strided_slice %30 {offsets = [0, 0, 2], sizes = [8, 32, 31], strides = [1, 1, 1]} : vector<8x32x42xf32> to vector<8x32x31xf32>
    %34 = vector.extract_strided_slice %30 {offsets = [0, 0, 3], sizes = [8, 32, 31], strides = [1, 1, 1]} : vector<8x32x42xf32> to vector<8x32x31xf32>
    %35 = vector.extract_strided_slice %30 {offsets = [0, 0, 4], sizes = [8, 32, 31], strides = [1, 1, 1]} : vector<8x32x42xf32> to vector<8x32x31xf32>
    %36 = vector.extract_strided_slice %30 {offsets = [0, 0, 5], sizes = [8, 32, 31], strides = [1, 1, 1]} : vector<8x32x42xf32> to vector<8x32x31xf32>
    %37 = vector.extract_strided_slice %30 {offsets = [0, 0, 6], sizes = [8, 32, 31], strides = [1, 1, 1]} : vector<8x32x42xf32> to vector<8x32x31xf32>
    %38 = vector.extract_strided_slice %30 {offsets = [0, 0, 7], sizes = [8, 32, 31], strides = [1, 1, 1]} : vector<8x32x42xf32> to vector<8x32x31xf32>
    %39 = vector.extract_strided_slice %30 {offsets = [0, 0, 8], sizes = [8, 32, 31], strides = [1, 1, 1]} : vector<8x32x42xf32> to vector<8x32x31xf32>
    %40 = vector.extract_strided_slice %30 {offsets = [0, 0, 9], sizes = [8, 32, 31], strides = [1, 1, 1]} : vector<8x32x42xf32> to vector<8x32x31xf32>
    %41 = vector.extract_strided_slice %30 {offsets = [0, 0, 10], sizes = [8, 32, 31], strides = [1, 1, 1]} : vector<8x32x42xf32> to vector<8x32x31xf32>
    %42 = vector.extract_strided_slice %30 {offsets = [0, 0, 11], sizes = [8, 32, 31], strides = [1, 1, 1]} : vector<8x32x42xf32> to vector<8x32x31xf32>
    %43 = tpu.concatenate %31, %32, %33, %34, %35, %36, %37, %38, %39, %40, %41, %42 in 1 : vector<8x32x31xf32>, vector<8x32x31xf32>, vector<8x32x31xf32>, vector<8x32x31xf32>, vector<8x32x31xf32>, vector<8x32x31xf32>, vector<8x32x31xf32>, vector<8x32x31xf32>, vector<8x32x31xf32>, vector<8x32x31xf32>, vector<8x32x31xf32>, vector<8x32x31xf32> -> vector<8x384x31xf32>
    %44 = vector.extract_strided_slice %43 {offsets = [0, 0, 0], sizes = [1, 384, 31], strides = [1, 1, 1]} : vector<8x384x31xf32> to vector<1x384x31xf32>
    %45 = vector.shape_cast %44 : vector<1x384x31xf32> to vector<384x31xf32>
    %46 = vector.extract_strided_slice %43 {offsets = [1, 0, 0], sizes = [1, 384, 31], strides = [1, 1, 1]} : vector<8x384x31xf32> to vector<1x384x31xf32>
    %47 = vector.shape_cast %46 : vector<1x384x31xf32> to vector<384x31xf32>
    %48 = vector.extract_strided_slice %43 {offsets = [2, 0, 0], sizes = [1, 384, 31], strides = [1, 1, 1]} : vector<8x384x31xf32> to vector<1x384x31xf32>
    %49 = vector.shape_cast %48 : vector<1x384x31xf32> to vector<384x31xf32>
    %50 = vector.extract_strided_slice %43 {offsets = [3, 0, 0], sizes = [1, 384, 31], strides = [1, 1, 1]} : vector<8x384x31xf32> to vector<1x384x31xf32>
    %51 = vector.shape_cast %50 : vector<1x384x31xf32> to vector<384x31xf32>
    %52 = vector.extract_strided_slice %43 {offsets = [4, 0, 0], sizes = [1, 384, 31], strides = [1, 1, 1]} : vector<8x384x31xf32> to vector<1x384x31xf32>
    %53 = vector.shape_cast %52 : vector<1x384x31xf32> to vector<384x31xf32>
    %54 = vector.extract_strided_slice %43 {offsets = [5, 0, 0], sizes = [1, 384, 31], strides = [1, 1, 1]} : vector<8x384x31xf32> to vector<1x384x31xf32>
    %55 = vector.shape_cast %54 : vector<1x384x31xf32> to vector<384x31xf32>
    %56 = vector.extract_strided_slice %43 {offsets = [6, 0, 0], sizes = [1, 384, 31], strides = [1, 1, 1]} : vector<8x384x31xf32> to vector<1x384x31xf32>
    %57 = vector.shape_cast %56 : vector<1x384x31xf32> to vector<384x31xf32>
    %58 = vector.extract_strided_slice %43 {offsets = [7, 0, 0], sizes = [1, 384, 31], strides = [1, 1, 1]} : vector<8x384x31xf32> to vector<1x384x31xf32>
    %59 = vector.shape_cast %58 : vector<1x384x31xf32> to vector<384x31xf32>
    %60 = tpu.concatenate %45, %47, %49, %51, %53, %55, %57, %59 in 1 : vector<384x31xf32>, vector<384x31xf32>, vector<384x31xf32>, vector<384x31xf32>, vector<384x31xf32>, vector<384x31xf32>, vector<384x31xf32>, vector<384x31xf32> -> vector<384x248xf32>
    %c0_8 = arith.constant 0 : index
    %c0_9 = arith.constant 0 : index
    %61 = vector.load %arg4[%c0_8, %c0_9] : memref<64x384xf32, #tpu.memory_space<vmem>>, vector<64x384xf32>
    %cst_10 = arith.constant dense<0.000000e+00> : vector<64x248xf32>
    %62 = tpu.matmul %61, %60, %cst_10 {dimension_numbers = #tpu.dot_dimension_numbers<[1], [0], [0], [1], [0, 0, 1, 1], [], []>} : vector<64x384xf32>, vector<384x248xf32>, vector<64x248xf32> -> vector<64x248xf32>
    %c0_11 = arith.constant 0 : index
    %c0_12 = arith.constant 0 : index
    %63 = vector.load %arg5[%c0_11, %c0_12] : memref<64x1xf32, #tpu.memory_space<vmem>>, vector<64x1xf32>
    %64 = vector.broadcast %63 : vector<64x1xf32> to vector<64x248xf32>
    %65 = arith.addf %62, %64 : vector<64x248xf32>
    %cst_13 = arith.constant 0.000000e+00 : f32
    %66 = vector.broadcast %cst_13 : f32 to vector<64x248xf32>
    %67 = arith.maximumf %65, %66 : vector<64x248xf32>
    %68 = tpu.transpose %67, [1, 0] : vector<64x248xf32> -> vector<248x64xf32>
    %69 = vector.shape_cast %68 : vector<248x64xf32> to vector<8x31x64xf32>
    %70 = vector.extract_strided_slice %69 {offsets = [0, 0, 0], sizes = [8, 30, 64], strides = [1, 1, 1]} : vector<8x31x64xf32> to vector<8x30x64xf32>
    %71 = vector.shape_cast %70 : vector<8x30x64xf32> to vector<8x10x3x64xf32>
    %cst_14 = arith.constant dense<0xFF800000> : vector<8x10x64xf32>
    %72 = vector.multi_reduction <maximumf>, %71, %cst_14 [2] : vector<8x10x3x64xf32> to vector<8x10x64xf32>
    %cst_15 = arith.constant 0.000000e+00 : f32
    %73 = vector.broadcast %cst_15 : f32 to vector<1x10x64xf32>
    %74 = tpu.concatenate %73, %72, %73 in 0 : vector<1x10x64xf32>, vector<8x10x64xf32>, vector<1x10x64xf32> -> vector<10x10x64xf32>
    %75 = vector.extract_strided_slice %74 {offsets = [0, 0, 0], sizes = [8, 5, 64], strides = [1, 1, 1]} : vector<10x10x64xf32> to vector<8x5x64xf32>
    %76 = vector.shape_cast %75 : vector<8x5x64xf32> to vector<40x64xf32>
    %77 = vector.extract_strided_slice %74 {offsets = [0, 1, 0], sizes = [8, 5, 64], strides = [1, 1, 1]} : vector<10x10x64xf32> to vector<8x5x64xf32>
    %78 = vector.shape_cast %77 : vector<8x5x64xf32> to vector<40x64xf32>
    %79 = vector.extract_strided_slice %74 {offsets = [0, 2, 0], sizes = [8, 5, 64], strides = [1, 1, 1]} : vector<10x10x64xf32> to vector<8x5x64xf32>
    %80 = vector.shape_cast %79 : vector<8x5x64xf32> to vector<40x64xf32>
    %81 = vector.extract_strided_slice %74 {offsets = [0, 3, 0], sizes = [8, 5, 64], strides = [1, 1, 1]} : vector<10x10x64xf32> to vector<8x5x64xf32>
    %82 = vector.shape_cast %81 : vector<8x5x64xf32> to vector<40x64xf32>
    %83 = vector.extract_strided_slice %74 {offsets = [0, 4, 0], sizes = [8, 5, 64], strides = [1, 1, 1]} : vector<10x10x64xf32> to vector<8x5x64xf32>
    %84 = vector.shape_cast %83 : vector<8x5x64xf32> to vector<40x64xf32>
    %85 = vector.extract_strided_slice %74 {offsets = [0, 5, 0], sizes = [8, 5, 64], strides = [1, 1, 1]} : vector<10x10x64xf32> to vector<8x5x64xf32>
    %86 = vector.shape_cast %85 : vector<8x5x64xf32> to vector<40x64xf32>
    %87 = vector.extract_strided_slice %74 {offsets = [1, 0, 0], sizes = [8, 5, 64], strides = [1, 1, 1]} : vector<10x10x64xf32> to vector<8x5x64xf32>
    %88 = vector.shape_cast %87 : vector<8x5x64xf32> to vector<40x64xf32>
    %89 = vector.extract_strided_slice %74 {offsets = [1, 1, 0], sizes = [8, 5, 64], strides = [1, 1, 1]} : vector<10x10x64xf32> to vector<8x5x64xf32>
    %90 = vector.shape_cast %89 : vector<8x5x64xf32> to vector<40x64xf32>
    %91 = vector.extract_strided_slice %74 {offsets = [1, 2, 0], sizes = [8, 5, 64], strides = [1, 1, 1]} : vector<10x10x64xf32> to vector<8x5x64xf32>
    %92 = vector.shape_cast %91 : vector<8x5x64xf32> to vector<40x64xf32>
    %93 = vector.extract_strided_slice %74 {offsets = [1, 3, 0], sizes = [8, 5, 64], strides = [1, 1, 1]} : vector<10x10x64xf32> to vector<8x5x64xf32>
    %94 = vector.shape_cast %93 : vector<8x5x64xf32> to vector<40x64xf32>
    %95 = vector.extract_strided_slice %74 {offsets = [1, 4, 0], sizes = [8, 5, 64], strides = [1, 1, 1]} : vector<10x10x64xf32> to vector<8x5x64xf32>
    %96 = vector.shape_cast %95 : vector<8x5x64xf32> to vector<40x64xf32>
    %97 = vector.extract_strided_slice %74 {offsets = [1, 5, 0], sizes = [8, 5, 64], strides = [1, 1, 1]} : vector<10x10x64xf32> to vector<8x5x64xf32>
    %98 = vector.shape_cast %97 : vector<8x5x64xf32> to vector<40x64xf32>
    %99 = vector.extract_strided_slice %74 {offsets = [2, 0, 0], sizes = [8, 5, 64], strides = [1, 1, 1]} : vector<10x10x64xf32> to vector<8x5x64xf32>
    %100 = vector.shape_cast %99 : vector<8x5x64xf32> to vector<40x64xf32>
    %101 = vector.extract_strided_slice %74 {offsets = [2, 1, 0], sizes = [8, 5, 64], strides = [1, 1, 1]} : vector<10x10x64xf32> to vector<8x5x64xf32>
    %102 = vector.shape_cast %101 : vector<8x5x64xf32> to vector<40x64xf32>
    %103 = vector.extract_strided_slice %74 {offsets = [2, 2, 0], sizes = [8, 5, 64], strides = [1, 1, 1]} : vector<10x10x64xf32> to vector<8x5x64xf32>
    %104 = vector.shape_cast %103 : vector<8x5x64xf32> to vector<40x64xf32>
    %105 = vector.extract_strided_slice %74 {offsets = [2, 3, 0], sizes = [8, 5, 64], strides = [1, 1, 1]} : vector<10x10x64xf32> to vector<8x5x64xf32>
    %106 = vector.shape_cast %105 : vector<8x5x64xf32> to vector<40x64xf32>
    %107 = vector.extract_strided_slice %74 {offsets = [2, 4, 0], sizes = [8, 5, 64], strides = [1, 1, 1]} : vector<10x10x64xf32> to vector<8x5x64xf32>
    %108 = vector.shape_cast %107 : vector<8x5x64xf32> to vector<40x64xf32>
    %109 = vector.extract_strided_slice %74 {offsets = [2, 5, 0], sizes = [8, 5, 64], strides = [1, 1, 1]} : vector<10x10x64xf32> to vector<8x5x64xf32>
    %110 = vector.shape_cast %109 : vector<8x5x64xf32> to vector<40x64xf32>
    %111 = tpu.concatenate %76, %78, %80, %82, %84, %86, %88, %90, %92, %94, %96, %98, %100, %102, %104, %106 in 1 : vector<40x64xf32>, vector<40x64xf32>, vector<40x64xf32>, vector<40x64xf32>, vector<40x64xf32>, vector<40x64xf32>, vector<40x64xf32>, vector<40x64xf32>, vector<40x64xf32>, vector<40x64xf32>, vector<40x64xf32>, vector<40x64xf32>, vector<40x64xf32>, vector<40x64xf32>, vector<40x64xf32>, vector<40x64xf32> -> vector<40x1024xf32>
    %112 = tpu.concatenate %108, %110 in 1 : vector<40x64xf32>, vector<40x64xf32> -> vector<40x128xf32>
    %113 = tpu.concatenate %111, %112 in 1 : vector<40x1024xf32>, vector<40x128xf32> -> vector<40x1152xf32>
    %c0_16 = arith.constant 0 : index
    %c0_17 = arith.constant 0 : index
    %114 = vector.load %arg6[%c0_16, %c0_17] : memref<1152x64xf32, #tpu.memory_space<vmem>>, vector<1152x64xf32>
    %cst_18 = arith.constant dense<0.000000e+00> : vector<40x64xf32>
    %115 = tpu.matmul %113, %114, %cst_18 {dimension_numbers = #tpu.dot_dimension_numbers<[1], [0], [0], [1], [0, 0, 1, 1], [], []>} : vector<40x1152xf32>, vector<1152x64xf32>, vector<40x64xf32> -> vector<40x64xf32>
    %c0_19 = arith.constant 0 : index
    %c0_20 = arith.constant 0 : index
    %116 = vector.load %arg7[%c0_19, %c0_20] : memref<1x64xf32, #tpu.memory_space<vmem>>, vector<1x64xf32>
    %117 = vector.broadcast %116 : vector<1x64xf32> to vector<40x64xf32>
    %118 = arith.addf %115, %117 : vector<40x64xf32>
    %cst_21 = arith.constant 0.000000e+00 : f32
    %119 = vector.broadcast %cst_21 : f32 to vector<40x64xf32>
    %120 = arith.maximumf %118, %119 : vector<40x64xf32>
    %121 = vector.shape_cast %120 : vector<40x64xf32> to vector<8x5x64xf32>
    %122 = vector.extract_strided_slice %121 {offsets = [0, 0, 0], sizes = [8, 3, 64], strides = [1, 1, 1]} : vector<8x5x64xf32> to vector<8x3x64xf32>
    %123 = vector.shape_cast %122 : vector<8x3x64xf32> to vector<8x1x3x64xf32>
    %cst_22 = arith.constant dense<0xFF800000> : vector<8x1x64xf32>
    %124 = vector.multi_reduction <maximumf>, %123, %cst_22 [2] : vector<8x1x3x64xf32> to vector<8x1x64xf32>
    %cst_23 = arith.constant dense<0.000000e+00> : vector<8x64xf32>
    %125 = vector.multi_reduction <add>, %124, %cst_23 [1] : vector<8x1x64xf32> to vector<8x64xf32>
    %cst_24 = arith.constant 1.000000e+00 : f32
    %126 = vector.broadcast %cst_24 : f32 to vector<8x64xf32>
    %127 = arith.divf %125, %126 : vector<8x64xf32>
    %c0_25 = arith.constant 0 : index
    %c0_26 = arith.constant 0 : index
    %c0_27 = arith.constant 0 : index
    %128 = vector.load %arg8[%c0_25, %c0_26, %c0_27] : memref<1x8x64xf32, #tpu.memory_space<vmem>>, vector<1x8x64xf32>
    %129 = vector.shape_cast %128 : vector<1x8x64xf32> to vector<8x64xf32>
    %130 = vector.shape_cast %127 : vector<8x64xf32> to vector<1x8x64xf32>
    tpu.vector_store %arg8[%c0_25, %c0_26, %c0_27], %130 {strides = array<i32>} : memref<1x8x64xf32, #tpu.memory_space<vmem>>, vector<1x8x64xf32>,
    return
  }
  func.func @transform_0(%arg0: i32) -> (i32, i32, i32) {
    %c0_i32 = arith.constant 0 : i32
    %c0_i32_0 = arith.constant 0 : i32
    %c0_i32_1 = arith.constant 0 : i32
    return %arg0, %c0_i32, %c0_i32_0 : i32, i32, i32
  }
  func.func @transform_1(%arg0: i32) -> (i32, i32) {
    %c0_i32 = arith.constant 0 : i32
    %c0_i32_0 = arith.constant 0 : i32
    %c0_i32_1 = arith.constant 0 : i32
    return %c0_i32, %c0_i32_0 : i32, i32
  }
  func.func @transform_2(%arg0: i32) -> (i32, i32) {
    %c0_i32 = arith.constant 0 : i32
    %c0_i32_0 = arith.constant 0 : i32
    %c0_i32_1 = arith.constant 0 : i32
    return %c0_i32, %c0_i32_0 : i32, i32
  }
  func.func @transform_3(%arg0: i32) -> (i32, i32) {
    %c0_i32 = arith.constant 0 : i32
    %c0_i32_0 = arith.constant 0 : i32
    %c0_i32_1 = arith.constant 0 : i32
    return %c0_i32, %c0_i32_0 : i32, i32
  }
  func.func @transform_4(%arg0: i32) -> (i32, i32) {
    %c0_i32 = arith.constant 0 : i32
    %c0_i32_0 = arith.constant 0 : i32
    %c0_i32_1 = arith.constant 0 : i32
    return %c0_i32, %c0_i32_0 : i32, i32
  }
  func.func @transform_5(%arg0: i32) -> (i32, i32) {
    %c0_i32 = arith.constant 0 : i32
    %c0_i32_0 = arith.constant 0 : i32
    %c0_i32_1 = arith.constant 0 : i32
    return %c0_i32, %c0_i32_0 : i32, i32
  }
  func.func @transform_6(%arg0: i32) -> (i32, i32) {
    %c0_i32 = arith.constant 0 : i32
    %c0_i32_0 = arith.constant 0 : i32
    %c0_i32_1 = arith.constant 0 : i32
    return %c0_i32, %c0_i32_0 : i32, i32
  }
  func.func @transform_7(%arg0: i32) -> (i32, i32, i32) {
    %c0_i32 = arith.constant 0 : i32
    %c0_i32_0 = arith.constant 0 : i32
    %c0_i32_1 = arith.constant 0 : i32
    return %arg0, %c0_i32, %c0_i32_0 : i32, i32, i32
  }
}

</mosaic_0001>

<llo_original>
// kernel: tile.8
$region0: #{tile.8}
  #allocation0 [shape = 's32[1]{0}', space=sflag, size = 0x4, scoped, tag = 'scoped memory for tile.8']
  %s0 = inlined_call_operand.vmem [shape: f32[32], index: 0, kind: input, shape index: {}]
  %s1 = inlined_call_operand.vmem [shape: f32[8,32], index: 1, kind: output, shape index: {}]
  // Predicated region
  $region2: #{tile.8} parent=0 // pred_check
    _
  $region3: #{tile.8} parent=0 // pred_check_branch
    %3 = sbr.rel (0) target = $region5
  $region4: #{tile.8} parent=0 // pred_region
    _
  $region5: #{tile.8} parent=0 // pred_fallthru
    _
  %v4 = vld [vmem:[%s0] ss:$0 sm:$0xff]
  %5 = vst [vmem:[%s1] sm:$0xff] %v4

// kernel: tile.0
$region0: #{tile.0}
  %s0 = inlined_call_operand.vmem [shape: f32[8,32], index: 0, kind: input, shape index: {}]
  %s1 = inlined_call_operand.vmem [shape: f32[256,1], index: 1, kind: output, shape index: {}]
  %v2 = vld [vmem:[%s0] sm:$0xff]
  %vm3 = vcmask 7168
  %4 = vst.msk [vmem:[%s1] sm:$0x1] %vm3, %v2
  %s5 = scalar_lea.vmem %s1, 31
  %6 = vst.msk [vmem:[%s5] sm:$0x2] %vm3, %v2
  %s7 = scalar_lea.vmem %s1, 62
  %8 = vst.msk [vmem:[%s7] sm:$0x4] %vm3, %v2
  %s9 = scalar_lea.vmem %s1, 93
  %10 = vst.msk [vmem:[%s9] sm:$0x8] %vm3, %v2
  %s11 = scalar_lea.vmem %s1, 124
  %12 = vst.msk [vmem:[%s11] sm:$0x10] %vm3, %v2
  %s13 = scalar_lea.vmem %s1, 155
  %14 = vst.msk [vmem:[%s13] sm:$0x20] %vm3, %v2
  %s15 = scalar_lea.vmem %s1, 186
  %16 = vst.msk [vmem:[%s15] sm:$0x40] %vm3, %v2
  %s17 = scalar_lea.vmem %s1, 217
  %18 = vst.msk [vmem:[%s17] sm:$0x80] %vm3, %v2
  %v19 = vld [vmem:[%s0] sm:$0xff]
  %20 = vrot.lane.b32.xlu0 %v19, 127
  %v21 = vpop.permute.xlu0 %20
  %vm22 = vcmask 7168
  %s23 = scalar_lea.vmem %s1, 1
  %24 = vst.msk [vmem:[%s23] sm:$0x1] %vm22, %v21
  %s25 = scalar_lea.vmem %s1, 32
  %26 = vst.msk [vmem:[%s25] sm:$0x2] %vm22, %v21
  %s27 = scalar_lea.vmem %s1, 63
  %28 = vst.msk [vmem:[%s27] sm:$0x4] %vm22, %v21
  %s29 = scalar_lea.vmem %s1, 94
  %30 = vst.msk [vmem:[%s29] sm:$0x8] %vm22, %v21
  %s31 = scalar_lea.vmem %s1, 125
  %32 = vst.msk [vmem:[%s31] sm:$0x10] %vm22, %v21
  %s33 = scalar_lea.vmem %s1, 156
  %34 = vst.msk [vmem:[%s33] sm:$0x20] %vm22, %v21
  %s35 = scalar_lea.vmem %s1, 187
  %36 = vst.msk [vmem:[%s35] sm:$0x40] %vm22, %v21
  %s37 = scalar_lea.vmem %s1, 218
  %38 = vst.msk [vmem:[%s37] sm:$0x80] %vm22, %v21
  %v39 = vld [vmem:[%s0] sm:$0xff]
  %40 = vrot.lane.b32.xlu0 %v39, 126
  %v41 = vpop.permute.xlu0 %40
  %vm42 = vcmask 7168
  %s43 = scalar_lea.vmem %s1, 2
  %44 = vst.msk [vmem:[%s43] sm:$0x1] %vm42, %v41
  %s45 = scalar_lea.vmem %s1, 33
  %46 = vst.msk [vmem:[%s45] sm:$0x2] %vm42, %v41
  %s47 = scalar_lea.vmem %s1, 64
  %48 = vst.msk [vmem:[%s47] sm:$0x4] %vm42, %v41
  %s49 = scalar_lea.vmem %s1, 95
  %50 = vst.msk [vmem:[%s49] sm:$0x8] %vm42, %v41
  %s51 = scalar_lea.vmem %s1, 126
  %52 = vst.msk [vmem:[%s51] sm:$0x10] %vm42, %v41
  %s53 = scalar_lea.vmem %s1, 157
  %54 = vst.msk [vmem:[%s53] sm:$0x20] %vm42, %v41
  %s55 = scalar_lea.vmem %s1, 188
  %56 = vst.msk [vmem:[%s55] sm:$0x40] %vm42, %v41
  %s57 = scalar_lea.vmem %s1, 219
  %58 = vst.msk [vmem:[%s57] sm:$0x80] %vm42, %v41
  %v59 = vld [vmem:[%s0] sm:$0xff]
  %60 = vrot.lane.b32.xlu0 %v59, 125
  %v61 = vpop.permute.xlu0 %60
  %vm62 = vcmask 7168
  %s63 = scalar_lea.vmem %s1, 3
  %64 = vst.msk [vmem:[%s63] sm:$0x1] %vm62, %v61
  %s65 = scalar_lea.vmem %s1, 34
  %66 = vst.msk [vmem:[%s65] sm:$0x2] %vm62, %v61
  %s67 = scalar_lea.vmem %s1, 65
  %68 = vst.msk [vmem:[%s67] sm:$0x4] %vm62, %v61
  %s69 = scalar_lea.vmem %s1, 96
  %70 = vst.msk [vmem:[%s69] sm:$0x8] %vm62, %v61
  %s71 = scalar_lea.vmem %s1, 127
  %72 = vst.msk [vmem:[%s71] sm:$0x10] %vm62, %v61
  %s73 = scalar_lea.vmem %s1, 158
  %74 = vst.msk [vmem:[%s73] sm:$0x20] %vm62, %v61
  %s75 = scalar_lea.vmem %s1, 189
  %76 = vst.msk [vmem:[%s75] sm:$0x40] %vm62, %v61
  %s77 = scalar_lea.vmem %s1, 220
  %78 = vst.msk [vmem:[%s77] sm:$0x80] %vm62, %v61
  %v79 = vld [vmem:[%s0] sm:$0xff]
  %80 = vrot.lane.b32.xlu0 %v79, 124
  %v81 = vpop.permute.xlu0 %80
  %vm82 = vcmask 7168
  %s83 = scalar_lea.vmem %s1, 4
  %84 = vst.msk [vmem:[%s83] sm:$0x1] %vm82, %v81
  %s85 = scalar_lea.vmem %s1, 35
  %86 = vst.msk [vmem:[%s85] sm:$0x2] %vm82, %v81
  %s87 = scalar_lea.vmem %s1, 66
  %88 = vst.msk [vmem:[%s87] sm:$0x4] %vm82, %v81
  %s89 = scalar_lea.vmem %s1, 97
  %90 = vst.msk [vmem:[%s89] sm:$0x8] %vm82, %v81
  %s91 = scalar_lea.vmem %s1, 128
  %92 = vst.msk [vmem:[%s91] sm:$0x10] %vm82, %v81
  %s93 = scalar_lea.vmem %s1, 159
  %94 = vst.msk [vmem:[%s93] sm:$0x20] %vm82, %v81
  %s95 = scalar_lea.vmem %s1, 190
  %96 = vst.msk [vmem:[%s95] sm:$0x40] %vm82, %v81
  %s97 = scalar_lea.vmem %s1, 221
  %98 = vst.msk [vmem:[%s97] sm:$0x80] %vm82, %v81
  %v99 = vld [vmem:[%s0] sm:$0xff]
  %100 = vrot.lane.b32.xlu0 %v99, 123
  %v101 = vpop.permute.xlu0 %100
  %vm102 = vcmask 7168
  %s103 = scalar_lea.vmem %s1, 5
  %104 = vst.msk [vmem:[%s103] sm:$0x1] %vm102, %v101
  %s105 = scalar_lea.vmem %s1, 36
  %106 = vst.msk [vmem:[%s105] sm:$0x2] %vm102, %v101
  %s107 = scalar_lea.vmem %s1, 67
  %108 = vst.msk [vmem:[%s107] sm:$0x4] %vm102, %v101
  %s109 = scalar_lea.vmem %s1, 98
  %110 = vst.msk [vmem:[%s109] sm:$0x8] %vm102, %v101
  %s111 = scalar_lea.vmem %s1, 129
  %112 = vst.msk [vmem:[%s111] sm:$0x10] %vm102, %v101
  %s113 = scalar_lea.vmem %s1, 160
  %114 = vst.msk [vmem:[%s113] sm:$0x20] %vm102, %v101
  %s115 = scalar_lea.vmem %s1, 191
  %116 = vst.msk [vmem:[%s115] sm:$0x40] %vm102, %v101
  %s117 = scalar_lea.vmem %s1, 222
  %118 = vst.msk [vmem:[%s117] sm:$0x80] %vm102, %v101
  %v119 = vld [vmem:[%s0] sm:$0xff]
  %120 = vrot.lane.b32.xlu0 %v119, 122
  %v121 = vpop.permute.xlu0 %120
  %vm122 = vcmask 7168
  %s123 = scalar_lea.vmem %s1, 6
  %124 = vst.msk [vmem:[%s123] sm:$0x1] %vm122, %v121
  %s125 = scalar_lea.vmem %s1, 37
  %126 = vst.msk [vmem:[%s125] sm:$0x2] %vm122, %v121
  %s127 = scalar_lea.vmem %s1, 68
  %128 = vst.msk [vmem:[%s127] sm:$0x4] %vm122, %v121
  %s129 = scalar_lea.vmem %s1, 99
  %130 = vst.msk [vmem:[%s129] sm:$0x8] %vm122, %v121
  %s131 = scalar_lea.vmem %s1, 130
  %132 = vst.msk [vmem:[%s131] sm:$0x10] %vm122, %v121
  %s133 = scalar_lea.vmem %s1, 161
  %134 = vst.msk [vmem:[%s133] sm:$0x20] %vm122, %v121
  %s135 = scalar_lea.vmem %s1, 192
  %136 = vst.msk [vmem:[%s135] sm:$0x40] %vm122, %v121
  %s137 = scalar_lea.vmem %s1, 223
  %138 = vst.msk [vmem:[%s137] sm:$0x80] %vm122, %v121
  %v139 = vld [vmem:[%s0] sm:$0xff]
  %140 = vrot.lane.b32.xlu0 %v139, 121
  %v141 = vpop.permute.xlu0 %140
  %vm142 = vcmask 7168
  %s143 = scalar_lea.vmem %s1, 7
  %144 = vst.msk [vmem:[%s143] sm:$0x1] %vm142, %v141
  %s145 = scalar_lea.vmem %s1, 38
  %146 = vst.msk [vmem:[%s145] sm:$0x2] %vm142, %v141
  %s147 = scalar_lea.vmem %s1, 69
  %148 = vst.msk [vmem:[%s147] sm:$0x4] %vm142, %v141
  %s149 = scalar_lea.vmem %s1, 100
  %150 = vst.msk [vmem:[%s149] sm:$0x8] %vm142, %v141
  %s151 = scalar_lea.vmem %s1, 131
  %152 = vst.msk [vmem:[%s151] sm:$0x10] %vm142, %v141
  %s153 = scalar_lea.vmem %s1, 162
  %154 = vst.msk [vmem:[%s153] sm:$0x20] %vm142, %v141
  %s155 = scalar_lea.vmem %s1, 193
  %156 = vst.msk [vmem:[%s155] sm:$0x40] %vm142, %v141
  %s157 = scalar_lea.vmem %s1, 224
  %158 = vst.msk [vmem:[%s157] sm:$0x80] %vm142, %v141
  %v159 = vld [vmem:[%s0] sm:$0xff]
  %160 = vrot.lane.b32.xlu0 %v159, 120
  %v161 = vpop.permute.xlu0 %160
  %vm162 = vcmask 7168
  %s163 = scalar_lea.vmem %s1, 8
  %164 = vst.msk [vmem:[%s163] sm:$0x1] %vm162, %v161
  %s165 = scalar_lea.vmem %s1, 39
  %166 = vst.msk [vmem:[%s165] sm:$0x2] %vm162, %v161
  %s167 = scalar_lea.vmem %s1, 70
  %168 = vst.msk [vmem:[%s167] sm:$0x4] %vm162, %v161
  %s169 = scalar_lea.vmem %s1, 101
  %170 = vst.msk [vmem:[%s169] sm:$0x8] %vm162, %v161
  %s171 = scalar_lea.vmem %s1, 132
  %172 = vst.msk [vmem:[%s171] sm:$0x10] %vm162, %v161
  %s173 = scalar_lea.vmem %s1, 163
  %174 = vst.msk [vmem:[%s173] sm:$0x20] %vm162, %v161
  %s175 = scalar_lea.vmem %s1, 194
  %176 = vst.msk [vmem:[%s175] sm:$0x40] %vm162, %v161
  %s177 = scalar_lea.vmem %s1, 225
  %178 = vst.msk [vmem:[%s177] sm:$0x80] %vm162, %v161
  %v179 = vld [vmem:[%s0] sm:$0xff]
  %180 = vrot.lane.b32.xlu0 %v179, 119
  %v181 = vpop.permute.xlu0 %180
  %vm182 = vcmask 7168
  %s183 = scalar_lea.vmem %s1, 9
  %184 = vst.msk [vmem:[%s183] sm:$0x1] %vm182, %v181
  %s185 = scalar_lea.vmem %s1, 40
  %186 = vst.msk [vmem:[%s185] sm:$0x2] %vm182, %v181
  %s187 = scalar_lea.vmem %s1, 71
  %188 = vst.msk [vmem:[%s187] sm:$0x4] %vm182, %v181
  %s189 = scalar_lea.vmem %s1, 102
  %190 = vst.msk [vmem:[%s189] sm:$0x8] %vm182, %v181
  %s191 = scalar_lea.vmem %s1, 133
  %192 = vst.msk [vmem:[%s191] sm:$0x10] %vm182, %v181
  %s193 = scalar_lea.vmem %s1, 164
  %194 = vst.msk [vmem:[%s193] sm:$0x20] %vm182, %v181
  %s195 = scalar_lea.vmem %s1, 195
  %196 = vst.msk [vmem:[%s195] sm:$0x40] %vm182, %v181
  %s197 = scalar_lea.vmem %s1, 226
  %198 = vst.msk [vmem:[%s197] sm:$0x80] %vm182, %v181
  %v199 = vld [vmem:[%s0] sm:$0xff]
  %200 = vrot.lane.b32.xlu0 %v199, 118
  %v201 = vpop.permute.xlu0 %200
  %vm202 = vcmask 7168
  %s203 = scalar_lea.vmem %s1, 10
  %204 = vst.msk [vmem:[%s203] sm:$0x1] %vm202, %v201
  %s205 = scalar_lea.vmem %s1, 41
  %206 = vst.msk [vmem:[%s205] sm:$0x2] %vm202, %v201
  %s207 = scalar_lea.vmem %s1, 72
  %208 = vst.msk [vmem:[%s207] sm:$0x4] %vm202, %v201
  %s209 = scalar_lea.vmem %s1, 103
  %210 = vst.msk [vmem:[%s209] sm:$0x8] %vm202, %v201
  %s211 = scalar_lea.vmem %s1, 134
  %212 = vst.msk [vmem:[%s211] sm:$0x10] %vm202, %v201
  %s213 = scalar_lea.vmem %s1, 165
  %214 = vst.msk [vmem:[%s213] sm:$0x20] %vm202, %v201
  %s215 = scalar_lea.vmem %s1, 196
  %216 = vst.msk [vmem:[%s215] sm:$0x40] %vm202, %v201
  %s217 = scalar_lea.vmem %s1, 227
  %218 = vst.msk [vmem:[%s217] sm:$0x80] %vm202, %v201
  %v219 = vld [vmem:[%s0] sm:$0xff]
  %220 = vrot.lane.b32.xlu0 %v219, 117
  %v221 = vpop.permute.xlu0 %220
  %vm222 = vcmask 7168
  %s223 = scalar_lea.vmem %s1, 11
  %224 = vst.msk [vmem:[%s223] sm:$0x1] %vm222, %v221
  %s225 = scalar_lea.vmem %s1, 42
  %226 = vst.msk [vmem:[%s225] sm:$0x2] %vm222, %v221
  %s227 = scalar_lea.vmem %s1, 73
  %228 = vst.msk [vmem:[%s227] sm:$0x4] %vm222, %v221
  %s229 = scalar_lea.vmem %s1, 104
  %230 = vst.msk [vmem:[%s229] sm:$0x8] %vm222, %v221
  %s231 = scalar_lea.vmem %s1, 135
  %232 = vst.msk [vmem:[%s231] sm:$0x10] %vm222, %v221
  %s233 = scalar_lea.vmem %s1, 166
  %234 = vst.msk [vmem:[%s233] sm:$0x20] %vm222, %v221
  %s235 = scalar_lea.vmem %s1, 197
  %236 = vst.msk [vmem:[%s235] sm:$0x40] %vm222, %v221
  %s237 = scalar_lea.vmem %s1, 228
  %238 = vst.msk [vmem:[%s237] sm:$0x80] %vm222, %v221
  %v239 = vld [vmem:[%s0] sm:$0xff]
  %240 = vrot.lane.b32.xlu0 %v239, 116
  %v241 = vpop.permute.xlu0 %240
  %vm242 = vcmask 7168
  %s243 = scalar_lea.vmem %s1, 12
  %244 = vst.msk [vmem:[%s243] sm:$0x1] %vm242, %v241
  %s245 = scalar_lea.vmem %s1, 43
  %246 = vst.msk [vmem:[%s245] sm:$0x2] %vm242, %v241
  %s247 = scalar_lea.vmem %s1, 74
  %248 = vst.msk [vmem:[%s247] sm:$0x4] %vm242, %v241
  %s249 = scalar_lea.vmem %s1, 105
  %250 = vst.msk [vmem:[%s249] sm:$0x8] %vm242, %v241
  %s251 = scalar_lea.vmem %s1, 136
  %252 = vst.msk [vmem:[%s251] sm:$0x10] %vm242, %v241
  %s253 = scalar_lea.vmem %s1, 167
  %254 = vst.msk [vmem:[%s253] sm:$0x20] %vm242, %v241
  %s255 = scalar_lea.vmem %s1, 198
  %256 = vst.msk [vmem:[%s255] sm:$0x40] %vm242, %v241
  %s257 = scalar_lea.vmem %s1, 229
  %258 = vst.msk [vmem:[%s257] sm:$0x80] %vm242, %v241
  %v259 = vld [vmem:[%s0] sm:$0xff]
  %260 = vrot.lane.b32.xlu0 %v259, 115
  %v261 = vpop.permute.xlu0 %260
  %vm262 = vcmask 7168
  %s263 = scalar_lea.vmem %s1, 13
  %264 = vst.msk [vmem:[%s263] sm:$0x1] %vm262, %v261
  %s265 = scalar_lea.vmem %s1, 44
  %266 = vst.msk [vmem:[%s265] sm:$0x2] %vm262, %v261
  %s267 = scalar_lea.vmem %s1, 75
  %268 = vst.msk [vmem:[%s267] sm:$0x4] %vm262, %v261
  %s269 = scalar_lea.vmem %s1, 106
  %270 = vst.msk [vmem:[%s269] sm:$0x8] %vm262, %v261
  %s271 = scalar_lea.vmem %s1, 137
  %272 = vst.msk [vmem:[%s271] sm:$0x10] %vm262, %v261
  %s273 = scalar_lea.vmem %s1, 168
  %274 = vst.msk [vmem:[%s273] sm:$0x20] %vm262, %v261
  %s275 = scalar_lea.vmem %s1, 199
  %276 = vst.msk [vmem:[%s275] sm:$0x40] %vm262, %v261
  %s277 = scalar_lea.vmem %s1, 230
  %278 = vst.msk [vmem:[%s277] sm:$0x80] %vm262, %v261
  %v279 = vld [vmem:[%s0] sm:$0xff]
  %280 = vrot.lane.b32.xlu0 %v279, 114
  %v281 = vpop.permute.xlu0 %280
  %vm282 = vcmask 7168
  %s283 = scalar_lea.vmem %s1, 14
  %284 = vst.msk [vmem:[%s283] sm:$0x1] %vm282, %v281
  %s285 = scalar_lea.vmem %s1, 45
  %286 = vst.msk [vmem:[%s285] sm:$0x2] %vm282, %v281
  %s287 = scalar_lea.vmem %s1, 76
  %288 = vst.msk [vmem:[%s287] sm:$0x4] %vm282, %v281
  %s289 = scalar_lea.vmem %s1, 107
  %290 = vst.msk [vmem:[%s289] sm:$0x8] %vm282, %v281
  %s291 = scalar_lea.vmem %s1, 138
  %292 = vst.msk [vmem:[%s291] sm:$0x10] %vm282, %v281
  %s293 = scalar_lea.vmem %s1, 169
  %294 = vst.msk [vmem:[%s293] sm:$0x20] %vm282, %v281
  %s295 = scalar_lea.vmem %s1, 200
  %296 = vst.msk [vmem:[%s295] sm:$0x40] %vm282, %v281
  %s297 = scalar_lea.vmem %s1, 231
  %298 = vst.msk [vmem:[%s297] sm:$0x80] %vm282, %v281
  %v299 = vld [vmem:[%s0] sm:$0xff]
  %300 = vrot.lane.b32.xlu0 %v299, 113
  %v301 = vpop.permute.xlu0 %300
  %vm302 = vcmask 7168
  %s303 = scalar_lea.vmem %s1, 15
  %304 = vst.msk [vmem:[%s303] sm:$0x1] %vm302, %v301
  %s305 = scalar_lea.vmem %s1, 46
  %306 = vst.msk [vmem:[%s305] sm:$0x2] %vm302, %v301
  %s307 = scalar_lea.vmem %s1, 77
  %308 = vst.msk [vmem:[%s307] sm:$0x4] %vm302, %v301
  %s309 = scalar_lea.vmem %s1, 108
  %310 = vst.msk [vmem:[%s309] sm:$0x8] %vm302, %v301
  %s311 = scalar_lea.vmem %s1, 139
  %312 = vst.msk [vmem:[%s311] sm:$0x10] %vm302, %v301
  %s313 = scalar_lea.vmem %s1, 170
  %314 = vst.msk [vmem:[%s313] sm:$0x20] %vm302, %v301
  %s315 = scalar_lea.vmem %s1, 201
  %316 = vst.msk [vmem:[%s315] sm:$0x40] %vm302, %v301
  %s317 = scalar_lea.vmem %s1, 232
  %318 = vst.msk [vmem:[%s317] sm:$0x80] %vm302, %v301
  %v319 = vld [vmem:[%s0] sm:$0xff]
  %320 = vrot.lane.b32.xlu0 %v319, 112
  %v321 = vpop.permute.xlu0 %320
  %vm322 = vcmask 7168
  %s323 = scalar_lea.vmem %s1, 16
  %324 = vst.msk [vmem:[%s323] sm:$0x1] %vm322, %v321
  %s325 = scalar_lea.vmem %s1, 47
  %326 = vst.msk [vmem:[%s325] sm:$0x2] %vm322, %v321
  %s327 = scalar_lea.vmem %s1, 78
  %328 = vst.msk [vmem:[%s327] sm:$0x4] %vm322, %v321
  %s329 = scalar_lea.vmem %s1, 109
  %330 = vst.msk [vmem:[%s329] sm:$0x8] %vm322, %v321
  %s331 = scalar_lea.vmem %s1, 140
  %332 = vst.msk [vmem:[%s331] sm:$0x10] %vm322, %v321
  %s333 = scalar_lea.vmem %s1, 171
  %334 = vst.msk [vmem:[%s333] sm:$0x20] %vm322, %v321
  %s335 = scalar_lea.vmem %s1, 202
  %336 = vst.msk [vmem:[%s335] sm:$0x40] %vm322, %v321
  %s337 = scalar_lea.vmem %s1, 233
  %338 = vst.msk [vmem:[%s337] sm:$0x80] %vm322, %v321
  %v339 = vld [vmem:[%s0] sm:$0xff]
  %340 = vrot.lane.b32.xlu0 %v339, 111
  %v341 = vpop.permute.xlu0 %340
  %vm342 = vcmask 7168
  %s343 = scalar_lea.vmem %s1, 17
  %344 = vst.msk [vmem:[%s343] sm:$0x1] %vm342, %v341
  %s345 = scalar_lea.vmem %s1, 48
  %346 = vst.msk [vmem:[%s345] sm:$0x2] %vm342, %v341
  %s347 = scalar_lea.vmem %s1, 79
  %348 = vst.msk [vmem:[%s347] sm:$0x4] %vm342, %v341
  %s349 = scalar_lea.vmem %s1, 110
  %350 = vst.msk [vmem:[%s349] sm:$0x8] %vm342, %v341
  %s351 = scalar_lea.vmem %s1, 141
  %352 = vst.msk [vmem:[%s351] sm:$0x10] %vm342, %v341
  %s353 = scalar_lea.vmem %s1, 172
  %354 = vst.msk [vmem:[%s353] sm:$0x20] %vm342, %v341
  %s355 = scalar_lea.vmem %s1, 203
  %356 = vst.msk [vmem:[%s355] sm:$0x40] %vm342, %v341
  %s357 = scalar_lea.vmem %s1, 234
  %358 = vst.msk [vmem:[%s357] sm:$0x80] %vm342, %v341
  %v359 = vld [vmem:[%s0] sm:$0xff]
  %360 = vrot.lane.b32.xlu0 %v359, 110
  %v361 = vpop.permute.xlu0 %360
  %vm362 = vcmask 7168
  %s363 = scalar_lea.vmem %s1, 18
  %364 = vst.msk [vmem:[%s363] sm:$0x1] %vm362, %v361
  %s365 = scalar_lea.vmem %s1, 49
  %366 = vst.msk [vmem:[%s365] sm:$0x2] %vm362, %v361
  %s367 = scalar_lea.vmem %s1, 80
  %368 = vst.msk [vmem:[%s367] sm:$0x4] %vm362, %v361
  %s369 = scalar_lea.vmem %s1, 111
  %370 = vst.msk [vmem:[%s369] sm:$0x8] %vm362, %v361
  %s371 = scalar_lea.vmem %s1, 142
  %372 = vst.msk [vmem:[%s371] sm:$0x10] %vm362, %v361
  %s373 = scalar_lea.vmem %s1, 173
  %374 = vst.msk [vmem:[%s373] sm:$0x20] %vm362, %v361
  %s375 = scalar_lea.vmem %s1, 204
  %376 = vst.msk [vmem:[%s375] sm:$0x40] %vm362, %v361
  %s377 = scalar_lea.vmem %s1, 235
  %378 = vst.msk [vmem:[%s377] sm:$0x80] %vm362, %v361
  %v379 = vld [vmem:[%s0] sm:$0xff]
  %380 = vrot.lane.b32.xlu0 %v379, 109
  %v381 = vpop.permute.xlu0 %380
  %vm382 = vcmask 7168
  %s383 = scalar_lea.vmem %s1, 19
  %384 = vst.msk [vmem:[%s383] sm:$0x1] %vm382, %v381
  %s385 = scalar_lea.vmem %s1, 50
  %386 = vst.msk [vmem:[%s385] sm:$0x2] %vm382, %v381
  %s387 = scalar_lea.vmem %s1, 81
  %388 = vst.msk [vmem:[%s387] sm:$0x4] %vm382, %v381
  %s389 = scalar_lea.vmem %s1, 112
  %390 = vst.msk [vmem:[%s389] sm:$0x8] %vm382, %v381
  %s391 = scalar_lea.vmem %s1, 143
  %392 = vst.msk [vmem:[%s391] sm:$0x10] %vm382, %v381
  %s393 = scalar_lea.vmem %s1, 174
  %394 = vst.msk [vmem:[%s393] sm:$0x20] %vm382, %v381
  %s395 = scalar_lea.vmem %s1, 205
  %396 = vst.msk [vmem:[%s395] sm:$0x40] %vm382, %v381
  %s397 = scalar_lea.vmem %s1, 236
  %398 = vst.msk [vmem:[%s397] sm:$0x80] %vm382, %v381
  %v399 = vld [vmem:[%s0] sm:$0xff]
  %400 = vrot.lane.b32.xlu0 %v399, 108
  %v401 = vpop.permute.xlu0 %400
  %vm402 = vcmask 7168
  %s403 = scalar_lea.vmem %s1, 20
  %404 = vst.msk [vmem:[%s403] sm:$0x1] %vm402, %v401
  %s405 = scalar_lea.vmem %s1, 51
  %406 = vst.msk [vmem:[%s405] sm:$0x2] %vm402, %v401
  %s407 = scalar_lea.vmem %s1, 82
  %408 = vst.msk [vmem:[%s407] sm:$0x4] %vm402, %v401
  %s409 = scalar_lea.vmem %s1, 113
  %410 = vst.msk [vmem:[%s409] sm:$0x8] %vm402, %v401
  %s411 = scalar_lea.vmem %s1, 144
  %412 = vst.msk [vmem:[%s411] sm:$0x10] %vm402, %v401
  %s413 = scalar_lea.vmem %s1, 175
  %414 = vst.msk [vmem:[%s413] sm:$0x20] %vm402, %v401
  %s415 = scalar_lea.vmem %s1, 206
  %416 = vst.msk [vmem:[%s415] sm:$0x40] %vm402, %v401
  %s417 = scalar_lea.vmem %s1, 237
  %418 = vst.msk [vmem:[%s417] sm:$0x80] %vm402, %v401
  %v419 = vld [vmem:[%s0] sm:$0xff]
  %420 = vrot.lane.b32.xlu0 %v419, 107
  %v421 = vpop.permute.xlu0 %420
  %vm422 = vcmask 7168
  %s423 = scalar_lea.vmem %s1, 21
  %424 = vst.msk [vmem:[%s423] sm:$0x1] %vm422, %v421
  %s425 = scalar_lea.vmem %s1, 52
  %426 = vst.msk [vmem:[%s425] sm:$0x2] %vm422, %v421
  %s427 = scalar_lea.vmem %s1, 83
  %428 = vst.msk [vmem:[%s427] sm:$0x4] %vm422, %v421
  %s429 = scalar_lea.vmem %s1, 114
  %430 = vst.msk [vmem:[%s429] sm:$0x8] %vm422, %v421
  %s431 = scalar_lea.vmem %s1, 145
  %432 = vst.msk [vmem:[%s431] sm:$0x10] %vm422, %v421
  %s433 = scalar_lea.vmem %s1, 176
  %434 = vst.msk [vmem:[%s433] sm:$0x20] %vm422, %v421
  %s435 = scalar_lea.vmem %s1, 207
  %436 = vst.msk [vmem:[%s435] sm:$0x40] %vm422, %v421
  %s437 = scalar_lea.vmem %s1, 238
  %438 = vst.msk [vmem:[%s437] sm:$0x80] %vm422, %v421
  %v439 = vld [vmem:[%s0] sm:$0xff]
  %440 = vrot.lane.b32.xlu0 %v439, 106
  %v441 = vpop.permute.xlu0 %440
  %vm442 = vcmask 7168
  %s443 = scalar_lea.vmem %s1, 22
  %444 = vst.msk [vmem:[%s443] sm:$0x1] %vm442, %v441
  %s445 = scalar_lea.vmem %s1, 53
  %446 = vst.msk [vmem:[%s445] sm:$0x2] %vm442, %v441
  %s447 = scalar_lea.vmem %s1, 84
  %448 = vst.msk [vmem:[%s447] sm:$0x4] %vm442, %v441
  %s449 = scalar_lea.vmem %s1, 115
  %450 = vst.msk [vmem:[%s449] sm:$0x8] %vm442, %v441
  %s451 = scalar_lea.vmem %s1, 146
  %452 = vst.msk [vmem:[%s451] sm:$0x10] %vm442, %v441
  %s453 = scalar_lea.vmem %s1, 177
  %454 = vst.msk [vmem:[%s453] sm:$0x20] %vm442, %v441
  %s455 = scalar_lea.vmem %s1, 208
  %456 = vst.msk [vmem:[%s455] sm:$0x40] %vm442, %v441
  %s457 = scalar_lea.vmem %s1, 239
  %458 = vst.msk [vmem:[%s457] sm:$0x80] %vm442, %v441
  %v459 = vld [vmem:[%s0] sm:$0xff]
  %460 = vrot.lane.b32.xlu0 %v459, 105
  %v461 = vpop.permute.xlu0 %460
  %vm462 = vcmask 7168
  %s463 = scalar_lea.vmem %s1, 23
  %464 = vst.msk [vmem:[%s463] sm:$0x1] %vm462, %v461
  %s465 = scalar_lea.vmem %s1, 54
  %466 = vst.msk [vmem:[%s465] sm:$0x2] %vm462, %v461
  %s467 = scalar_lea.vmem %s1, 85
  %468 = vst.msk [vmem:[%s467] sm:$0x4] %vm462, %v461
  %s469 = scalar_lea.vmem %s1, 116
  %470 = vst.msk [vmem:[%s469] sm:$0x8] %vm462, %v461
  %s471 = scalar_lea.vmem %s1, 147
  %472 = vst.msk [vmem:[%s471] sm:$0x10] %vm462, %v461
  %s473 = scalar_lea.vmem %s1, 178
  %474 = vst.msk [vmem:[%s473] sm:$0x20] %vm462, %v461
  %s475 = scalar_lea.vmem %s1, 209
  %476 = vst.msk [vmem:[%s475] sm:$0x40] %vm462, %v461
  %s477 = scalar_lea.vmem %s1, 240
  %478 = vst.msk [vmem:[%s477] sm:$0x80] %vm462, %v461
  %v479 = vld [vmem:[%s0] sm:$0xff]
  %480 = vrot.lane.b32.xlu0 %v479, 104
  %v481 = vpop.permute.xlu0 %480
  %vm482 = vcmask 7168
  %s483 = scalar_lea.vmem %s1, 24
  %484 = vst.msk [vmem:[%s483] sm:$0x1] %vm482, %v481
  %s485 = scalar_lea.vmem %s1, 55
  %486 = vst.msk [vmem:[%s485] sm:$0x2] %vm482, %v481
  %s487 = scalar_lea.vmem %s1, 86
  %488 = vst.msk [vmem:[%s487] sm:$0x4] %vm482, %v481
  %s489 = scalar_lea.vmem %s1, 117
  %490 = vst.msk [vmem:[%s489] sm:$0x8] %vm482, %v481
  %s491 = scalar_lea.vmem %s1, 148
  %492 = vst.msk [vmem:[%s491] sm:$0x10] %vm482, %v481
  %s493 = scalar_lea.vmem %s1, 179
  %494 = vst.msk [vmem:[%s493] sm:$0x20] %vm482, %v481
  %s495 = scalar_lea.vmem %s1, 210
  %496 = vst.msk [vmem:[%s495] sm:$0x40] %vm482, %v481
  %s497 = scalar_lea.vmem %s1, 241
  %498 = vst.msk [vmem:[%s497] sm:$0x80] %vm482, %v481
  %v499 = vld [vmem:[%s0] sm:$0xff]
  %500 = vrot.lane.b32.xlu0 %v499, 103
  %v501 = vpop.permute.xlu0 %500
  %vm502 = vcmask 7168
  %s503 = scalar_lea.vmem %s1, 25
  %504 = vst.msk [vmem:[%s503] sm:$0x1] %vm502, %v501
  %s505 = scalar_lea.vmem %s1, 56
  %506 = vst.msk [vmem:[%s505] sm:$0x2] %vm502, %v501
  %s507 = scalar_lea.vmem %s1, 87
  %508 = vst.msk [vmem:[%s507] sm:$0x4] %vm502, %v501
  %s509 = scalar_lea.vmem %s1, 118
  %510 = vst.msk [vmem:[%s509] sm:$0x8] %vm502, %v501
  %s511 = scalar_lea.vmem %s1, 149
  %512 = vst.msk [vmem:[%s511] sm:$0x10] %vm502, %v501
  %s513 = scalar_lea.vmem %s1, 180
  %514 = vst.msk [vmem:[%s513] sm:$0x20] %vm502, %v501
  %s515 = scalar_lea.vmem %s1, 211
  %516 = vst.msk [vmem:[%s515] sm:$0x40] %vm502, %v501
  %s517 = scalar_lea.vmem %s1, 242
  %518 = vst.msk [vmem:[%s517] sm:$0x80] %vm502, %v501
  %v519 = vld [vmem:[%s0] sm:$0xff]
  %520 = vrot.lane.b32.xlu0 %v519, 102
  %v521 = vpop.permute.xlu0 %520
  %vm522 = vcmask 7168
  %s523 = scalar_lea.vmem %s1, 26
  %524 = vst.msk [vmem:[%s523] sm:$0x1] %vm522, %v521
  %s525 = scalar_lea.vmem %s1, 57
  %526 = vst.msk [vmem:[%s525] sm:$0x2] %vm522, %v521
  %s527 = scalar_lea.vmem %s1, 88
  %528 = vst.msk [vmem:[%s527] sm:$0x4] %vm522, %v521
  %s529 = scalar_lea.vmem %s1, 119
  %530 = vst.msk [vmem:[%s529] sm:$0x8] %vm522, %v521
  %s531 = scalar_lea.vmem %s1, 150
  %532 = vst.msk [vmem:[%s531] sm:$0x10] %vm522, %v521
  %s533 = scalar_lea.vmem %s1, 181
  %534 = vst.msk [vmem:[%s533] sm:$0x20] %vm522, %v521
  %s535 = scalar_lea.vmem %s1, 212
  %536 = vst.msk [vmem:[%s535] sm:$0x40] %vm522, %v521
  %s537 = scalar_lea.vmem %s1, 243
  %538 = vst.msk [vmem:[%s537] sm:$0x80] %vm522, %v521
  %v539 = vld [vmem:[%s0] sm:$0xff]
  %540 = vrot.lane.b32.xlu0 %v539, 101
  %v541 = vpop.permute.xlu0 %540
  %vm542 = vcmask 7168
  %s543 = scalar_lea.vmem %s1, 27
  %544 = vst.msk [vmem:[%s543] sm:$0x1] %vm542, %v541
  %s545 = scalar_lea.vmem %s1, 58
  %546 = vst.msk [vmem:[%s545] sm:$0x2] %vm542, %v541
  %s547 = scalar_lea.vmem %s1, 89
  %548 = vst.msk [vmem:[%s547] sm:$0x4] %vm542, %v541
  %s549 = scalar_lea.vmem %s1, 120
  %550 = vst.msk [vmem:[%s549] sm:$0x8] %vm542, %v541
  %s551 = scalar_lea.vmem %s1, 151
  %552 = vst.msk [vmem:[%s551] sm:$0x10] %vm542, %v541
  %s553 = scalar_lea.vmem %s1, 182
  %554 = vst.msk [vmem:[%s553] sm:$0x20] %vm542, %v541
  %s555 = scalar_lea.vmem %s1, 213
  %556 = vst.msk [vmem:[%s555] sm:$0x40] %vm542, %v541
  %s557 = scalar_lea.vmem %s1, 244
  %558 = vst.msk [vmem:[%s557] sm:$0x80] %vm542, %v541
  %v559 = vld [vmem:[%s0] sm:$0xff]
  %560 = vrot.lane.b32.xlu0 %v559, 100
  %v561 = vpop.permute.xlu0 %560
  %vm562 = vcmask 7168
  %s563 = scalar_lea.vmem %s1, 28
  %564 = vst.msk [vmem:[%s563] sm:$0x1] %vm562, %v561
  %s565 = scalar_lea.vmem %s1, 59
  %566 = vst.msk [vmem:[%s565] sm:$0x2] %vm562, %v561
  %s567 = scalar_lea.vmem %s1, 90
  %568 = vst.msk [vmem:[%s567] sm:$0x4] %vm562, %v561
  %s569 = scalar_lea.vmem %s1, 121
  %570 = vst.msk [vmem:[%s569] sm:$0x8] %vm562, %v561
  %s571 = scalar_lea.vmem %s1, 152
  %572 = vst.msk [vmem:[%s571] sm:$0x10] %vm562, %v561
  %s573 = scalar_lea.vmem %s1, 183
  %574 = vst.msk [vmem:[%s573] sm:$0x20] %vm562, %v561
  %s575 = scalar_lea.vmem %s1, 214
  %576 = vst.msk [vmem:[%s575] sm:$0x40] %vm562, %v561
  %s577 = scalar_lea.vmem %s1, 245
  %578 = vst.msk [vmem:[%s577] sm:$0x80] %vm562, %v561
  %v579 = vld [vmem:[%s0] sm:$0xff]
  %580 = vrot.lane.b32.xlu0 %v579, 99
  %v581 = vpop.permute.xlu0 %580
  %vm582 = vcmask 7168
  %s583 = scalar_lea.vmem %s1, 29
  %584 = vst.msk [vmem:[%s583] sm:$0x1] %vm582, %v581
  %s585 = scalar_lea.vmem %s1, 60
  %586 = vst.msk [vmem:[%s585] sm:$0x2] %vm582, %v581
  %s587 = scalar_lea.vmem %s1, 91
  %588 = vst.msk [vmem:[%s587] sm:$0x4] %vm582, %v581
  %s589 = scalar_lea.vmem %s1, 122
  %590 = vst.msk [vmem:[%s589] sm:$0x8] %vm582, %v581
  %s591 = scalar_lea.vmem %s1, 153
  %592 = vst.msk [vmem:[%s591] sm:$0x10] %vm582, %v581
  %s593 = scalar_lea.vmem %s1, 184
  %594 = vst.msk [vmem:[%s593] sm:$0x20] %vm582, %v581
  %s595 = scalar_lea.vmem %s1, 215
  %596 = vst.msk [vmem:[%s595] sm:$0x40] %vm582, %v581
  %s597 = scalar_lea.vmem %s1, 246
  %598 = vst.msk [vmem:[%s597] sm:$0x80] %vm582, %v581
  %v599 = vld [vmem:[%s0] sm:$0xff]
  %600 = vrot.lane.b32.xlu0 %v599, 98
  %v601 = vpop.permute.xlu0 %600
  %vm602 = vcmask 7168
  %s603 = scalar_lea.vmem %s1, 30
  %604 = vst.msk [vmem:[%s603] sm:$0x1] %vm602, %v601
  %s605 = scalar_lea.vmem %s1, 61
  %606 = vst.msk [vmem:[%s605] sm:$0x2] %vm602, %v601
  %s607 = scalar_lea.vmem %s1, 92
  %608 = vst.msk [vmem:[%s607] sm:$0x4] %vm602, %v601
  %s609 = scalar_lea.vmem %s1, 123
  %610 = vst.msk [vmem:[%s609] sm:$0x8] %vm602, %v601
  %s611 = scalar_lea.vmem %s1, 154
  %612 = vst.msk [vmem:[%s611] sm:$0x10] %vm602, %v601
  %s613 = scalar_lea.vmem %s1, 185
  %614 = vst.msk [vmem:[%s613] sm:$0x20] %vm602, %v601
  %s615 = scalar_lea.vmem %s1, 216
  %616 = vst.msk [vmem:[%s615] sm:$0x40] %vm602, %v601
  %s617 = scalar_lea.vmem %s1, 247
  %618 = vst.msk [vmem:[%s617] sm:$0x80] %vm602, %v601
  %v619 = vld [vmem:[%s0] sm:$0xff]
  %620 = vrot.lane.b32.xlu0 %v619, 97
  %v621 = vpop.permute.xlu0 %620
  %vm622 = vcmask 7168
  %s623 = scalar_lea.vmem %s1, 31
  %624 = vst.msk [vmem:[%s623] sm:$0x1] %vm622, %v621
  %s625 = scalar_lea.vmem %s1, 62
  %626 = vst.msk [vmem:[%s625] sm:$0x2] %vm622, %v621
  %s627 = scalar_lea.vmem %s1, 93
  %628 = vst.msk [vmem:[%s627] sm:$0x4] %vm622, %v621
  %s629 = scalar_lea.vmem %s1, 124
  %630 = vst.msk [vmem:[%s629] sm:$0x8] %vm622, %v621
  %s631 = scalar_lea.vmem %s1, 155
  %632 = vst.msk [vmem:[%s631] sm:$0x10] %vm622, %v621
  %s633 = scalar_lea.vmem %s1, 186
  %634 = vst.msk [vmem:[%s633] sm:$0x20] %vm622, %v621
  %s635 = scalar_lea.vmem %s1, 217
  %636 = vst.msk [vmem:[%s635] sm:$0x40] %vm622, %v621
  %s637 = scalar_lea.vmem %s1, 248
  %638 = vst.msk [vmem:[%s637] sm:$0x80] %vm622, %v621

// kernel: cnn_block_forward.1
$region0: #{cnn_block_forward.1}
  #allocation0 [shape = 'u32[]', space=smem, size = 0x4, offset = 0x4, fixed_abs, tag = 'smem constant byte address 0x4 - core index']
  #allocation1 [shape = 'u32[72,128]{1,0:T(1,128)}', space=vmem, size = 0x9000, scoped, tag = 'internal scratch']
  %s0 = inlined_call_operand.vmem [shape: f32[2,12,130], index: 0, kind: input, shape index: {}]
  %s1 = inlined_call_operand.vmem [shape: f32[256,120], index: 1, kind: input, shape index: {}]
  %s2 = inlined_call_operand.vmem [shape: f32[256,1], index: 2, kind: input, shape index: {}]
  %s3 = inlined_call_operand.vmem [shape: f32[64,384], index: 3, kind: input, shape index: {}]
  %s4 = inlined_call_operand.vmem [shape: f32[64,1], index: 4, kind: input, shape index: {}]
  %s5 = inlined_call_operand.vmem [shape: f32[1152,64], index: 5, kind: input, shape index: {}]
  %s6 = inlined_call_operand.vmem [shape: f32[1,64], index: 6, kind: input, shape index: {}]
  %s7 = inlined_call_operand.hbm [shape: f32[2,8,64], index: 7, kind: output, shape index: {}]
  %s8 = sld [smem:[#allocation0]]
  $region61: #{cnn_block_forward.1} parent=0
    _
  %s10 = ssub.s32 1, %s8
  %s11 = scalar_select 0, %s10, %s8
  $region1: #{cnn_block_forward.1} parent=0
    #allocation2 [shape = 'u8[8192]{0}', space=vmem, size = 0x2000, scoped, tag = 'output window, operand 0']
    #allocation3 [shape = 's32[2]{0}', space=sflag, size = 0x8, scoped, tag = 'scoped memory for cnn_block_forward.1']
    %12 = vsyncpa [#allocation3], 0
    %s13 = scalar_lea.sflag [#allocation3], 1
    %14 = vsyncpa %s13, 0
    loop: start=0, step=1, limit=4
    $region2: #{cnn_block_forward.1} parent=1 // loop_pre_header
      _
    $region3: #{cnn_block_forward.1} parent=1 // loop_header
      %s16 = sphi 0, %s20
      %p17 = scmp.ge.s32.totalorder %s16, 4
      %s26 = sphi 0, %s28
      %s29 = sphi 0, %s26
      %s30 = sphi 0, %s29
      %s46 = sphi 0, %s30
      %s50 = sphi 0, %s50
      %s52 = sphi 0, %s50
      %s53 = sphi 0, %s52
      %s67 = sphi 0, %s53
      %s71 = sphi 0, %s71
      %s73 = sphi 0, %s71
      %s74 = sphi 0, %s73
      %s88 = sphi 0, %s74
      %s92 = sphi 0, %s92
      %s94 = sphi 0, %s92
      %s95 = sphi 0, %s94
      %s109 = sphi 0, %s95
      %s113 = sphi 0, %s113
      %s115 = sphi 0, %s113
      %s116 = sphi 0, %s115
      %s130 = sphi 0, %s116
      %s134 = sphi 0, %s134
      %s136 = sphi 0, %s134
      %s137 = sphi 0, %s136
      %s151 = sphi 0, %s137
      %s155 = sphi 0, %s155
      %s157 = sphi 0, %s155
      %s158 = sphi 0, %s157
      %s172 = sphi 0, %s158
      %s178 = sphi 0, %s180
      %s181 = sphi 0, %s178
      %s182 = sphi 0, %s181
      %s198 = sphi 0, %s182
    $region4: #{cnn_block_forward.1} parent=1 // loop_header_branch
      %19 = sbr.rel (%p17) target = $region8
    $region5: #{cnn_block_forward.1} parent=1 // loop_body
      %s21 = ssub.s32 %s16, 1
      %s22 = ssub.s32 %s16, 2
      %s23 = sadd.s32 %s16, 1
      %s24 = ssub.s32 %s16, %s23
      %p25 = scmp.eq.s32.totalorder %s24, 0
      %s27 = sadd.s32 %s26, 1
      %s28 = scalar_select %p25, %s26, %s27
      %p31 = pneg %p25
      %p32 = scmp.eq.s32.totalorder %s16, 1
      %p33 = por %p31, %p32
      %p34 = scmp.ne.s32.totalorder %s26, %s29
      %p35 = scmp.eq.s32.totalorder %s16, 0
      %p36 = por %p34, %p35
      %p37 = scmp.ne.s32.totalorder %s26, %s29
      %p38 = scmp.eq.s32.totalorder %s21, 1
      %p39 = por %p37, %p38
      %p40 = scmp.ne.s32.totalorder %s29, %s30
      %p41 = scmp.eq.s32.totalorder %s21, 0
      %p42 = por %p40, %p41
      %p43 = scmp.ne.s32.totalorder %s29, %s30
      %p44 = scmp.eq.s32.totalorder %s22, 1
      %p45 = por %p43, %p44
      %p47 = scmp.ne.s32.totalorder %s30, %s46
      %p48 = scmp.eq.s32.totalorder %s22, 0
      %p49 = por %p47, %p48
      %s51 = sadd.s32 %s50, 1
      %p54 = scmp.eq.s32.totalorder %s16, 1
      %p55 = scmp.ne.s32.totalorder %s50, %s52
      %p56 = scmp.eq.s32.totalorder %s16, 0
      %p57 = por %p55, %p56
      %p58 = scmp.ne.s32.totalorder %s50, %s52
      %p59 = scmp.eq.s32.totalorder %s21, 1
      %p60 = por %p58, %p59
      %p61 = scmp.ne.s32.totalorder %s52, %s53
      %p62 = scmp.eq.s32.totalorder %s21, 0
      %p63 = por %p61, %p62
      %p64 = scmp.ne.s32.totalorder %s52, %s53
      %p65 = scmp.eq.s32.totalorder %s22, 1
      %p66 = por %p64, %p65
      %p68 = scmp.ne.s32.totalorder %s53, %s67
      %p69 = scmp.eq.s32.totalorder %s22, 0
      %p70 = por %p68, %p69
      %s72 = sadd.s32 %s71, 1
      %p75 = scmp.eq.s32.totalorder %s16, 1
      %p76 = scmp.ne.s32.totalorder %s71, %s73
      %p77 = scmp.eq.s32.totalorder %s16, 0
      %p78 = por %p76, %p77
      %p79 = scmp.ne.s32.totalorder %s71, %s73
      %p80 = scmp.eq.s32.totalorder %s21, 1
      %p81 = por %p79, %p80
      %p82 = scmp.ne.s32.totalorder %s73, %s74
      %p83 = scmp.eq.s32.totalorder %s21, 0
      %p84 = por %p82, %p83
      %p85 = scmp.ne.s32.totalorder %s73, %s74
      %p86 = scmp.eq.s32.totalorder %s22, 1
      %p87 = por %p85, %p86
      %p89 = scmp.ne.s32.totalorder %s74, %s88
      %p90 = scmp.eq.s32.totalorder %s22, 0
      %p91 = por %p89, %p90
      %s93 = sadd.s32 %s92, 1
      %p96 = scmp.eq.s32.totalorder %s16, 1
      %p97 = scmp.ne.s32.totalorder %s92, %s94
      %p98 = scmp.eq.s32.totalorder %s16, 0
      %p99 = por %p97, %p98
      %p100 = scmp.ne.s32.totalorder %s92, %s94
      %p101 = scmp.eq.s32.totalorder %s21, 1
      %p102 = por %p100, %p101
      %p103 = scmp.ne.s32.totalorder %s94, %s95
      %p104 = scmp.eq.s32.totalorder %s21, 0
      %p105 = por %p103, %p104
      %p106 = scmp.ne.s32.totalorder %s94, %s95
      %p107 = scmp.eq.s32.totalorder %s22, 1
      %p108 = por %p106, %p107
      %p110 = scmp.ne.s32.totalorder %s95, %s109
      %p111 = scmp.eq.s32.totalorder %s22, 0
      %p112 = por %p110, %p111
      %s114 = sadd.s32 %s113, 1
      %p117 = scmp.eq.s32.totalorder %s16, 1
      %p118 = scmp.ne.s32.totalorder %s113, %s115
      %p119 = scmp.eq.s32.totalorder %s16, 0
      %p120 = por %p118, %p119
      %p121 = scmp.ne.s32.totalorder %s113, %s115
      %p122 = scmp.eq.s32.totalorder %s21, 1
      %p123 = por %p121, %p122
      %p124 = scmp.ne.s32.totalorder %s115, %s116
      %p125 = scmp.eq.s32.totalorder %s21, 0
      %p126 = por %p124, %p125
      %p127 = scmp.ne.s32.totalorder %s115, %s116
      %p128 = scmp.eq.s32.totalorder %s22, 1
      %p129 = por %p127, %p128
      %p131 = scmp.ne.s32.totalorder %s116, %s130
      %p132 = scmp.eq.s32.totalorder %s22, 0
      %p133 = por %p131, %p132
      %s135 = sadd.s32 %s134, 1
      %p138 = scmp.eq.s32.totalorder %s16, 1
      %p139 = scmp.ne.s32.totalorder %s134, %s136
      %p140 = scmp.eq.s32.totalorder %s16, 0
      %p141 = por %p139, %p140
      %p142 = scmp.ne.s32.totalorder %s134, %s136
      %p143 = scmp.eq.s32.totalorder %s21, 1
      %p144 = por %p142, %p143
      %p145 = scmp.ne.s32.totalorder %s136, %s137
      %p146 = scmp.eq.s32.totalorder %s21, 0
      %p147 = por %p145, %p146
      %p148 = scmp.ne.s32.totalorder %s136, %s137
      %p149 = scmp.eq.s32.totalorder %s22, 1
      %p150 = por %p148, %p149
      %p152 = scmp.ne.s32.totalorder %s137, %s151
      %p153 = scmp.eq.s32.totalorder %s22, 0
      %p154 = por %p152, %p153
      %s156 = sadd.s32 %s155, 1
      %p159 = scmp.eq.s32.totalorder %s16, 1
      %p160 = scmp.ne.s32.totalorder %s155, %s157
      %p161 = scmp.eq.s32.totalorder %s16, 0
      %p162 = por %p160, %p161
      %p163 = scmp.ne.s32.totalorder %s155, %s157
      %p164 = scmp.eq.s32.totalorder %s21, 1
      %p165 = por %p163, %p164
      %p166 = scmp.ne.s32.totalorder %s157, %s158
      %p167 = scmp.eq.s32.totalorder %s21, 0
      %p168 = por %p166, %p167
      %p169 = scmp.ne.s32.totalorder %s157, %s158
      %p170 = scmp.eq.s32.totalorder %s22, 1
      %p171 = por %p169, %p170
      %p173 = scmp.ne.s32.totalorder %s158, %s172
      %p174 = scmp.eq.s32.totalorder %s22, 0
      %p175 = por %p173, %p174
      %s176 = ssub.s32 %s16, %s23
      %p177 = scmp.eq.s32.totalorder %s176, 0
      %s179 = sadd.s32 %s178, 1
      %s180 = scalar_select %p177, %s178, %s179
      %p183 = pneg %p177
      %p184 = scmp.eq.s32.totalorder %s16, 1
      %p185 = por %p183, %p184
      %p186 = scmp.ne.s32.totalorder %s178, %s181
      %p187 = scmp.eq.s32.totalorder %s16, 0
      %p188 = por %p186, %p187
      %p189 = scmp.ne.s32.totalorder %s178, %s181
      %p190 = scmp.eq.s32.totalorder %s21, 1
      %p191 = por %p189, %p190
      %p192 = scmp.ne.s32.totalorder %s181, %s182
      %p193 = scmp.eq.s32.totalorder %s21, 0
      %p194 = por %p192, %p193
      %p195 = scmp.ne.s32.totalorder %s181, %s182
      %p196 = scmp.eq.s32.totalorder %s22, 1
      %p197 = por %p195, %p196
      %p199 = scmp.ne.s32.totalorder %s182, %s198
      %p200 = scmp.eq.s32.totalorder %s22, 0
      %p201 = por %p199, %p200
      %p202 = scmp.le.s32.totalorder 1, %s16
      %p203 = scmp.lt.s32.totalorder %s16, 3
      %p204 = pnand %p202, %p203
      %p205 = pneg %p204
      // Predicated region
      $region9: #{cnn_block_forward.1} parent=5 // pred_check
        _
      $region10: #{cnn_block_forward.1} parent=5 // pred_check_branch
        %207 = sbr.rel (%p204) target = $region12
      $region11: #{cnn_block_forward.1} parent=5 // pred_region
        %s208 = ssub.s32 %s16, 1
        // Predicated region
        $region13: #{cnn_block_forward.1} parent=11 // pred_check
          %p209 = pneg %p63
        $region14: #{cnn_block_forward.1} parent=11 // pred_check_branch
          %211 = sbr.rel (%p209) target = $region16
        $region15: #{cnn_block_forward.1} parent=11 // pred_region
          _
        $region16: #{cnn_block_forward.1} parent=11 // pred_fallthru
          _
        // Predicated region
        $region17: #{cnn_block_forward.1} parent=11 // pred_check
          %p212 = pneg %p84
        $region18: #{cnn_block_forward.1} parent=11 // pred_check_branch
          %214 = sbr.rel (%p212) target = $region20
        $region19: #{cnn_block_forward.1} parent=11 // pred_region
          _
        $region20: #{cnn_block_forward.1} parent=11 // pred_fallthru
          _
        // Predicated region
        $region21: #{cnn_block_forward.1} parent=11 // pred_check
          %p215 = pneg %p105
        $region22: #{cnn_block_forward.1} parent=11 // pred_check_branch
          %217 = sbr.rel (%p215) target = $region24
        $region23: #{cnn_block_forward.1} parent=11 // pred_region
          _
        $region24: #{cnn_block_forward.1} parent=11 // pred_fallthru
          _
        // Predicated region
        $region25: #{cnn_block_forward.1} parent=11 // pred_check
          %p218 = pneg %p126
        $region26: #{cnn_block_forward.1} parent=11 // pred_check_branch
          %220 = sbr.rel (%p218) target = $region28
        $region27: #{cnn_block_forward.1} parent=11 // pred_region
          _
        $region28: #{cnn_block_forward.1} parent=11 // pred_fallthru
          _
        // Predicated region
        $region29: #{cnn_block_forward.1} parent=11 // pred_check
          %p221 = pneg %p147
        $region30: #{cnn_block_forward.1} parent=11 // pred_check_branch
          %223 = sbr.rel (%p221) target = $region32
        $region31: #{cnn_block_forward.1} parent=11 // pred_region
          _
        $region32: #{cnn_block_forward.1} parent=11 // pred_fallthru
          _
        // Predicated region
        $region33: #{cnn_block_forward.1} parent=11 // pred_check
          %p224 = pneg %p168
        $region34: #{cnn_block_forward.1} parent=11 // pred_check_branch
          %226 = sbr.rel (%p224) target = $region36
        $region35: #{cnn_block_forward.1} parent=11 // pred_region
          _
        $region36: #{cnn_block_forward.1} parent=11 // pred_fallthru
          _
      $region12: #{cnn_block_forward.1} parent=5 // pred_fallthru
        _
      %p227 = scmp.lt.s32.totalorder %s16, 2
      // Predicated region
      $region37: #{cnn_block_forward.1} parent=5 // pred_check
        %p228 = pneg %p227
      $region38: #{cnn_block_forward.1} parent=5 // pred_check_branch
        %230 = sbr.rel (%p228) target = $region40
      $region39: #{cnn_block_forward.1} parent=5 // pred_region
        // Predicated region
        $region41: #{cnn_block_forward.1} parent=39 // pred_check
          %p231 = pneg %p36
        $region42: #{cnn_block_forward.1} parent=39 // pred_check_branch
          %233 = sbr.rel (%p231) target = $region44
        $region43: #{cnn_block_forward.1} parent=39 // pred_region
          %p234 = scmp.lt.s32.totalorder %s16, 1
          %s235 = scalar_select %p234, %s16, 1
          %s236 = smul.addr %s235, 4
          %s237 = smul.addr %s236, 8
          %s238 = scalar_lea.vmem %s0, %s237
        $region44: #{cnn_block_forward.1} parent=39 // pred_fallthru
          _
      $region40: #{cnn_block_forward.1} parent=5 // pred_fallthru
        _
      %p239 = scmp.le.s32.totalorder 1, %s16
      %p240 = scmp.lt.s32.totalorder %s16, 3
      %p241 = pnand %p239, %p240
      %p242 = pneg %p241
      // Predicated region
      $region45: #{cnn_block_forward.1} parent=5 // pred_check
        _
      $region46: #{cnn_block_forward.1} parent=5 // pred_check_branch
        %244 = sbr.rel (%p241) target = $region48
      $region47: #{cnn_block_forward.1} parent=5 // pred_region
        %s245 = ssub.s32 %s16, 1
        %p246 = scmp.lt.s32.totalorder %s21, 1
        %s247 = scalar_select %p246, %s21, 1
        %s248 = smul.addr %s247, 4
        %s249 = smul.addr %s248, 8
        %s250 = scalar_lea.vmem %s0, %s249
        %p251 = pneg %p42
        %p252 = pneg %p39
        %p253 = pneg %p63
        %p254 = pneg %p60
        %p255 = pneg %p84
        %p256 = pneg %p81
        %p257 = pneg %p105
        %p258 = pneg %p102
        %p259 = pneg %p126
        %p260 = pneg %p123
        %p261 = pneg %p147
        %p262 = pneg %p144
        %p263 = pneg %p168
        %p264 = pneg %p165
        %p265 = pneg %p194
        %p266 = pneg %p191
        %s267 = sand.u32 %s181, 1
        %s268 = scalar_lea.sflag [#allocation3], %s267
        %s269 = sand.u32 %s181, 1
        %s270 = smul.addr %s269, 8
        %s271 = scalar_lea.vmem [#allocation2], %s270
        %p272 = scmp.lt.s32.totalorder %s21, 1
        %s273 = scalar_select %p272, %s21, 1
        %s274 = smul.addr %s273, 4
        %s275 = smul.addr %s274, 8
        %s276 = scalar_lea.vmem %s0, %s275
        %v277 = vld [vmem:[%s276] sm:$0xff]
        %v278 = vld [vmem:[%s276 + $0x8] sm:$0xff]
        %v279 = vld [vmem:[%s276 + $0x10] sm:$0xf]
        %v280 = vld [vmem:[%s276 + $0x18] sm:$0xf]
        %283 = vrot.lane.b32.xlu0 %v277, 127
        %v284 = vpop.permute.xlu0 %283
        %285 = vrot.lane.b32.xlu0 %v278, 127
        %v286 = vpop.permute.xlu0 %285
        %vm287 = vcmask 1039360
        %v288 = vsel %vm287, %v284, %v286
        %290 = vrot.lane.b32.xlu0 %v277, 126
        %v291 = vpop.permute.xlu0 %290
        %292 = vrot.lane.b32.xlu0 %v278, 126
        %v293 = vpop.permute.xlu0 %292
        %vm294 = vcmask 1031168
        %v295 = vsel %vm294, %v291, %v293
        %vm298 = vcmask 1046528
        %v299 = vrot.slane %v277, 1
        %v300 = vrot.slane %v279, 1
        %v301 = vsel %vm298, %v299, %v300
        %v304 = vrot.slane %v278, 1
        %v305 = vrot.slane %v280, 1
        %v306 = vsel %vm298, %v304, %v305
        %307 = vrot.lane.b32.xlu0 %v301, 127
        %v308 = vpop.permute.xlu0 %307
        %309 = vrot.lane.b32.xlu0 %v306, 127
        %v310 = vpop.permute.xlu0 %309
        %v311 = vsel %vm287, %v308, %v310
        %313 = vrot.lane.b32.xlu0 %v301, 126
        %v314 = vpop.permute.xlu0 %313
        %315 = vrot.lane.b32.xlu0 %v306, 126
        %v316 = vpop.permute.xlu0 %315
        %v317 = vsel %vm294, %v314, %v316
        %vm319 = vcmask 1045504
        %v320 = vrot.slane %v277, 2
        %v321 = vrot.slane %v279, 2
        %v322 = vsel %vm319, %v320, %v321
        %v324 = vrot.slane %v278, 2
        %v325 = vrot.slane %v280, 2
        %v326 = vsel %vm319, %v324, %v325
        %327 = vrot.lane.b32.xlu0 %v322, 127
        %v328 = vpop.permute.xlu0 %327
        %329 = vrot.lane.b32.xlu0 %v326, 127
        %v330 = vpop.permute.xlu0 %329
        %v331 = vsel %vm287, %v328, %v330
        %333 = vrot.lane.b32.xlu0 %v322, 126
        %v334 = vpop.permute.xlu0 %333
        %335 = vrot.lane.b32.xlu0 %v326, 126
        %v336 = vpop.permute.xlu0 %335
        %v337 = vsel %vm294, %v334, %v336
        %vm339 = vcmask 1044480
        %v340 = vrot.slane %v277, 3
        %v341 = vrot.slane %v279, 3
        %v342 = vsel %vm339, %v340, %v341
        %v344 = vrot.slane %v278, 3
        %v345 = vrot.slane %v280, 3
        %v346 = vsel %vm339, %v344, %v345
        %347 = vrot.lane.b32.xlu0 %v342, 127
        %v348 = vpop.permute.xlu0 %347
        %349 = vrot.lane.b32.xlu0 %v346, 127
        %v350 = vpop.permute.xlu0 %349
        %v351 = vsel %vm287, %v348, %v350
        %353 = vrot.lane.b32.xlu0 %v342, 126
        %v354 = vpop.permute.xlu0 %353
        %355 = vrot.lane.b32.xlu0 %v346, 126
        %v356 = vpop.permute.xlu0 %355
        %v357 = vsel %vm294, %v354, %v356
        %vm359 = vcmask 1043456
        %v360 = vrot.slane %v277, 4
        %v361 = vrot.slane %v279, 4
        %v362 = vsel %vm359, %v360, %v361
        %v364 = vrot.slane %v278, 4
        %v365 = vrot.slane %v280, 4
        %v366 = vsel %vm359, %v364, %v365
        %367 = vrot.lane.b32.xlu0 %v362, 127
        %v368 = vpop.permute.xlu0 %367
        %369 = vrot.lane.b32.xlu0 %v366, 127
        %v370 = vpop.permute.xlu0 %369
        %v371 = vsel %vm287, %v368, %v370
        %373 = vrot.lane.b32.xlu0 %v362, 126
        %v374 = vpop.permute.xlu0 %373
        %375 = vrot.lane.b32.xlu0 %v366, 126
        %v376 = vpop.permute.xlu0 %375
        %v377 = vsel %vm294, %v374, %v376
        %v379 = vld [vmem:[%s1] sm:$0xff]
        %v380 = vld [vmem:[%s1 + $0x8] sm:$0xff]
        %v381 = vld [vmem:[%s1 + $0x10] sm:$0xff]
        %v382 = vld [vmem:[%s1 + $0x18] sm:$0xff]
        %v383 = vld [vmem:[%s1 + $0x20] sm:$0xff]
        %v384 = vld [vmem:[%s1 + $0x28] sm:$0xff]
        %v385 = vld [vmem:[%s1 + $0x30] sm:$0xff]
        %v386 = vld [vmem:[%s1 + $0x38] sm:$0xff]
        %v387 = vld [vmem:[%s1 + $0x40] sm:$0xff]
        %v388 = vld [vmem:[%s1 + $0x48] sm:$0xff]
        %v389 = vld [vmem:[%s1 + $0x50] sm:$0xff]
        %v390 = vld [vmem:[%s1 + $0x58] sm:$0xff]
        %v391 = vld [vmem:[%s1 + $0x60] sm:$0xff]
        %v392 = vld [vmem:[%s1 + $0x68] sm:$0xff]
        %v393 = vld [vmem:[%s1 + $0x70] sm:$0xff]
        %v394 = vld [vmem:[%s1 + $0x78] sm:$0xff]
        %v395 = vld [vmem:[%s1 + $0x80] sm:$0xff]
        %v396 = vld [vmem:[%s1 + $0x88] sm:$0xff]
        %v397 = vld [vmem:[%s1 + $0x90] sm:$0xff]
        %v398 = vld [vmem:[%s1 + $0x98] sm:$0xff]
        %v399 = vld [vmem:[%s1 + $0xa0] sm:$0xff]
        %v400 = vld [vmem:[%s1 + $0xa8] sm:$0xff]
        %v401 = vld [vmem:[%s1 + $0xb0] sm:$0xff]
        %v402 = vld [vmem:[%s1 + $0xb8] sm:$0xff]
        %v403 = vld [vmem:[%s1 + $0xc0] sm:$0xff]
        %v404 = vld [vmem:[%s1 + $0xc8] sm:$0xff]
        %v405 = vld [vmem:[%s1 + $0xd0] sm:$0xff]
        %v406 = vld [vmem:[%s1 + $0xd8] sm:$0xff]
        %v407 = vld [vmem:[%s1 + $0xe0] sm:$0xff]
        %v408 = vld [vmem:[%s1 + $0xe8] sm:$0xff]
        %v409 = vld [vmem:[%s1 + $0xf0] sm:$0xff]
        %v410 = vld [vmem:[%s1 + $0xf8] sm:$0xff]
        %v411 = vld [vmem:[%s2] sm:$0xff]
        %v412 = vld [vmem:[%s2 + $0x8] sm:$0xff]
        %v413 = vld [vmem:[%s2 + $0x10] sm:$0xff]
        %v414 = vld [vmem:[%s2 + $0x18] sm:$0xff]
        %v415 = vld [vmem:[%s2 + $0x20] sm:$0xff]
        %v416 = vld [vmem:[%s2 + $0x28] sm:$0xff]
        %v417 = vld [vmem:[%s2 + $0x30] sm:$0xff]
        %v418 = vld [vmem:[%s2 + $0x38] sm:$0xff]
        %v419 = vld [vmem:[%s2 + $0x40] sm:$0xff]
        %v420 = vld [vmem:[%s2 + $0x48] sm:$0xff]
        %v421 = vld [vmem:[%s2 + $0x50] sm:$0xff]
        %v422 = vld [vmem:[%s2 + $0x58] sm:$0xff]
        %v423 = vld [vmem:[%s2 + $0x60] sm:$0xff]
        %v424 = vld [vmem:[%s2 + $0x68] sm:$0xff]
        %v425 = vld [vmem:[%s2 + $0x70] sm:$0xff]
        %v426 = vld [vmem:[%s2 + $0x78] sm:$0xff]
        %v427 = vld [vmem:[%s2 + $0x80] sm:$0xff]
        %v428 = vld [vmem:[%s2 + $0x88] sm:$0xff]
        %v429 = vld [vmem:[%s2 + $0x90] sm:$0xff]
        %v430 = vld [vmem:[%s2 + $0x98] sm:$0xff]
        %v431 = vld [vmem:[%s2 + $0xa0] sm:$0xff]
        %v432 = vld [vmem:[%s2 + $0xa8] sm:$0xff]
        %v433 = vld [vmem:[%s2 + $0xb0] sm:$0xff]
        %v434 = vld [vmem:[%s2 + $0xb8] sm:$0xff]
        %v435 = vld [vmem:[%s2 + $0xc0] sm:$0xff]
        %v436 = vld [vmem:[%s2 + $0xc8] sm:$0xff]
        %v437 = vld [vmem:[%s2 + $0xd0] sm:$0xff]
        %v438 = vld [vmem:[%s2 + $0xd8] sm:$0xff]
        %v439 = vld [vmem:[%s2 + $0xe0] sm:$0xff]
        %v440 = vld [vmem:[%s2 + $0xe8] sm:$0xff]
        %v441 = vld [vmem:[%s2 + $0xf0] sm:$0xff]
        %v442 = vld [vmem:[%s2 + $0xf8] sm:$0xff]
        %444 = vset.pattern.permute.xlu0 0
        %445 = vperm.xlu0 %444, %v411
        %v446 = vpop.permute.xlu0 %445
        %449 = vset.pattern.permute.xlu0 0
        %450 = vperm.xlu0 %449, %v412
        %v451 = vpop.permute.xlu0 %450
        %454 = vset.pattern.permute.xlu0 0
        %455 = vperm.xlu0 %454, %v413
        %v456 = vpop.permute.xlu0 %455
        %459 = vset.pattern.permute.xlu0 0
        %460 = vperm.xlu0 %459, %v414
        %v461 = vpop.permute.xlu0 %460
        %464 = vset.pattern.permute.xlu0 0
        %465 = vperm.xlu0 %464, %v415
        %v466 = vpop.permute.xlu0 %465
        %469 = vset.pattern.permute.xlu0 0
        %470 = vperm.xlu0 %469, %v416
        %v471 = vpop.permute.xlu0 %470
        %474 = vset.pattern.permute.xlu0 0
        %475 = vperm.xlu0 %474, %v417
        %v476 = vpop.permute.xlu0 %475
        %479 = vset.pattern.permute.xlu0 0
        %480 = vperm.xlu0 %479, %v418
        %v481 = vpop.permute.xlu0 %480
        %484 = vset.pattern.permute.xlu0 0
        %485 = vperm.xlu0 %484, %v419
        %v486 = vpop.permute.xlu0 %485
        %489 = vset.pattern.permute.xlu0 0
        %490 = vperm.xlu0 %489, %v420
        %v491 = vpop.permute.xlu0 %490
        %494 = vset.pattern.permute.xlu0 0
        %495 = vperm.xlu0 %494, %v421
        %v496 = vpop.permute.xlu0 %495
        %499 = vset.pattern.permute.xlu0 0
        %500 = vperm.xlu0 %499, %v422
        %v501 = vpop.permute.xlu0 %500
        %504 = vset.pattern.permute.xlu0 0
        %505 = vperm.xlu0 %504, %v423
        %v506 = vpop.permute.xlu0 %505
        %509 = vset.pattern.permute.xlu0 0
        %510 = vperm.xlu0 %509, %v424
        %v511 = vpop.permute.xlu0 %510
        %514 = vset.pattern.permute.xlu0 0
        %515 = vperm.xlu0 %514, %v425
        %v516 = vpop.permute.xlu0 %515
        %519 = vset.pattern.permute.xlu0 0
        %520 = vperm.xlu0 %519, %v426
        %v521 = vpop.permute.xlu0 %520
        %524 = vset.pattern.permute.xlu0 0
        %525 = vperm.xlu0 %524, %v427
        %v526 = vpop.permute.xlu0 %525
        %529 = vset.pattern.permute.xlu0 0
        %530 = vperm.xlu0 %529, %v428
        %v531 = vpop.permute.xlu0 %530
        %534 = vset.pattern.permute.xlu0 0
        %535 = vperm.xlu0 %534, %v429
        %v536 = vpop.permute.xlu0 %535
        %539 = vset.pattern.permute.xlu0 0
        %540 = vperm.xlu0 %539, %v430
        %v541 = vpop.permute.xlu0 %540
        %544 = vset.pattern.permute.xlu0 0
        %545 = vperm.xlu0 %544, %v431
        %v546 = vpop.permute.xlu0 %545
        %549 = vset.pattern.permute.xlu0 0
        %550 = vperm.xlu0 %549, %v432
        %v551 = vpop.permute.xlu0 %550
        %554 = vset.pattern.permute.xlu0 0
        %555 = vperm.xlu0 %554, %v433
        %v556 = vpop.permute.xlu0 %555
        %559 = vset.pattern.permute.xlu0 0
        %560 = vperm.xlu0 %559, %v434
        %v561 = vpop.permute.xlu0 %560
        %564 = vset.pattern.permute.xlu0 0
        %565 = vperm.xlu0 %564, %v435
        %v566 = vpop.permute.xlu0 %565
        %569 = vset.pattern.permute.xlu0 0
        %570 = vperm.xlu0 %569, %v436
        %v571 = vpop.permute.xlu0 %570
        %574 = vset.pattern.permute.xlu0 0
        %575 = vperm.xlu0 %574, %v437
        %v576 = vpop.permute.xlu0 %575
        %579 = vset.pattern.permute.xlu0 0
        %580 = vperm.xlu0 %579, %v438
        %v581 = vpop.permute.xlu0 %580
        %584 = vset.pattern.permute.xlu0 0
        %585 = vperm.xlu0 %584, %v439
        %v586 = vpop.permute.xlu0 %585
        %589 = vset.pattern.permute.xlu0 0
        %590 = vperm.xlu0 %589, %v440
        %v591 = vpop.permute.xlu0 %590
        %594 = vset.pattern.permute.xlu0 0
        %595 = vperm.xlu0 %594, %v441
        %v596 = vpop.permute.xlu0 %595
        %599 = vset.pattern.permute.xlu0 0
        %600 = vperm.xlu0 %599, %v442
        %v601 = vpop.permute.xlu0 %600
        %vm603 = vcmask 982016
        %v605 = vsel %vm603, %v379, 0
        %v608 = vsel %vm603, %v380, 0
        %v611 = vsel %vm603, %v381, 0
        %v614 = vsel %vm603, %v382, 0
        %v617 = vsel %vm603, %v383, 0
        %v620 = vsel %vm603, %v384, 0
        %v623 = vsel %vm603, %v385, 0
        %v626 = vsel %vm603, %v386, 0
        %v629 = vsel %vm603, %v387, 0
        %v632 = vsel %vm603, %v388, 0
        %v635 = vsel %vm603, %v389, 0
        %v638 = vsel %vm603, %v390, 0
        %v641 = vsel %vm603, %v391, 0
        %v644 = vsel %vm603, %v392, 0
        %v647 = vsel %vm603, %v393, 0
        %v650 = vsel %vm603, %v394, 0
        %v653 = vsel %vm603, %v395, 0
        %v656 = vsel %vm603, %v396, 0
        %v659 = vsel %vm603, %v397, 0
        %v662 = vsel %vm603, %v398, 0
        %v665 = vsel %vm603, %v399, 0
        %v668 = vsel %vm603, %v400, 0
        %v671 = vsel %vm603, %v401, 0
        %v674 = vsel %vm603, %v402, 0
        %v677 = vsel %vm603, %v403, 0
        %v680 = vsel %vm603, %v404, 0
        %v683 = vsel %vm603, %v405, 0
        %v686 = vsel %vm603, %v406, 0
        %v689 = vsel %vm603, %v407, 0
        %v692 = vsel %vm603, %v408, 0
        %v695 = vsel %vm603, %v409, 0
        %v698 = vsel %vm603, %v410, 0
        %700 = vmatpush.msra.mxu0 0.0
        %701 = vmatpush.msra.mxu0 %v377
        %702 = vmatpush.msra.mxu0 %v371
        %703 = vmatpush.msra.mxu0 %v362
        %704 = vmatpush.msra.mxu0 %v357
        %705 = vmatpush.msra.mxu0 %v351
        %706 = vmatpush.msra.mxu0 %v342
        %707 = vmatpush.msra.mxu0 %v337
        %708 = vmatpush.msra.mxu0 %v331
        %709 = vmatpush.msra.mxu0 %v322
        %710 = vmatpush.msra.mxu0 %v317
        %711 = vmatpush.msra.mxu0 %v311
        %712 = vmatpush.msra.mxu0 %v301
        %713 = vmatpush.msra.mxu0 %v295
        %714 = vmatpush.msra.mxu0 %v288
        %715 = vmatpush.msra.mxu0 %v277
        %716 = vmatmul.f32.gmra.mxu0 %v605
        %v717 = vpop.f32.mrf.mxu0
        %v718 = vadd.f32 %v446, %v717
        %719 = vmatmul.f32.gmra.mxu0 %v608
        %v720 = vpop.f32.mrf.mxu0
        %v721 = vadd.f32 %v451, %v720
        %722 = vmatmul.f32.gmra.mxu0 %v611
        %v723 = vpop.f32.mrf.mxu0
        %v724 = vadd.f32 %v456, %v723
        %725 = vmatmul.f32.gmra.mxu0 %v614
        %v726 = vpop.f32.mrf.mxu0
        %v727 = vadd.f32 %v461, %v726
        %728 = vmatmul.f32.gmra.mxu0 %v617
        %v729 = vpop.f32.mrf.mxu0
        %v730 = vadd.f32 %v466, %v729
        %731 = vmatmul.f32.gmra.mxu0 %v620
        %v732 = vpop.f32.mrf.mxu0
        %v733 = vadd.f32 %v471, %v732
        %734 = vmatmul.f32.gmra.mxu0 %v623
        %v735 = vpop.f32.mrf.mxu0
        %v736 = vadd.f32 %v476, %v735
        %737 = vmatmul.f32.gmra.mxu0 %v626
        %v738 = vpop.f32.mrf.mxu0
        %v739 = vadd.f32 %v481, %v738
        %740 = vmatmul.f32.gmra.mxu0 %v629
        %v741 = vpop.f32.mrf.mxu0
        %v742 = vadd.f32 %v486, %v741
        %743 = vmatmul.f32.gmra.mxu0 %v632
        %v744 = vpop.f32.mrf.mxu0
        %v745 = vadd.f32 %v491, %v744
        %746 = vmatmul.f32.gmra.mxu0 %v635
        %v747 = vpop.f32.mrf.mxu0
        %v748 = vadd.f32 %v496, %v747
        %749 = vmatmul.f32.gmra.mxu0 %v638
        %v750 = vpop.f32.mrf.mxu0
        %v751 = vadd.f32 %v501, %v750
        %752 = vmatmul.f32.gmra.mxu0 %v641
        %v753 = vpop.f32.mrf.mxu0
        %v754 = vadd.f32 %v506, %v753
        %755 = vmatmul.f32.gmra.mxu0 %v644
        %v756 = vpop.f32.mrf.mxu0
        %v757 = vadd.f32 %v511, %v756
        %758 = vmatmul.f32.gmra.mxu0 %v647
        %v759 = vpop.f32.mrf.mxu0
        %v760 = vadd.f32 %v516, %v759
        %761 = vmatmul.f32.gmra.mxu0 %v650
        %v762 = vpop.f32.mrf.mxu0
        %v763 = vadd.f32 %v521, %v762
        %764 = vmatmul.f32.gmra.mxu0 %v653
        %v765 = vpop.f32.mrf.mxu0
        %v766 = vadd.f32 %v526, %v765
        %767 = vmatmul.f32.gmra.mxu0 %v656
        %v768 = vpop.f32.mrf.mxu0
        %v769 = vadd.f32 %v531, %v768
        %770 = vmatmul.f32.gmra.mxu0 %v659
        %v771 = vpop.f32.mrf.mxu0
        %v772 = vadd.f32 %v536, %v771
        %773 = vmatmul.f32.gmra.mxu0 %v662
        %v774 = vpop.f32.mrf.mxu0
        %v775 = vadd.f32 %v541, %v774
        %776 = vmatmul.f32.gmra.mxu0 %v665
        %v777 = vpop.f32.mrf.mxu0
        %v778 = vadd.f32 %v546, %v777
        %779 = vmatmul.f32.gmra.mxu0 %v668
        %v780 = vpop.f32.mrf.mxu0
        %v781 = vadd.f32 %v551, %v780
        %782 = vmatmul.f32.gmra.mxu0 %v671
        %v783 = vpop.f32.mrf.mxu0
        %v784 = vadd.f32 %v556, %v783
        %785 = vmatmul.f32.gmra.mxu0 %v674
        %v786 = vpop.f32.mrf.mxu0
        %v787 = vadd.f32 %v561, %v786
        %788 = vmatmul.f32.gmra.mxu0 %v677
        %v789 = vpop.f32.mrf.mxu0
        %v790 = vadd.f32 %v566, %v789
        %791 = vmatmul.f32.gmra.mxu0 %v680
        %v792 = vpop.f32.mrf.mxu0
        %v793 = vadd.f32 %v571, %v792
        %794 = vmatmul.f32.gmra.mxu0 %v683
        %v795 = vpop.f32.mrf.mxu0
        %v796 = vadd.f32 %v576, %v795
        %797 = vmatmul.f32.gmra.mxu0 %v686
        %v798 = vpop.f32.mrf.mxu0
        %v799 = vadd.f32 %v581, %v798
        %800 = vmatmul.f32.gmra.mxu0 %v689
        %v801 = vpop.f32.mrf.mxu0
        %v802 = vadd.f32 %v586, %v801
        %803 = vmatmul.f32.gmra.mxu0 %v692
        %v804 = vpop.f32.mrf.mxu0
        %v805 = vadd.f32 %v591, %v804
        %806 = vmatmul.f32.gmra.mxu0 %v695
        %v807 = vpop.f32.mrf.mxu0
        %v808 = vadd.f32 %v596, %v807
        %809 = vmatmul.f32.gmra.mxu0 %v698
        %v810 = vpop.f32.mrf.mxu0
        %v811 = vadd.f32 %v601, %v810
        %812 = vdwg.mxu0
        %v813 = vmax.f32 %v718, 0.0
        %v814 = vmax.f32 %v721, 0.0
        %v815 = vmax.f32 %v724, 0.0
        %v816 = vmax.f32 %v727, 0.0
        %v817 = vmax.f32 %v730, 0.0
        %v818 = vmax.f32 %v733, 0.0
        %v819 = vmax.f32 %v736, 0.0
        %v820 = vmax.f32 %v739, 0.0
        %v821 = vmax.f32 %v742, 0.0
        %v822 = vmax.f32 %v745, 0.0
        %v823 = vmax.f32 %v748, 0.0
        %v824 = vmax.f32 %v751, 0.0
        %v825 = vmax.f32 %v754, 0.0
        %v826 = vmax.f32 %v757, 0.0
        %v827 = vmax.f32 %v760, 0.0
        %v828 = vmax.f32 %v763, 0.0
        %v829 = vmax.f32 %v766, 0.0
        %v830 = vmax.f32 %v769, 0.0
        %v831 = vmax.f32 %v772, 0.0
        %v832 = vmax.f32 %v775, 0.0
        %v833 = vmax.f32 %v778, 0.0
        %v834 = vmax.f32 %v781, 0.0
        %v835 = vmax.f32 %v784, 0.0
        %v836 = vmax.f32 %v787, 0.0
        %v837 = vmax.f32 %v790, 0.0
        %v838 = vmax.f32 %v793, 0.0
        %v839 = vmax.f32 %v796, 0.0
        %v840 = vmax.f32 %v799, 0.0
        %v841 = vmax.f32 %v802, 0.0
        %v842 = vmax.f32 %v805, 0.0
        %v843 = vmax.f32 %v808, 0.0
        %v844 = vmax.f32 %v811, 0.0
        %845 = vxpose.xlu0.b32.start [1/16] %v813, 128
        %846 = vxpose.xlu0.b32.cont [2/16] %v814, 128
        %847 = vxpose.xlu0.b32.cont [3/16] %v815, 128
        %848 = vxpose.xlu0.b32.cont [4/16] %v816, 128
        %849 = vxpose.xlu0.b32.cont [5/16] %v817, 128
        %850 = vxpose.xlu0.b32.cont [6/16] %v818, 128
        %851 = vxpose.xlu0.b32.cont [7/16] %v819, 128
        %852 = vxpose.xlu0.b32.cont [8/16] %v820, 128
        %853 = vxpose.xlu0.b32.cont [9/16] %v821, 128
        %854 = vxpose.xlu0.b32.cont [10/16] %v822, 128
        %855 = vxpose.xlu0.b32.cont [11/16] %v823, 128
        %856 = vxpose.xlu0.b32.cont [12/16] %v824, 128
        %857 = vxpose.xlu0.b32.cont [13/16] %v825, 128
        %858 = vxpose.xlu0.b32.cont [14/16] %v826, 128
        %859 = vxpose.xlu0.b32.cont [15/16] %v827, 128
        %860 = vxpose.xlu0.b32.end [16/16] %v828, 128
        %v861 = vpop.trf.xlu0
        %v862 = vpop.trf.xlu0
        %v863 = vpop.trf.xlu0
        %v864 = vpop.trf.xlu0
        %v865 = vpop.trf.xlu0
        %v866 = vpop.trf.xlu0
        %v867 = vpop.trf.xlu0
        %v868 = vpop.trf.xlu0
        %v869 = vpop.trf.xlu0
        %v870 = vpop.trf.xlu0
        %v871 = vpop.trf.xlu0
        %v872 = vpop.trf.xlu0
        %v873 = vpop.trf.xlu0
        %v874 = vpop.trf.xlu0
        %v875 = vpop.trf.xlu0
        %v876 = vpop.trf.xlu0
        %877 = vxpose.xlu0.b32.start [1/16] %v829, 128
        %878 = vxpose.xlu0.b32.cont [2/16] %v830, 128
        %879 = vxpose.xlu0.b32.cont [3/16] %v831, 128
        %880 = vxpose.xlu0.b32.cont [4/16] %v832, 128
        %881 = vxpose.xlu0.b32.cont [5/16] %v833, 128
        %882 = vxpose.xlu0.b32.cont [6/16] %v834, 128
        %883 = vxpose.xlu0.b32.cont [7/16] %v835, 128
        %884 = vxpose.xlu0.b32.cont [8/16] %v836, 128
        %885 = vxpose.xlu0.b32.cont [9/16] %v837, 128
        %886 = vxpose.xlu0.b32.cont [10/16] %v838, 128
        %887 = vxpose.xlu0.b32.cont [11/16] %v839, 128
        %888 = vxpose.xlu0.b32.cont [12/16] %v840, 128
        %889 = vxpose.xlu0.b32.cont [13/16] %v841, 128
        %890 = vxpose.xlu0.b32.cont [14/16] %v842, 128
        %891 = vxpose.xlu0.b32.cont [15/16] %v843, 128
        %892 = vxpose.xlu0.b32.end [16/16] %v844, 128
        %v893 = vpop.trf.xlu0
        %v894 = vpop.trf.xlu0
        %v895 = vpop.trf.xlu0
        %v896 = vpop.trf.xlu0
        %v897 = vpop.trf.xlu0
        %v898 = vpop.trf.xlu0
        %v899 = vpop.trf.xlu0
        %v900 = vpop.trf.xlu0
        %v901 = vpop.trf.xlu0
        %v902 = vpop.trf.xlu0
        %v903 = vpop.trf.xlu0
        %v904 = vpop.trf.xlu0
        %v905 = vpop.trf.xlu0
        %v906 = vpop.trf.xlu0
        %v907 = vpop.trf.xlu0
        %v908 = vpop.trf.xlu0
        %v941 = vrot.slane %v893, 7
        %v942 = vrot.slane %v894, 7
        %v943 = vrot.slane %v895, 7
        %v944 = vrot.slane %v896, 7
        %v945 = vrot.slane %v897, 7
        %v946 = vrot.slane %v898, 7
        %v947 = vrot.slane %v899, 7
        %v948 = vrot.slane %v900, 7
        %v949 = vrot.slane %v901, 7
        %v950 = vrot.slane %v902, 7
        %v951 = vrot.slane %v903, 7
        %v952 = vrot.slane %v904, 7
        %v953 = vrot.slane %v905, 7
        %v954 = vrot.slane %v906, 7
        %v955 = vrot.slane %v907, 7
        %v956 = vrot.slane %v908, 7
        %vm957 = vcmask 1040384
        %v958 = vsel %vm957, %v861, %v941
        %vm959 = vcmask 1041409
        %v960 = vsel %vm959, %v861, %v941
        %v961 = vrot.slane %v960, 1
        %vm962 = vcmask 1042434
        %v963 = vsel %vm962, %v861, %v941
        %v964 = vrot.slane %v963, 2
        %vm965 = vcmask 1043459
        %v966 = vsel %vm965, %v861, %v941
        %v967 = vrot.slane %v966, 3
        %vm968 = vcmask 1044484
        %v969 = vsel %vm968, %v861, %v941
        %v970 = vrot.slane %v969, 4
        %vm971 = vcmask 1045509
        %v972 = vsel %vm971, %v861, %v941
        %v973 = vrot.slane %v972, 5
        %vm974 = vcmask 1046534
        %v975 = vsel %vm974, %v861, %v941
        %v976 = vrot.slane %v975, 6
        %v977 = vsel %vm298, %v941, %v861
        %v978 = vrot.slane %v977, 7
        %v979 = vsel %vm957, %v862, %v942
        %v980 = vsel %vm959, %v862, %v942
        %v981 = vrot.slane %v980, 1
        %v982 = vsel %vm962, %v862, %v942
        %v983 = vrot.slane %v982, 2
        %v984 = vsel %vm965, %v862, %v942
        %v985 = vrot.slane %v984, 3
        %v986 = vsel %vm968, %v862, %v942
        %v987 = vrot.slane %v986, 4
        %v988 = vsel %vm971, %v862, %v942
        %v989 = vrot.slane %v988, 5
        %v990 = vsel %vm974, %v862, %v942
        %v991 = vrot.slane %v990, 6
        %v992 = vsel %vm298, %v942, %v862
        %v993 = vrot.slane %v992, 7
        %v994 = vsel %vm957, %v863, %v943
        %v995 = vsel %vm959, %v863, %v943
        %v996 = vrot.slane %v995, 1
        %v997 = vsel %vm962, %v863, %v943
        %v998 = vrot.slane %v997, 2
        %v999 = vsel %vm965, %v863, %v943
        %v1000 = vrot.slane %v999, 3
        %v1001 = vsel %vm968, %v863, %v943
        %v1002 = vrot.slane %v1001, 4
        %v1003 = vsel %vm971, %v863, %v943
        %v1004 = vrot.slane %v1003, 5
        %v1005 = vsel %vm974, %v863, %v943
        %v1006 = vrot.slane %v1005, 6
        %v1007 = vsel %vm298, %v943, %v863
        %v1008 = vrot.slane %v1007, 7
        %v1009 = vsel %vm957, %v864, %v944
        %v1010 = vsel %vm959, %v864, %v944
        %v1011 = vrot.slane %v1010, 1
        %v1012 = vsel %vm962, %v864, %v944
        %v1013 = vrot.slane %v1012, 2
        %v1014 = vsel %vm965, %v864, %v944
        %v1015 = vrot.slane %v1014, 3
        %v1016 = vsel %vm968, %v864, %v944
        %v1017 = vrot.slane %v1016, 4
        %v1018 = vsel %vm971, %v864, %v944
        %v1019 = vrot.slane %v1018, 5
        %v1020 = vsel %vm974, %v864, %v944
        %v1021 = vrot.slane %v1020, 6
        %v1022 = vsel %vm298, %v944, %v864
        %v1023 = vrot.slane %v1022, 7
        %v1024 = vsel %vm957, %v865, %v945
        %v1025 = vsel %vm959, %v865, %v945
        %v1026 = vrot.slane %v1025, 1
        %v1027 = vsel %vm962, %v865, %v945
        %v1028 = vrot.slane %v1027, 2
        %v1029 = vsel %vm965, %v865, %v945
        %v1030 = vrot.slane %v1029, 3
        %v1031 = vsel %vm968, %v865, %v945
        %v1032 = vrot.slane %v1031, 4
        %v1033 = vsel %vm971, %v865, %v945
        %v1034 = vrot.slane %v1033, 5
        %v1035 = vsel %vm974, %v865, %v945
        %v1036 = vrot.slane %v1035, 6
        %v1037 = vsel %vm298, %v945, %v865
        %v1038 = vrot.slane %v1037, 7
        %v1039 = vsel %vm957, %v866, %v946
        %v1040 = vsel %vm959, %v866, %v946
        %v1041 = vrot.slane %v1040, 1
        %v1042 = vsel %vm962, %v866, %v946
        %v1043 = vrot.slane %v1042, 2
        %v1044 = vsel %vm965, %v866, %v946
        %v1045 = vrot.slane %v1044, 3
        %v1046 = vsel %vm968, %v866, %v946
        %v1047 = vrot.slane %v1046, 4
        %v1048 = vsel %vm971, %v866, %v946
        %v1049 = vrot.slane %v1048, 5
        %v1050 = vsel %vm974, %v866, %v946
        %v1051 = vrot.slane %v1050, 6
        %v1052 = vsel %vm298, %v946, %v866
        %v1053 = vrot.slane %v1052, 7
        %v1054 = vsel %vm957, %v867, %v947
        %v1055 = vsel %vm959, %v867, %v947
        %v1056 = vrot.slane %v1055, 1
        %v1057 = vsel %vm962, %v867, %v947
        %v1058 = vrot.slane %v1057, 2
        %v1059 = vsel %vm965, %v867, %v947
        %v1060 = vrot.slane %v1059, 3
        %v1061 = vsel %vm968, %v867, %v947
        %v1062 = vrot.slane %v1061, 4
        %v1063 = vsel %vm971, %v867, %v947
        %v1064 = vrot.slane %v1063, 5
        %v1065 = vsel %vm974, %v867, %v947
        %v1066 = vrot.slane %v1065, 6
        %v1067 = vsel %vm298, %v947, %v867
        %v1068 = vrot.slane %v1067, 7
        %v1069 = vsel %vm957, %v868, %v948
        %v1070 = vsel %vm959, %v868, %v948
        %v1071 = vrot.slane %v1070, 1
        %v1072 = vsel %vm962, %v868, %v948
        %v1073 = vrot.slane %v1072, 2
        %v1074 = vsel %vm965, %v868, %v948
        %v1075 = vrot.slane %v1074, 3
        %v1076 = vsel %vm968, %v868, %v948
        %v1077 = vrot.slane %v1076, 4
        %v1078 = vsel %vm971, %v868, %v948
        %v1079 = vrot.slane %v1078, 5
        %v1080 = vsel %vm974, %v868, %v948
        %v1081 = vrot.slane %v1080, 6
        %v1082 = vsel %vm298, %v948, %v868
        %v1083 = vrot.slane %v1082, 7
        %v1084 = vsel %vm957, %v869, %v949
        %v1085 = vsel %vm959, %v869, %v949
        %v1086 = vrot.slane %v1085, 1
        %v1087 = vsel %vm962, %v869, %v949
        %v1088 = vrot.slane %v1087, 2
        %v1089 = vsel %vm965, %v869, %v949
        %v1090 = vrot.slane %v1089, 3
        %v1091 = vsel %vm968, %v869, %v949
        %v1092 = vrot.slane %v1091, 4
        %v1093 = vsel %vm971, %v869, %v949
        %v1094 = vrot.slane %v1093, 5
        %v1095 = vsel %vm974, %v869, %v949
        %v1096 = vrot.slane %v1095, 6
        %v1097 = vsel %vm298, %v949, %v869
        %v1098 = vrot.slane %v1097, 7
        %v1099 = vsel %vm957, %v870, %v950
        %v1100 = vsel %vm959, %v870, %v950
        %v1101 = vrot.slane %v1100, 1
        %v1102 = vsel %vm962, %v870, %v950
        %v1103 = vrot.slane %v1102, 2
        %v1104 = vsel %vm965, %v870, %v950
        %v1105 = vrot.slane %v1104, 3
        %v1106 = vsel %vm968, %v870, %v950
        %v1107 = vrot.slane %v1106, 4
        %v1108 = vsel %vm971, %v870, %v950
        %v1109 = vrot.slane %v1108, 5
        %v1110 = vsel %vm974, %v870, %v950
        %v1111 = vrot.slane %v1110, 6
        %v1112 = vsel %vm298, %v950, %v870
        %v1113 = vrot.slane %v1112, 7
        %v1114 = vsel %vm957, %v871, %v951
        %v1115 = vsel %vm959, %v871, %v951
        %v1116 = vrot.slane %v1115, 1
        %v1117 = vsel %vm962, %v871, %v951
        %v1118 = vrot.slane %v1117, 2
        %v1119 = vsel %vm965, %v871, %v951
        %v1120 = vrot.slane %v1119, 3
        %v1121 = vsel %vm968, %v871, %v951
        %v1122 = vrot.slane %v1121, 4
        %v1123 = vsel %vm971, %v871, %v951
        %v1124 = vrot.slane %v1123, 5
        %v1125 = vsel %vm974, %v871, %v951
        %v1126 = vrot.slane %v1125, 6
        %v1127 = vsel %vm298, %v951, %v871
        %v1128 = vrot.slane %v1127, 7
        %v1129 = vsel %vm957, %v872, %v952
        %v1130 = vsel %vm959, %v872, %v952
        %v1131 = vrot.slane %v1130, 1
        %v1132 = vsel %vm962, %v872, %v952
        %v1133 = vrot.slane %v1132, 2
        %v1134 = vsel %vm965, %v872, %v952
        %v1135 = vrot.slane %v1134, 3
        %v1136 = vsel %vm968, %v872, %v952
        %v1137 = vrot.slane %v1136, 4
        %v1138 = vsel %vm971, %v872, %v952
        %v1139 = vrot.slane %v1138, 5
        %v1140 = vsel %vm974, %v872, %v952
        %v1141 = vrot.slane %v1140, 6
        %v1142 = vsel %vm298, %v952, %v872
        %v1143 = vrot.slane %v1142, 7
        %v1144 = vsel %vm957, %v873, %v953
        %v1145 = vsel %vm959, %v873, %v953
        %v1146 = vrot.slane %v1145, 1
        %v1147 = vsel %vm962, %v873, %v953
        %v1148 = vrot.slane %v1147, 2
        %v1149 = vsel %vm965, %v873, %v953
        %v1150 = vrot.slane %v1149, 3
        %v1151 = vsel %vm968, %v873, %v953
        %v1152 = vrot.slane %v1151, 4
        %v1153 = vsel %vm971, %v873, %v953
        %v1154 = vrot.slane %v1153, 5
        %v1155 = vsel %vm974, %v873, %v953
        %v1156 = vrot.slane %v1155, 6
        %v1157 = vsel %vm298, %v953, %v873
        %v1158 = vrot.slane %v1157, 7
        %v1159 = vsel %vm957, %v874, %v954
        %v1160 = vsel %vm959, %v874, %v954
        %v1161 = vrot.slane %v1160, 1
        %v1162 = vsel %vm962, %v874, %v954
        %v1163 = vrot.slane %v1162, 2
        %v1164 = vsel %vm965, %v874, %v954
        %v1165 = vrot.slane %v1164, 3
        %v1166 = vsel %vm968, %v874, %v954
        %v1167 = vrot.slane %v1166, 4
        %v1168 = vsel %vm971, %v874, %v954
        %v1169 = vrot.slane %v1168, 5
        %v1170 = vsel %vm974, %v874, %v954
        %v1171 = vrot.slane %v1170, 6
        %v1172 = vsel %vm298, %v954, %v874
        %v1173 = vrot.slane %v1172, 7
        %v1174 = vsel %vm957, %v875, %v955
        %v1175 = vsel %vm959, %v875, %v955
        %v1176 = vrot.slane %v1175, 1
        %v1177 = vsel %vm962, %v875, %v955
        %v1178 = vrot.slane %v1177, 2
        %v1179 = vsel %vm965, %v875, %v955
        %v1180 = vrot.slane %v1179, 3
        %v1181 = vsel %vm968, %v875, %v955
        %v1182 = vrot.slane %v1181, 4
        %v1183 = vsel %vm971, %v875, %v955
        %v1184 = vrot.slane %v1183, 5
        %v1185 = vsel %vm974, %v875, %v955
        %v1186 = vrot.slane %v1185, 6
        %v1187 = vsel %vm298, %v955, %v875
        %v1188 = vrot.slane %v1187, 7
        %v1189 = vsel %vm957, %v876, %v956
        %v1190 = vsel %vm959, %v876, %v956
        %v1191 = vrot.slane %v1190, 1
        %v1192 = vsel %vm962, %v876, %v956
        %v1193 = vrot.slane %v1192, 2
        %v1194 = vsel %vm965, %v876, %v956
        %v1195 = vrot.slane %v1194, 3
        %v1196 = vsel %vm968, %v876, %v956
        %v1197 = vrot.slane %v1196, 4
        %v1198 = vsel %vm971, %v876, %v956
        %v1199 = vrot.slane %v1198, 5
        %1200 = vst [vmem:[#allocation1] ss:$9 sm:$0xff] %v958
        %s1201 = scalar_lea.vmem [#allocation1], 1
        %1202 = vst [vmem:[%s1201] ss:$9 sm:$0xff] %v961
        %s1203 = scalar_lea.vmem [#allocation1], 2
        %1204 = vst [vmem:[%s1203] ss:$9 sm:$0xff] %v964
        %v1205 = vld [vmem:[#allocation1] sm:$0xff]
        %v1206 = vld [vmem:[#allocation1 + $0x9] sm:$0xff]
        %1207 = vst [vmem:[#allocation1] ss:$9 sm:$0xff] %v967
        %1208 = vst [vmem:[%s1201] ss:$9 sm:$0xff] %v970
        %1209 = vst [vmem:[%s1203] ss:$9 sm:$0xff] %v973
        %v1210 = vld [vmem:[#allocation1] sm:$0xff]
        %v1211 = vld [vmem:[#allocation1 + $0x9] sm:$0xff]
        %1212 = vst [vmem:[#allocation1] ss:$9 sm:$0xff] %v976
        %1213 = vst [vmem:[%s1201] ss:$9 sm:$0xff] %v978
        %1214 = vst [vmem:[%s1203] ss:$9 sm:$0xff] %v979
        %v1215 = vld [vmem:[#allocation1] sm:$0xff]
        %v1216 = vld [vmem:[#allocation1 + $0x9] sm:$0xff]
        %1217 = vst [vmem:[#allocation1] ss:$9 sm:$0xff] %v981
        %1218 = vst [vmem:[%s1201] ss:$9 sm:$0xff] %v983
        %1219 = vst [vmem:[%s1203] ss:$9 sm:$0xff] %v985
        %v1220 = vld [vmem:[#allocation1] sm:$0xff]
        %v1221 = vld [vmem:[#allocation1 + $0x9] sm:$0xff]
        %1222 = vst [vmem:[#allocation1] ss:$9 sm:$0xff] %v987
        %1223 = vst [vmem:[%s1201] ss:$9 sm:$0xff] %v989
        %1224 = vst [vmem:[%s1203] ss:$9 sm:$0xff] %v991
        %v1225 = vld [vmem:[#allocation1] sm:$0xff]
        %v1226 = vld [vmem:[#allocation1 + $0x9] sm:$0xff]
        %1227 = vst [vmem:[#allocation1] ss:$9 sm:$0xff] %v993
        %1228 = vst [vmem:[%s1201] ss:$9 sm:$0xff] %v994
        %1229 = vst [vmem:[%s1203] ss:$9 sm:$0xff] %v996
        %v1230 = vld [vmem:[#allocation1] sm:$0xff]
        %v1231 = vld [vmem:[#allocation1 + $0x9] sm:$0xff]
        %1232 = vst [vmem:[#allocation1] ss:$9 sm:$0xff] %v998
        %1233 = vst [vmem:[%s1201] ss:$9 sm:$0xff] %v1000
        %1234 = vst [vmem:[%s1203] ss:$9 sm:$0xff] %v1002
        %v1235 = vld [vmem:[#allocation1] sm:$0xff]
        %v1236 = vld [vmem:[#allocation1 + $0x9] sm:$0xff]
        %1237 = vst [vmem:[#allocation1] ss:$9 sm:$0xff] %v1004
        %1238 = vst [vmem:[%s1201] ss:$9 sm:$0xff] %v1006
        %1239 = vst [vmem:[%s1203] ss:$9 sm:$0xff] %v1008
        %v1240 = vld [vmem:[#allocation1] sm:$0xff]
        %v1241 = vld [vmem:[#allocation1 + $0x9] sm:$0xff]
        %1242 = vst [vmem:[#allocation1] ss:$9 sm:$0xff] %v1009
        %1243 = vst [vmem:[%s1201] ss:$9 sm:$0xff] %v1011
        %1244 = vst [vmem:[%s1203] ss:$9 sm:$0xff] %v1013
        %v1245 = vld [vmem:[#allocation1] sm:$0xff]
        %v1246 = vld [vmem:[#allocation1 + $0x9] sm:$0xff]
        %1247 = vst [vmem:[#allocation1] ss:$9 sm:$0xff] %v1015
        %1248 = vst [vmem:[%s1201] ss:$9 sm:$0xff] %v1017
        %1249 = vst [vmem:[%s1203] ss:$9 sm:$0xff] %v1019
        %v1250 = vld [vmem:[#allocation1] sm:$0xff]
        %v1251 = vld [vmem:[#allocation1 + $0x9] sm:$0xff]
        %1252 = vst [vmem:[#allocation1] ss:$9 sm:$0xff] %v1021
        %1253 = vst [vmem:[%s1201] ss:$9 sm:$0xff] %v1023
        %1254 = vst [vmem:[%s1203] ss:$9 sm:$0xff] %v1024
        %v1255 = vld [vmem:[#allocation1] sm:$0xff]
        %v1256 = vld [vmem:[#allocation1 + $0x9] sm:$0xff]
        %1257 = vst [vmem:[#allocation1] ss:$9 sm:$0xff] %v1026
        %1258 = vst [vmem:[%s1201] ss:$9 sm:$0xff] %v1028
        %1259 = vst [vmem:[%s1203] ss:$9 sm:$0xff] %v1030
        %v1260 = vld [vmem:[#allocation1] sm:$0xff]
        %v1261 = vld [vmem:[#allocation1 + $0x9] sm:$0xff]
        %1262 = vst [vmem:[#allocation1] ss:$9 sm:$0xff] %v1032
        %1263 = vst [vmem:[%s1201] ss:$9 sm:$0xff] %v1034
        %1264 = vst [vmem:[%s1203] ss:$9 sm:$0xff] %v1036
        %v1265 = vld [vmem:[#allocation1] sm:$0xff]
        %v1266 = vld [vmem:[#allocation1 + $0x9] sm:$0xff]
        %1267 = vst [vmem:[#allocation1] ss:$9 sm:$0xff] %v1038
        %1268 = vst [vmem:[%s1201] ss:$9 sm:$0xff] %v1039
        %1269 = vst [vmem:[%s1203] ss:$9 sm:$0xff] %v1041
        %v1270 = vld [vmem:[#allocation1] sm:$0xff]
        %v1271 = vld [vmem:[#allocation1 + $0x9] sm:$0xff]
        %1272 = vst [vmem:[#allocation1] ss:$9 sm:$0xff] %v1043
        %1273 = vst [vmem:[%s1201] ss:$9 sm:$0xff] %v1045
        %1274 = vst [vmem:[%s1203] ss:$9 sm:$0xff] %v1047
        %v1275 = vld [vmem:[#allocation1] sm:$0xff]
        %v1276 = vld [vmem:[#allocation1 + $0x9] sm:$0xff]
        %1277 = vst [vmem:[#allocation1] ss:$9 sm:$0xff] %v1049
        %1278 = vst [vmem:[%s1201] ss:$9 sm:$0xff] %v1051
        %1279 = vst [vmem:[%s1203] ss:$9 sm:$0xff] %v1053
        %v1280 = vld [vmem:[#allocation1] sm:$0xff]
        %v1281 = vld [vmem:[#allocation1 + $0x9] sm:$0xff]
        %1282 = vst [vmem:[#allocation1] ss:$9 sm:$0xff] %v1054
        %1283 = vst [vmem:[%s1201] ss:$9 sm:$0xff] %v1056
        %1284 = vst [vmem:[%s1203] ss:$9 sm:$0xff] %v1058
        %v1285 = vld [vmem:[#allocation1] sm:$0xff]
        %v1286 = vld [vmem:[#allocation1 + $0x9] sm:$0xff]
        %1287 = vst [vmem:[#allocation1] ss:$9 sm:$0xff] %v1060
        %1288 = vst [vmem:[%s1201] ss:$9 sm:$0xff] %v1062
        %1289 = vst [vmem:[%s1203] ss:$9 sm:$0xff] %v1064
        %v1290 = vld [vmem:[#allocation1] sm:$0xff]
        %v1291 = vld [vmem:[#allocation1 + $0x9] sm:$0xff]
        %1292 = vst [vmem:[#allocation1] ss:$9 sm:$0xff] %v1066
        %1293 = vst [vmem:[%s1201] ss:$9 sm:$0xff] %v1068
        %1294 = vst [vmem:[%s1203] ss:$9 sm:$0xff] %v1069
        %v1295 = vld [vmem:[#allocation1] sm:$0xff]
        %v1296 = vld [vmem:[#allocation1 + $0x9] sm:$0xff]
        %1297 = vst [vmem:[#allocation1] ss:$9 sm:$0xff] %v1071
        %1298 = vst [vmem:[%s1201] ss:$9 sm:$0xff] %v1073
        %1299 = vst [vmem:[%s1203] ss:$9 sm:$0xff] %v1075
        %v1300 = vld [vmem:[#allocation1] sm:$0xff]
        %v1301 = vld [vmem:[#allocation1 + $0x9] sm:$0xff]
        %1302 = vst [vmem:[#allocation1] ss:$9 sm:$0xff] %v1077
        %1303 = vst [vmem:[%s1201] ss:$9 sm:$0xff] %v1079
        %1304 = vst [vmem:[%s1203] ss:$9 sm:$0xff] %v1081
        %v1305 = vld [vmem:[#allocation1] sm:$0xff]
        %v1306 = vld [vmem:[#allocation1 + $0x9] sm:$0xff]
        %1307 = vst [vmem:[#allocation1] ss:$9 sm:$0xff] %v1083
        %1308 = vst [vmem:[%s1201] ss:$9 sm:$0xff] %v1084
        %1309 = vst [vmem:[%s1203] ss:$9 sm:$0xff] %v1086
        %v1310 = vld [vmem:[#allocation1] sm:$0xff]
        %v1311 = vld [vmem:[#allocation1 + $0x9] sm:$0xff]
        %1312 = vst [vmem:[#allocation1] ss:$9 sm:$0xff] %v1088
        %1313 = vst [vmem:[%s1201] ss:$9 sm:$0xff] %v1090
        %1314 = vst [vmem:[%s1203] ss:$9 sm:$0xff] %v1092
        %v1315 = vld [vmem:[#allocation1] sm:$0xff]
        %v1316 = vld [vmem:[#allocation1 + $0x9] sm:$0xff]
        %1317 = vst [vmem:[#allocation1] ss:$9 sm:$0xff] %v1094
        %1318 = vst [vmem:[%s1201] ss:$9 sm:$0xff] %v1096
        %1319 = vst [vmem:[%s1203] ss:$9 sm:$0xff] %v1098
        %v1320 = vld [vmem:[#allocation1] sm:$0xff]
        %v1321 = vld [vmem:[#allocation1 + $0x9] sm:$0xff]
        %1322 = vst [vmem:[#allocation1] ss:$9 sm:$0xff] %v1099
        %1323 = vst [vmem:[%s1201] ss:$9 sm:$0xff] %v1101
        %1324 = vst [vmem:[%s1203] ss:$9 sm:$0xff] %v1103
        %v1325 = vld [vmem:[#allocation1] sm:$0xff]
        %v1326 = vld [vmem:[#allocation1 + $0x9] sm:$0xff]
        %1327 = vst [vmem:[#allocation1] ss:$9 sm:$0xff] %v1105
        %1328 = vst [vmem:[%s1201] ss:$9 sm:$0xff] %v1107
        %1329 = vst [vmem:[%s1203] ss:$9 sm:$0xff] %v1109
        %v1330 = vld [vmem:[#allocation1] sm:$0xff]
        %v1331 = vld [vmem:[#allocation1 + $0x9] sm:$0xff]
        %1332 = vst [vmem:[#allocation1] ss:$9 sm:$0xff] %v1111
        %1333 = vst [vmem:[%s1201] ss:$9 sm:$0xff] %v1113
        %1334 = vst [vmem:[%s1203] ss:$9 sm:$0xff] %v1114
        %v1335 = vld [vmem:[#allocation1] sm:$0xff]
        %v1336 = vld [vmem:[#allocation1 + $0x9] sm:$0xff]
        %1337 = vst [vmem:[#allocation1] ss:$9 sm:$0xff] %v1116
        %1338 = vst [vmem:[%s1201] ss:$9 sm:$0xff] %v1118
        %1339 = vst [vmem:[%s1203] ss:$9 sm:$0xff] %v1120
        %v1340 = vld [vmem:[#allocation1] sm:$0xff]
        %v1341 = vld [vmem:[#allocation1 + $0x9] sm:$0xff]
        %1342 = vst [vmem:[#allocation1] ss:$9 sm:$0xff] %v1122
        %1343 = vst [vmem:[%s1201] ss:$9 sm:$0xff] %v1124
        %1344 = vst [vmem:[%s1203] ss:$9 sm:$0xff] %v1126
        %v1345 = vld [vmem:[#allocation1] sm:$0xff]
        %v1346 = vld [vmem:[#allocation1 + $0x9] sm:$0xff]
        %1347 = vst [vmem:[#allocation1] ss:$9 sm:$0xff] %v1128
        %1348 = vst [vmem:[%s1201] ss:$9 sm:$0xff] %v1129
        %1349 = vst [vmem:[%s1203] ss:$9 sm:$0xff] %v1131
        %v1350 = vld [vmem:[#allocation1] sm:$0xff]
        %v1351 = vld [vmem:[#allocation1 + $0x9] sm:$0xff]
        %1352 = vst [vmem:[#allocation1] ss:$9 sm:$0xff] %v1133
        %1353 = vst [vmem:[%s1201] ss:$9 sm:$0xff] %v1135
        %1354 = vst [vmem:[%s1203] ss:$9 sm:$0xff] %v1137
        %v1355 = vld [vmem:[#allocation1] sm:$0xff]
        %v1356 = vld [vmem:[#allocation1 + $0x9] sm:$0xff]
        %1357 = vst [vmem:[#allocation1] ss:$9 sm:$0xff] %v1139
        %1358 = vst [vmem:[%s1201] ss:$9 sm:$0xff] %v1141
        %1359 = vst [vmem:[%s1203] ss:$9 sm:$0xff] %v1143
        %v1360 = vld [vmem:[#allocation1] sm:$0xff]
        %v1361 = vld [vmem:[#allocation1 + $0x9] sm:$0xff]
        %1362 = vst [vmem:[#allocation1] ss:$9 sm:$0xff] %v1144
        %1363 = vst [vmem:[%s1201] ss:$9 sm:$0xff] %v1146
        %1364 = vst [vmem:[%s1203] ss:$9 sm:$0xff] %v1148
        %v1365 = vld [vmem:[#allocation1] sm:$0xff]
        %v1366 = vld [vmem:[#allocation1 + $0x9] sm:$0xff]
        %1367 = vst [vmem:[#allocation1] ss:$9 sm:$0xff] %v1150
        %1368 = vst [vmem:[%s1201] ss:$9 sm:$0xff] %v1152
        %1369 = vst [vmem:[%s1203] ss:$9 sm:$0xff] %v1154
        %v1370 = vld [vmem:[#allocation1] sm:$0xff]
        %v1371 = vld [vmem:[#allocation1 + $0x9] sm:$0xff]
        %1372 = vst [vmem:[#allocation1] ss:$9 sm:$0xff] %v1156
        %1373 = vst [vmem:[%s1201] ss:$9 sm:$0xff] %v1158
        %1374 = vst [vmem:[%s1203] ss:$9 sm:$0xff] %v1159
        %v1375 = vld [vmem:[#allocation1] sm:$0xff]
        %v1376 = vld [vmem:[#allocation1 + $0x9] sm:$0xff]
        %1377 = vst [vmem:[#allocation1] ss:$9 sm:$0xff] %v1161
        %1378 = vst [vmem:[%s1201] ss:$9 sm:$0xff] %v1163
        %1379 = vst [vmem:[%s1203] ss:$9 sm:$0xff] %v1165
        %v1380 = vld [vmem:[#allocation1] sm:$0xff]
        %v1381 = vld [vmem:[#allocation1 + $0x9] sm:$0xff]
        %1382 = vst [vmem:[#allocation1] ss:$9 sm:$0xff] %v1167
        %1383 = vst [vmem:[%s1201] ss:$9 sm:$0xff] %v1169
        %1384 = vst [vmem:[%s1203] ss:$9 sm:$0xff] %v1171
        %v1385 = vld [vmem:[#allocation1] sm:$0xff]
        %v1386 = vld [vmem:[#allocation1 + $0x9] sm:$0xff]
        %1387 = vst [vmem:[#allocation1] ss:$9 sm:$0xff] %v1173
        %1388 = vst [vmem:[%s1201] ss:$9 sm:$0xff] %v1174
        %1389 = vst [vmem:[%s1203] ss:$9 sm:$0xff] %v1176
        %v1390 = vld [vmem:[#allocation1] sm:$0xff]
        %v1391 = vld [vmem:[#allocation1 + $0x9] sm:$0xff]
        %1392 = vst [vmem:[#allocation1] ss:$9 sm:$0xff] %v1178
        %1393 = vst [vmem:[%s1201] ss:$9 sm:$0xff] %v1180
        %1394 = vst [vmem:[%s1203] ss:$9 sm:$0xff] %v1182
        %v1395 = vld [vmem:[#allocation1] sm:$0xff]
        %v1396 = vld [vmem:[#allocation1 + $0x9] sm:$0xff]
        %1397 = vst [vmem:[#allocation1] ss:$9 sm:$0xff] %v1184
        %1398 = vst [vmem:[%s1201] ss:$9 sm:$0xff] %v1186
        %1399 = vst [vmem:[%s1203] ss:$9 sm:$0xff] %v1188
        %v1400 = vld [vmem:[#allocation1] sm:$0xff]
        %v1401 = vld [vmem:[#allocation1 + $0x9] sm:$0xff]
        %1402 = vst [vmem:[#allocation1] ss:$9 sm:$0xff] %v1189
        %1403 = vst [vmem:[%s1201] ss:$9 sm:$0xff] %v1191
        %1404 = vst [vmem:[%s1203] ss:$9 sm:$0xff] %v1193
        %v1405 = vld [vmem:[#allocation1] sm:$0xff]
        %v1406 = vld [vmem:[#allocation1 + $0x9] sm:$0xff]
        %1407 = vst [vmem:[#allocation1] ss:$9 sm:$0xff] %v1195
        %1408 = vst [vmem:[%s1201] ss:$9 sm:$0xff] %v1197
        %1409 = vst [vmem:[%s1203] ss:$9 sm:$0xff] %v1199
        %v1410 = vld [vmem:[#allocation1] sm:$0xff]
        %v1411 = vld [vmem:[#allocation1 + $0x9] sm:$0xff]
        %vm1496 = vcmask 1042432
        %v1497 = vsel %vm1496, %v1205, -inf
        %v1498 = vrot.slane %v1497, 4
        %v1499 = vmax.f32 %v1497, %v1498
        %v1500 = vrot.slane %v1499, 2
        %v1501 = vmax.f32 %v1499, %v1500
        %v1502 = vrot.slane %v1501, 1
        %v1503 = vmax.f32 %v1501, %v1502
        %v1504 = vsel %vm1496, %v1206, -inf
        %v1505 = vrot.slane %v1504, 4
        %v1506 = vmax.f32 %v1504, %v1505
        %v1507 = vrot.slane %v1506, 2
        %v1508 = vmax.f32 %v1506, %v1507
        %v1509 = vrot.slane %v1508, 1
        %v1510 = vmax.f32 %v1508, %v1509
        %v1511 = vsel %vm1496, %v1210, -inf
        %v1512 = vrot.slane %v1511, 4
        %v1513 = vmax.f32 %v1511, %v1512
        %v1514 = vrot.slane %v1513, 2
        %v1515 = vmax.f32 %v1513, %v1514
        %v1516 = vrot.slane %v1515, 1
        %v1517 = vmax.f32 %v1515, %v1516
        %v1518 = vsel %vm1496, %v1211, -inf
        %v1519 = vrot.slane %v1518, 4
        %v1520 = vmax.f32 %v1518, %v1519
        %v1521 = vrot.slane %v1520, 2
        %v1522 = vmax.f32 %v1520, %v1521
        %v1523 = vrot.slane %v1522, 1
        %v1524 = vmax.f32 %v1522, %v1523
        %v1525 = vsel %vm1496, %v1215, -inf
        %v1526 = vrot.slane %v1525, 4
        %v1527 = vmax.f32 %v1525, %v1526
        %v1528 = vrot.slane %v1527, 2
        %v1529 = vmax.f32 %v1527, %v1528
        %v1530 = vrot.slane %v1529, 1
        %v1531 = vmax.f32 %v1529, %v1530
        %v1532 = vsel %vm1496, %v1216, -inf
        %v1533 = vrot.slane %v1532, 4
        %v1534 = vmax.f32 %v1532, %v1533
        %v1535 = vrot.slane %v1534, 2
        %v1536 = vmax.f32 %v1534, %v1535
        %v1537 = vrot.slane %v1536, 1
        %v1538 = vmax.f32 %v1536, %v1537
        %v1539 = vsel %vm1496, %v1220, -inf
        %v1540 = vrot.slane %v1539, 4
        %v1541 = vmax.f32 %v1539, %v1540
        %v1542 = vrot.slane %v1541, 2
        %v1543 = vmax.f32 %v1541, %v1542
        %v1544 = vrot.slane %v1543, 1
        %v1545 = vmax.f32 %v1543, %v1544
        %v1546 = vsel %vm1496, %v1221, -inf
        %v1547 = vrot.slane %v1546, 4
        %v1548 = vmax.f32 %v1546, %v1547
        %v1549 = vrot.slane %v1548, 2
        %v1550 = vmax.f32 %v1548, %v1549
        %v1551 = vrot.slane %v1550, 1
        %v1552 = vmax.f32 %v1550, %v1551
        %v1553 = vsel %vm1496, %v1225, -inf
        %v1554 = vrot.slane %v1553, 4
        %v1555 = vmax.f32 %v1553, %v1554
        %v1556 = vrot.slane %v1555, 2
        %v1557 = vmax.f32 %v1555, %v1556
        %v1558 = vrot.slane %v1557, 1
        %v1559 = vmax.f32 %v1557, %v1558
        %v1560 = vsel %vm1496, %v1226, -inf
        %v1561 = vrot.slane %v1560, 4
        %v1562 = vmax.f32 %v1560, %v1561
        %v1563 = vrot.slane %v1562, 2
        %v1564 = vmax.f32 %v1562, %v1563
        %v1565 = vrot.slane %v1564, 1
        %v1566 = vmax.f32 %v1564, %v1565
        %v1567 = vsel %vm1496, %v1230, -inf
        %v1568 = vrot.slane %v1567, 4
        %v1569 = vmax.f32 %v1567, %v1568
        %v1570 = vrot.slane %v1569, 2
        %v1571 = vmax.f32 %v1569, %v1570
        %v1572 = vrot.slane %v1571, 1
        %v1573 = vmax.f32 %v1571, %v1572
        %v1574 = vsel %vm1496, %v1231, -inf
        %v1575 = vrot.slane %v1574, 4
        %v1576 = vmax.f32 %v1574, %v1575
        %v1577 = vrot.slane %v1576, 2
        %v1578 = vmax.f32 %v1576, %v1577
        %v1579 = vrot.slane %v1578, 1
        %v1580 = vmax.f32 %v1578, %v1579
        %v1581 = vsel %vm1496, %v1235, -inf
        %v1582 = vrot.slane %v1581, 4
        %v1583 = vmax.f32 %v1581, %v1582
        %v1584 = vrot.slane %v1583, 2
        %v1585 = vmax.f32 %v1583, %v1584
        %v1586 = vrot.slane %v1585, 1
        %v1587 = vmax.f32 %v1585, %v1586
        %v1588 = vsel %vm1496, %v1236, -inf
        %v1589 = vrot.slane %v1588, 4
        %v1590 = vmax.f32 %v1588, %v1589
        %v1591 = vrot.slane %v1590, 2
        %v1592 = vmax.f32 %v1590, %v1591
        %v1593 = vrot.slane %v1592, 1
        %v1594 = vmax.f32 %v1592, %v1593
        %v1595 = vsel %vm1496, %v1240, -inf
        %v1596 = vrot.slane %v1595, 4
        %v1597 = vmax.f32 %v1595, %v1596
        %v1598 = vrot.slane %v1597, 2
        %v1599 = vmax.f32 %v1597, %v1598
        %v1600 = vrot.slane %v1599, 1
        %v1601 = vmax.f32 %v1599, %v1600
        %v1602 = vsel %vm1496, %v1241, -inf
        %v1603 = vrot.slane %v1602, 4
        %v1604 = vmax.f32 %v1602, %v1603
        %v1605 = vrot.slane %v1604, 2
        %v1606 = vmax.f32 %v1604, %v1605
        %v1607 = vrot.slane %v1606, 1
        %v1608 = vmax.f32 %v1606, %v1607
        %v1609 = vsel %vm1496, %v1245, -inf
        %v1610 = vrot.slane %v1609, 4
        %v1611 = vmax.f32 %v1609, %v1610
        %v1612 = vrot.slane %v1611, 2
        %v1613 = vmax.f32 %v1611, %v1612
        %v1614 = vrot.slane %v1613, 1
        %v1615 = vmax.f32 %v1613, %v1614
        %v1616 = vsel %vm1496, %v1246, -inf
        %v1617 = vrot.slane %v1616, 4
        %v1618 = vmax.f32 %v1616, %v1617
        %v1619 = vrot.slane %v1618, 2
        %v1620 = vmax.f32 %v1618, %v1619
        %v1621 = vrot.slane %v1620, 1
        %v1622 = vmax.f32 %v1620, %v1621
        %v1623 = vsel %vm1496, %v1250, -inf
        %v1624 = vrot.slane %v1623, 4
        %v1625 = vmax.f32 %v1623, %v1624
        %v1626 = vrot.slane %v1625, 2
        %v1627 = vmax.f32 %v1625, %v1626
        %v1628 = vrot.slane %v1627, 1
        %v1629 = vmax.f32 %v1627, %v1628
        %v1630 = vsel %vm1496, %v1251, -inf
        %v1631 = vrot.slane %v1630, 4
        %v1632 = vmax.f32 %v1630, %v1631
        %v1633 = vrot.slane %v1632, 2
        %v1634 = vmax.f32 %v1632, %v1633
        %v1635 = vrot.slane %v1634, 1
        %v1636 = vmax.f32 %v1634, %v1635
        %v1637 = vsel %vm1496, %v1255, -inf
        %v1638 = vrot.slane %v1637, 4
        %v1639 = vmax.f32 %v1637, %v1638
        %v1640 = vrot.slane %v1639, 2
        %v1641 = vmax.f32 %v1639, %v1640
        %v1642 = vrot.slane %v1641, 1
        %v1643 = vmax.f32 %v1641, %v1642
        %v1644 = vsel %vm1496, %v1256, -inf
        %v1645 = vrot.slane %v1644, 4
        %v1646 = vmax.f32 %v1644, %v1645
        %v1647 = vrot.slane %v1646, 2
        %v1648 = vmax.f32 %v1646, %v1647
        %v1649 = vrot.slane %v1648, 1
        %v1650 = vmax.f32 %v1648, %v1649
        %v1651 = vsel %vm1496, %v1260, -inf
        %v1652 = vrot.slane %v1651, 4
        %v1653 = vmax.f32 %v1651, %v1652
        %v1654 = vrot.slane %v1653, 2
        %v1655 = vmax.f32 %v1653, %v1654
        %v1656 = vrot.slane %v1655, 1
        %v1657 = vmax.f32 %v1655, %v1656
        %v1658 = vsel %vm1496, %v1261, -inf
        %v1659 = vrot.slane %v1658, 4
        %v1660 = vmax.f32 %v1658, %v1659
        %v1661 = vrot.slane %v1660, 2
        %v1662 = vmax.f32 %v1660, %v1661
        %v1663 = vrot.slane %v1662, 1
        %v1664 = vmax.f32 %v1662, %v1663
        %v1665 = vsel %vm1496, %v1265, -inf
        %v1666 = vrot.slane %v1665, 4
        %v1667 = vmax.f32 %v1665, %v1666
        %v1668 = vrot.slane %v1667, 2
        %v1669 = vmax.f32 %v1667, %v1668
        %v1670 = vrot.slane %v1669, 1
        %v1671 = vmax.f32 %v1669, %v1670
        %v1672 = vsel %vm1496, %v1266, -inf
        %v1673 = vrot.slane %v1672, 4
        %v1674 = vmax.f32 %v1672, %v1673
        %v1675 = vrot.slane %v1674, 2
        %v1676 = vmax.f32 %v1674, %v1675
        %v1677 = vrot.slane %v1676, 1
        %v1678 = vmax.f32 %v1676, %v1677
        %v1679 = vsel %vm1496, %v1270, -inf
        %v1680 = vrot.slane %v1679, 4
        %v1681 = vmax.f32 %v1679, %v1680
        %v1682 = vrot.slane %v1681, 2
        %v1683 = vmax.f32 %v1681, %v1682
        %v1684 = vrot.slane %v1683, 1
        %v1685 = vmax.f32 %v1683, %v1684
        %v1686 = vsel %vm1496, %v1271, -inf
        %v1687 = vrot.slane %v1686, 4
        %v1688 = vmax.f32 %v1686, %v1687
        %v1689 = vrot.slane %v1688, 2
        %v1690 = vmax.f32 %v1688, %v1689
        %v1691 = vrot.slane %v1690, 1
        %v1692 = vmax.f32 %v1690, %v1691
        %v1693 = vsel %vm1496, %v1275, -inf
        %v1694 = vrot.slane %v1693, 4
        %v1695 = vmax.f32 %v1693, %v1694
        %v1696 = vrot.slane %v1695, 2
        %v1697 = vmax.f32 %v1695, %v1696
        %v1698 = vrot.slane %v1697, 1
        %v1699 = vmax.f32 %v1697, %v1698
        %v1700 = vsel %vm1496, %v1276, -inf
        %v1701 = vrot.slane %v1700, 4
        %v1702 = vmax.f32 %v1700, %v1701
        %v1703 = vrot.slane %v1702, 2
        %v1704 = vmax.f32 %v1702, %v1703
        %v1705 = vrot.slane %v1704, 1
        %v1706 = vmax.f32 %v1704, %v1705
        %v1707 = vsel %vm1496, %v1280, -inf
        %v1708 = vrot.slane %v1707, 4
        %v1709 = vmax.f32 %v1707, %v1708
        %v1710 = vrot.slane %v1709, 2
        %v1711 = vmax.f32 %v1709, %v1710
        %v1712 = vrot.slane %v1711, 1
        %v1713 = vmax.f32 %v1711, %v1712
        %v1714 = vsel %vm1496, %v1281, -inf
        %v1715 = vrot.slane %v1714, 4
        %v1716 = vmax.f32 %v1714, %v1715
        %v1717 = vrot.slane %v1716, 2
        %v1718 = vmax.f32 %v1716, %v1717
        %v1719 = vrot.slane %v1718, 1
        %v1720 = vmax.f32 %v1718, %v1719
        %v1721 = vsel %vm1496, %v1285, -inf
        %v1722 = vrot.slane %v1721, 4
        %v1723 = vmax.f32 %v1721, %v1722
        %v1724 = vrot.slane %v1723, 2
        %v1725 = vmax.f32 %v1723, %v1724
        %v1726 = vrot.slane %v1725, 1
        %v1727 = vmax.f32 %v1725, %v1726
        %v1728 = vsel %vm1496, %v1286, -inf
        %v1729 = vrot.slane %v1728, 4
        %v1730 = vmax.f32 %v1728, %v1729
        %v1731 = vrot.slane %v1730, 2
        %v1732 = vmax.f32 %v1730, %v1731
        %v1733 = vrot.slane %v1732, 1
        %v1734 = vmax.f32 %v1732, %v1733
        %v1735 = vsel %vm1496, %v1290, -inf
        %v1736 = vrot.slane %v1735, 4
        %v1737 = vmax.f32 %v1735, %v1736
        %v1738 = vrot.slane %v1737, 2
        %v1739 = vmax.f32 %v1737, %v1738
        %v1740 = vrot.slane %v1739, 1
        %v1741 = vmax.f32 %v1739, %v1740
        %v1742 = vsel %vm1496, %v1291, -inf
        %v1743 = vrot.slane %v1742, 4
        %v1744 = vmax.f32 %v1742, %v1743
        %v1745 = vrot.slane %v1744, 2
        %v1746 = vmax.f32 %v1744, %v1745
        %v1747 = vrot.slane %v1746, 1
        %v1748 = vmax.f32 %v1746, %v1747
        %v1749 = vsel %vm1496, %v1295, -inf
        %v1750 = vrot.slane %v1749, 4
        %v1751 = vmax.f32 %v1749, %v1750
        %v1752 = vrot.slane %v1751, 2
        %v1753 = vmax.f32 %v1751, %v1752
        %v1754 = vrot.slane %v1753, 1
        %v1755 = vmax.f32 %v1753, %v1754
        %v1756 = vsel %vm1496, %v1296, -inf
        %v1757 = vrot.slane %v1756, 4
        %v1758 = vmax.f32 %v1756, %v1757
        %v1759 = vrot.slane %v1758, 2
        %v1760 = vmax.f32 %v1758, %v1759
        %v1761 = vrot.slane %v1760, 1
        %v1762 = vmax.f32 %v1760, %v1761
        %v1763 = vsel %vm1496, %v1300, -inf
        %v1764 = vrot.slane %v1763, 4
        %v1765 = vmax.f32 %v1763, %v1764
        %v1766 = vrot.slane %v1765, 2
        %v1767 = vmax.f32 %v1765, %v1766
        %v1768 = vrot.slane %v1767, 1
        %v1769 = vmax.f32 %v1767, %v1768
        %v1770 = vsel %vm1496, %v1301, -inf
        %v1771 = vrot.slane %v1770, 4
        %v1772 = vmax.f32 %v1770, %v1771
        %v1773 = vrot.slane %v1772, 2
        %v1774 = vmax.f32 %v1772, %v1773
        %v1775 = vrot.slane %v1774, 1
        %v1776 = vmax.f32 %v1774, %v1775
        %v1777 = vsel %vm1496, %v1305, -inf
        %v1778 = vrot.slane %v1777, 4
        %v1779 = vmax.f32 %v1777, %v1778
        %v1780 = vrot.slane %v1779, 2
        %v1781 = vmax.f32 %v1779, %v1780
        %v1782 = vrot.slane %v1781, 1
        %v1783 = vmax.f32 %v1781, %v1782
        %v1784 = vsel %vm1496, %v1306, -inf
        %v1785 = vrot.slane %v1784, 4
        %v1786 = vmax.f32 %v1784, %v1785
        %v1787 = vrot.slane %v1786, 2
        %v1788 = vmax.f32 %v1786, %v1787
        %v1789 = vrot.slane %v1788, 1
        %v1790 = vmax.f32 %v1788, %v1789
        %v1791 = vsel %vm1496, %v1310, -inf
        %v1792 = vrot.slane %v1791, 4
        %v1793 = vmax.f32 %v1791, %v1792
        %v1794 = vrot.slane %v1793, 2
        %v1795 = vmax.f32 %v1793, %v1794
        %v1796 = vrot.slane %v1795, 1
        %v1797 = vmax.f32 %v1795, %v1796
        %v1798 = vsel %vm1496, %v1311, -inf
        %v1799 = vrot.slane %v1798, 4
        %v1800 = vmax.f32 %v1798, %v1799
        %v1801 = vrot.slane %v1800, 2
        %v1802 = vmax.f32 %v1800, %v1801
        %v1803 = vrot.slane %v1802, 1
        %v1804 = vmax.f32 %v1802, %v1803
        %v1805 = vsel %vm1496, %v1315, -inf
        %v1806 = vrot.slane %v1805, 4
        %v1807 = vmax.f32 %v1805, %v1806
        %v1808 = vrot.slane %v1807, 2
        %v1809 = vmax.f32 %v1807, %v1808
        %v1810 = vrot.slane %v1809, 1
        %v1811 = vmax.f32 %v1809, %v1810
        %v1812 = vsel %vm1496, %v1316, -inf
        %v1813 = vrot.slane %v1812, 4
        %v1814 = vmax.f32 %v1812, %v1813
        %v1815 = vrot.slane %v1814, 2
        %v1816 = vmax.f32 %v1814, %v1815
        %v1817 = vrot.slane %v1816, 1
        %v1818 = vmax.f32 %v1816, %v1817
        %v1819 = vsel %vm1496, %v1320, -inf
        %v1820 = vrot.slane %v1819, 4
        %v1821 = vmax.f32 %v1819, %v1820
        %v1822 = vrot.slane %v1821, 2
        %v1823 = vmax.f32 %v1821, %v1822
        %v1824 = vrot.slane %v1823, 1
        %v1825 = vmax.f32 %v1823, %v1824
        %v1826 = vsel %vm1496, %v1321, -inf
        %v1827 = vrot.slane %v1826, 4
        %v1828 = vmax.f32 %v1826, %v1827
        %v1829 = vrot.slane %v1828, 2
        %v1830 = vmax.f32 %v1828, %v1829
        %v1831 = vrot.slane %v1830, 1
        %v1832 = vmax.f32 %v1830, %v1831
        %v1833 = vsel %vm1496, %v1325, -inf
        %v1834 = vrot.slane %v1833, 4
        %v1835 = vmax.f32 %v1833, %v1834
        %v1836 = vrot.slane %v1835, 2
        %v1837 = vmax.f32 %v1835, %v1836
        %v1838 = vrot.slane %v1837, 1
        %v1839 = vmax.f32 %v1837, %v1838
        %v1840 = vsel %vm1496, %v1326, -inf
        %v1841 = vrot.slane %v1840, 4
        %v1842 = vmax.f32 %v1840, %v1841
        %v1843 = vrot.slane %v1842, 2
        %v1844 = vmax.f32 %v1842, %v1843
        %v1845 = vrot.slane %v1844, 1
        %v1846 = vmax.f32 %v1844, %v1845
        %v1847 = vsel %vm1496, %v1330, -inf
        %v1848 = vrot.slane %v1847, 4
        %v1849 = vmax.f32 %v1847, %v1848
        %v1850 = vrot.slane %v1849, 2
        %v1851 = vmax.f32 %v1849, %v1850
        %v1852 = vrot.slane %v1851, 1
        %v1853 = vmax.f32 %v1851, %v1852
        %v1854 = vsel %vm1496, %v1331, -inf
        %v1855 = vrot.slane %v1854, 4
        %v1856 = vmax.f32 %v1854, %v1855
        %v1857 = vrot.slane %v1856, 2
        %v1858 = vmax.f32 %v1856, %v1857
        %v1859 = vrot.slane %v1858, 1
        %v1860 = vmax.f32 %v1858, %v1859
        %v1861 = vsel %vm1496, %v1335, -inf
        %v1862 = vrot.slane %v1861, 4
        %v1863 = vmax.f32 %v1861, %v1862
        %v1864 = vrot.slane %v1863, 2
        %v1865 = vmax.f32 %v1863, %v1864
        %v1866 = vrot.slane %v1865, 1
        %v1867 = vmax.f32 %v1865, %v1866
        %v1868 = vsel %vm1496, %v1336, -inf
        %v1869 = vrot.slane %v1868, 4
        %v1870 = vmax.f32 %v1868, %v1869
        %v1871 = vrot.slane %v1870, 2
        %v1872 = vmax.f32 %v1870, %v1871
        %v1873 = vrot.slane %v1872, 1
        %v1874 = vmax.f32 %v1872, %v1873
        %v1875 = vsel %vm1496, %v1340, -inf
        %v1876 = vrot.slane %v1875, 4
        %v1877 = vmax.f32 %v1875, %v1876
        %v1878 = vrot.slane %v1877, 2
        %v1879 = vmax.f32 %v1877, %v1878
        %v1880 = vrot.slane %v1879, 1
        %v1881 = vmax.f32 %v1879, %v1880
        %v1882 = vsel %vm1496, %v1341, -inf
        %v1883 = vrot.slane %v1882, 4
        %v1884 = vmax.f32 %v1882, %v1883
        %v1885 = vrot.slane %v1884, 2
        %v1886 = vmax.f32 %v1884, %v1885
        %v1887 = vrot.slane %v1886, 1
        %v1888 = vmax.f32 %v1886, %v1887
        %v1889 = vsel %vm1496, %v1345, -inf
        %v1890 = vrot.slane %v1889, 4
        %v1891 = vmax.f32 %v1889, %v1890
        %v1892 = vrot.slane %v1891, 2
        %v1893 = vmax.f32 %v1891, %v1892
        %v1894 = vrot.slane %v1893, 1
        %v1895 = vmax.f32 %v1893, %v1894
        %v1896 = vsel %vm1496, %v1346, -inf
        %v1897 = vrot.slane %v1896, 4
        %v1898 = vmax.f32 %v1896, %v1897
        %v1899 = vrot.slane %v1898, 2
        %v1900 = vmax.f32 %v1898, %v1899
        %v1901 = vrot.slane %v1900, 1
        %v1902 = vmax.f32 %v1900, %v1901
        %v1903 = vsel %vm1496, %v1350, -inf
        %v1904 = vrot.slane %v1903, 4
        %v1905 = vmax.f32 %v1903, %v1904
        %v1906 = vrot.slane %v1905, 2
        %v1907 = vmax.f32 %v1905, %v1906
        %v1908 = vrot.slane %v1907, 1
        %v1909 = vmax.f32 %v1907, %v1908
        %v1910 = vsel %vm1496, %v1351, -inf
        %v1911 = vrot.slane %v1910, 4
        %v1912 = vmax.f32 %v1910, %v1911
        %v1913 = vrot.slane %v1912, 2
        %v1914 = vmax.f32 %v1912, %v1913
        %v1915 = vrot.slane %v1914, 1
        %v1916 = vmax.f32 %v1914, %v1915
        %v1917 = vsel %vm1496, %v1355, -inf
        %v1918 = vrot.slane %v1917, 4
        %v1919 = vmax.f32 %v1917, %v1918
        %v1920 = vrot.slane %v1919, 2
        %v1921 = vmax.f32 %v1919, %v1920
        %v1922 = vrot.slane %v1921, 1
        %v1923 = vmax.f32 %v1921, %v1922
        %v1924 = vsel %vm1496, %v1356, -inf
        %v1925 = vrot.slane %v1924, 4
        %v1926 = vmax.f32 %v1924, %v1925
        %v1927 = vrot.slane %v1926, 2
        %v1928 = vmax.f32 %v1926, %v1927
        %v1929 = vrot.slane %v1928, 1
        %v1930 = vmax.f32 %v1928, %v1929
        %v1931 = vsel %vm1496, %v1360, -inf
        %v1932 = vrot.slane %v1931, 4
        %v1933 = vmax.f32 %v1931, %v1932
        %v1934 = vrot.slane %v1933, 2
        %v1935 = vmax.f32 %v1933, %v1934
        %v1936 = vrot.slane %v1935, 1
        %v1937 = vmax.f32 %v1935, %v1936
        %v1938 = vsel %vm1496, %v1361, -inf
        %v1939 = vrot.slane %v1938, 4
        %v1940 = vmax.f32 %v1938, %v1939
        %v1941 = vrot.slane %v1940, 2
        %v1942 = vmax.f32 %v1940, %v1941
        %v1943 = vrot.slane %v1942, 1
        %v1944 = vmax.f32 %v1942, %v1943
        %v1945 = vsel %vm1496, %v1365, -inf
        %v1946 = vrot.slane %v1945, 4
        %v1947 = vmax.f32 %v1945, %v1946
        %v1948 = vrot.slane %v1947, 2
        %v1949 = vmax.f32 %v1947, %v1948
        %v1950 = vrot.slane %v1949, 1
        %v1951 = vmax.f32 %v1949, %v1950
        %v1952 = vsel %vm1496, %v1366, -inf
        %v1953 = vrot.slane %v1952, 4
        %v1954 = vmax.f32 %v1952, %v1953
        %v1955 = vrot.slane %v1954, 2
        %v1956 = vmax.f32 %v1954, %v1955
        %v1957 = vrot.slane %v1956, 1
        %v1958 = vmax.f32 %v1956, %v1957
        %v1959 = vsel %vm1496, %v1370, -inf
        %v1960 = vrot.slane %v1959, 4
        %v1961 = vmax.f32 %v1959, %v1960
        %v1962 = vrot.slane %v1961, 2
        %v1963 = vmax.f32 %v1961, %v1962
        %v1964 = vrot.slane %v1963, 1
        %v1965 = vmax.f32 %v1963, %v1964
        %v1966 = vsel %vm1496, %v1371, -inf
        %v1967 = vrot.slane %v1966, 4
        %v1968 = vmax.f32 %v1966, %v1967
        %v1969 = vrot.slane %v1968, 2
        %v1970 = vmax.f32 %v1968, %v1969
        %v1971 = vrot.slane %v1970, 1
        %v1972 = vmax.f32 %v1970, %v1971
        %v1973 = vsel %vm1496, %v1375, -inf
        %v1974 = vrot.slane %v1973, 4
        %v1975 = vmax.f32 %v1973, %v1974
        %v1976 = vrot.slane %v1975, 2
        %v1977 = vmax.f32 %v1975, %v1976
        %v1978 = vrot.slane %v1977, 1
        %v1979 = vmax.f32 %v1977, %v1978
        %v1980 = vsel %vm1496, %v1376, -inf
        %v1981 = vrot.slane %v1980, 4
        %v1982 = vmax.f32 %v1980, %v1981
        %v1983 = vrot.slane %v1982, 2
        %v1984 = vmax.f32 %v1982, %v1983
        %v1985 = vrot.slane %v1984, 1
        %v1986 = vmax.f32 %v1984, %v1985
        %v1987 = vsel %vm1496, %v1380, -inf
        %v1988 = vrot.slane %v1987, 4
        %v1989 = vmax.f32 %v1987, %v1988
        %v1990 = vrot.slane %v1989, 2
        %v1991 = vmax.f32 %v1989, %v1990
        %v1992 = vrot.slane %v1991, 1
        %v1993 = vmax.f32 %v1991, %v1992
        %v1994 = vsel %vm1496, %v1381, -inf
        %v1995 = vrot.slane %v1994, 4
        %v1996 = vmax.f32 %v1994, %v1995
        %v1997 = vrot.slane %v1996, 2
        %v1998 = vmax.f32 %v1996, %v1997
        %v1999 = vrot.slane %v1998, 1
        %v2000 = vmax.f32 %v1998, %v1999
        %v2001 = vsel %vm1496, %v1385, -inf
        %v2002 = vrot.slane %v2001, 4
        %v2003 = vmax.f32 %v2001, %v2002
        %v2004 = vrot.slane %v2003, 2
        %v2005 = vmax.f32 %v2003, %v2004
        %v2006 = vrot.slane %v2005, 1
        %v2007 = vmax.f32 %v2005, %v2006
        %v2008 = vsel %vm1496, %v1386, -inf
        %v2009 = vrot.slane %v2008, 4
        %v2010 = vmax.f32 %v2008, %v2009
        %v2011 = vrot.slane %v2010, 2
        %v2012 = vmax.f32 %v2010, %v2011
        %v2013 = vrot.slane %v2012, 1
        %v2014 = vmax.f32 %v2012, %v2013
        %v2015 = vsel %vm1496, %v1390, -inf
        %v2016 = vrot.slane %v2015, 4
        %v2017 = vmax.f32 %v2015, %v2016
        %v2018 = vrot.slane %v2017, 2
        %v2019 = vmax.f32 %v2017, %v2018
        %v2020 = vrot.slane %v2019, 1
        %v2021 = vmax.f32 %v2019, %v2020
        %v2022 = vsel %vm1496, %v1391, -inf
        %v2023 = vrot.slane %v2022, 4
        %v2024 = vmax.f32 %v2022, %v2023
        %v2025 = vrot.slane %v2024, 2
        %v2026 = vmax.f32 %v2024, %v2025
        %v2027 = vrot.slane %v2026, 1
        %v2028 = vmax.f32 %v2026, %v2027
        %v2029 = vsel %vm1496, %v1395, -inf
        %v2030 = vrot.slane %v2029, 4
        %v2031 = vmax.f32 %v2029, %v2030
        %v2032 = vrot.slane %v2031, 2
        %v2033 = vmax.f32 %v2031, %v2032
        %v2034 = vrot.slane %v2033, 1
        %v2035 = vmax.f32 %v2033, %v2034
        %v2036 = vsel %vm1496, %v1396, -inf
        %v2037 = vrot.slane %v2036, 4
        %v2038 = vmax.f32 %v2036, %v2037
        %v2039 = vrot.slane %v2038, 2
        %v2040 = vmax.f32 %v2038, %v2039
        %v2041 = vrot.slane %v2040, 1
        %v2042 = vmax.f32 %v2040, %v2041
        %v2043 = vsel %vm1496, %v1400, -inf
        %v2044 = vrot.slane %v2043, 4
        %v2045 = vmax.f32 %v2043, %v2044
        %v2046 = vrot.slane %v2045, 2
        %v2047 = vmax.f32 %v2045, %v2046
        %v2048 = vrot.slane %v2047, 1
        %v2049 = vmax.f32 %v2047, %v2048
        %v2050 = vsel %vm1496, %v1401, -inf
        %v2051 = vrot.slane %v2050, 4
        %v2052 = vmax.f32 %v2050, %v2051
        %v2053 = vrot.slane %v2052, 2
        %v2054 = vmax.f32 %v2052, %v2053
        %v2055 = vrot.slane %v2054, 1
        %v2056 = vmax.f32 %v2054, %v2055
        %v2057 = vsel %vm1496, %v1405, -inf
        %v2058 = vrot.slane %v2057, 4
        %v2059 = vmax.f32 %v2057, %v2058
        %v2060 = vrot.slane %v2059, 2
        %v2061 = vmax.f32 %v2059, %v2060
        %v2062 = vrot.slane %v2061, 1
        %v2063 = vmax.f32 %v2061, %v2062
        %v2064 = vsel %vm1496, %v1406, -inf
        %v2065 = vrot.slane %v2064, 4
        %v2066 = vmax.f32 %v2064, %v2065
        %v2067 = vrot.slane %v2066, 2
        %v2068 = vmax.f32 %v2066, %v2067
        %v2069 = vrot.slane %v2068, 1
        %v2070 = vmax.f32 %v2068, %v2069
        %v2071 = vsel %vm1496, %v1410, -inf
        %v2072 = vrot.slane %v2071, 4
        %v2073 = vmax.f32 %v2071, %v2072
        %v2074 = vrot.slane %v2073, 2
        %v2075 = vmax.f32 %v2073, %v2074
        %v2076 = vrot.slane %v2075, 1
        %v2077 = vmax.f32 %v2075, %v2076
        %v2078 = vsel %vm1496, %v1411, -inf
        %v2079 = vrot.slane %v2078, 4
        %v2080 = vmax.f32 %v2078, %v2079
        %v2081 = vrot.slane %v2080, 2
        %v2082 = vmax.f32 %v2080, %v2081
        %v2083 = vrot.slane %v2082, 1
        %v2084 = vmax.f32 %v2082, %v2083
        %v2169 = vsel %vm959, %v1517, %v1503
        %v2170 = vsel %vm962, %v1531, %v2169
        %v2171 = vsel %vm965, %v1545, %v2170
        %v2172 = vsel %vm968, %v1559, %v2171
        %v2173 = vsel %vm971, %v1573, %v2172
        %v2174 = vsel %vm974, %v1587, %v2173
        %vm2175 = vcmask 1047559
        %v2176 = vsel %vm2175, %v1601, %v2174
        %v2177 = vsel %vm959, %v1524, %v1510
        %v2178 = vsel %vm962, %v1538, %v2177
        %v2179 = vsel %vm965, %v1552, %v2178
        %v2180 = vsel %vm968, %v1566, %v2179
        %v2181 = vsel %vm971, %v1580, %v2180
        %v2182 = vsel %vm974, %v1594, %v2181
        %v2183 = vsel %vm2175, %v1608, %v2182
        %v2184 = vsel %vm959, %v1629, %v1615
        %v2185 = vsel %vm962, %v1643, %v2184
        %v2186 = vsel %vm965, %v1657, %v2185
        %v2187 = vsel %vm968, %v1671, %v2186
        %v2188 = vsel %vm971, %v1685, %v2187
        %v2189 = vsel %vm974, %v1699, %v2188
        %v2190 = vsel %vm2175, %v1713, %v2189
        %v2191 = vsel %vm959, %v1636, %v1622
        %v2192 = vsel %vm962, %v1650, %v2191
        %v2193 = vsel %vm965, %v1664, %v2192
        %v2194 = vsel %vm968, %v1678, %v2193
        %v2195 = vsel %vm971, %v1692, %v2194
        %v2196 = vsel %vm974, %v1706, %v2195
        %v2197 = vsel %vm2175, %v1720, %v2196
        %v2198 = vsel %vm959, %v1741, %v1727
        %v2199 = vsel %vm962, %v1755, %v2198
        %v2200 = vsel %vm965, %v1769, %v2199
        %v2201 = vsel %vm968, %v1783, %v2200
        %v2202 = vsel %vm971, %v1797, %v2201
        %v2203 = vsel %vm974, %v1811, %v2202
        %v2204 = vsel %vm2175, %v1825, %v2203
        %v2205 = vsel %vm959, %v1748, %v1734
        %v2206 = vsel %vm962, %v1762, %v2205
        %v2207 = vsel %vm965, %v1776, %v2206
        %v2208 = vsel %vm968, %v1790, %v2207
        %v2209 = vsel %vm971, %v1804, %v2208
        %v2210 = vsel %vm974, %v1818, %v2209
        %v2211 = vsel %vm2175, %v1832, %v2210
        %v2212 = vsel %vm959, %v1853, %v1839
        %v2213 = vsel %vm962, %v1867, %v2212
        %v2214 = vsel %vm965, %v1881, %v2213
        %v2215 = vsel %vm968, %v1895, %v2214
        %v2216 = vsel %vm971, %v1909, %v2215
        %v2217 = vsel %vm974, %v1923, %v2216
        %v2218 = vsel %vm2175, %v1937, %v2217
        %v2219 = vsel %vm959, %v1860, %v1846
        %v2220 = vsel %vm962, %v1874, %v2219
        %v2221 = vsel %vm965, %v1888, %v2220
        %v2222 = vsel %vm968, %v1902, %v2221
        %v2223 = vsel %vm971, %v1916, %v2222
        %v2224 = vsel %vm974, %v1930, %v2223
        %v2225 = vsel %vm2175, %v1944, %v2224
        %v2226 = vsel %vm959, %v1965, %v1951
        %v2227 = vsel %vm962, %v1979, %v2226
        %v2228 = vsel %vm965, %v1993, %v2227
        %v2229 = vsel %vm968, %v2007, %v2228
        %v2230 = vsel %vm971, %v2021, %v2229
        %v2231 = vsel %vm974, %v2035, %v2230
        %v2232 = vsel %vm2175, %v2049, %v2231
        %v2233 = vsel %vm959, %v1972, %v1958
        %v2234 = vsel %vm962, %v1986, %v2233
        %v2235 = vsel %vm965, %v2000, %v2234
        %v2236 = vsel %vm968, %v2014, %v2235
        %v2237 = vsel %vm971, %v2028, %v2236
        %v2238 = vsel %vm974, %v2042, %v2237
        %v2239 = vsel %vm2175, %v2056, %v2238
        %v2240 = vsel %vm959, %v2077, %v2063
        %v2241 = vsel %vm959, %v2084, %v2070
        %2254 = vxpose.xlu0.b32.start [1/16] %v2176, 128
        %2255 = vxpose.xlu0.b32.cont [2/16] %v2190, 128
        %2256 = vxpose.xlu0.b32.cont [3/16] %v2204, 128
        %2257 = vxpose.xlu0.b32.cont [4/16] %v2218, 128
        %2258 = vxpose.xlu0.b32.cont [5/16] %v2232, 128
        %2259 = vxpose.xlu0.b32.cont [6/16] %v2240, 128
        %2260 = vxpose.xlu0.b32.cont [7/16] 0.0, 128
        %2261 = vxpose.xlu0.b32.cont [8/16] 0.0, 128
        %2262 = vxpose.xlu0.b32.cont [9/16] 0.0, 128
        %2263 = vxpose.xlu0.b32.cont [10/16] 0.0, 128
        %2264 = vxpose.xlu0.b32.cont [11/16] 0.0, 128
        %2265 = vxpose.xlu0.b32.cont [12/16] 0.0, 128
        %2266 = vxpose.xlu0.b32.cont [13/16] 0.0, 128
        %2267 = vxpose.xlu0.b32.cont [14/16] 0.0, 128
        %2268 = vxpose.xlu0.b32.cont [15/16] 0.0, 128
        %2269 = vxpose.xlu0.b32.end [16/16] 0.0, 128
        %v2270 = vpop.trf.xlu0
        %v2271 = vpop.trf.xlu0
        %v2272 = vpop.trf.xlu0
        %v2273 = vpop.trf.xlu0
        %v2274 = vpop.trf.xlu0
        %v2275 = vpop.trf.xlu0
        %v2276 = vpop.trf.xlu0
        %v2277 = vpop.trf.xlu0
        %v2278 = vpop.trf.xlu0
        %v2279 = vpop.trf.xlu0
        %v2280 = vpop.trf.xlu0
        %v2281 = vpop.trf.xlu0
        %v2282 = vpop.trf.xlu0
        %v2283 = vpop.trf.xlu0
        %v2284 = vpop.trf.xlu0
        %v2285 = vpop.trf.xlu0
        %2286 = vxpose.xlu0.b32.start [1/16] %v2183, 128
        %2287 = vxpose.xlu0.b32.cont [2/16] %v2197, 128
        %2288 = vxpose.xlu0.b32.cont [3/16] %v2211, 128
        %2289 = vxpose.xlu0.b32.cont [4/16] %v2225, 128
        %2290 = vxpose.xlu0.b32.cont [5/16] %v2239, 128
        %2291 = vxpose.xlu0.b32.cont [6/16] %v2241, 128
        %2292 = vxpose.xlu0.b32.cont [7/16] 0.0, 128
        %2293 = vxpose.xlu0.b32.cont [8/16] 0.0, 128
        %2294 = vxpose.xlu0.b32.cont [9/16] 0.0, 128
        %2295 = vxpose.xlu0.b32.cont [10/16] 0.0, 128
        %2296 = vxpose.xlu0.b32.cont [11/16] 0.0, 128
        %2297 = vxpose.xlu0.b32.cont [12/16] 0.0, 128
        %2298 = vxpose.xlu0.b32.cont [13/16] 0.0, 128
        %2299 = vxpose.xlu0.b32.cont [14/16] 0.0, 128
        %2300 = vxpose.xlu0.b32.cont [15/16] 0.0, 128
        %2301 = vxpose.xlu0.b32.end [16/16] 0.0, 128
        %v2302 = vpop.trf.xlu0
        %v2303 = vpop.trf.xlu0
        %v2304 = vpop.trf.xlu0
        %v2305 = vpop.trf.xlu0
        %v2306 = vpop.trf.xlu0
        %v2307 = vpop.trf.xlu0
        %v2308 = vpop.trf.xlu0
        %v2309 = vpop.trf.xlu0
        %v2310 = vpop.trf.xlu0
        %v2311 = vpop.trf.xlu0
        %v2312 = vpop.trf.xlu0
        %v2313 = vpop.trf.xlu0
        %v2314 = vpop.trf.xlu0
        %v2315 = vpop.trf.xlu0
        %v2316 = vpop.trf.xlu0
        %v2317 = vpop.trf.xlu0
        %2350 = vrot.lane.b32.xlu0 %v2270, 127
        %v2351 = vpop.permute.xlu0 %2350
        %2352 = vrot.lane.b32.xlu0 %v2271, 127
        %v2353 = vpop.permute.xlu0 %2352
        %2354 = vrot.lane.b32.xlu0 %v2272, 127
        %v2355 = vpop.permute.xlu0 %2354
        %2356 = vrot.lane.b32.xlu0 %v2273, 127
        %v2357 = vpop.permute.xlu0 %2356
        %2358 = vrot.lane.b32.xlu0 %v2274, 127
        %v2359 = vpop.permute.xlu0 %2358
        %2360 = vrot.lane.b32.xlu0 %v2275, 127
        %v2361 = vpop.permute.xlu0 %2360
        %2362 = vrot.lane.b32.xlu0 %v2276, 127
        %v2363 = vpop.permute.xlu0 %2362
        %2364 = vrot.lane.b32.xlu0 %v2277, 127
        %v2365 = vpop.permute.xlu0 %2364
        %2366 = vrot.lane.b32.xlu0 %v2278, 127
        %v2367 = vpop.permute.xlu0 %2366
        %2368 = vrot.lane.b32.xlu0 %v2279, 127
        %v2369 = vpop.permute.xlu0 %2368
        %2370 = vrot.lane.b32.xlu0 %v2280, 127
        %v2371 = vpop.permute.xlu0 %2370
        %2372 = vrot.lane.b32.xlu0 %v2281, 127
        %v2373 = vpop.permute.xlu0 %2372
        %2374 = vrot.lane.b32.xlu0 %v2282, 127
        %v2375 = vpop.permute.xlu0 %2374
        %2376 = vrot.lane.b32.xlu0 %v2283, 127
        %v2377 = vpop.permute.xlu0 %2376
        %2378 = vrot.lane.b32.xlu0 %v2284, 127
        %v2379 = vpop.permute.xlu0 %2378
        %2380 = vrot.lane.b32.xlu0 %v2285, 127
        %v2381 = vpop.permute.xlu0 %2380
        %2382 = vrot.lane.b32.xlu0 %v2302, 127
        %v2383 = vpop.permute.xlu0 %2382
        %2384 = vrot.lane.b32.xlu0 %v2303, 127
        %v2385 = vpop.permute.xlu0 %2384
        %2386 = vrot.lane.b32.xlu0 %v2304, 127
        %v2387 = vpop.permute.xlu0 %2386
        %2388 = vrot.lane.b32.xlu0 %v2305, 127
        %v2389 = vpop.permute.xlu0 %2388
        %2390 = vrot.lane.b32.xlu0 %v2306, 127
        %v2391 = vpop.permute.xlu0 %2390
        %2392 = vrot.lane.b32.xlu0 %v2307, 127
        %v2393 = vpop.permute.xlu0 %2392
        %2394 = vrot.lane.b32.xlu0 %v2308, 127
        %v2395 = vpop.permute.xlu0 %2394
        %2396 = vrot.lane.b32.xlu0 %v2309, 127
        %v2397 = vpop.permute.xlu0 %2396
        %2398 = vrot.lane.b32.xlu0 %v2310, 127
        %v2399 = vpop.permute.xlu0 %2398
        %2400 = vrot.lane.b32.xlu0 %v2311, 127
        %v2401 = vpop.permute.xlu0 %2400
        %2402 = vrot.lane.b32.xlu0 %v2312, 127
        %v2403 = vpop.permute.xlu0 %2402
        %2404 = vrot.lane.b32.xlu0 %v2313, 127
        %v2405 = vpop.permute.xlu0 %2404
        %2406 = vrot.lane.b32.xlu0 %v2314, 127
        %v2407 = vpop.permute.xlu0 %2406
        %2408 = vrot.lane.b32.xlu0 %v2315, 127
        %v2409 = vpop.permute.xlu0 %2408
        %2410 = vrot.lane.b32.xlu0 %v2316, 127
        %v2411 = vpop.permute.xlu0 %2410
        %2412 = vrot.lane.b32.xlu0 %v2317, 127
        %v2413 = vpop.permute.xlu0 %2412
        %2418 = vrot.lane.b32.xlu0 %v2270, 126
        %v2419 = vpop.permute.xlu0 %2418
        %2420 = vrot.lane.b32.xlu0 %v2271, 126
        %v2421 = vpop.permute.xlu0 %2420
        %2422 = vrot.lane.b32.xlu0 %v2272, 126
        %v2423 = vpop.permute.xlu0 %2422
        %2424 = vrot.lane.b32.xlu0 %v2273, 126
        %v2425 = vpop.permute.xlu0 %2424
        %2426 = vrot.lane.b32.xlu0 %v2274, 126
        %v2427 = vpop.permute.xlu0 %2426
        %2428 = vrot.lane.b32.xlu0 %v2275, 126
        %v2429 = vpop.permute.xlu0 %2428
        %2430 = vrot.lane.b32.xlu0 %v2276, 126
        %v2431 = vpop.permute.xlu0 %2430
        %2432 = vrot.lane.b32.xlu0 %v2277, 126
        %v2433 = vpop.permute.xlu0 %2432
        %2434 = vrot.lane.b32.xlu0 %v2278, 126
        %v2435 = vpop.permute.xlu0 %2434
        %2436 = vrot.lane.b32.xlu0 %v2279, 126
        %v2437 = vpop.permute.xlu0 %2436
        %2438 = vrot.lane.b32.xlu0 %v2280, 126
        %v2439 = vpop.permute.xlu0 %2438
        %2440 = vrot.lane.b32.xlu0 %v2281, 126
        %v2441 = vpop.permute.xlu0 %2440
        %2442 = vrot.lane.b32.xlu0 %v2282, 126
        %v2443 = vpop.permute.xlu0 %2442
        %2444 = vrot.lane.b32.xlu0 %v2283, 126
        %v2445 = vpop.permute.xlu0 %2444
        %2446 = vrot.lane.b32.xlu0 %v2284, 126
        %v2447 = vpop.permute.xlu0 %2446
        %2448 = vrot.lane.b32.xlu0 %v2285, 126
        %v2449 = vpop.permute.xlu0 %2448
        %2450 = vrot.lane.b32.xlu0 %v2302, 126
        %v2451 = vpop.permute.xlu0 %2450
        %2452 = vrot.lane.b32.xlu0 %v2303, 126
        %v2453 = vpop.permute.xlu0 %2452
        %2454 = vrot.lane.b32.xlu0 %v2304, 126
        %v2455 = vpop.permute.xlu0 %2454
        %2456 = vrot.lane.b32.xlu0 %v2305, 126
        %v2457 = vpop.permute.xlu0 %2456
        %2458 = vrot.lane.b32.xlu0 %v2306, 126
        %v2459 = vpop.permute.xlu0 %2458
        %2460 = vrot.lane.b32.xlu0 %v2307, 126
        %v2461 = vpop.permute.xlu0 %2460
        %2462 = vrot.lane.b32.xlu0 %v2308, 126
        %v2463 = vpop.permute.xlu0 %2462
        %2464 = vrot.lane.b32.xlu0 %v2309, 126
        %v2465 = vpop.permute.xlu0 %2464
        %2466 = vrot.lane.b32.xlu0 %v2310, 126
        %v2467 = vpop.permute.xlu0 %2466
        %2468 = vrot.lane.b32.xlu0 %v2311, 126
        %v2469 = vpop.permute.xlu0 %2468
        %2470 = vrot.lane.b32.xlu0 %v2312, 126
        %v2471 = vpop.permute.xlu0 %2470
        %2472 = vrot.lane.b32.xlu0 %v2313, 126
        %v2473 = vpop.permute.xlu0 %2472
        %2474 = vrot.lane.b32.xlu0 %v2314, 126
        %v2475 = vpop.permute.xlu0 %2474
        %2476 = vrot.lane.b32.xlu0 %v2315, 126
        %v2477 = vpop.permute.xlu0 %2476
        %2478 = vrot.lane.b32.xlu0 %v2316, 126
        %v2479 = vpop.permute.xlu0 %2478
        %2480 = vrot.lane.b32.xlu0 %v2317, 126
        %v2481 = vpop.permute.xlu0 %2480
        %2486 = vrot.lane.b32.xlu0 %v2270, 125
        %v2487 = vpop.permute.xlu0 %2486
        %2488 = vrot.lane.b32.xlu0 %v2271, 125
        %v2489 = vpop.permute.xlu0 %2488
        %2490 = vrot.lane.b32.xlu0 %v2272, 125
        %v2491 = vpop.permute.xlu0 %2490
        %2492 = vrot.lane.b32.xlu0 %v2273, 125
        %v2493 = vpop.permute.xlu0 %2492
        %2494 = vrot.lane.b32.xlu0 %v2274, 125
        %v2495 = vpop.permute.xlu0 %2494
        %2496 = vrot.lane.b32.xlu0 %v2275, 125
        %v2497 = vpop.permute.xlu0 %2496
        %2498 = vrot.lane.b32.xlu0 %v2276, 125
        %v2499 = vpop.permute.xlu0 %2498
        %2500 = vrot.lane.b32.xlu0 %v2277, 125
        %v2501 = vpop.permute.xlu0 %2500
        %2502 = vrot.lane.b32.xlu0 %v2278, 125
        %v2503 = vpop.permute.xlu0 %2502
        %2504 = vrot.lane.b32.xlu0 %v2279, 125
        %v2505 = vpop.permute.xlu0 %2504
        %2506 = vrot.lane.b32.xlu0 %v2280, 125
        %v2507 = vpop.permute.xlu0 %2506
        %2508 = vrot.lane.b32.xlu0 %v2281, 125
        %v2509 = vpop.permute.xlu0 %2508
        %2510 = vrot.lane.b32.xlu0 %v2282, 125
        %v2511 = vpop.permute.xlu0 %2510
        %2512 = vrot.lane.b32.xlu0 %v2283, 125
        %v2513 = vpop.permute.xlu0 %2512
        %2514 = vrot.lane.b32.xlu0 %v2284, 125
        %v2515 = vpop.permute.xlu0 %2514
        %2516 = vrot.lane.b32.xlu0 %v2285, 125
        %v2517 = vpop.permute.xlu0 %2516
        %2518 = vrot.lane.b32.xlu0 %v2302, 125
        %v2519 = vpop.permute.xlu0 %2518
        %2520 = vrot.lane.b32.xlu0 %v2303, 125
        %v2521 = vpop.permute.xlu0 %2520
        %2522 = vrot.lane.b32.xlu0 %v2304, 125
        %v2523 = vpop.permute.xlu0 %2522
        %2524 = vrot.lane.b32.xlu0 %v2305, 125
        %v2525 = vpop.permute.xlu0 %2524
        %2526 = vrot.lane.b32.xlu0 %v2306, 125
        %v2527 = vpop.permute.xlu0 %2526
        %2528 = vrot.lane.b32.xlu0 %v2307, 125
        %v2529 = vpop.permute.xlu0 %2528
        %2530 = vrot.lane.b32.xlu0 %v2308, 125
        %v2531 = vpop.permute.xlu0 %2530
        %2532 = vrot.lane.b32.xlu0 %v2309, 125
        %v2533 = vpop.permute.xlu0 %2532
        %2534 = vrot.lane.b32.xlu0 %v2310, 125
        %v2535 = vpop.permute.xlu0 %2534
        %2536 = vrot.lane.b32.xlu0 %v2311, 125
        %v2537 = vpop.permute.xlu0 %2536
        %2538 = vrot.lane.b32.xlu0 %v2312, 125
        %v2539 = vpop.permute.xlu0 %2538
        %2540 = vrot.lane.b32.xlu0 %v2313, 125
        %v2541 = vpop.permute.xlu0 %2540
        %2542 = vrot.lane.b32.xlu0 %v2314, 125
        %v2543 = vpop.permute.xlu0 %2542
        %2544 = vrot.lane.b32.xlu0 %v2315, 125
        %v2545 = vpop.permute.xlu0 %2544
        %2546 = vrot.lane.b32.xlu0 %v2316, 125
        %v2547 = vpop.permute.xlu0 %2546
        %2548 = vrot.lane.b32.xlu0 %v2317, 125
        %v2549 = vpop.permute.xlu0 %2548
        %2554 = vrot.lane.b32.xlu0 %v2270, 124
        %v2555 = vpop.permute.xlu0 %2554
        %2556 = vrot.lane.b32.xlu0 %v2271, 124
        %v2557 = vpop.permute.xlu0 %2556
        %2558 = vrot.lane.b32.xlu0 %v2272, 124
        %v2559 = vpop.permute.xlu0 %2558
        %2560 = vrot.lane.b32.xlu0 %v2273, 124
        %v2561 = vpop.permute.xlu0 %2560
        %2562 = vrot.lane.b32.xlu0 %v2274, 124
        %v2563 = vpop.permute.xlu0 %2562
        %2564 = vrot.lane.b32.xlu0 %v2275, 124
        %v2565 = vpop.permute.xlu0 %2564
        %2566 = vrot.lane.b32.xlu0 %v2276, 124
        %v2567 = vpop.permute.xlu0 %2566
        %2568 = vrot.lane.b32.xlu0 %v2277, 124
        %v2569 = vpop.permute.xlu0 %2568
        %2570 = vrot.lane.b32.xlu0 %v2278, 124
        %v2571 = vpop.permute.xlu0 %2570
        %2572 = vrot.lane.b32.xlu0 %v2279, 124
        %v2573 = vpop.permute.xlu0 %2572
        %2574 = vrot.lane.b32.xlu0 %v2280, 124
        %v2575 = vpop.permute.xlu0 %2574
        %2576 = vrot.lane.b32.xlu0 %v2281, 124
        %v2577 = vpop.permute.xlu0 %2576
        %2578 = vrot.lane.b32.xlu0 %v2282, 124
        %v2579 = vpop.permute.xlu0 %2578
        %2580 = vrot.lane.b32.xlu0 %v2283, 124
        %v2581 = vpop.permute.xlu0 %2580
        %2582 = vrot.lane.b32.xlu0 %v2284, 124
        %v2583 = vpop.permute.xlu0 %2582
        %2584 = vrot.lane.b32.xlu0 %v2285, 124
        %v2585 = vpop.permute.xlu0 %2584
        %2586 = vrot.lane.b32.xlu0 %v2302, 124
        %v2587 = vpop.permute.xlu0 %2586
        %2588 = vrot.lane.b32.xlu0 %v2303, 124
        %v2589 = vpop.permute.xlu0 %2588
        %2590 = vrot.lane.b32.xlu0 %v2304, 124
        %v2591 = vpop.permute.xlu0 %2590
        %2592 = vrot.lane.b32.xlu0 %v2305, 124
        %v2593 = vpop.permute.xlu0 %2592
        %2594 = vrot.lane.b32.xlu0 %v2306, 124
        %v2595 = vpop.permute.xlu0 %2594
        %2596 = vrot.lane.b32.xlu0 %v2307, 124
        %v2597 = vpop.permute.xlu0 %2596
        %2598 = vrot.lane.b32.xlu0 %v2308, 124
        %v2599 = vpop.permute.xlu0 %2598
        %2600 = vrot.lane.b32.xlu0 %v2309, 124
        %v2601 = vpop.permute.xlu0 %2600
        %2602 = vrot.lane.b32.xlu0 %v2310, 124
        %v2603 = vpop.permute.xlu0 %2602
        %2604 = vrot.lane.b32.xlu0 %v2311, 124
        %v2605 = vpop.permute.xlu0 %2604
        %2606 = vrot.lane.b32.xlu0 %v2312, 124
        %v2607 = vpop.permute.xlu0 %2606
        %2608 = vrot.lane.b32.xlu0 %v2313, 124
        %v2609 = vpop.permute.xlu0 %2608
        %2610 = vrot.lane.b32.xlu0 %v2314, 124
        %v2611 = vpop.permute.xlu0 %2610
        %2612 = vrot.lane.b32.xlu0 %v2315, 124
        %v2613 = vpop.permute.xlu0 %2612
        %2614 = vrot.lane.b32.xlu0 %v2316, 124
        %v2615 = vpop.permute.xlu0 %2614
        %2616 = vrot.lane.b32.xlu0 %v2317, 124
        %v2617 = vpop.permute.xlu0 %2616
        %2622 = vrot.lane.b32.xlu0 %v2270, 123
        %v2623 = vpop.permute.xlu0 %2622
        %2624 = vrot.lane.b32.xlu0 %v2271, 123
        %v2625 = vpop.permute.xlu0 %2624
        %2626 = vrot.lane.b32.xlu0 %v2272, 123
        %v2627 = vpop.permute.xlu0 %2626
        %2628 = vrot.lane.b32.xlu0 %v2273, 123
        %v2629 = vpop.permute.xlu0 %2628
        %2630 = vrot.lane.b32.xlu0 %v2274, 123
        %v2631 = vpop.permute.xlu0 %2630
        %2632 = vrot.lane.b32.xlu0 %v2275, 123
        %v2633 = vpop.permute.xlu0 %2632
        %2634 = vrot.lane.b32.xlu0 %v2276, 123
        %v2635 = vpop.permute.xlu0 %2634
        %2636 = vrot.lane.b32.xlu0 %v2277, 123
        %v2637 = vpop.permute.xlu0 %2636
        %2638 = vrot.lane.b32.xlu0 %v2278, 123
        %v2639 = vpop.permute.xlu0 %2638
        %2640 = vrot.lane.b32.xlu0 %v2279, 123
        %v2641 = vpop.permute.xlu0 %2640
        %2642 = vrot.lane.b32.xlu0 %v2280, 123
        %v2643 = vpop.permute.xlu0 %2642
        %2644 = vrot.lane.b32.xlu0 %v2281, 123
        %v2645 = vpop.permute.xlu0 %2644
        %2646 = vrot.lane.b32.xlu0 %v2282, 123
        %v2647 = vpop.permute.xlu0 %2646
        %2648 = vrot.lane.b32.xlu0 %v2283, 123
        %v2649 = vpop.permute.xlu0 %2648
        %2650 = vrot.lane.b32.xlu0 %v2284, 123
        %v2651 = vpop.permute.xlu0 %2650
        %2652 = vrot.lane.b32.xlu0 %v2285, 123
        %v2653 = vpop.permute.xlu0 %2652
        %2654 = vrot.lane.b32.xlu0 %v2302, 123
        %v2655 = vpop.permute.xlu0 %2654
        %2656 = vrot.lane.b32.xlu0 %v2303, 123
        %v2657 = vpop.permute.xlu0 %2656
        %2658 = vrot.lane.b32.xlu0 %v2304, 123
        %v2659 = vpop.permute.xlu0 %2658
        %2660 = vrot.lane.b32.xlu0 %v2305, 123
        %v2661 = vpop.permute.xlu0 %2660
        %2662 = vrot.lane.b32.xlu0 %v2306, 123
        %v2663 = vpop.permute.xlu0 %2662
        %2664 = vrot.lane.b32.xlu0 %v2307, 123
        %v2665 = vpop.permute.xlu0 %2664
        %2666 = vrot.lane.b32.xlu0 %v2308, 123
        %v2667 = vpop.permute.xlu0 %2666
        %2668 = vrot.lane.b32.xlu0 %v2309, 123
        %v2669 = vpop.permute.xlu0 %2668
        %2670 = vrot.lane.b32.xlu0 %v2310, 123
        %v2671 = vpop.permute.xlu0 %2670
        %2672 = vrot.lane.b32.xlu0 %v2311, 123
        %v2673 = vpop.permute.xlu0 %2672
        %2674 = vrot.lane.b32.xlu0 %v2312, 123
        %v2675 = vpop.permute.xlu0 %2674
        %2676 = vrot.lane.b32.xlu0 %v2313, 123
        %v2677 = vpop.permute.xlu0 %2676
        %2678 = vrot.lane.b32.xlu0 %v2314, 123
        %v2679 = vpop.permute.xlu0 %2678
        %2680 = vrot.lane.b32.xlu0 %v2315, 123
        %v2681 = vpop.permute.xlu0 %2680
        %2682 = vrot.lane.b32.xlu0 %v2316, 123
        %v2683 = vpop.permute.xlu0 %2682
        %2684 = vrot.lane.b32.xlu0 %v2317, 123
        %v2685 = vpop.permute.xlu0 %2684
        %2690 = vrot.lane.b32.xlu0 %v2270, 122
        %v2691 = vpop.permute.xlu0 %2690
        %2692 = vrot.lane.b32.xlu0 %v2271, 122
        %v2693 = vpop.permute.xlu0 %2692
        %2694 = vrot.lane.b32.xlu0 %v2272, 122
        %v2695 = vpop.permute.xlu0 %2694
        %2696 = vrot.lane.b32.xlu0 %v2273, 122
        %v2697 = vpop.permute.xlu0 %2696
        %2698 = vrot.lane.b32.xlu0 %v2274, 122
        %v2699 = vpop.permute.xlu0 %2698
        %2700 = vrot.lane.b32.xlu0 %v2275, 122
        %v2701 = vpop.permute.xlu0 %2700
        %2702 = vrot.lane.b32.xlu0 %v2276, 122
        %v2703 = vpop.permute.xlu0 %2702
        %2704 = vrot.lane.b32.xlu0 %v2277, 122
        %v2705 = vpop.permute.xlu0 %2704
        %2706 = vrot.lane.b32.xlu0 %v2278, 122
        %v2707 = vpop.permute.xlu0 %2706
        %2708 = vrot.lane.b32.xlu0 %v2279, 122
        %v2709 = vpop.permute.xlu0 %2708
        %2710 = vrot.lane.b32.xlu0 %v2280, 122
        %v2711 = vpop.permute.xlu0 %2710
        %2712 = vrot.lane.b32.xlu0 %v2281, 122
        %v2713 = vpop.permute.xlu0 %2712
        %2714 = vrot.lane.b32.xlu0 %v2282, 122
        %v2715 = vpop.permute.xlu0 %2714
        %2716 = vrot.lane.b32.xlu0 %v2283, 122
        %v2717 = vpop.permute.xlu0 %2716
        %2718 = vrot.lane.b32.xlu0 %v2284, 122
        %v2719 = vpop.permute.xlu0 %2718
        %2720 = vrot.lane.b32.xlu0 %v2285, 122
        %v2721 = vpop.permute.xlu0 %2720
        %2722 = vrot.lane.b32.xlu0 %v2302, 122
        %v2723 = vpop.permute.xlu0 %2722
        %2724 = vrot.lane.b32.xlu0 %v2303, 122
        %v2725 = vpop.permute.xlu0 %2724
        %2726 = vrot.lane.b32.xlu0 %v2304, 122
        %v2727 = vpop.permute.xlu0 %2726
        %2728 = vrot.lane.b32.xlu0 %v2305, 122
        %v2729 = vpop.permute.xlu0 %2728
        %2730 = vrot.lane.b32.xlu0 %v2306, 122
        %v2731 = vpop.permute.xlu0 %2730
        %2732 = vrot.lane.b32.xlu0 %v2307, 122
        %v2733 = vpop.permute.xlu0 %2732
        %2734 = vrot.lane.b32.xlu0 %v2308, 122
        %v2735 = vpop.permute.xlu0 %2734
        %2736 = vrot.lane.b32.xlu0 %v2309, 122
        %v2737 = vpop.permute.xlu0 %2736
        %2738 = vrot.lane.b32.xlu0 %v2310, 122
        %v2739 = vpop.permute.xlu0 %2738
        %2740 = vrot.lane.b32.xlu0 %v2311, 122
        %v2741 = vpop.permute.xlu0 %2740
        %2742 = vrot.lane.b32.xlu0 %v2312, 122
        %v2743 = vpop.permute.xlu0 %2742
        %2744 = vrot.lane.b32.xlu0 %v2313, 122
        %v2745 = vpop.permute.xlu0 %2744
        %2746 = vrot.lane.b32.xlu0 %v2314, 122
        %v2747 = vpop.permute.xlu0 %2746
        %2748 = vrot.lane.b32.xlu0 %v2315, 122
        %v2749 = vpop.permute.xlu0 %2748
        %2750 = vrot.lane.b32.xlu0 %v2316, 122
        %v2751 = vpop.permute.xlu0 %2750
        %2752 = vrot.lane.b32.xlu0 %v2317, 122
        %v2753 = vpop.permute.xlu0 %2752
        %2758 = vrot.lane.b32.xlu0 %v2270, 121
        %v2759 = vpop.permute.xlu0 %2758
        %2760 = vrot.lane.b32.xlu0 %v2271, 121
        %v2761 = vpop.permute.xlu0 %2760
        %2762 = vrot.lane.b32.xlu0 %v2272, 121
        %v2763 = vpop.permute.xlu0 %2762
        %2764 = vrot.lane.b32.xlu0 %v2273, 121
        %v2765 = vpop.permute.xlu0 %2764
        %2766 = vrot.lane.b32.xlu0 %v2274, 121
        %v2767 = vpop.permute.xlu0 %2766
        %2768 = vrot.lane.b32.xlu0 %v2275, 121
        %v2769 = vpop.permute.xlu0 %2768
        %2770 = vrot.lane.b32.xlu0 %v2276, 121
        %v2771 = vpop.permute.xlu0 %2770
        %2772 = vrot.lane.b32.xlu0 %v2277, 121
        %v2773 = vpop.permute.xlu0 %2772
        %2774 = vrot.lane.b32.xlu0 %v2278, 121
        %v2775 = vpop.permute.xlu0 %2774
        %2776 = vrot.lane.b32.xlu0 %v2279, 121
        %v2777 = vpop.permute.xlu0 %2776
        %2778 = vrot.lane.b32.xlu0 %v2280, 121
        %v2779 = vpop.permute.xlu0 %2778
        %2780 = vrot.lane.b32.xlu0 %v2281, 121
        %v2781 = vpop.permute.xlu0 %2780
        %2782 = vrot.lane.b32.xlu0 %v2282, 121
        %v2783 = vpop.permute.xlu0 %2782
        %2784 = vrot.lane.b32.xlu0 %v2283, 121
        %v2785 = vpop.permute.xlu0 %2784
        %2786 = vrot.lane.b32.xlu0 %v2284, 121
        %v2787 = vpop.permute.xlu0 %2786
        %2788 = vrot.lane.b32.xlu0 %v2285, 121
        %v2789 = vpop.permute.xlu0 %2788
        %2790 = vrot.lane.b32.xlu0 %v2302, 121
        %v2791 = vpop.permute.xlu0 %2790
        %2792 = vrot.lane.b32.xlu0 %v2303, 121
        %v2793 = vpop.permute.xlu0 %2792
        %2794 = vrot.lane.b32.xlu0 %v2304, 121
        %v2795 = vpop.permute.xlu0 %2794
        %2796 = vrot.lane.b32.xlu0 %v2305, 121
        %v2797 = vpop.permute.xlu0 %2796
        %2798 = vrot.lane.b32.xlu0 %v2306, 121
        %v2799 = vpop.permute.xlu0 %2798
        %2800 = vrot.lane.b32.xlu0 %v2307, 121
        %v2801 = vpop.permute.xlu0 %2800
        %2802 = vrot.lane.b32.xlu0 %v2308, 121
        %v2803 = vpop.permute.xlu0 %2802
        %2804 = vrot.lane.b32.xlu0 %v2309, 121
        %v2805 = vpop.permute.xlu0 %2804
        %2806 = vrot.lane.b32.xlu0 %v2310, 121
        %v2807 = vpop.permute.xlu0 %2806
        %2808 = vrot.lane.b32.xlu0 %v2311, 121
        %v2809 = vpop.permute.xlu0 %2808
        %2810 = vrot.lane.b32.xlu0 %v2312, 121
        %v2811 = vpop.permute.xlu0 %2810
        %2812 = vrot.lane.b32.xlu0 %v2313, 121
        %v2813 = vpop.permute.xlu0 %2812
        %2814 = vrot.lane.b32.xlu0 %v2314, 121
        %v2815 = vpop.permute.xlu0 %2814
        %2816 = vrot.lane.b32.xlu0 %v2315, 121
        %v2817 = vpop.permute.xlu0 %2816
        %2818 = vrot.lane.b32.xlu0 %v2316, 121
        %v2819 = vpop.permute.xlu0 %2818
        %2820 = vrot.lane.b32.xlu0 %v2317, 121
        %v2821 = vpop.permute.xlu0 %2820
        %2826 = vrot.lane.b32.xlu0 %v2270, 120
        %v2827 = vpop.permute.xlu0 %2826
        %2828 = vrot.lane.b32.xlu0 %v2271, 120
        %v2829 = vpop.permute.xlu0 %2828
        %2830 = vrot.lane.b32.xlu0 %v2272, 120
        %v2831 = vpop.permute.xlu0 %2830
        %2832 = vrot.lane.b32.xlu0 %v2273, 120
        %v2833 = vpop.permute.xlu0 %2832
        %2834 = vrot.lane.b32.xlu0 %v2274, 120
        %v2835 = vpop.permute.xlu0 %2834
        %2836 = vrot.lane.b32.xlu0 %v2275, 120
        %v2837 = vpop.permute.xlu0 %2836
        %2838 = vrot.lane.b32.xlu0 %v2276, 120
        %v2839 = vpop.permute.xlu0 %2838
        %2840 = vrot.lane.b32.xlu0 %v2277, 120
        %v2841 = vpop.permute.xlu0 %2840
        %2842 = vrot.lane.b32.xlu0 %v2278, 120
        %v2843 = vpop.permute.xlu0 %2842
        %2844 = vrot.lane.b32.xlu0 %v2279, 120
        %v2845 = vpop.permute.xlu0 %2844
        %2846 = vrot.lane.b32.xlu0 %v2280, 120
        %v2847 = vpop.permute.xlu0 %2846
        %2848 = vrot.lane.b32.xlu0 %v2281, 120
        %v2849 = vpop.permute.xlu0 %2848
        %2850 = vrot.lane.b32.xlu0 %v2282, 120
        %v2851 = vpop.permute.xlu0 %2850
        %2852 = vrot.lane.b32.xlu0 %v2283, 120
        %v2853 = vpop.permute.xlu0 %2852
        %2854 = vrot.lane.b32.xlu0 %v2284, 120
        %v2855 = vpop.permute.xlu0 %2854
        %2856 = vrot.lane.b32.xlu0 %v2285, 120
        %v2857 = vpop.permute.xlu0 %2856
        %2858 = vrot.lane.b32.xlu0 %v2302, 120
        %v2859 = vpop.permute.xlu0 %2858
        %2860 = vrot.lane.b32.xlu0 %v2303, 120
        %v2861 = vpop.permute.xlu0 %2860
        %2862 = vrot.lane.b32.xlu0 %v2304, 120
        %v2863 = vpop.permute.xlu0 %2862
        %2864 = vrot.lane.b32.xlu0 %v2305, 120
        %v2865 = vpop.permute.xlu0 %2864
        %2866 = vrot.lane.b32.xlu0 %v2306, 120
        %v2867 = vpop.permute.xlu0 %2866
        %2868 = vrot.lane.b32.xlu0 %v2307, 120
        %v2869 = vpop.permute.xlu0 %2868
        %2870 = vrot.lane.b32.xlu0 %v2308, 120
        %v2871 = vpop.permute.xlu0 %2870
        %2872 = vrot.lane.b32.xlu0 %v2309, 120
        %v2873 = vpop.permute.xlu0 %2872
        %2874 = vrot.lane.b32.xlu0 %v2310, 120
        %v2875 = vpop.permute.xlu0 %2874
        %2876 = vrot.lane.b32.xlu0 %v2311, 120
        %v2877 = vpop.permute.xlu0 %2876
        %2878 = vrot.lane.b32.xlu0 %v2312, 120
        %v2879 = vpop.permute.xlu0 %2878
        %2880 = vrot.lane.b32.xlu0 %v2313, 120
        %v2881 = vpop.permute.xlu0 %2880
        %2882 = vrot.lane.b32.xlu0 %v2314, 120
        %v2883 = vpop.permute.xlu0 %2882
        %2884 = vrot.lane.b32.xlu0 %v2315, 120
        %v2885 = vpop.permute.xlu0 %2884
        %2886 = vrot.lane.b32.xlu0 %v2316, 120
        %v2887 = vpop.permute.xlu0 %2886
        %2888 = vrot.lane.b32.xlu0 %v2317, 120
        %v2889 = vpop.permute.xlu0 %2888
        %2894 = vrot.lane.b32.xlu0 %v2270, 119
        %v2895 = vpop.permute.xlu0 %2894
        %2896 = vrot.lane.b32.xlu0 %v2271, 119
        %v2897 = vpop.permute.xlu0 %2896
        %2898 = vrot.lane.b32.xlu0 %v2272, 119
        %v2899 = vpop.permute.xlu0 %2898
        %2900 = vrot.lane.b32.xlu0 %v2273, 119
        %v2901 = vpop.permute.xlu0 %2900
        %2902 = vrot.lane.b32.xlu0 %v2274, 119
        %v2903 = vpop.permute.xlu0 %2902
        %2904 = vrot.lane.b32.xlu0 %v2275, 119
        %v2905 = vpop.permute.xlu0 %2904
        %2906 = vrot.lane.b32.xlu0 %v2276, 119
        %v2907 = vpop.permute.xlu0 %2906
        %2908 = vrot.lane.b32.xlu0 %v2277, 119
        %v2909 = vpop.permute.xlu0 %2908
        %2910 = vrot.lane.b32.xlu0 %v2278, 119
        %v2911 = vpop.permute.xlu0 %2910
        %2912 = vrot.lane.b32.xlu0 %v2279, 119
        %v2913 = vpop.permute.xlu0 %2912
        %2914 = vrot.lane.b32.xlu0 %v2280, 119
        %v2915 = vpop.permute.xlu0 %2914
        %2916 = vrot.lane.b32.xlu0 %v2281, 119
        %v2917 = vpop.permute.xlu0 %2916
        %2918 = vrot.lane.b32.xlu0 %v2282, 119
        %v2919 = vpop.permute.xlu0 %2918
        %2920 = vrot.lane.b32.xlu0 %v2283, 119
        %v2921 = vpop.permute.xlu0 %2920
        %2922 = vrot.lane.b32.xlu0 %v2284, 119
        %v2923 = vpop.permute.xlu0 %2922
        %2924 = vrot.lane.b32.xlu0 %v2285, 119
        %v2925 = vpop.permute.xlu0 %2924
        %2926 = vrot.lane.b32.xlu0 %v2302, 119
        %v2927 = vpop.permute.xlu0 %2926
        %2928 = vrot.lane.b32.xlu0 %v2303, 119
        %v2929 = vpop.permute.xlu0 %2928
        %2930 = vrot.lane.b32.xlu0 %v2304, 119
        %v2931 = vpop.permute.xlu0 %2930
        %2932 = vrot.lane.b32.xlu0 %v2305, 119
        %v2933 = vpop.permute.xlu0 %2932
        %2934 = vrot.lane.b32.xlu0 %v2306, 119
        %v2935 = vpop.permute.xlu0 %2934
        %2936 = vrot.lane.b32.xlu0 %v2307, 119
        %v2937 = vpop.permute.xlu0 %2936
        %2938 = vrot.lane.b32.xlu0 %v2308, 119
        %v2939 = vpop.permute.xlu0 %2938
        %2940 = vrot.lane.b32.xlu0 %v2309, 119
        %v2941 = vpop.permute.xlu0 %2940
        %2942 = vrot.lane.b32.xlu0 %v2310, 119
        %v2943 = vpop.permute.xlu0 %2942
        %2944 = vrot.lane.b32.xlu0 %v2311, 119
        %v2945 = vpop.permute.xlu0 %2944
        %2946 = vrot.lane.b32.xlu0 %v2312, 119
        %v2947 = vpop.permute.xlu0 %2946
        %2948 = vrot.lane.b32.xlu0 %v2313, 119
        %v2949 = vpop.permute.xlu0 %2948
        %2950 = vrot.lane.b32.xlu0 %v2314, 119
        %v2951 = vpop.permute.xlu0 %2950
        %2952 = vrot.lane.b32.xlu0 %v2315, 119
        %v2953 = vpop.permute.xlu0 %2952
        %2954 = vrot.lane.b32.xlu0 %v2316, 119
        %v2955 = vpop.permute.xlu0 %2954
        %2956 = vrot.lane.b32.xlu0 %v2317, 119
        %v2957 = vpop.permute.xlu0 %2956
        %2962 = vrot.lane.b32.xlu0 %v2270, 118
        %v2963 = vpop.permute.xlu0 %2962
        %2964 = vrot.lane.b32.xlu0 %v2271, 118
        %v2965 = vpop.permute.xlu0 %2964
        %2966 = vrot.lane.b32.xlu0 %v2272, 118
        %v2967 = vpop.permute.xlu0 %2966
        %2968 = vrot.lane.b32.xlu0 %v2273, 118
        %v2969 = vpop.permute.xlu0 %2968
        %2970 = vrot.lane.b32.xlu0 %v2274, 118
        %v2971 = vpop.permute.xlu0 %2970
        %2972 = vrot.lane.b32.xlu0 %v2275, 118
        %v2973 = vpop.permute.xlu0 %2972
        %2974 = vrot.lane.b32.xlu0 %v2276, 118
        %v2975 = vpop.permute.xlu0 %2974
        %2976 = vrot.lane.b32.xlu0 %v2277, 118
        %v2977 = vpop.permute.xlu0 %2976
        %2978 = vrot.lane.b32.xlu0 %v2278, 118
        %v2979 = vpop.permute.xlu0 %2978
        %2980 = vrot.lane.b32.xlu0 %v2279, 118
        %v2981 = vpop.permute.xlu0 %2980
        %2982 = vrot.lane.b32.xlu0 %v2280, 118
        %v2983 = vpop.permute.xlu0 %2982
        %2984 = vrot.lane.b32.xlu0 %v2281, 118
        %v2985 = vpop.permute.xlu0 %2984
        %2986 = vrot.lane.b32.xlu0 %v2282, 118
        %v2987 = vpop.permute.xlu0 %2986
        %2988 = vrot.lane.b32.xlu0 %v2283, 118
        %v2989 = vpop.permute.xlu0 %2988
        %2990 = vrot.lane.b32.xlu0 %v2284, 118
        %v2991 = vpop.permute.xlu0 %2990
        %2992 = vrot.lane.b32.xlu0 %v2285, 118
        %v2993 = vpop.permute.xlu0 %2992
        %2994 = vrot.lane.b32.xlu0 %v2302, 118
        %v2995 = vpop.permute.xlu0 %2994
        %2996 = vrot.lane.b32.xlu0 %v2303, 118
        %v2997 = vpop.permute.xlu0 %2996
        %2998 = vrot.lane.b32.xlu0 %v2304, 118
        %v2999 = vpop.permute.xlu0 %2998
        %3000 = vrot.lane.b32.xlu0 %v2305, 118
        %v3001 = vpop.permute.xlu0 %3000
        %3002 = vrot.lane.b32.xlu0 %v2306, 118
        %v3003 = vpop.permute.xlu0 %3002
        %3004 = vrot.lane.b32.xlu0 %v2307, 118
        %v3005 = vpop.permute.xlu0 %3004
        %3006 = vrot.lane.b32.xlu0 %v2308, 118
        %v3007 = vpop.permute.xlu0 %3006
        %3008 = vrot.lane.b32.xlu0 %v2309, 118
        %v3009 = vpop.permute.xlu0 %3008
        %3010 = vrot.lane.b32.xlu0 %v2310, 118
        %v3011 = vpop.permute.xlu0 %3010
        %3012 = vrot.lane.b32.xlu0 %v2311, 118
        %v3013 = vpop.permute.xlu0 %3012
        %3014 = vrot.lane.b32.xlu0 %v2312, 118
        %v3015 = vpop.permute.xlu0 %3014
        %3016 = vrot.lane.b32.xlu0 %v2313, 118
        %v3017 = vpop.permute.xlu0 %3016
        %3018 = vrot.lane.b32.xlu0 %v2314, 118
        %v3019 = vpop.permute.xlu0 %3018
        %3020 = vrot.lane.b32.xlu0 %v2315, 118
        %v3021 = vpop.permute.xlu0 %3020
        %3022 = vrot.lane.b32.xlu0 %v2316, 118
        %v3023 = vpop.permute.xlu0 %3022
        %3024 = vrot.lane.b32.xlu0 %v2317, 118
        %v3025 = vpop.permute.xlu0 %3024
        %3030 = vrot.lane.b32.xlu0 %v2270, 117
        %v3031 = vpop.permute.xlu0 %3030
        %3032 = vrot.lane.b32.xlu0 %v2271, 117
        %v3033 = vpop.permute.xlu0 %3032
        %3034 = vrot.lane.b32.xlu0 %v2272, 117
        %v3035 = vpop.permute.xlu0 %3034
        %3036 = vrot.lane.b32.xlu0 %v2273, 117
        %v3037 = vpop.permute.xlu0 %3036
        %3038 = vrot.lane.b32.xlu0 %v2274, 117
        %v3039 = vpop.permute.xlu0 %3038
        %3040 = vrot.lane.b32.xlu0 %v2275, 117
        %v3041 = vpop.permute.xlu0 %3040
        %3042 = vrot.lane.b32.xlu0 %v2276, 117
        %v3043 = vpop.permute.xlu0 %3042
        %3044 = vrot.lane.b32.xlu0 %v2277, 117
        %v3045 = vpop.permute.xlu0 %3044
        %3046 = vrot.lane.b32.xlu0 %v2278, 117
        %v3047 = vpop.permute.xlu0 %3046
        %3048 = vrot.lane.b32.xlu0 %v2279, 117
        %v3049 = vpop.permute.xlu0 %3048
        %3050 = vrot.lane.b32.xlu0 %v2280, 117
        %v3051 = vpop.permute.xlu0 %3050
        %3052 = vrot.lane.b32.xlu0 %v2281, 117
        %v3053 = vpop.permute.xlu0 %3052
        %3054 = vrot.lane.b32.xlu0 %v2282, 117
        %v3055 = vpop.permute.xlu0 %3054
        %3056 = vrot.lane.b32.xlu0 %v2283, 117
        %v3057 = vpop.permute.xlu0 %3056
        %3058 = vrot.lane.b32.xlu0 %v2284, 117
        %v3059 = vpop.permute.xlu0 %3058
        %3060 = vrot.lane.b32.xlu0 %v2285, 117
        %v3061 = vpop.permute.xlu0 %3060
        %3062 = vrot.lane.b32.xlu0 %v2302, 117
        %v3063 = vpop.permute.xlu0 %3062
        %3064 = vrot.lane.b32.xlu0 %v2303, 117
        %v3065 = vpop.permute.xlu0 %3064
        %3066 = vrot.lane.b32.xlu0 %v2304, 117
        %v3067 = vpop.permute.xlu0 %3066
        %3068 = vrot.lane.b32.xlu0 %v2305, 117
        %v3069 = vpop.permute.xlu0 %3068
        %3070 = vrot.lane.b32.xlu0 %v2306, 117
        %v3071 = vpop.permute.xlu0 %3070
        %3072 = vrot.lane.b32.xlu0 %v2307, 117
        %v3073 = vpop.permute.xlu0 %3072
        %3074 = vrot.lane.b32.xlu0 %v2308, 117
        %v3075 = vpop.permute.xlu0 %3074
        %3076 = vrot.lane.b32.xlu0 %v2309, 117
        %v3077 = vpop.permute.xlu0 %3076
        %3078 = vrot.lane.b32.xlu0 %v2310, 117
        %v3079 = vpop.permute.xlu0 %3078
        %3080 = vrot.lane.b32.xlu0 %v2311, 117
        %v3081 = vpop.permute.xlu0 %3080
        %3082 = vrot.lane.b32.xlu0 %v2312, 117
        %v3083 = vpop.permute.xlu0 %3082
        %3084 = vrot.lane.b32.xlu0 %v2313, 117
        %v3085 = vpop.permute.xlu0 %3084
        %3086 = vrot.lane.b32.xlu0 %v2314, 117
        %v3087 = vpop.permute.xlu0 %3086
        %3088 = vrot.lane.b32.xlu0 %v2315, 117
        %v3089 = vpop.permute.xlu0 %3088
        %3090 = vrot.lane.b32.xlu0 %v2316, 117
        %v3091 = vpop.permute.xlu0 %3090
        %3092 = vrot.lane.b32.xlu0 %v2317, 117
        %v3093 = vpop.permute.xlu0 %3092
        %3098 = vrot.lane.b32.xlu0 %v2274, 31
        %v3099 = vpop.permute.xlu0 %3098
        %3100 = vrot.lane.b32.xlu0 %v2275, 31
        %v3101 = vpop.permute.xlu0 %3100
        %3102 = vrot.lane.b32.xlu0 %v2276, 31
        %v3103 = vpop.permute.xlu0 %3102
        %3104 = vrot.lane.b32.xlu0 %v2277, 31
        %v3105 = vpop.permute.xlu0 %3104
        %3106 = vrot.lane.b32.xlu0 %v2359, 31
        %v3107 = vpop.permute.xlu0 %3106
        %3108 = vrot.lane.b32.xlu0 %v2361, 31
        %v3109 = vpop.permute.xlu0 %3108
        %3110 = vrot.lane.b32.xlu0 %v2363, 31
        %v3111 = vpop.permute.xlu0 %3110
        %3112 = vrot.lane.b32.xlu0 %v2365, 31
        %v3113 = vpop.permute.xlu0 %3112
        %3114 = vrot.lane.b32.xlu0 %v2427, 31
        %v3115 = vpop.permute.xlu0 %3114
        %3116 = vrot.lane.b32.xlu0 %v2429, 31
        %v3117 = vpop.permute.xlu0 %3116
        %3118 = vrot.lane.b32.xlu0 %v2431, 31
        %v3119 = vpop.permute.xlu0 %3118
        %3120 = vrot.lane.b32.xlu0 %v2433, 31
        %v3121 = vpop.permute.xlu0 %3120
        %3122 = vrot.lane.b32.xlu0 %v2495, 31
        %v3123 = vpop.permute.xlu0 %3122
        %3124 = vrot.lane.b32.xlu0 %v2497, 31
        %v3125 = vpop.permute.xlu0 %3124
        %3126 = vrot.lane.b32.xlu0 %v2499, 31
        %v3127 = vpop.permute.xlu0 %3126
        %3128 = vrot.lane.b32.xlu0 %v2501, 31
        %v3129 = vpop.permute.xlu0 %3128
        %3130 = vrot.lane.b32.xlu0 %v2563, 31
        %v3131 = vpop.permute.xlu0 %3130
        %3132 = vrot.lane.b32.xlu0 %v2565, 31
        %v3133 = vpop.permute.xlu0 %3132
        %3134 = vrot.lane.b32.xlu0 %v2567, 31
        %v3135 = vpop.permute.xlu0 %3134
        %3136 = vrot.lane.b32.xlu0 %v2569, 31
        %v3137 = vpop.permute.xlu0 %3136
        %3138 = vrot.lane.b32.xlu0 %v2631, 31
        %v3139 = vpop.permute.xlu0 %3138
        %3140 = vrot.lane.b32.xlu0 %v2633, 31
        %v3141 = vpop.permute.xlu0 %3140
        %3142 = vrot.lane.b32.xlu0 %v2635, 31
        %v3143 = vpop.permute.xlu0 %3142
        %3144 = vrot.lane.b32.xlu0 %v2637, 31
        %v3145 = vpop.permute.xlu0 %3144
        %3146 = vrot.lane.b32.xlu0 %v2699, 31
        %v3147 = vpop.permute.xlu0 %3146
        %3148 = vrot.lane.b32.xlu0 %v2701, 31
        %v3149 = vpop.permute.xlu0 %3148
        %3150 = vrot.lane.b32.xlu0 %v2703, 31
        %v3151 = vpop.permute.xlu0 %3150
        %3152 = vrot.lane.b32.xlu0 %v2705, 31
        %v3153 = vpop.permute.xlu0 %3152
        %3154 = vrot.lane.b32.xlu0 %v2767, 31
        %v3155 = vpop.permute.xlu0 %3154
        %3156 = vrot.lane.b32.xlu0 %v2769, 31
        %v3157 = vpop.permute.xlu0 %3156
        %3158 = vrot.lane.b32.xlu0 %v2771, 31
        %v3159 = vpop.permute.xlu0 %3158
        %3160 = vrot.lane.b32.xlu0 %v2773, 31
        %v3161 = vpop.permute.xlu0 %3160
        %3162 = vrot.lane.b32.xlu0 %v2835, 31
        %v3163 = vpop.permute.xlu0 %3162
        %3164 = vrot.lane.b32.xlu0 %v2837, 31
        %v3165 = vpop.permute.xlu0 %3164
        %3166 = vrot.lane.b32.xlu0 %v2839, 31
        %v3167 = vpop.permute.xlu0 %3166
        %3168 = vrot.lane.b32.xlu0 %v2841, 31
        %v3169 = vpop.permute.xlu0 %3168
        %3170 = vrot.lane.b32.xlu0 %v2903, 31
        %v3171 = vpop.permute.xlu0 %3170
        %3172 = vrot.lane.b32.xlu0 %v2905, 31
        %v3173 = vpop.permute.xlu0 %3172
        %3174 = vrot.lane.b32.xlu0 %v2907, 31
        %v3175 = vpop.permute.xlu0 %3174
        %3176 = vrot.lane.b32.xlu0 %v2909, 31
        %v3177 = vpop.permute.xlu0 %3176
        %3178 = vrot.lane.b32.xlu0 %v2971, 31
        %v3179 = vpop.permute.xlu0 %3178
        %3180 = vrot.lane.b32.xlu0 %v2973, 31
        %v3181 = vpop.permute.xlu0 %3180
        %3182 = vrot.lane.b32.xlu0 %v2975, 31
        %v3183 = vpop.permute.xlu0 %3182
        %3184 = vrot.lane.b32.xlu0 %v2977, 31
        %v3185 = vpop.permute.xlu0 %3184
        %3186 = vrot.lane.b32.xlu0 %v3039, 31
        %v3187 = vpop.permute.xlu0 %3186
        %3188 = vrot.lane.b32.xlu0 %v3041, 31
        %v3189 = vpop.permute.xlu0 %3188
        %3190 = vrot.lane.b32.xlu0 %v3043, 31
        %v3191 = vpop.permute.xlu0 %3190
        %3192 = vrot.lane.b32.xlu0 %v3045, 31
        %v3193 = vpop.permute.xlu0 %3192
        %3242 = vrot.lane.b32.xlu0 %v2278, 62
        %v3243 = vpop.permute.xlu0 %3242
        %3244 = vrot.lane.b32.xlu0 %v2279, 62
        %v3245 = vpop.permute.xlu0 %3244
        %3246 = vrot.lane.b32.xlu0 %v2280, 62
        %v3247 = vpop.permute.xlu0 %3246
        %3248 = vrot.lane.b32.xlu0 %v2281, 62
        %v3249 = vpop.permute.xlu0 %3248
        %3250 = vrot.lane.b32.xlu0 %v2367, 62
        %v3251 = vpop.permute.xlu0 %3250
        %3252 = vrot.lane.b32.xlu0 %v2369, 62
        %v3253 = vpop.permute.xlu0 %3252
        %3254 = vrot.lane.b32.xlu0 %v2371, 62
        %v3255 = vpop.permute.xlu0 %3254
        %3256 = vrot.lane.b32.xlu0 %v2373, 62
        %v3257 = vpop.permute.xlu0 %3256
        %3258 = vrot.lane.b32.xlu0 %v2435, 62
        %v3259 = vpop.permute.xlu0 %3258
        %3260 = vrot.lane.b32.xlu0 %v2437, 62
        %v3261 = vpop.permute.xlu0 %3260
        %3262 = vrot.lane.b32.xlu0 %v2439, 62
        %v3263 = vpop.permute.xlu0 %3262
        %3264 = vrot.lane.b32.xlu0 %v2441, 62
        %v3265 = vpop.permute.xlu0 %3264
        %3266 = vrot.lane.b32.xlu0 %v2503, 62
        %v3267 = vpop.permute.xlu0 %3266
        %3268 = vrot.lane.b32.xlu0 %v2505, 62
        %v3269 = vpop.permute.xlu0 %3268
        %3270 = vrot.lane.b32.xlu0 %v2507, 62
        %v3271 = vpop.permute.xlu0 %3270
        %3272 = vrot.lane.b32.xlu0 %v2509, 62
        %v3273 = vpop.permute.xlu0 %3272
        %3274 = vrot.lane.b32.xlu0 %v2571, 62
        %v3275 = vpop.permute.xlu0 %3274
        %3276 = vrot.lane.b32.xlu0 %v2573, 62
        %v3277 = vpop.permute.xlu0 %3276
        %3278 = vrot.lane.b32.xlu0 %v2575, 62
        %v3279 = vpop.permute.xlu0 %3278
        %3280 = vrot.lane.b32.xlu0 %v2577, 62
        %v3281 = vpop.permute.xlu0 %3280
        %3282 = vrot.lane.b32.xlu0 %v2639, 62
        %v3283 = vpop.permute.xlu0 %3282
        %3284 = vrot.lane.b32.xlu0 %v2641, 62
        %v3285 = vpop.permute.xlu0 %3284
        %3286 = vrot.lane.b32.xlu0 %v2643, 62
        %v3287 = vpop.permute.xlu0 %3286
        %3288 = vrot.lane.b32.xlu0 %v2645, 62
        %v3289 = vpop.permute.xlu0 %3288
        %3290 = vrot.lane.b32.xlu0 %v2707, 62
        %v3291 = vpop.permute.xlu0 %3290
        %3292 = vrot.lane.b32.xlu0 %v2709, 62
        %v3293 = vpop.permute.xlu0 %3292
        %3294 = vrot.lane.b32.xlu0 %v2711, 62
        %v3295 = vpop.permute.xlu0 %3294
        %3296 = vrot.lane.b32.xlu0 %v2713, 62
        %v3297 = vpop.permute.xlu0 %3296
        %3298 = vrot.lane.b32.xlu0 %v2775, 62
        %v3299 = vpop.permute.xlu0 %3298
        %3300 = vrot.lane.b32.xlu0 %v2777, 62
        %v3301 = vpop.permute.xlu0 %3300
        %3302 = vrot.lane.b32.xlu0 %v2779, 62
        %v3303 = vpop.permute.xlu0 %3302
        %3304 = vrot.lane.b32.xlu0 %v2781, 62
        %v3305 = vpop.permute.xlu0 %3304
        %3306 = vrot.lane.b32.xlu0 %v2843, 62
        %v3307 = vpop.permute.xlu0 %3306
        %3308 = vrot.lane.b32.xlu0 %v2845, 62
        %v3309 = vpop.permute.xlu0 %3308
        %3310 = vrot.lane.b32.xlu0 %v2847, 62
        %v3311 = vpop.permute.xlu0 %3310
        %3312 = vrot.lane.b32.xlu0 %v2849, 62
        %v3313 = vpop.permute.xlu0 %3312
        %3314 = vrot.lane.b32.xlu0 %v2911, 62
        %v3315 = vpop.permute.xlu0 %3314
        %3316 = vrot.lane.b32.xlu0 %v2913, 62
        %v3317 = vpop.permute.xlu0 %3316
        %3318 = vrot.lane.b32.xlu0 %v2915, 62
        %v3319 = vpop.permute.xlu0 %3318
        %3320 = vrot.lane.b32.xlu0 %v2917, 62
        %v3321 = vpop.permute.xlu0 %3320
        %3322 = vrot.lane.b32.xlu0 %v2979, 62
        %v3323 = vpop.permute.xlu0 %3322
        %3324 = vrot.lane.b32.xlu0 %v2981, 62
        %v3325 = vpop.permute.xlu0 %3324
        %3326 = vrot.lane.b32.xlu0 %v2983, 62
        %v3327 = vpop.permute.xlu0 %3326
        %3328 = vrot.lane.b32.xlu0 %v2985, 62
        %v3329 = vpop.permute.xlu0 %3328
        %3330 = vrot.lane.b32.xlu0 %v3047, 62
        %v3331 = vpop.permute.xlu0 %3330
        %3332 = vrot.lane.b32.xlu0 %v3049, 62
        %v3333 = vpop.permute.xlu0 %3332
        %3334 = vrot.lane.b32.xlu0 %v3051, 62
        %v3335 = vpop.permute.xlu0 %3334
        %3336 = vrot.lane.b32.xlu0 %v3053, 62
        %v3337 = vpop.permute.xlu0 %3336
        %3386 = vrot.lane.b32.xlu0 %v2282, 93
        %v3387 = vpop.permute.xlu0 %3386
        %3388 = vrot.lane.b32.xlu0 %v2283, 93
        %v3389 = vpop.permute.xlu0 %3388
        %3390 = vrot.lane.b32.xlu0 %v2284, 93
        %v3391 = vpop.permute.xlu0 %3390
        %3392 = vrot.lane.b32.xlu0 %v2285, 93
        %v3393 = vpop.permute.xlu0 %3392
        %3394 = vrot.lane.b32.xlu0 %v2375, 93
        %v3395 = vpop.permute.xlu0 %3394
        %3396 = vrot.lane.b32.xlu0 %v2377, 93
        %v3397 = vpop.permute.xlu0 %3396
        %3398 = vrot.lane.b32.xlu0 %v2379, 93
        %v3399 = vpop.permute.xlu0 %3398
        %3400 = vrot.lane.b32.xlu0 %v2381, 93
        %v3401 = vpop.permute.xlu0 %3400
        %3402 = vrot.lane.b32.xlu0 %v2443, 93
        %v3403 = vpop.permute.xlu0 %3402
        %3404 = vrot.lane.b32.xlu0 %v2445, 93
        %v3405 = vpop.permute.xlu0 %3404
        %3406 = vrot.lane.b32.xlu0 %v2447, 93
        %v3407 = vpop.permute.xlu0 %3406
        %3408 = vrot.lane.b32.xlu0 %v2449, 93
        %v3409 = vpop.permute.xlu0 %3408
        %3410 = vrot.lane.b32.xlu0 %v2511, 93
        %v3411 = vpop.permute.xlu0 %3410
        %3412 = vrot.lane.b32.xlu0 %v2513, 93
        %v3413 = vpop.permute.xlu0 %3412
        %3414 = vrot.lane.b32.xlu0 %v2515, 93
        %v3415 = vpop.permute.xlu0 %3414
        %3416 = vrot.lane.b32.xlu0 %v2517, 93
        %v3417 = vpop.permute.xlu0 %3416
        %3418 = vrot.lane.b32.xlu0 %v2579, 93
        %v3419 = vpop.permute.xlu0 %3418
        %3420 = vrot.lane.b32.xlu0 %v2581, 93
        %v3421 = vpop.permute.xlu0 %3420
        %3422 = vrot.lane.b32.xlu0 %v2583, 93
        %v3423 = vpop.permute.xlu0 %3422
        %3424 = vrot.lane.b32.xlu0 %v2585, 93
        %v3425 = vpop.permute.xlu0 %3424
        %3426 = vrot.lane.b32.xlu0 %v2647, 93
        %v3427 = vpop.permute.xlu0 %3426
        %3428 = vrot.lane.b32.xlu0 %v2649, 93
        %v3429 = vpop.permute.xlu0 %3428
        %3430 = vrot.lane.b32.xlu0 %v2651, 93
        %v3431 = vpop.permute.xlu0 %3430
        %3432 = vrot.lane.b32.xlu0 %v2653, 93
        %v3433 = vpop.permute.xlu0 %3432
        %3434 = vrot.lane.b32.xlu0 %v2715, 93
        %v3435 = vpop.permute.xlu0 %3434
        %3436 = vrot.lane.b32.xlu0 %v2717, 93
        %v3437 = vpop.permute.xlu0 %3436
        %3438 = vrot.lane.b32.xlu0 %v2719, 93
        %v3439 = vpop.permute.xlu0 %3438
        %3440 = vrot.lane.b32.xlu0 %v2721, 93
        %v3441 = vpop.permute.xlu0 %3440
        %3442 = vrot.lane.b32.xlu0 %v2783, 93
        %v3443 = vpop.permute.xlu0 %3442
        %3444 = vrot.lane.b32.xlu0 %v2785, 93
        %v3445 = vpop.permute.xlu0 %3444
        %3446 = vrot.lane.b32.xlu0 %v2787, 93
        %v3447 = vpop.permute.xlu0 %3446
        %3448 = vrot.lane.b32.xlu0 %v2789, 93
        %v3449 = vpop.permute.xlu0 %3448
        %3450 = vrot.lane.b32.xlu0 %v2851, 93
        %v3451 = vpop.permute.xlu0 %3450
        %3452 = vrot.lane.b32.xlu0 %v2853, 93
        %v3453 = vpop.permute.xlu0 %3452
        %3454 = vrot.lane.b32.xlu0 %v2855, 93
        %v3455 = vpop.permute.xlu0 %3454
        %3456 = vrot.lane.b32.xlu0 %v2857, 93
        %v3457 = vpop.permute.xlu0 %3456
        %3458 = vrot.lane.b32.xlu0 %v2919, 93
        %v3459 = vpop.permute.xlu0 %3458
        %3460 = vrot.lane.b32.xlu0 %v2921, 93
        %v3461 = vpop.permute.xlu0 %3460
        %3462 = vrot.lane.b32.xlu0 %v2923, 93
        %v3463 = vpop.permute.xlu0 %3462
        %3464 = vrot.lane.b32.xlu0 %v2925, 93
        %v3465 = vpop.permute.xlu0 %3464
        %3466 = vrot.lane.b32.xlu0 %v2987, 93
        %v3467 = vpop.permute.xlu0 %3466
        %3468 = vrot.lane.b32.xlu0 %v2989, 93
        %v3469 = vpop.permute.xlu0 %3468
        %3470 = vrot.lane.b32.xlu0 %v2991, 93
        %v3471 = vpop.permute.xlu0 %3470
        %3472 = vrot.lane.b32.xlu0 %v2993, 93
        %v3473 = vpop.permute.xlu0 %3472
        %3474 = vrot.lane.b32.xlu0 %v3055, 93
        %v3475 = vpop.permute.xlu0 %3474
        %3476 = vrot.lane.b32.xlu0 %v3057, 93
        %v3477 = vpop.permute.xlu0 %3476
        %3478 = vrot.lane.b32.xlu0 %v3059, 93
        %v3479 = vpop.permute.xlu0 %3478
        %3480 = vrot.lane.b32.xlu0 %v3061, 93
        %v3481 = vpop.permute.xlu0 %3480
        %3530 = vrot.lane.b32.xlu0 %v2383, 124
        %v3531 = vpop.permute.xlu0 %3530
        %3532 = vrot.lane.b32.xlu0 %v2385, 124
        %v3533 = vpop.permute.xlu0 %3532
        %3534 = vrot.lane.b32.xlu0 %v2387, 124
        %v3535 = vpop.permute.xlu0 %3534
        %3536 = vrot.lane.b32.xlu0 %v2389, 124
        %v3537 = vpop.permute.xlu0 %3536
        %3538 = vrot.lane.b32.xlu0 %v2451, 124
        %v3539 = vpop.permute.xlu0 %3538
        %3540 = vrot.lane.b32.xlu0 %v2453, 124
        %v3541 = vpop.permute.xlu0 %3540
        %3542 = vrot.lane.b32.xlu0 %v2455, 124
        %v3543 = vpop.permute.xlu0 %3542
        %3544 = vrot.lane.b32.xlu0 %v2457, 124
        %v3545 = vpop.permute.xlu0 %3544
        %3546 = vrot.lane.b32.xlu0 %v2519, 124
        %v3547 = vpop.permute.xlu0 %3546
        %3548 = vrot.lane.b32.xlu0 %v2521, 124
        %v3549 = vpop.permute.xlu0 %3548
        %3550 = vrot.lane.b32.xlu0 %v2523, 124
        %v3551 = vpop.permute.xlu0 %3550
        %3552 = vrot.lane.b32.xlu0 %v2525, 124
        %v3553 = vpop.permute.xlu0 %3552
        %3554 = vrot.lane.b32.xlu0 %v2587, 124
        %v3555 = vpop.permute.xlu0 %3554
        %3556 = vrot.lane.b32.xlu0 %v2589, 124
        %v3557 = vpop.permute.xlu0 %3556
        %3558 = vrot.lane.b32.xlu0 %v2591, 124
        %v3559 = vpop.permute.xlu0 %3558
        %3560 = vrot.lane.b32.xlu0 %v2593, 124
        %v3561 = vpop.permute.xlu0 %3560
        %3562 = vrot.lane.b32.xlu0 %v2655, 124
        %v3563 = vpop.permute.xlu0 %3562
        %3564 = vrot.lane.b32.xlu0 %v2657, 124
        %v3565 = vpop.permute.xlu0 %3564
        %3566 = vrot.lane.b32.xlu0 %v2659, 124
        %v3567 = vpop.permute.xlu0 %3566
        %3568 = vrot.lane.b32.xlu0 %v2661, 124
        %v3569 = vpop.permute.xlu0 %3568
        %3570 = vrot.lane.b32.xlu0 %v2723, 124
        %v3571 = vpop.permute.xlu0 %3570
        %3572 = vrot.lane.b32.xlu0 %v2725, 124
        %v3573 = vpop.permute.xlu0 %3572
        %3574 = vrot.lane.b32.xlu0 %v2727, 124
        %v3575 = vpop.permute.xlu0 %3574
        %3576 = vrot.lane.b32.xlu0 %v2729, 124
        %v3577 = vpop.permute.xlu0 %3576
        %3578 = vrot.lane.b32.xlu0 %v2791, 124
        %v3579 = vpop.permute.xlu0 %3578
        %3580 = vrot.lane.b32.xlu0 %v2793, 124
        %v3581 = vpop.permute.xlu0 %3580
        %3582 = vrot.lane.b32.xlu0 %v2795, 124
        %v3583 = vpop.permute.xlu0 %3582
        %3584 = vrot.lane.b32.xlu0 %v2797, 124
        %v3585 = vpop.permute.xlu0 %3584
        %3586 = vrot.lane.b32.xlu0 %v2859, 124
        %v3587 = vpop.permute.xlu0 %3586
        %3588 = vrot.lane.b32.xlu0 %v2861, 124
        %v3589 = vpop.permute.xlu0 %3588
        %3590 = vrot.lane.b32.xlu0 %v2863, 124
        %v3591 = vpop.permute.xlu0 %3590
        %3592 = vrot.lane.b32.xlu0 %v2865, 124
        %v3593 = vpop.permute.xlu0 %3592
        %3594 = vrot.lane.b32.xlu0 %v2927, 124
        %v3595 = vpop.permute.xlu0 %3594
        %3596 = vrot.lane.b32.xlu0 %v2929, 124
        %v3597 = vpop.permute.xlu0 %3596
        %3598 = vrot.lane.b32.xlu0 %v2931, 124
        %v3599 = vpop.permute.xlu0 %3598
        %3600 = vrot.lane.b32.xlu0 %v2933, 124
        %v3601 = vpop.permute.xlu0 %3600
        %3602 = vrot.lane.b32.xlu0 %v2995, 124
        %v3603 = vpop.permute.xlu0 %3602
        %3604 = vrot.lane.b32.xlu0 %v2997, 124
        %v3605 = vpop.permute.xlu0 %3604
        %3606 = vrot.lane.b32.xlu0 %v2999, 124
        %v3607 = vpop.permute.xlu0 %3606
        %3608 = vrot.lane.b32.xlu0 %v3001, 124
        %v3609 = vpop.permute.xlu0 %3608
        %3610 = vrot.lane.b32.xlu0 %v3063, 124
        %v3611 = vpop.permute.xlu0 %3610
        %3612 = vrot.lane.b32.xlu0 %v3065, 124
        %v3613 = vpop.permute.xlu0 %3612
        %3614 = vrot.lane.b32.xlu0 %v3067, 124
        %v3615 = vpop.permute.xlu0 %3614
        %3616 = vrot.lane.b32.xlu0 %v3069, 124
        %v3617 = vpop.permute.xlu0 %3616
        %3666 = vrot.lane.b32.xlu0 %v2306, 27
        %v3667 = vpop.permute.xlu0 %3666
        %3668 = vrot.lane.b32.xlu0 %v2307, 27
        %v3669 = vpop.permute.xlu0 %3668
        %3670 = vrot.lane.b32.xlu0 %v2308, 27
        %v3671 = vpop.permute.xlu0 %3670
        %3672 = vrot.lane.b32.xlu0 %v2309, 27
        %v3673 = vpop.permute.xlu0 %3672
        %3674 = vrot.lane.b32.xlu0 %v2391, 27
        %v3675 = vpop.permute.xlu0 %3674
        %3676 = vrot.lane.b32.xlu0 %v2393, 27
        %v3677 = vpop.permute.xlu0 %3676
        %3678 = vrot.lane.b32.xlu0 %v2395, 27
        %v3679 = vpop.permute.xlu0 %3678
        %3680 = vrot.lane.b32.xlu0 %v2397, 27
        %v3681 = vpop.permute.xlu0 %3680
        %3682 = vrot.lane.b32.xlu0 %v2459, 27
        %v3683 = vpop.permute.xlu0 %3682
        %3684 = vrot.lane.b32.xlu0 %v2461, 27
        %v3685 = vpop.permute.xlu0 %3684
        %3686 = vrot.lane.b32.xlu0 %v2463, 27
        %v3687 = vpop.permute.xlu0 %3686
        %3688 = vrot.lane.b32.xlu0 %v2465, 27
        %v3689 = vpop.permute.xlu0 %3688
        %3690 = vrot.lane.b32.xlu0 %v2527, 27
        %v3691 = vpop.permute.xlu0 %3690
        %3692 = vrot.lane.b32.xlu0 %v2529, 27
        %v3693 = vpop.permute.xlu0 %3692
        %3694 = vrot.lane.b32.xlu0 %v2531, 27
        %v3695 = vpop.permute.xlu0 %3694
        %3696 = vrot.lane.b32.xlu0 %v2533, 27
        %v3697 = vpop.permute.xlu0 %3696
        %3698 = vrot.lane.b32.xlu0 %v2595, 27
        %v3699 = vpop.permute.xlu0 %3698
        %3700 = vrot.lane.b32.xlu0 %v2597, 27
        %v3701 = vpop.permute.xlu0 %3700
        %3702 = vrot.lane.b32.xlu0 %v2599, 27
        %v3703 = vpop.permute.xlu0 %3702
        %3704 = vrot.lane.b32.xlu0 %v2601, 27
        %v3705 = vpop.permute.xlu0 %3704
        %3706 = vrot.lane.b32.xlu0 %v2663, 27
        %v3707 = vpop.permute.xlu0 %3706
        %3708 = vrot.lane.b32.xlu0 %v2665, 27
        %v3709 = vpop.permute.xlu0 %3708
        %3710 = vrot.lane.b32.xlu0 %v2667, 27
        %v3711 = vpop.permute.xlu0 %3710
        %3712 = vrot.lane.b32.xlu0 %v2669, 27
        %v3713 = vpop.permute.xlu0 %3712
        %3714 = vrot.lane.b32.xlu0 %v2731, 27
        %v3715 = vpop.permute.xlu0 %3714
        %3716 = vrot.lane.b32.xlu0 %v2733, 27
        %v3717 = vpop.permute.xlu0 %3716
        %3718 = vrot.lane.b32.xlu0 %v2735, 27
        %v3719 = vpop.permute.xlu0 %3718
        %3720 = vrot.lane.b32.xlu0 %v2737, 27
        %v3721 = vpop.permute.xlu0 %3720
        %3722 = vrot.lane.b32.xlu0 %v2799, 27
        %v3723 = vpop.permute.xlu0 %3722
        %3724 = vrot.lane.b32.xlu0 %v2801, 27
        %v3725 = vpop.permute.xlu0 %3724
        %3726 = vrot.lane.b32.xlu0 %v2803, 27
        %v3727 = vpop.permute.xlu0 %3726
        %3728 = vrot.lane.b32.xlu0 %v2805, 27
        %v3729 = vpop.permute.xlu0 %3728
        %3730 = vrot.lane.b32.xlu0 %v2867, 27
        %v3731 = vpop.permute.xlu0 %3730
        %3732 = vrot.lane.b32.xlu0 %v2869, 27
        %v3733 = vpop.permute.xlu0 %3732
        %3734 = vrot.lane.b32.xlu0 %v2871, 27
        %v3735 = vpop.permute.xlu0 %3734
        %3736 = vrot.lane.b32.xlu0 %v2873, 27
        %v3737 = vpop.permute.xlu0 %3736
        %3738 = vrot.lane.b32.xlu0 %v2935, 27
        %v3739 = vpop.permute.xlu0 %3738
        %3740 = vrot.lane.b32.xlu0 %v2937, 27
        %v3741 = vpop.permute.xlu0 %3740
        %3742 = vrot.lane.b32.xlu0 %v2939, 27
        %v3743 = vpop.permute.xlu0 %3742
        %3744 = vrot.lane.b32.xlu0 %v2941, 27
        %v3745 = vpop.permute.xlu0 %3744
        %3746 = vrot.lane.b32.xlu0 %v3003, 27
        %v3747 = vpop.permute.xlu0 %3746
        %3748 = vrot.lane.b32.xlu0 %v3005, 27
        %v3749 = vpop.permute.xlu0 %3748
        %3750 = vrot.lane.b32.xlu0 %v3007, 27
        %v3751 = vpop.permute.xlu0 %3750
        %3752 = vrot.lane.b32.xlu0 %v3009, 27
        %v3753 = vpop.permute.xlu0 %3752
        %3754 = vrot.lane.b32.xlu0 %v3071, 27
        %v3755 = vpop.permute.xlu0 %3754
        %3756 = vrot.lane.b32.xlu0 %v3073, 27
        %v3757 = vpop.permute.xlu0 %3756
        %3758 = vrot.lane.b32.xlu0 %v3075, 27
        %v3759 = vpop.permute.xlu0 %3758
        %3760 = vrot.lane.b32.xlu0 %v3077, 27
        %v3761 = vpop.permute.xlu0 %3760
        %3810 = vrot.lane.b32.xlu0 %v2310, 58
        %v3811 = vpop.permute.xlu0 %3810
        %3812 = vrot.lane.b32.xlu0 %v2311, 58
        %v3813 = vpop.permute.xlu0 %3812
        %3814 = vrot.lane.b32.xlu0 %v2312, 58
        %v3815 = vpop.permute.xlu0 %3814
        %3816 = vrot.lane.b32.xlu0 %v2313, 58
        %v3817 = vpop.permute.xlu0 %3816
        %3818 = vrot.lane.b32.xlu0 %v2399, 58
        %v3819 = vpop.permute.xlu0 %3818
        %3820 = vrot.lane.b32.xlu0 %v2401, 58
        %v3821 = vpop.permute.xlu0 %3820
        %3822 = vrot.lane.b32.xlu0 %v2403, 58
        %v3823 = vpop.permute.xlu0 %3822
        %3824 = vrot.lane.b32.xlu0 %v2405, 58
        %v3825 = vpop.permute.xlu0 %3824
        %3826 = vrot.lane.b32.xlu0 %v2467, 58
        %v3827 = vpop.permute.xlu0 %3826
        %3828 = vrot.lane.b32.xlu0 %v2469, 58
        %v3829 = vpop.permute.xlu0 %3828
        %3830 = vrot.lane.b32.xlu0 %v2471, 58
        %v3831 = vpop.permute.xlu0 %3830
        %3832 = vrot.lane.b32.xlu0 %v2473, 58
        %v3833 = vpop.permute.xlu0 %3832
        %3834 = vrot.lane.b32.xlu0 %v2535, 58
        %v3835 = vpop.permute.xlu0 %3834
        %3836 = vrot.lane.b32.xlu0 %v2537, 58
        %v3837 = vpop.permute.xlu0 %3836
        %3838 = vrot.lane.b32.xlu0 %v2539, 58
        %v3839 = vpop.permute.xlu0 %3838
        %3840 = vrot.lane.b32.xlu0 %v2541, 58
        %v3841 = vpop.permute.xlu0 %3840
        %3842 = vrot.lane.b32.xlu0 %v2603, 58
        %v3843 = vpop.permute.xlu0 %3842
        %3844 = vrot.lane.b32.xlu0 %v2605, 58
        %v3845 = vpop.permute.xlu0 %3844
        %3846 = vrot.lane.b32.xlu0 %v2607, 58
        %v3847 = vpop.permute.xlu0 %3846
        %3848 = vrot.lane.b32.xlu0 %v2609, 58
        %v3849 = vpop.permute.xlu0 %3848
        %3850 = vrot.lane.b32.xlu0 %v2671, 58
        %v3851 = vpop.permute.xlu0 %3850
        %3852 = vrot.lane.b32.xlu0 %v2673, 58
        %v3853 = vpop.permute.xlu0 %3852
        %3854 = vrot.lane.b32.xlu0 %v2675, 58
        %v3855 = vpop.permute.xlu0 %3854
        %3856 = vrot.lane.b32.xlu0 %v2677, 58
        %v3857 = vpop.permute.xlu0 %3856
        %3858 = vrot.lane.b32.xlu0 %v2739, 58
        %v3859 = vpop.permute.xlu0 %3858
        %3860 = vrot.lane.b32.xlu0 %v2741, 58
        %v3861 = vpop.permute.xlu0 %3860
        %3862 = vrot.lane.b32.xlu0 %v2743, 58
        %v3863 = vpop.permute.xlu0 %3862
        %3864 = vrot.lane.b32.xlu0 %v2745, 58
        %v3865 = vpop.permute.xlu0 %3864
        %3866 = vrot.lane.b32.xlu0 %v2807, 58
        %v3867 = vpop.permute.xlu0 %3866
        %3868 = vrot.lane.b32.xlu0 %v2809, 58
        %v3869 = vpop.permute.xlu0 %3868
        %3870 = vrot.lane.b32.xlu0 %v2811, 58
        %v3871 = vpop.permute.xlu0 %3870
        %3872 = vrot.lane.b32.xlu0 %v2813, 58
        %v3873 = vpop.permute.xlu0 %3872
        %3874 = vrot.lane.b32.xlu0 %v2875, 58
        %v3875 = vpop.permute.xlu0 %3874
        %3876 = vrot.lane.b32.xlu0 %v2877, 58
        %v3877 = vpop.permute.xlu0 %3876
        %3878 = vrot.lane.b32.xlu0 %v2879, 58
        %v3879 = vpop.permute.xlu0 %3878
        %3880 = vrot.lane.b32.xlu0 %v2881, 58
        %v3881 = vpop.permute.xlu0 %3880
        %3882 = vrot.lane.b32.xlu0 %v2943, 58
        %v3883 = vpop.permute.xlu0 %3882
        %3884 = vrot.lane.b32.xlu0 %v2945, 58
        %v3885 = vpop.permute.xlu0 %3884
        %3886 = vrot.lane.b32.xlu0 %v2947, 58
        %v3887 = vpop.permute.xlu0 %3886
        %3888 = vrot.lane.b32.xlu0 %v2949, 58
        %v3889 = vpop.permute.xlu0 %3888
        %3890 = vrot.lane.b32.xlu0 %v3011, 58
        %v3891 = vpop.permute.xlu0 %3890
        %3892 = vrot.lane.b32.xlu0 %v3013, 58
        %v3893 = vpop.permute.xlu0 %3892
        %3894 = vrot.lane.b32.xlu0 %v3015, 58
        %v3895 = vpop.permute.xlu0 %3894
        %3896 = vrot.lane.b32.xlu0 %v3017, 58
        %v3897 = vpop.permute.xlu0 %3896
        %3898 = vrot.lane.b32.xlu0 %v3079, 58
        %v3899 = vpop.permute.xlu0 %3898
        %3900 = vrot.lane.b32.xlu0 %v3081, 58
        %v3901 = vpop.permute.xlu0 %3900
        %3902 = vrot.lane.b32.xlu0 %v3083, 58
        %v3903 = vpop.permute.xlu0 %3902
        %3904 = vrot.lane.b32.xlu0 %v3085, 58
        %v3905 = vpop.permute.xlu0 %3904
        %3954 = vrot.lane.b32.xlu0 %v2314, 89
        %v3955 = vpop.permute.xlu0 %3954
        %3956 = vrot.lane.b32.xlu0 %v2315, 89
        %v3957 = vpop.permute.xlu0 %3956
        %3958 = vrot.lane.b32.xlu0 %v2316, 89
        %v3959 = vpop.permute.xlu0 %3958
        %3960 = vrot.lane.b32.xlu0 %v2317, 89
        %v3961 = vpop.permute.xlu0 %3960
        %3962 = vrot.lane.b32.xlu0 %v2407, 89
        %v3963 = vpop.permute.xlu0 %3962
        %3964 = vrot.lane.b32.xlu0 %v2409, 89
        %v3965 = vpop.permute.xlu0 %3964
        %3966 = vrot.lane.b32.xlu0 %v2411, 89
        %v3967 = vpop.permute.xlu0 %3966
        %3968 = vrot.lane.b32.xlu0 %v2413, 89
        %v3969 = vpop.permute.xlu0 %3968
        %3970 = vrot.lane.b32.xlu0 %v2475, 89
        %v3971 = vpop.permute.xlu0 %3970
        %3972 = vrot.lane.b32.xlu0 %v2477, 89
        %v3973 = vpop.permute.xlu0 %3972
        %3974 = vrot.lane.b32.xlu0 %v2479, 89
        %v3975 = vpop.permute.xlu0 %3974
        %3976 = vrot.lane.b32.xlu0 %v2481, 89
        %v3977 = vpop.permute.xlu0 %3976
        %3978 = vrot.lane.b32.xlu0 %v2543, 89
        %v3979 = vpop.permute.xlu0 %3978
        %3980 = vrot.lane.b32.xlu0 %v2545, 89
        %v3981 = vpop.permute.xlu0 %3980
        %3982 = vrot.lane.b32.xlu0 %v2547, 89
        %v3983 = vpop.permute.xlu0 %3982
        %3984 = vrot.lane.b32.xlu0 %v2549, 89
        %v3985 = vpop.permute.xlu0 %3984
        %3986 = vrot.lane.b32.xlu0 %v2611, 89
        %v3987 = vpop.permute.xlu0 %3986
        %3988 = vrot.lane.b32.xlu0 %v2613, 89
        %v3989 = vpop.permute.xlu0 %3988
        %3990 = vrot.lane.b32.xlu0 %v2615, 89
        %v3991 = vpop.permute.xlu0 %3990
        %3992 = vrot.lane.b32.xlu0 %v2617, 89
        %v3993 = vpop.permute.xlu0 %3992
        %3994 = vrot.lane.b32.xlu0 %v2679, 89
        %v3995 = vpop.permute.xlu0 %3994
        %3996 = vrot.lane.b32.xlu0 %v2681, 89
        %v3997 = vpop.permute.xlu0 %3996
        %3998 = vrot.lane.b32.xlu0 %v2683, 89
        %v3999 = vpop.permute.xlu0 %3998
        %4000 = vrot.lane.b32.xlu0 %v2685, 89
        %v4001 = vpop.permute.xlu0 %4000
        %4002 = vrot.lane.b32.xlu0 %v2747, 89
        %v4003 = vpop.permute.xlu0 %4002
        %4004 = vrot.lane.b32.xlu0 %v2749, 89
        %v4005 = vpop.permute.xlu0 %4004
        %4006 = vrot.lane.b32.xlu0 %v2751, 89
        %v4007 = vpop.permute.xlu0 %4006
        %4008 = vrot.lane.b32.xlu0 %v2753, 89
        %v4009 = vpop.permute.xlu0 %4008
        %4010 = vrot.lane.b32.xlu0 %v2815, 89
        %v4011 = vpop.permute.xlu0 %4010
        %4012 = vrot.lane.b32.xlu0 %v2817, 89
        %v4013 = vpop.permute.xlu0 %4012
        %4014 = vrot.lane.b32.xlu0 %v2819, 89
        %v4015 = vpop.permute.xlu0 %4014
        %4016 = vrot.lane.b32.xlu0 %v2821, 89
        %v4017 = vpop.permute.xlu0 %4016
        %4018 = vrot.lane.b32.xlu0 %v2883, 89
        %v4019 = vpop.permute.xlu0 %4018
        %4020 = vrot.lane.b32.xlu0 %v2885, 89
        %v4021 = vpop.permute.xlu0 %4020
        %4022 = vrot.lane.b32.xlu0 %v2887, 89
        %v4023 = vpop.permute.xlu0 %4022
        %4024 = vrot.lane.b32.xlu0 %v2889, 89
        %v4025 = vpop.permute.xlu0 %4024
        %4026 = vrot.lane.b32.xlu0 %v2951, 89
        %v4027 = vpop.permute.xlu0 %4026
        %4028 = vrot.lane.b32.xlu0 %v2953, 89
        %v4029 = vpop.permute.xlu0 %4028
        %4030 = vrot.lane.b32.xlu0 %v2955, 89
        %v4031 = vpop.permute.xlu0 %4030
        %4032 = vrot.lane.b32.xlu0 %v2957, 89
        %v4033 = vpop.permute.xlu0 %4032
        %4034 = vrot.lane.b32.xlu0 %v3019, 89
        %v4035 = vpop.permute.xlu0 %4034
        %4036 = vrot.lane.b32.xlu0 %v3021, 89
        %v4037 = vpop.permute.xlu0 %4036
        %4038 = vrot.lane.b32.xlu0 %v3023, 89
        %v4039 = vpop.permute.xlu0 %4038
        %4040 = vrot.lane.b32.xlu0 %v3025, 89
        %v4041 = vpop.permute.xlu0 %4040
        %4042 = vrot.lane.b32.xlu0 %v3087, 89
        %v4043 = vpop.permute.xlu0 %4042
        %4044 = vrot.lane.b32.xlu0 %v3089, 89
        %v4045 = vpop.permute.xlu0 %4044
        %4046 = vrot.lane.b32.xlu0 %v3091, 89
        %v4047 = vpop.permute.xlu0 %4046
        %4048 = vrot.lane.b32.xlu0 %v3093, 89
        %v4049 = vpop.permute.xlu0 %4048
        %vm4098 = vcmask 252928
        %v4099 = vsel %vm4098, %v2270, %v3099
        %v4100 = vsel %vm4098, %v2271, %v3101
        %v4101 = vsel %vm4098, %v2272, %v3103
        %v4102 = vsel %vm4098, %v2273, %v3105
        %v4103 = vsel %vm4098, %v2351, %v3107
        %v4104 = vsel %vm4098, %v2353, %v3109
        %v4105 = vsel %vm4098, %v2355, %v3111
        %v4106 = vsel %vm4098, %v2357, %v3113
        %v4107 = vsel %vm4098, %v2419, %v3115
        %v4108 = vsel %vm4098, %v2421, %v3117
        %v4109 = vsel %vm4098, %v2423, %v3119
        %v4110 = vsel %vm4098, %v2425, %v3121
        %v4111 = vsel %vm4098, %v2487, %v3123
        %v4112 = vsel %vm4098, %v2489, %v3125
        %v4113 = vsel %vm4098, %v2491, %v3127
        %v4114 = vsel %vm4098, %v2493, %v3129
        %v4115 = vsel %vm4098, %v2555, %v3131
        %v4116 = vsel %vm4098, %v2557, %v3133
        %v4117 = vsel %vm4098, %v2559, %v3135
        %v4118 = vsel %vm4098, %v2561, %v3137
        %v4119 = vsel %vm4098, %v2623, %v3139
        %v4120 = vsel %vm4098, %v2625, %v3141
        %v4121 = vsel %vm4098, %v2627, %v3143
        %v4122 = vsel %vm4098, %v2629, %v3145
        %v4123 = vsel %vm4098, %v2691, %v3147
        %v4124 = vsel %vm4098, %v2693, %v3149
        %v4125 = vsel %vm4098, %v2695, %v3151
        %v4126 = vsel %vm4098, %v2697, %v3153
        %v4127 = vsel %vm4098, %v2759, %v3155
        %v4128 = vsel %vm4098, %v2761, %v3157
        %v4129 = vsel %vm4098, %v2763, %v3159
        %v4130 = vsel %vm4098, %v2765, %v3161
        %v4131 = vsel %vm4098, %v2827, %v3163
        %v4132 = vsel %vm4098, %v2829, %v3165
        %v4133 = vsel %vm4098, %v2831, %v3167
        %v4134 = vsel %vm4098, %v2833, %v3169
        %v4135 = vsel %vm4098, %v2895, %v3171
        %v4136 = vsel %vm4098, %v2897, %v3173
        %v4137 = vsel %vm4098, %v2899, %v3175
        %v4138 = vsel %vm4098, %v2901, %v3177
        %v4139 = vsel %vm4098, %v2963, %v3179
        %v4140 = vsel %vm4098, %v2965, %v3181
        %v4141 = vsel %vm4098, %v2967, %v3183
        %v4142 = vsel %vm4098, %v2969, %v3185
        %v4143 = vsel %vm4098, %v3031, %v3187
        %v4144 = vsel %vm4098, %v3033, %v3189
        %v4145 = vsel %vm4098, %v3035, %v3191
        %v4146 = vsel %vm4098, %v3037, %v3193
        %vm4147 = vcmask 506880
        %v4148 = vsel %vm4147, %v4099, %v3243
        %v4149 = vsel %vm4147, %v4100, %v3245
        %v4150 = vsel %vm4147, %v4101, %v3247
        %v4151 = vsel %vm4147, %v4102, %v3249
        %v4152 = vsel %vm4147, %v4103, %v3251
        %v4153 = vsel %vm4147, %v4104, %v3253
        %v4154 = vsel %vm4147, %v4105, %v3255
        %v4155 = vsel %vm4147, %v4106, %v3257
        %v4156 = vsel %vm4147, %v4107, %v3259
        %v4157 = vsel %vm4147, %v4108, %v3261
        %v4158 = vsel %vm4147, %v4109, %v3263
        %v4159 = vsel %vm4147, %v4110, %v3265
        %v4160 = vsel %vm4147, %v4111, %v3267
        %v4161 = vsel %vm4147, %v4112, %v3269
        %v4162 = vsel %vm4147, %v4113, %v3271
        %v4163 = vsel %vm4147, %v4114, %v3273
        %v4164 = vsel %vm4147, %v4115, %v3275
        %v4165 = vsel %vm4147, %v4116, %v3277
        %v4166 = vsel %vm4147, %v4117, %v3279
        %v4167 = vsel %vm4147, %v4118, %v3281
        %v4168 = vsel %vm4147, %v4119, %v3283
        %v4169 = vsel %vm4147, %v4120, %v3285
        %v4170 = vsel %vm4147, %v4121, %v3287
        %v4171 = vsel %vm4147, %v4122, %v3289
        %v4172 = vsel %vm4147, %v4123, %v3291
        %v4173 = vsel %vm4147, %v4124, %v3293
        %v4174 = vsel %vm4147, %v4125, %v3295
        %v4175 = vsel %vm4147, %v4126, %v3297
        %v4176 = vsel %vm4147, %v4127, %v3299
        %v4177 = vsel %vm4147, %v4128, %v3301
        %v4178 = vsel %vm4147, %v4129, %v3303
        %v4179 = vsel %vm4147, %v4130, %v3305
        %v4180 = vsel %vm4147, %v4131, %v3307
        %v4181 = vsel %vm4147, %v4132, %v3309
        %v4182 = vsel %vm4147, %v4133, %v3311
        %v4183 = vsel %vm4147, %v4134, %v3313
        %v4184 = vsel %vm4147, %v4135, %v3315
        %v4185 = vsel %vm4147, %v4136, %v3317
        %v4186 = vsel %vm4147, %v4137, %v3319
        %v4187 = vsel %vm4147, %v4138, %v3321
        %v4188 = vsel %vm4147, %v4139, %v3323
        %v4189 = vsel %vm4147, %v4140, %v3325
        %v4190 = vsel %vm4147, %v4141, %v3327
        %v4191 = vsel %vm4147, %v4142, %v3329
        %v4192 = vsel %vm4147, %v4143, %v3331
        %v4193 = vsel %vm4147, %v4144, %v3333
        %v4194 = vsel %vm4147, %v4145, %v3335
        %v4195 = vsel %vm4147, %v4146, %v3337
        %vm4196 = vcmask 760832
        %v4197 = vsel %vm4196, %v4148, %v3387
        %v4198 = vsel %vm4196, %v4149, %v3389
        %v4199 = vsel %vm4196, %v4150, %v3391
        %v4200 = vsel %vm4196, %v4151, %v3393
        %v4201 = vsel %vm4196, %v4152, %v3395
        %v4202 = vsel %vm4196, %v4153, %v3397
        %v4203 = vsel %vm4196, %v4154, %v3399
        %v4204 = vsel %vm4196, %v4155, %v3401
        %v4205 = vsel %vm4196, %v4156, %v3403
        %v4206 = vsel %vm4196, %v4157, %v3405
        %v4207 = vsel %vm4196, %v4158, %v3407
        %v4208 = vsel %vm4196, %v4159, %v3409
        %v4209 = vsel %vm4196, %v4160, %v3411
        %v4210 = vsel %vm4196, %v4161, %v3413
        %v4211 = vsel %vm4196, %v4162, %v3415
        %v4212 = vsel %vm4196, %v4163, %v3417
        %v4213 = vsel %vm4196, %v4164, %v3419
        %v4214 = vsel %vm4196, %v4165, %v3421
        %v4215 = vsel %vm4196, %v4166, %v3423
        %v4216 = vsel %vm4196, %v4167, %v3425
        %v4217 = vsel %vm4196, %v4168, %v3427
        %v4218 = vsel %vm4196, %v4169, %v3429
        %v4219 = vsel %vm4196, %v4170, %v3431
        %v4220 = vsel %vm4196, %v4171, %v3433
        %v4221 = vsel %vm4196, %v4172, %v3435
        %v4222 = vsel %vm4196, %v4173, %v3437
        %v4223 = vsel %vm4196, %v4174, %v3439
        %v4224 = vsel %vm4196, %v4175, %v3441
        %v4225 = vsel %vm4196, %v4176, %v3443
        %v4226 = vsel %vm4196, %v4177, %v3445
        %v4227 = vsel %vm4196, %v4178, %v3447
        %v4228 = vsel %vm4196, %v4179, %v3449
        %v4229 = vsel %vm4196, %v4180, %v3451
        %v4230 = vsel %vm4196, %v4181, %v3453
        %v4231 = vsel %vm4196, %v4182, %v3455
        %v4232 = vsel %vm4196, %v4183, %v3457
        %v4233 = vsel %vm4196, %v4184, %v3459
        %v4234 = vsel %vm4196, %v4185, %v3461
        %v4235 = vsel %vm4196, %v4186, %v3463
        %v4236 = vsel %vm4196, %v4187, %v3465
        %v4237 = vsel %vm4196, %v4188, %v3467
        %v4238 = vsel %vm4196, %v4189, %v3469
        %v4239 = vsel %vm4196, %v4190, %v3471
        %v4240 = vsel %vm4196, %v4191, %v3473
        %v4241 = vsel %vm4196, %v4192, %v3475
        %v4242 = vsel %vm4196, %v4193, %v3477
        %v4243 = vsel %vm4196, %v4194, %v3479
        %v4244 = vsel %vm4196, %v4195, %v3481
        %vm4245 = vcmask 1014784
        %v4246 = vsel %vm4245, %v4197, %v2587
        %v4247 = vsel %vm4245, %v4198, %v2589
        %v4248 = vsel %vm4245, %v4199, %v2591
        %v4249 = vsel %vm4245, %v4200, %v2593
        %v4250 = vsel %vm4245, %v4201, %v3531
        %v4251 = vsel %vm4245, %v4202, %v3533
        %v4252 = vsel %vm4245, %v4203, %v3535
        %v4253 = vsel %vm4245, %v4204, %v3537
        %v4254 = vsel %vm4245, %v4205, %v3539
        %v4255 = vsel %vm4245, %v4206, %v3541
        %v4256 = vsel %vm4245, %v4207, %v3543
        %v4257 = vsel %vm4245, %v4208, %v3545
        %v4258 = vsel %vm4245, %v4209, %v3547
        %v4259 = vsel %vm4245, %v4210, %v3549
        %v4260 = vsel %vm4245, %v4211, %v3551
        %v4261 = vsel %vm4245, %v4212, %v3553
        %v4262 = vsel %vm4245, %v4213, %v3555
        %v4263 = vsel %vm4245, %v4214, %v3557
        %v4264 = vsel %vm4245, %v4215, %v3559
        %v4265 = vsel %vm4245, %v4216, %v3561
        %v4266 = vsel %vm4245, %v4217, %v3563
        %v4267 = vsel %vm4245, %v4218, %v3565
        %v4268 = vsel %vm4245, %v4219, %v3567
        %v4269 = vsel %vm4245, %v4220, %v3569
        %v4270 = vsel %vm4245, %v4221, %v3571
        %v4271 = vsel %vm4245, %v4222, %v3573
        %v4272 = vsel %vm4245, %v4223, %v3575
        %v4273 = vsel %vm4245, %v4224, %v3577
        %v4274 = vsel %vm4245, %v4225, %v3579
        %v4275 = vsel %vm4245, %v4226, %v3581
        %v4276 = vsel %vm4245, %v4227, %v3583
        %v4277 = vsel %vm4245, %v4228, %v3585
        %v4278 = vsel %vm4245, %v4229, %v3587
        %v4279 = vsel %vm4245, %v4230, %v3589
        %v4280 = vsel %vm4245, %v4231, %v3591
        %v4281 = vsel %vm4245, %v4232, %v3593
        %v4282 = vsel %vm4245, %v4233, %v3595
        %v4283 = vsel %vm4245, %v4234, %v3597
        %v4284 = vsel %vm4245, %v4235, %v3599
        %v4285 = vsel %vm4245, %v4236, %v3601
        %v4286 = vsel %vm4245, %v4237, %v3603
        %v4287 = vsel %vm4245, %v4238, %v3605
        %v4288 = vsel %vm4245, %v4239, %v3607
        %v4289 = vsel %vm4245, %v4240, %v3609
        %v4290 = vsel %vm4245, %v4241, %v3611
        %v4291 = vsel %vm4245, %v4242, %v3613
        %v4292 = vsel %vm4245, %v4243, %v3615
        %v4293 = vsel %vm4245, %v4244, %v3617
        %vm4294 = vcmask 220160
        %v4295 = vsel %vm4294, %v2587, %v3667
        %v4296 = vsel %vm4294, %v2589, %v3669
        %v4297 = vsel %vm4294, %v2591, %v3671
        %v4298 = vsel %vm4294, %v2593, %v3673
        %v4299 = vsel %vm4294, %v3531, %v3675
        %v4300 = vsel %vm4294, %v3533, %v3677
        %v4301 = vsel %vm4294, %v3535, %v3679
        %v4302 = vsel %vm4294, %v3537, %v3681
        %v4303 = vsel %vm4294, %v3539, %v3683
        %v4304 = vsel %vm4294, %v3541, %v3685
        %v4305 = vsel %vm4294, %v3543, %v3687
        %v4306 = vsel %vm4294, %v3545, %v3689
        %v4307 = vsel %vm4294, %v3547, %v3691
        %v4308 = vsel %vm4294, %v3549, %v3693
        %v4309 = vsel %vm4294, %v3551, %v3695
        %v4310 = vsel %vm4294, %v3553, %v3697
        %v4311 = vsel %vm4294, %v3555, %v3699
        %v4312 = vsel %vm4294, %v3557, %v3701
        %v4313 = vsel %vm4294, %v3559, %v3703
        %v4314 = vsel %vm4294, %v3561, %v3705
        %v4315 = vsel %vm4294, %v3563, %v3707
        %v4316 = vsel %vm4294, %v3565, %v3709
        %v4317 = vsel %vm4294, %v3567, %v3711
        %v4318 = vsel %vm4294, %v3569, %v3713
        %v4319 = vsel %vm4294, %v3571, %v3715
        %v4320 = vsel %vm4294, %v3573, %v3717
        %v4321 = vsel %vm4294, %v3575, %v3719
        %v4322 = vsel %vm4294, %v3577, %v3721
        %v4323 = vsel %vm4294, %v3579, %v3723
        %v4324 = vsel %vm4294, %v3581, %v3725
        %v4325 = vsel %vm4294, %v3583, %v3727
        %v4326 = vsel %vm4294, %v3585, %v3729
        %v4327 = vsel %vm4294, %v3587, %v3731
        %v4328 = vsel %vm4294, %v3589, %v3733
        %v4329 = vsel %vm4294, %v3591, %v3735
        %v4330 = vsel %vm4294, %v3593, %v3737
        %v4331 = vsel %vm4294, %v3595, %v3739
        %v4332 = vsel %vm4294, %v3597, %v3741
        %v4333 = vsel %vm4294, %v3599, %v3743
        %v4334 = vsel %vm4294, %v3601, %v3745
        %v4335 = vsel %vm4294, %v3603, %v3747
        %v4336 = vsel %vm4294, %v3605, %v3749
        %v4337 = vsel %vm4294, %v3607, %v3751
        %v4338 = vsel %vm4294, %v3609, %v3753
        %v4339 = vsel %vm4294, %v3611, %v3755
        %v4340 = vsel %vm4294, %v3613, %v3757
        %v4341 = vsel %vm4294, %v3615, %v3759
        %v4342 = vsel %vm4294, %v3617, %v3761
        %vm4343 = vcmask 474112
        %v4344 = vsel %vm4343, %v4295, %v3811
        %v4345 = vsel %vm4343, %v4296, %v3813
        %v4346 = vsel %vm4343, %v4297, %v3815
        %v4347 = vsel %vm4343, %v4298, %v3817
        %v4348 = vsel %vm4343, %v4299, %v3819
        %v4349 = vsel %vm4343, %v4300, %v3821
        %v4350 = vsel %vm4343, %v4301, %v3823
        %v4351 = vsel %vm4343, %v4302, %v3825
        %v4352 = vsel %vm4343, %v4303, %v3827
        %v4353 = vsel %vm4343, %v4304, %v3829
        %v4354 = vsel %vm4343, %v4305, %v3831
        %v4355 = vsel %vm4343, %v4306, %v3833
        %v4356 = vsel %vm4343, %v4307, %v3835
        %v4357 = vsel %vm4343, %v4308, %v3837
        %v4358 = vsel %vm4343, %v4309, %v3839
        %v4359 = vsel %vm4343, %v4310, %v3841
        %v4360 = vsel %vm4343, %v4311, %v3843
        %v4361 = vsel %vm4343, %v4312, %v3845
        %v4362 = vsel %vm4343, %v4313, %v3847
        %v4363 = vsel %vm4343, %v4314, %v3849
        %v4364 = vsel %vm4343, %v4315, %v3851
        %v4365 = vsel %vm4343, %v4316, %v3853
        %v4366 = vsel %vm4343, %v4317, %v3855
        %v4367 = vsel %vm4343, %v4318, %v3857
        %v4368 = vsel %vm4343, %v4319, %v3859
        %v4369 = vsel %vm4343, %v4320, %v3861
        %v4370 = vsel %vm4343, %v4321, %v3863
        %v4371 = vsel %vm4343, %v4322, %v3865
        %v4372 = vsel %vm4343, %v4323, %v3867
        %v4373 = vsel %vm4343, %v4324, %v3869
        %v4374 = vsel %vm4343, %v4325, %v3871
        %v4375 = vsel %vm4343, %v4326, %v3873
        %v4376 = vsel %vm4343, %v4327, %v3875
        %v4377 = vsel %vm4343, %v4328, %v3877
        %v4378 = vsel %vm4343, %v4329, %v3879
        %v4379 = vsel %vm4343, %v4330, %v3881
        %v4380 = vsel %vm4343, %v4331, %v3883
        %v4381 = vsel %vm4343, %v4332, %v3885
        %v4382 = vsel %vm4343, %v4333, %v3887
        %v4383 = vsel %vm4343, %v4334, %v3889
        %v4384 = vsel %vm4343, %v4335, %v3891
        %v4385 = vsel %vm4343, %v4336, %v3893
        %v4386 = vsel %vm4343, %v4337, %v3895
        %v4387 = vsel %vm4343, %v4338, %v3897
        %v4388 = vsel %vm4343, %v4339, %v3899
        %v4389 = vsel %vm4343, %v4340, %v3901
        %v4390 = vsel %vm4343, %v4341, %v3903
        %v4391 = vsel %vm4343, %v4342, %v3905
        %vm4392 = vcmask 728064
        %v4393 = vsel %vm4392, %v4344, %v3955
        %v4394 = vsel %vm4392, %v4345, %v3957
        %v4395 = vsel %vm4392, %v4346, %v3959
        %v4396 = vsel %vm4392, %v4347, %v3961
        %v4397 = vsel %vm4392, %v4348, %v3963
        %v4398 = vsel %vm4392, %v4349, %v3965
        %v4399 = vsel %vm4392, %v4350, %v3967
        %v4400 = vsel %vm4392, %v4351, %v3969
        %v4401 = vsel %vm4392, %v4352, %v3971
        %v4402 = vsel %vm4392, %v4353, %v3973
        %v4403 = vsel %vm4392, %v4354, %v3975
        %v4404 = vsel %vm4392, %v4355, %v3977
        %v4405 = vsel %vm4392, %v4356, %v3979
        %v4406 = vsel %vm4392, %v4357, %v3981
        %v4407 = vsel %vm4392, %v4358, %v3983
        %v4408 = vsel %vm4392, %v4359, %v3985
        %v4409 = vsel %vm4392, %v4360, %v3987
        %v4410 = vsel %vm4392, %v4361, %v3989
        %v4411 = vsel %vm4392, %v4362, %v3991
        %v4412 = vsel %vm4392, %v4363, %v3993
        %v4413 = vsel %vm4392, %v4364, %v3995
        %v4414 = vsel %vm4392, %v4365, %v3997
        %v4415 = vsel %vm4392, %v4366, %v3999
        %v4416 = vsel %vm4392, %v4367, %v4001
        %v4417 = vsel %vm4392, %v4368, %v4003
        %v4418 = vsel %vm4392, %v4369, %v4005
        %v4419 = vsel %vm4392, %v4370, %v4007
        %v4420 = vsel %vm4392, %v4371, %v4009
        %v4421 = vsel %vm4392, %v4372, %v4011
        %v4422 = vsel %vm4392, %v4373, %v4013
        %v4423 = vsel %vm4392, %v4374, %v4015
        %v4424 = vsel %vm4392, %v4375, %v4017
        %v4425 = vsel %vm4392, %v4376, %v4019
        %v4426 = vsel %vm4392, %v4377, %v4021
        %v4427 = vsel %vm4392, %v4378, %v4023
        %v4428 = vsel %vm4392, %v4379, %v4025
        %v4429 = vsel %vm4392, %v4380, %v4027
        %v4430 = vsel %vm4392, %v4381, %v4029
        %v4431 = vsel %vm4392, %v4382, %v4031
        %v4432 = vsel %vm4392, %v4383, %v4033
        %v4433 = vsel %vm4392, %v4384, %v4035
        %v4434 = vsel %vm4392, %v4385, %v4037
        %v4435 = vsel %vm4392, %v4386, %v4039
        %v4436 = vsel %vm4392, %v4387, %v4041
        %v4437 = vsel %vm4392, %v4388, %v4043
        %v4438 = vsel %vm4392, %v4389, %v4045
        %v4439 = vsel %vm4392, %v4390, %v4047
        %v4440 = vsel %vm4392, %v4391, %v4049
        %v4441 = vld [vmem:[%s3] sm:$0xff]
        %v4442 = vld [vmem:[%s3 + $0x8] sm:$0xff]
        %v4443 = vld [vmem:[%s3 + $0x10] sm:$0xff]
        %v4444 = vld [vmem:[%s3 + $0x18] sm:$0xff]
        %v4445 = vld [vmem:[%s3 + $0x20] sm:$0xff]
        %v4446 = vld [vmem:[%s3 + $0x28] sm:$0xff]
        %v4447 = vld [vmem:[%s3 + $0x30] sm:$0xff]
        %v4448 = vld [vmem:[%s3 + $0x38] sm:$0xff]
        %v4449 = vld [vmem:[%s3 + $0x40] sm:$0xff]
        %v4450 = vld [vmem:[%s3 + $0x48] sm:$0xff]
        %v4451 = vld [vmem:[%s3 + $0x50] sm:$0xff]
        %v4452 = vld [vmem:[%s3 + $0x58] sm:$0xff]
        %v4453 = vld [vmem:[%s3 + $0x60] sm:$0xff]
        %v4454 = vld [vmem:[%s3 + $0x68] sm:$0xff]
        %v4455 = vld [vmem:[%s3 + $0x70] sm:$0xff]
        %v4456 = vld [vmem:[%s3 + $0x78] sm:$0xff]
        %v4457 = vld [vmem:[%s3 + $0x80] sm:$0xff]
        %v4458 = vld [vmem:[%s3 + $0x88] sm:$0xff]
        %v4459 = vld [vmem:[%s3 + $0x90] sm:$0xff]
        %v4460 = vld [vmem:[%s3 + $0x98] sm:$0xff]
        %v4461 = vld [vmem:[%s3 + $0xa0] sm:$0xff]
        %v4462 = vld [vmem:[%s3 + $0xa8] sm:$0xff]
        %v4463 = vld [vmem:[%s3 + $0xb0] sm:$0xff]
        %v4464 = vld [vmem:[%s3 + $0xb8] sm:$0xff]
        %v4465 = vld [vmem:[%s4] sm:$0xff]
        %v4466 = vld [vmem:[%s4 + $0x8] sm:$0xff]
        %v4467 = vld [vmem:[%s4 + $0x10] sm:$0xff]
        %v4468 = vld [vmem:[%s4 + $0x18] sm:$0xff]
        %v4469 = vld [vmem:[%s4 + $0x20] sm:$0xff]
        %v4470 = vld [vmem:[%s4 + $0x28] sm:$0xff]
        %v4471 = vld [vmem:[%s4 + $0x30] sm:$0xff]
        %v4472 = vld [vmem:[%s4 + $0x38] sm:$0xff]
        %4474 = vset.pattern.permute.xlu0 0
        %4475 = vperm.xlu0 %4474, %v4465
        %v4476 = vpop.permute.xlu0 %4475
        %4479 = vset.pattern.permute.xlu0 0
        %4480 = vperm.xlu0 %4479, %v4466
        %v4481 = vpop.permute.xlu0 %4480
        %4484 = vset.pattern.permute.xlu0 0
        %4485 = vperm.xlu0 %4484, %v4467
        %v4486 = vpop.permute.xlu0 %4485
        %4489 = vset.pattern.permute.xlu0 0
        %4490 = vperm.xlu0 %4489, %v4468
        %v4491 = vpop.permute.xlu0 %4490
        %4494 = vset.pattern.permute.xlu0 0
        %4495 = vperm.xlu0 %4494, %v4469
        %v4496 = vpop.permute.xlu0 %4495
        %4499 = vset.pattern.permute.xlu0 0
        %4500 = vperm.xlu0 %4499, %v4470
        %v4501 = vpop.permute.xlu0 %4500
        %4504 = vset.pattern.permute.xlu0 0
        %4505 = vperm.xlu0 %4504, %v4471
        %v4506 = vpop.permute.xlu0 %4505
        %4509 = vset.pattern.permute.xlu0 0
        %4510 = vperm.xlu0 %4509, %v4472
        %v4511 = vpop.permute.xlu0 %4510
        %4513 = vmatpush.msra.mxu0 %v4261
        %4514 = vmatpush.msra.mxu0 %v4260
        %4515 = vmatpush.msra.mxu0 %v4259
        %4516 = vmatpush.msra.mxu0 %v4258
        %4517 = vmatpush.msra.mxu0 %v4257
        %4518 = vmatpush.msra.mxu0 %v4256
        %4519 = vmatpush.msra.mxu0 %v4255
        %4520 = vmatpush.msra.mxu0 %v4254
        %4521 = vmatpush.msra.mxu0 %v4253
        %4522 = vmatpush.msra.mxu0 %v4252
        %4523 = vmatpush.msra.mxu0 %v4251
        %4524 = vmatpush.msra.mxu0 %v4250
        %4525 = vmatpush.msra.mxu0 %v4249
        %4526 = vmatpush.msra.mxu0 %v4248
        %4527 = vmatpush.msra.mxu0 %v4247
        %4528 = vmatpush.msra.mxu0 %v4246
        %4529 = vmatmul.f32.gmra.mxu0 %v4441
        %v4530 = vpop.f32.mrf.mxu0
        %v4531 = vadd.f32 %v4476, %v4530
        %4532 = vmatmul.f32.gmra.mxu0 %v4444
        %v4533 = vpop.f32.mrf.mxu0
        %v4534 = vadd.f32 %v4481, %v4533
        %4535 = vmatmul.f32.gmra.mxu0 %v4447
        %v4536 = vpop.f32.mrf.mxu0
        %v4537 = vadd.f32 %v4486, %v4536
        %4538 = vmatmul.f32.gmra.mxu0 %v4450
        %v4539 = vpop.f32.mrf.mxu0
        %v4540 = vadd.f32 %v4491, %v4539
        %4541 = vmatmul.f32.gmra.mxu0 %v4453
        %v4542 = vpop.f32.mrf.mxu0
        %v4543 = vadd.f32 %v4496, %v4542
        %4544 = vmatmul.f32.gmra.mxu0 %v4456
        %v4545 = vpop.f32.mrf.mxu0
        %v4546 = vadd.f32 %v4501, %v4545
        %4547 = vmatmul.f32.gmra.mxu0 %v4459
        %v4548 = vpop.f32.mrf.mxu0
        %v4549 = vadd.f32 %v4506, %v4548
        %4550 = vmatmul.f32.gmra.mxu0 %v4462
        %v4551 = vpop.f32.mrf.mxu0
        %v4552 = vadd.f32 %v4511, %v4551
        %4553 = vdwg.mxu0
        %4554 = vmatpush.msra.mxu0 %v4277
        %4555 = vmatpush.msra.mxu0 %v4276
        %4556 = vmatpush.msra.mxu0 %v4275
        %4557 = vmatpush.msra.mxu0 %v4274
        %4558 = vmatpush.msra.mxu0 %v4273
        %4559 = vmatpush.msra.mxu0 %v4272
        %4560 = vmatpush.msra.mxu0 %v4271
        %4561 = vmatpush.msra.mxu0 %v4270
        %4562 = vmatpush.msra.mxu0 %v4269
        %4563 = vmatpush.msra.mxu0 %v4268
        %4564 = vmatpush.msra.mxu0 %v4267
        %4565 = vmatpush.msra.mxu0 %v4266
        %4566 = vmatpush.msra.mxu0 %v4265
        %4567 = vmatpush.msra.mxu0 %v4264
        %4568 = vmatpush.msra.mxu0 %v4263
        %4569 = vmatpush.msra.mxu0 %v4262
        %4570 = vmatmul.f32.gmra.mxu0 %v4442
        %v4571 = vpop.f32.mrf.mxu0
        %v4572 = vadd.f32 %v4531, %v4571
        %4573 = vmatmul.f32.gmra.mxu0 %v4445
        %v4574 = vpop.f32.mrf.mxu0
        %v4575 = vadd.f32 %v4534, %v4574
        %4576 = vmatmul.f32.gmra.mxu0 %v4448
        %v4577 = vpop.f32.mrf.mxu0
        %v4578 = vadd.f32 %v4537, %v4577
        %4579 = vmatmul.f32.gmra.mxu0 %v4451
        %v4580 = vpop.f32.mrf.mxu0
        %v4581 = vadd.f32 %v4540, %v4580
        %4582 = vmatmul.f32.gmra.mxu0 %v4454
        %v4583 = vpop.f32.mrf.mxu0
        %v4584 = vadd.f32 %v4543, %v4583
        %4585 = vmatmul.f32.gmra.mxu0 %v4457
        %v4586 = vpop.f32.mrf.mxu0
        %v4587 = vadd.f32 %v4546, %v4586
        %4588 = vmatmul.f32.gmra.mxu0 %v4460
        %v4589 = vpop.f32.mrf.mxu0
        %v4590 = vadd.f32 %v4549, %v4589
        %4591 = vmatmul.f32.gmra.mxu0 %v4463
        %v4592 = vpop.f32.mrf.mxu0
        %v4593 = vadd.f32 %v4552, %v4592
        %4594 = vdwg.mxu0
        %4595 = vmatpush.msra.mxu0 %v4293
        %4596 = vmatpush.msra.mxu0 %v4292
        %4597 = vmatpush.msra.mxu0 %v4291
        %4598 = vmatpush.msra.mxu0 %v4290
        %4599 = vmatpush.msra.mxu0 %v4289
        %4600 = vmatpush.msra.mxu0 %v4288
        %4601 = vmatpush.msra.mxu0 %v4287
        %4602 = vmatpush.msra.mxu0 %v4286
        %4603 = vmatpush.msra.mxu0 %v4285
        %4604 = vmatpush.msra.mxu0 %v4284
        %4605 = vmatpush.msra.mxu0 %v4283
        %4606 = vmatpush.msra.mxu0 %v4282
        %4607 = vmatpush.msra.mxu0 %v4281
        %4608 = vmatpush.msra.mxu0 %v4280
        %4609 = vmatpush.msra.mxu0 %v4279
        %4610 = vmatpush.msra.mxu0 %v4278
        %4611 = vmatmul.f32.gmra.mxu0 %v4443
        %v4612 = vpop.f32.mrf.mxu0
        %v4613 = vadd.f32 %v4572, %v4612
        %4614 = vmatmul.f32.gmra.mxu0 %v4446
        %v4615 = vpop.f32.mrf.mxu0
        %v4616 = vadd.f32 %v4575, %v4615
        %4617 = vmatmul.f32.gmra.mxu0 %v4449
        %v4618 = vpop.f32.mrf.mxu0
        %v4619 = vadd.f32 %v4578, %v4618
        %4620 = vmatmul.f32.gmra.mxu0 %v4452
        %v4621 = vpop.f32.mrf.mxu0
        %v4622 = vadd.f32 %v4581, %v4621
        %4623 = vmatmul.f32.gmra.mxu0 %v4455
        %v4624 = vpop.f32.mrf.mxu0
        %v4625 = vadd.f32 %v4584, %v4624
        %4626 = vmatmul.f32.gmra.mxu0 %v4458
        %v4627 = vpop.f32.mrf.mxu0
        %v4628 = vadd.f32 %v4587, %v4627
        %4629 = vmatmul.f32.gmra.mxu0 %v4461
        %v4630 = vpop.f32.mrf.mxu0
        %v4631 = vadd.f32 %v4590, %v4630
        %4632 = vmatmul.f32.gmra.mxu0 %v4464
        %v4633 = vpop.f32.mrf.mxu0
        %v4634 = vadd.f32 %v4593, %v4633
        %4635 = vdwg.mxu0
        %4636 = vmatpush.msra.mxu0 %v4408
        %4637 = vmatpush.msra.mxu0 %v4407
        %4638 = vmatpush.msra.mxu0 %v4406
        %4639 = vmatpush.msra.mxu0 %v4405
        %4640 = vmatpush.msra.mxu0 %v4404
        %4641 = vmatpush.msra.mxu0 %v4403
        %4642 = vmatpush.msra.mxu0 %v4402
        %4643 = vmatpush.msra.mxu0 %v4401
        %4644 = vmatpush.msra.mxu0 %v4400
        %4645 = vmatpush.msra.mxu0 %v4399
        %4646 = vmatpush.msra.mxu0 %v4398
        %4647 = vmatpush.msra.mxu0 %v4397
        %4648 = vmatpush.msra.mxu0 %v4396
        %4649 = vmatpush.msra.mxu0 %v4395
        %4650 = vmatpush.msra.mxu0 %v4394
        %4651 = vmatpush.msra.mxu0 %v4393
        %4652 = vmatmul.f32.gmra.mxu0 %v4441
        %v4653 = vpop.f32.mrf.mxu0
        %v4654 = vadd.f32 %v4476, %v4653
        %4655 = vmatmul.f32.gmra.mxu0 %v4444
        %v4656 = vpop.f32.mrf.mxu0
        %v4657 = vadd.f32 %v4481, %v4656
        %4658 = vmatmul.f32.gmra.mxu0 %v4447
        %v4659 = vpop.f32.mrf.mxu0
        %v4660 = vadd.f32 %v4486, %v4659
        %4661 = vmatmul.f32.gmra.mxu0 %v4450
        %v4662 = vpop.f32.mrf.mxu0
        %v4663 = vadd.f32 %v4491, %v4662
        %4664 = vmatmul.f32.gmra.mxu0 %v4453
        %v4665 = vpop.f32.mrf.mxu0
        %v4666 = vadd.f32 %v4496, %v4665
        %4667 = vmatmul.f32.gmra.mxu0 %v4456
        %v4668 = vpop.f32.mrf.mxu0
        %v4669 = vadd.f32 %v4501, %v4668
        %4670 = vmatmul.f32.gmra.mxu0 %v4459
        %v4671 = vpop.f32.mrf.mxu0
        %v4672 = vadd.f32 %v4506, %v4671
        %4673 = vmatmul.f32.gmra.mxu0 %v4462
        %v4674 = vpop.f32.mrf.mxu0
        %v4675 = vadd.f32 %v4511, %v4674
        %4676 = vdwg.mxu0
        %4677 = vmatpush.msra.mxu0 %v4424
        %4678 = vmatpush.msra.mxu0 %v4423
        %4679 = vmatpush.msra.mxu0 %v4422
        %4680 = vmatpush.msra.mxu0 %v4421
        %4681 = vmatpush.msra.mxu0 %v4420
        %4682 = vmatpush.msra.mxu0 %v4419
        %4683 = vmatpush.msra.mxu0 %v4418
        %4684 = vmatpush.msra.mxu0 %v4417
        %4685 = vmatpush.msra.mxu0 %v4416
        %4686 = vmatpush.msra.mxu0 %v4415
        %4687 = vmatpush.msra.mxu0 %v4414
        %4688 = vmatpush.msra.mxu0 %v4413
        %4689 = vmatpush.msra.mxu0 %v4412
        %4690 = vmatpush.msra.mxu0 %v4411
        %4691 = vmatpush.msra.mxu0 %v4410
        %4692 = vmatpush.msra.mxu0 %v4409
        %4693 = vmatmul.f32.gmra.mxu0 %v4442
        %v4694 = vpop.f32.mrf.mxu0
        %v4695 = vadd.f32 %v4654, %v4694
        %4696 = vmatmul.f32.gmra.mxu0 %v4445
        %v4697 = vpop.f32.mrf.mxu0
        %v4698 = vadd.f32 %v4657, %v4697
        %4699 = vmatmul.f32.gmra.mxu0 %v4448
        %v4700 = vpop.f32.mrf.mxu0
        %v4701 = vadd.f32 %v4660, %v4700
        %4702 = vmatmul.f32.gmra.mxu0 %v4451
        %v4703 = vpop.f32.mrf.mxu0
        %v4704 = vadd.f32 %v4663, %v4703
        %4705 = vmatmul.f32.gmra.mxu0 %v4454
        %v4706 = vpop.f32.mrf.mxu0
        %v4707 = vadd.f32 %v4666, %v4706
        %4708 = vmatmul.f32.gmra.mxu0 %v4457
        %v4709 = vpop.f32.mrf.mxu0
        %v4710 = vadd.f32 %v4669, %v4709
        %4711 = vmatmul.f32.gmra.mxu0 %v4460
        %v4712 = vpop.f32.mrf.mxu0
        %v4713 = vadd.f32 %v4672, %v4712
        %4714 = vmatmul.f32.gmra.mxu0 %v4463
        %v4715 = vpop.f32.mrf.mxu0
        %v4716 = vadd.f32 %v4675, %v4715
        %4717 = vdwg.mxu0
        %4718 = vmatpush.msra.mxu0 %v4440
        %4719 = vmatpush.msra.mxu0 %v4439
        %4720 = vmatpush.msra.mxu0 %v4438
        %4721 = vmatpush.msra.mxu0 %v4437
        %4722 = vmatpush.msra.mxu0 %v4436
        %4723 = vmatpush.msra.mxu0 %v4435
        %4724 = vmatpush.msra.mxu0 %v4434
        %4725 = vmatpush.msra.mxu0 %v4433
        %4726 = vmatpush.msra.mxu0 %v4432
        %4727 = vmatpush.msra.mxu0 %v4431
        %4728 = vmatpush.msra.mxu0 %v4430
        %4729 = vmatpush.msra.mxu0 %v4429
        %4730 = vmatpush.msra.mxu0 %v4428
        %4731 = vmatpush.msra.mxu0 %v4427
        %4732 = vmatpush.msra.mxu0 %v4426
        %4733 = vmatpush.msra.mxu0 %v4425
        %4734 = vmatmul.f32.gmra.mxu0 %v4443
        %v4735 = vpop.f32.mrf.mxu0
        %v4736 = vadd.f32 %v4695, %v4735
        %4737 = vmatmul.f32.gmra.mxu0 %v4446
        %v4738 = vpop.f32.mrf.mxu0
        %v4739 = vadd.f32 %v4698, %v4738
        %4740 = vmatmul.f32.gmra.mxu0 %v4449
        %v4741 = vpop.f32.mrf.mxu0
        %v4742 = vadd.f32 %v4701, %v4741
        %4743 = vmatmul.f32.gmra.mxu0 %v4452
        %v4744 = vpop.f32.mrf.mxu0
        %v4745 = vadd.f32 %v4704, %v4744
        %4746 = vmatmul.f32.gmra.mxu0 %v4455
        %v4747 = vpop.f32.mrf.mxu0
        %v4748 = vadd.f32 %v4707, %v4747
        %4749 = vmatmul.f32.gmra.mxu0 %v4458
        %v4750 = vpop.f32.mrf.mxu0
        %v4751 = vadd.f32 %v4710, %v4750
        %4752 = vmatmul.f32.gmra.mxu0 %v4461
        %v4753 = vpop.f32.mrf.mxu0
        %v4754 = vadd.f32 %v4713, %v4753
        %4755 = vmatmul.f32.gmra.mxu0 %v4464
        %v4756 = vpop.f32.mrf.mxu0
        %v4757 = vadd.f32 %v4716, %v4756
        %4758 = vdwg.mxu0
        %v4759 = vmax.f32 %v4613, 0.0
        %v4760 = vmax.f32 %v4736, 0.0
        %v4761 = vmax.f32 %v4616, 0.0
        %v4762 = vmax.f32 %v4739, 0.0
        %v4763 = vmax.f32 %v4619, 0.0
        %v4764 = vmax.f32 %v4742, 0.0
        %v4765 = vmax.f32 %v4622, 0.0
        %v4766 = vmax.f32 %v4745, 0.0
        %v4767 = vmax.f32 %v4625, 0.0
        %v4768 = vmax.f32 %v4748, 0.0
        %v4769 = vmax.f32 %v4628, 0.0
        %v4770 = vmax.f32 %v4751, 0.0
        %v4771 = vmax.f32 %v4631, 0.0
        %v4772 = vmax.f32 %v4754, 0.0
        %v4773 = vmax.f32 %v4634, 0.0
        %v4774 = vmax.f32 %v4757, 0.0
        %4775 = vxpose.xlu0.b32.start [1/16] %v4759, 128
        %4776 = vxpose.xlu0.b32.cont [2/16] %v4761, 128
        %4777 = vxpose.xlu0.b32.cont [3/16] %v4763, 128
        %4778 = vxpose.xlu0.b32.cont [4/16] %v4765, 128
        %4779 = vxpose.xlu0.b32.cont [5/16] %v4767, 128
        %4780 = vxpose.xlu0.b32.cont [6/16] %v4769, 128
        %4781 = vxpose.xlu0.b32.cont [7/16] %v4771, 128
        %4782 = vxpose.xlu0.b32.cont [8/16] %v4773, 128
        %4783 = vxpose.xlu0.b32.cont [9/16] 0.0, 128
        %4784 = vxpose.xlu0.b32.cont [10/16] 0.0, 128
        %4785 = vxpose.xlu0.b32.cont [11/16] 0.0, 128
        %4786 = vxpose.xlu0.b32.cont [12/16] 0.0, 128
        %4787 = vxpose.xlu0.b32.cont [13/16] 0.0, 128
        %4788 = vxpose.xlu0.b32.cont [14/16] 0.0, 128
        %4789 = vxpose.xlu0.b32.cont [15/16] 0.0, 128
        %4790 = vxpose.xlu0.b32.end [16/16] 0.0, 128
        %v4791 = vpop.trf.xlu0
        %v4792 = vpop.trf.xlu0
        %v4793 = vpop.trf.xlu0
        %v4794 = vpop.trf.xlu0
        %v4795 = vpop.trf.xlu0
        %v4796 = vpop.trf.xlu0
        %v4797 = vpop.trf.xlu0
        %v4798 = vpop.trf.xlu0
        %v4799 = vpop.trf.xlu0
        %v4800 = vpop.trf.xlu0
        %v4801 = vpop.trf.xlu0
        %v4802 = vpop.trf.xlu0
        %v4803 = vpop.trf.xlu0
        %v4804 = vpop.trf.xlu0
        %v4805 = vpop.trf.xlu0
        %v4806 = vpop.trf.xlu0
        %4807 = vxpose.xlu0.b32.start [1/16] %v4760, 128
        %4808 = vxpose.xlu0.b32.cont [2/16] %v4762, 128
        %4809 = vxpose.xlu0.b32.cont [3/16] %v4764, 128
        %4810 = vxpose.xlu0.b32.cont [4/16] %v4766, 128
        %4811 = vxpose.xlu0.b32.cont [5/16] %v4768, 128
        %4812 = vxpose.xlu0.b32.cont [6/16] %v4770, 128
        %4813 = vxpose.xlu0.b32.cont [7/16] %v4772, 128
        %4814 = vxpose.xlu0.b32.cont [8/16] %v4774, 128
        %4815 = vxpose.xlu0.b32.cont [9/16] 0.0, 128
        %4816 = vxpose.xlu0.b32.cont [10/16] 0.0, 128
        %4817 = vxpose.xlu0.b32.cont [11/16] 0.0, 128
        %4818 = vxpose.xlu0.b32.cont [12/16] 0.0, 128
        %4819 = vxpose.xlu0.b32.cont [13/16] 0.0, 128
        %4820 = vxpose.xlu0.b32.cont [14/16] 0.0, 128
        %4821 = vxpose.xlu0.b32.cont [15/16] 0.0, 128
        %4822 = vxpose.xlu0.b32.end [16/16] 0.0, 128
        %v4823 = vpop.trf.xlu0
        %v4824 = vpop.trf.xlu0
        %v4825 = vpop.trf.xlu0
        %v4826 = vpop.trf.xlu0
        %v4827 = vpop.trf.xlu0
        %v4828 = vpop.trf.xlu0
        %v4829 = vpop.trf.xlu0
        %v4830 = vpop.trf.xlu0
        %v4831 = vpop.trf.xlu0
        %v4832 = vpop.trf.xlu0
        %v4833 = vpop.trf.xlu0
        %v4834 = vpop.trf.xlu0
        %v4835 = vpop.trf.xlu0
        %v4836 = vpop.trf.xlu0
        %v4837 = vpop.trf.xlu0
        %v4838 = vpop.trf.xlu0
        %v4870 = vrot.slane %v4791, 1
        %v4871 = vrot.slane %v4791, 2
        %v4872 = vrot.slane %v4791, 3
        %v4873 = vrot.slane %v4791, 4
        %v4874 = vrot.slane %v4791, 5
        %v4875 = vrot.slane %v4791, 6
        %v4876 = vrot.slane %v4791, 7
        %v4877 = vrot.slane %v4792, 1
        %v4878 = vrot.slane %v4792, 2
        %v4879 = vrot.slane %v4792, 3
        %v4880 = vrot.slane %v4792, 4
        %v4881 = vrot.slane %v4792, 5
        %v4882 = vrot.slane %v4792, 6
        %v4883 = vrot.slane %v4792, 7
        %v4884 = vrot.slane %v4793, 1
        %v4885 = vrot.slane %v4793, 2
        %v4886 = vrot.slane %v4793, 3
        %v4887 = vrot.slane %v4793, 4
        %v4888 = vrot.slane %v4793, 5
        %v4889 = vrot.slane %v4793, 6
        %v4890 = vrot.slane %v4793, 7
        %v4891 = vrot.slane %v4794, 1
        %v4892 = vrot.slane %v4794, 2
        %v4893 = vrot.slane %v4794, 3
        %v4894 = vrot.slane %v4794, 4
        %v4895 = vrot.slane %v4794, 5
        %v4896 = vrot.slane %v4794, 7
        %v4897 = vrot.slane %v4795, 1
        %v4898 = vrot.slane %v4795, 2
        %v4899 = vrot.slane %v4795, 3
        %v4900 = vrot.slane %v4795, 4
        %v4901 = vrot.slane %v4795, 5
        %v4902 = vrot.slane %v4795, 6
        %v4903 = vrot.slane %v4795, 7
        %v4904 = vrot.slane %v4796, 1
        %v4905 = vrot.slane %v4796, 2
        %v4906 = vrot.slane %v4796, 3
        %v4907 = vrot.slane %v4796, 4
        %v4908 = vrot.slane %v4796, 5
        %v4909 = vrot.slane %v4796, 6
        %v4910 = vrot.slane %v4796, 7
        %v4911 = vrot.slane %v4797, 1
        %v4912 = vrot.slane %v4797, 2
        %v4913 = vrot.slane %v4797, 3
        %v4914 = vrot.slane %v4797, 4
        %v4915 = vrot.slane %v4797, 5
        %v4916 = vrot.slane %v4797, 6
        %v4917 = vrot.slane %v4797, 7
        %v4918 = vrot.slane %v4798, 1
        %v4919 = vrot.slane %v4798, 2
        %v4920 = vrot.slane %v4798, 3
        %v4921 = vrot.slane %v4798, 4
        %v4922 = vrot.slane %v4798, 6
        %v4923 = vrot.slane %v4798, 7
        %v4924 = vrot.slane %v4799, 1
        %v4925 = vrot.slane %v4799, 2
        %v4926 = vrot.slane %v4799, 3
        %v4927 = vrot.slane %v4799, 4
        %v4928 = vrot.slane %v4799, 5
        %v4929 = vrot.slane %v4799, 6
        %v4930 = vrot.slane %v4799, 7
        %v4931 = vrot.slane %v4800, 1
        %v4932 = vrot.slane %v4800, 2
        %v4933 = vrot.slane %v4800, 3
        %v4934 = vrot.slane %v4800, 4
        %v4935 = vrot.slane %v4800, 5
        %v4936 = vrot.slane %v4800, 6
        %v4937 = vrot.slane %v4800, 7
        %v4938 = vrot.slane %v4801, 1
        %v4939 = vrot.slane %v4801, 2
        %v4940 = vrot.slane %v4801, 3
        %v4941 = vrot.slane %v4801, 4
        %v4942 = vrot.slane %v4801, 5
        %v4943 = vrot.slane %v4801, 6
        %v4944 = vrot.slane %v4801, 7
        %v4945 = vrot.slane %v4802, 1
        %v4946 = vrot.slane %v4802, 2
        %v4947 = vrot.slane %v4802, 3
        %v4948 = vrot.slane %v4802, 5
        %v4949 = vrot.slane %v4802, 6
        %v4950 = vrot.slane %v4802, 7
        %v4951 = vrot.slane %v4803, 1
        %v4952 = vrot.slane %v4803, 2
        %v4953 = vrot.slane %v4803, 3
        %v4954 = vrot.slane %v4803, 4
        %v4955 = vrot.slane %v4803, 5
        %v4956 = vrot.slane %v4803, 6
        %v4957 = vrot.slane %v4803, 7
        %v4958 = vrot.slane %v4804, 1
        %v4959 = vrot.slane %v4804, 2
        %v4960 = vrot.slane %v4804, 3
        %v4961 = vrot.slane %v4804, 4
        %v4962 = vrot.slane %v4804, 5
        %v4963 = vrot.slane %v4804, 6
        %v4964 = vrot.slane %v4804, 7
        %v4965 = vrot.slane %v4805, 1
        %v4966 = vrot.slane %v4805, 2
        %v4967 = vrot.slane %v4805, 3
        %v4968 = vrot.slane %v4805, 4
        %v4969 = vrot.slane %v4805, 5
        %v4970 = vrot.slane %v4805, 6
        %v4971 = vrot.slane %v4805, 7
        %v4972 = vrot.slane %v4806, 1
        %v4973 = vrot.slane %v4806, 2
        %v4974 = vrot.slane %v4806, 4
        %v4975 = vrot.slane %v4806, 5
        %v4976 = vrot.slane %v4806, 6
        %v4977 = vrot.slane %v4806, 7
        %v4978 = vrot.slane %v4823, 1
        %v4979 = vrot.slane %v4823, 2
        %v4980 = vrot.slane %v4823, 3
        %v4981 = vrot.slane %v4823, 4
        %v4982 = vrot.slane %v4823, 5
        %v4983 = vrot.slane %v4823, 6
        %v4984 = vrot.slane %v4823, 7
        %v4985 = vrot.slane %v4824, 1
        %v4986 = vrot.slane %v4824, 2
        %v4987 = vrot.slane %v4824, 3
        %v4988 = vrot.slane %v4824, 4
        %v4989 = vrot.slane %v4824, 5
        %v4990 = vrot.slane %v4824, 6
        %v4991 = vrot.slane %v4824, 7
        %v4992 = vrot.slane %v4825, 1
        %v4993 = vrot.slane %v4825, 2
        %v4994 = vrot.slane %v4825, 3
        %v4995 = vrot.slane %v4825, 4
        %v4996 = vrot.slane %v4825, 5
        %v4997 = vrot.slane %v4825, 6
        %v4998 = vrot.slane %v4825, 7
        %v4999 = vrot.slane %v4826, 1
        %v5000 = vrot.slane %v4826, 3
        %v5001 = vrot.slane %v4826, 4
        %v5002 = vrot.slane %v4826, 5
        %v5003 = vrot.slane %v4826, 6
        %v5004 = vrot.slane %v4826, 7
        %v5005 = vrot.slane %v4827, 1
        %v5006 = vrot.slane %v4827, 2
        %v5007 = vrot.slane %v4827, 3
        %v5008 = vrot.slane %v4827, 4
        %v5009 = vrot.slane %v4827, 5
        %v5010 = vrot.slane %v4827, 6
        %v5011 = vrot.slane %v4827, 7
        %v5012 = vrot.slane %v4828, 1
        %v5013 = vrot.slane %v4828, 2
        %v5014 = vrot.slane %v4828, 3
        %v5015 = vrot.slane %v4828, 4
        %v5016 = vrot.slane %v4828, 5
        %v5017 = vrot.slane %v4828, 6
        %v5018 = vrot.slane %v4828, 7
        %v5019 = vrot.slane %v4829, 1
        %v5020 = vrot.slane %v4829, 2
        %v5021 = vrot.slane %v4829, 3
        %v5022 = vrot.slane %v4829, 4
        %v5023 = vrot.slane %v4829, 5
        %v5024 = vrot.slane %v4829, 6
        %v5025 = vrot.slane %v4829, 7
        %v5026 = vrot.slane %v4830, 2
        %v5027 = vrot.slane %v4830, 3
        %v5028 = vrot.slane %v4830, 4
        %v5029 = vrot.slane %v4830, 5
        %v5030 = vrot.slane %v4830, 6
        %v5031 = vrot.slane %v4830, 7
        %v5032 = vrot.slane %v4831, 1
        %v5033 = vrot.slane %v4831, 2
        %v5034 = vrot.slane %v4831, 3
        %v5035 = vrot.slane %v4831, 4
        %v5036 = vrot.slane %v4831, 5
        %v5037 = vrot.slane %v4831, 6
        %v5038 = vrot.slane %v4831, 7
        %v5039 = vrot.slane %v4832, 1
        %v5040 = vrot.slane %v4832, 2
        %v5041 = vrot.slane %v4832, 3
        %v5042 = vrot.slane %v4832, 4
        %v5043 = vrot.slane %v4832, 5
        %v5044 = vrot.slane %v4832, 6
        %v5045 = vrot.slane %v4832, 7
        %v5046 = vrot.slane %v4833, 1
        %v5047 = vrot.slane %v4833, 2
        %v5048 = vrot.slane %v4833, 3
        %v5049 = vrot.slane %v4833, 4
        %v5050 = vrot.slane %v4833, 5
        %v5051 = vrot.slane %v4833, 6
        %v5052 = vrot.slane %v4833, 7
        %v5053 = vrot.slane %v4834, 1
        %v5054 = vrot.slane %v4834, 2
        %v5055 = vrot.slane %v4834, 3
        %v5056 = vrot.slane %v4834, 4
        %v5057 = vrot.slane %v4834, 5
        %v5058 = vrot.slane %v4834, 6
        %v5059 = vrot.slane %v4834, 7
        %v5060 = vrot.slane %v4835, 1
        %v5061 = vrot.slane %v4835, 2
        %v5062 = vrot.slane %v4835, 3
        %v5063 = vrot.slane %v4835, 4
        %v5064 = vrot.slane %v4835, 5
        %v5065 = vrot.slane %v4835, 6
        %v5066 = vrot.slane %v4835, 7
        %v5067 = vrot.slane %v4836, 1
        %v5068 = vrot.slane %v4836, 2
        %v5069 = vrot.slane %v4836, 3
        %v5070 = vrot.slane %v4836, 4
        %v5071 = vrot.slane %v4836, 5
        %v5072 = vrot.slane %v4836, 6
        %v5073 = vrot.slane %v4836, 7
        %v5074 = vrot.slane %v4837, 1
        %v5075 = vrot.slane %v4837, 2
        %v5076 = vrot.slane %v4837, 3
        %v5077 = vrot.slane %v4837, 4
        %v5078 = vrot.slane %v4837, 5
        %v5079 = vrot.slane %v4837, 6
        %5080 = vst [vmem:[#allocation1] ss:$9 sm:$0xff] %v4791
        %s5081 = scalar_lea.vmem [#allocation1], 1
        %5082 = vst [vmem:[%s5081] ss:$9 sm:$0xff] %v4870
        %s5083 = scalar_lea.vmem [#allocation1], 2
        %5084 = vst [vmem:[%s5083] ss:$9 sm:$0xff] %v4871
        %v5085 = vld [vmem:[#allocation1] sm:$0xff]
        %5086 = vst [vmem:[#allocation1] ss:$9 sm:$0xff] %v4872
        %5087 = vst [vmem:[%s5081] ss:$9 sm:$0xff] %v4873
        %5088 = vst [vmem:[%s5083] ss:$9 sm:$0xff] %v4874
        %v5089 = vld [vmem:[#allocation1] sm:$0xff]
        %5090 = vst [vmem:[#allocation1] ss:$9 sm:$0xff] %v4875
        %5091 = vst [vmem:[%s5081] ss:$9 sm:$0xff] %v4876
        %5092 = vst [vmem:[%s5083] ss:$9 sm:$0xff] %v4792
        %v5093 = vld [vmem:[#allocation1] sm:$0xff]
        %5094 = vst [vmem:[#allocation1] ss:$9 sm:$0xff] %v4877
        %5095 = vst [vmem:[%s5081] ss:$9 sm:$0xff] %v4878
        %5096 = vst [vmem:[%s5083] ss:$9 sm:$0xff] %v4879
        %v5097 = vld [vmem:[#allocation1] sm:$0xff]
        %5098 = vst [vmem:[#allocation1] ss:$9 sm:$0xff] %v4880
        %5099 = vst [vmem:[%s5081] ss:$9 sm:$0xff] %v4881
        %5100 = vst [vmem:[%s5083] ss:$9 sm:$0xff] %v4882
        %v5101 = vld [vmem:[#allocation1] sm:$0xff]
        %5102 = vst [vmem:[#allocation1] ss:$9 sm:$0xff] %v4883
        %5103 = vst [vmem:[%s5081] ss:$9 sm:$0xff] %v4793
        %5104 = vst [vmem:[%s5083] ss:$9 sm:$0xff] %v4884
        %v5105 = vld [vmem:[#allocation1] sm:$0xff]
        %5106 = vst [vmem:[#allocation1] ss:$9 sm:$0xff] %v4885
        %5107 = vst [vmem:[%s5081] ss:$9 sm:$0xff] %v4886
        %5108 = vst [vmem:[%s5083] ss:$9 sm:$0xff] %v4887
        %v5109 = vld [vmem:[#allocation1] sm:$0xff]
        %5110 = vst [vmem:[#allocation1] ss:$9 sm:$0xff] %v4888
        %5111 = vst [vmem:[%s5081] ss:$9 sm:$0xff] %v4889
        %5112 = vst [vmem:[%s5083] ss:$9 sm:$0xff] %v4890
        %v5113 = vld [vmem:[#allocation1] sm:$0xff]
        %5114 = vst [vmem:[#allocation1] ss:$9 sm:$0xff] %v4794
        %5115 = vst [vmem:[%s5081] ss:$9 sm:$0xff] %v4891
        %5116 = vst [vmem:[%s5083] ss:$9 sm:$0xff] %v4892
        %v5117 = vld [vmem:[#allocation1] sm:$0xff]
        %5118 = vst [vmem:[#allocation1] ss:$9 sm:$0xff] %v4893
        %5119 = vst [vmem:[%s5081] ss:$9 sm:$0xff] %v4894
        %5120 = vst [vmem:[%s5083] ss:$9 sm:$0xff] %v4895
        %v5121 = vld [vmem:[#allocation1] sm:$0xff]
        %5122 = vst [vmem:[#allocation1] ss:$9 sm:$0xff] %v4896
        %5123 = vst [vmem:[%s5081] ss:$9 sm:$0xff] %v4795
        %5124 = vst [vmem:[%s5083] ss:$9 sm:$0xff] %v4897
        %v5125 = vld [vmem:[#allocation1] sm:$0xff]
        %5126 = vst [vmem:[#allocation1] ss:$9 sm:$0xff] %v4898
        %5127 = vst [vmem:[%s5081] ss:$9 sm:$0xff] %v4899
        %5128 = vst [vmem:[%s5083] ss:$9 sm:$0xff] %v4900
        %v5129 = vld [vmem:[#allocation1] sm:$0xff]
        %5130 = vst [vmem:[#allocation1] ss:$9 sm:$0xff] %v4901
        %5131 = vst [vmem:[%s5081] ss:$9 sm:$0xff] %v4902
        %5132 = vst [vmem:[%s5083] ss:$9 sm:$0xff] %v4903
        %v5133 = vld [vmem:[#allocation1] sm:$0xff]
        %5134 = vst [vmem:[#allocation1] ss:$9 sm:$0xff] %v4796
        %5135 = vst [vmem:[%s5081] ss:$9 sm:$0xff] %v4904
        %5136 = vst [vmem:[%s5083] ss:$9 sm:$0xff] %v4905
        %v5137 = vld [vmem:[#allocation1] sm:$0xff]
        %5138 = vst [vmem:[#allocation1] ss:$9 sm:$0xff] %v4906
        %5139 = vst [vmem:[%s5081] ss:$9 sm:$0xff] %v4907
        %5140 = vst [vmem:[%s5083] ss:$9 sm:$0xff] %v4908
        %v5141 = vld [vmem:[#allocation1] sm:$0xff]
        %5142 = vst [vmem:[#allocation1] ss:$9 sm:$0xff] %v4909
        %5143 = vst [vmem:[%s5081] ss:$9 sm:$0xff] %v4910
        %5144 = vst [vmem:[%s5083] ss:$9 sm:$0xff] %v4797
        %v5145 = vld [vmem:[#allocation1] sm:$0xff]
        %5146 = vst [vmem:[#allocation1] ss:$9 sm:$0xff] %v4911
        %5147 = vst [vmem:[%s5081] ss:$9 sm:$0xff] %v4912
        %5148 = vst [vmem:[%s5083] ss:$9 sm:$0xff] %v4913
        %v5149 = vld [vmem:[#allocation1] sm:$0xff]
        %5150 = vst [vmem:[#allocation1] ss:$9 sm:$0xff] %v4914
        %5151 = vst [vmem:[%s5081] ss:$9 sm:$0xff] %v4915
        %5152 = vst [vmem:[%s5083] ss:$9 sm:$0xff] %v4916
        %v5153 = vld [vmem:[#allocation1] sm:$0xff]
        %5154 = vst [vmem:[#allocation1] ss:$9 sm:$0xff] %v4917
        %5155 = vst [vmem:[%s5081] ss:$9 sm:$0xff] %v4798
        %5156 = vst [vmem:[%s5083] ss:$9 sm:$0xff] %v4918
        %v5157 = vld [vmem:[#allocation1] sm:$0xff]
        %5158 = vst [vmem:[#allocation1] ss:$9 sm:$0xff] %v4919
        %5159 = vst [vmem:[%s5081] ss:$9 sm:$0xff] %v4920
        %5160 = vst [vmem:[%s5083] ss:$9 sm:$0xff] %v4921
        %v5161 = vld [vmem:[#allocation1] sm:$0xff]
        %5162 = vst [vmem:[#allocation1] ss:$9 sm:$0xff] %v4922
        %5163 = vst [vmem:[%s5081] ss:$9 sm:$0xff] %v4923
        %5164 = vst [vmem:[%s5083] ss:$9 sm:$0xff] %v4799
        %v5165 = vld [vmem:[#allocation1] sm:$0xff]
        %5166 = vst [vmem:[#allocation1] ss:$9 sm:$0xff] %v4924
        %5167 = vst [vmem:[%s5081] ss:$9 sm:$0xff] %v4925
        %5168 = vst [vmem:[%s5083] ss:$9 sm:$0xff] %v4926
        %v5169 = vld [vmem:[#allocation1] sm:$0xff]
        %5170 = vst [vmem:[#allocation1] ss:$9 sm:$0xff] %v4927
        %5171 = vst [vmem:[%s5081] ss:$9 sm:$0xff] %v4928
        %5172 = vst [vmem:[%s5083] ss:$9 sm:$0xff] %v4929
        %v5173 = vld [vmem:[#allocation1] sm:$0xff]
        %5174 = vst [vmem:[#allocation1] ss:$9 sm:$0xff] %v4930
        %5175 = vst [vmem:[%s5081] ss:$9 sm:$0xff] %v4800
        %5176 = vst [vmem:[%s5083] ss:$9 sm:$0xff] %v4931
        %v5177 = vld [vmem:[#allocation1] sm:$0xff]
        %5178 = vst [vmem:[#allocation1] ss:$9 sm:$0xff] %v4932
        %5179 = vst [vmem:[%s5081] ss:$9 sm:$0xff] %v4933
        %5180 = vst [vmem:[%s5083] ss:$9 sm:$0xff] %v4934
        %v5181 = vld [vmem:[#allocation1] sm:$0xff]
        %5182 = vst [vmem:[#allocation1] ss:$9 sm:$0xff] %v4935
        %5183 = vst [vmem:[%s5081] ss:$9 sm:$0xff] %v4936
        %5184 = vst [vmem:[%s5083] ss:$9 sm:$0xff] %v4937
        %v5185 = vld [vmem:[#allocation1] sm:$0xff]
        %5186 = vst [vmem:[#allocation1] ss:$9 sm:$0xff] %v4801
        %5187 = vst [vmem:[%s5081] ss:$9 sm:$0xff] %v4938
        %5188 = vst [vmem:[%s5083] ss:$9 sm:$0xff] %v4939
        %v5189 = vld [vmem:[#allocation1] sm:$0xff]
        %5190 = vst [vmem:[#allocation1] ss:$9 sm:$0xff] %v4940
        %5191 = vst [vmem:[%s5081] ss:$9 sm:$0xff] %v4941
        %5192 = vst [vmem:[%s5083] ss:$9 sm:$0xff] %v4942
        %v5193 = vld [vmem:[#allocation1] sm:$0xff]
        %5194 = vst [vmem:[#allocation1] ss:$9 sm:$0xff] %v4943
        %5195 = vst [vmem:[%s5081] ss:$9 sm:$0xff] %v4944
        %5196 = vst [vmem:[%s5083] ss:$9 sm:$0xff] %v4802
        %v5197 = vld [vmem:[#allocation1] sm:$0xff]
        %5198 = vst [vmem:[#allocation1] ss:$9 sm:$0xff] %v4945
        %5199 = vst [vmem:[%s5081] ss:$9 sm:$0xff] %v4946
        %5200 = vst [vmem:[%s5083] ss:$9 sm:$0xff] %v4947
        %v5201 = vld [vmem:[#allocation1] sm:$0xff]
        %5202 = vst [vmem:[#allocation1] ss:$9 sm:$0xff] %v4948
        %5203 = vst [vmem:[%s5081] ss:$9 sm:$0xff] %v4949
        %5204 = vst [vmem:[%s5083] ss:$9 sm:$0xff] %v4950
        %v5205 = vld [vmem:[#allocation1] sm:$0xff]
        %5206 = vst [vmem:[#allocation1] ss:$9 sm:$0xff] %v4803
        %5207 = vst [vmem:[%s5081] ss:$9 sm:$0xff] %v4951
        %5208 = vst [vmem:[%s5083] ss:$9 sm:$0xff] %v4952
        %v5209 = vld [vmem:[#allocation1] sm:$0xff]
        %5210 = vst [vmem:[#allocation1] ss:$9 sm:$0xff] %v4953
        %5211 = vst [vmem:[%s5081] ss:$9 sm:$0xff] %v4954
        %5212 = vst [vmem:[%s5083] ss:$9 sm:$0xff] %v4955
        %v5213 = vld [vmem:[#allocation1] sm:$0xff]
        %5214 = vst [vmem:[#allocation1] ss:$9 sm:$0xff] %v4956
        %5215 = vst [vmem:[%s5081] ss:$9 sm:$0xff] %v4957
        %5216 = vst [vmem:[%s5083] ss:$9 sm:$0xff] %v4804
        %v5217 = vld [vmem:[#allocation1] sm:$0xff]
        %5218 = vst [vmem:[#allocation1] ss:$9 sm:$0xff] %v4958
        %5219 = vst [vmem:[%s5081] ss:$9 sm:$0xff] %v4959
        %5220 = vst [vmem:[%s5083] ss:$9 sm:$0xff] %v4960
        %v5221 = vld [vmem:[#allocation1] sm:$0xff]
        %5222 = vst [vmem:[#allocation1] ss:$9 sm:$0xff] %v4961
        %5223 = vst [vmem:[%s5081] ss:$9 sm:$0xff] %v4962
        %5224 = vst [vmem:[%s5083] ss:$9 sm:$0xff] %v4963
        %v5225 = vld [vmem:[#allocation1] sm:$0xff]
        %5226 = vst [vmem:[#allocation1] ss:$9 sm:$0xff] %v4964
        %5227 = vst [vmem:[%s5081] ss:$9 sm:$0xff] %v4805
        %5228 = vst [vmem:[%s5083] ss:$9 sm:$0xff] %v4965
        %v5229 = vld [vmem:[#allocation1] sm:$0xff]
        %5230 = vst [vmem:[#allocation1] ss:$9 sm:$0xff] %v4966
        %5231 = vst [vmem:[%s5081] ss:$9 sm:$0xff] %v4967
        %5232 = vst [vmem:[%s5083] ss:$9 sm:$0xff] %v4968
        %v5233 = vld [vmem:[#allocation1] sm:$0xff]
        %5234 = vst [vmem:[#allocation1] ss:$9 sm:$0xff] %v4969
        %5235 = vst [vmem:[%s5081] ss:$9 sm:$0xff] %v4970
        %5236 = vst [vmem:[%s5083] ss:$9 sm:$0xff] %v4971
        %v5237 = vld [vmem:[#allocation1] sm:$0xff]
        %5238 = vst [vmem:[#allocation1] ss:$9 sm:$0xff] %v4806
        %5239 = vst [vmem:[%s5081] ss:$9 sm:$0xff] %v4972
        %5240 = vst [vmem:[%s5083] ss:$9 sm:$0xff] %v4973
        %v5241 = vld [vmem:[#allocation1] sm:$0xff]
        %5242 = vst [vmem:[#allocation1] ss:$9 sm:$0xff] %v4974
        %5243 = vst [vmem:[%s5081] ss:$9 sm:$0xff] %v4975
        %5244 = vst [vmem:[%s5083] ss:$9 sm:$0xff] %v4976
        %v5245 = vld [vmem:[#allocation1] sm:$0xff]
        %5246 = vst [vmem:[#allocation1] ss:$9 sm:$0xff] %v4977
        %5247 = vst [vmem:[%s5081] ss:$9 sm:$0xff] %v4823
        %5248 = vst [vmem:[%s5083] ss:$9 sm:$0xff] %v4978
        %v5249 = vld [vmem:[#allocation1] sm:$0xff]
        %5250 = vst [vmem:[#allocation1] ss:$9 sm:$0xff] %v4979
        %5251 = vst [vmem:[%s5081] ss:$9 sm:$0xff] %v4980
        %5252 = vst [vmem:[%s5083] ss:$9 sm:$0xff] %v4981
        %v5253 = vld [vmem:[#allocation1] sm:$0xff]
        %5254 = vst [vmem:[#allocation1] ss:$9 sm:$0xff] %v4982
        %5255 = vst [vmem:[%s5081] ss:$9 sm:$0xff] %v4983
        %5256 = vst [vmem:[%s5083] ss:$9 sm:$0xff] %v4984
        %v5257 = vld [vmem:[#allocation1] sm:$0xff]
        %5258 = vst [vmem:[#allocation1] ss:$9 sm:$0xff] %v4824
        %5259 = vst [vmem:[%s5081] ss:$9 sm:$0xff] %v4985
        %5260 = vst [vmem:[%s5083] ss:$9 sm:$0xff] %v4986
        %v5261 = vld [vmem:[#allocation1] sm:$0xff]
        %5262 = vst [vmem:[#allocation1] ss:$9 sm:$0xff] %v4987
        %5263 = vst [vmem:[%s5081] ss:$9 sm:$0xff] %v4988
        %5264 = vst [vmem:[%s5083] ss:$9 sm:$0xff] %v4989
        %v5265 = vld [vmem:[#allocation1] sm:$0xff]
        %5266 = vst [vmem:[#allocation1] ss:$9 sm:$0xff] %v4990
        %5267 = vst [vmem:[%s5081] ss:$9 sm:$0xff] %v4991
        %5268 = vst [vmem:[%s5083] ss:$9 sm:$0xff] %v4825
        %v5269 = vld [vmem:[#allocation1] sm:$0xff]
        %5270 = vst [vmem:[#allocation1] ss:$9 sm:$0xff] %v4992
        %5271 = vst [vmem:[%s5081] ss:$9 sm:$0xff] %v4993
        %5272 = vst [vmem:[%s5083] ss:$9 sm:$0xff] %v4994
        %v5273 = vld [vmem:[#allocation1] sm:$0xff]
        %5274 = vst [vmem:[#allocation1] ss:$9 sm:$0xff] %v4995
        %5275 = vst [vmem:[%s5081] ss:$9 sm:$0xff] %v4996
        %5276 = vst [vmem:[%s5083] ss:$9 sm:$0xff] %v4997
        %v5277 = vld [vmem:[#allocation1] sm:$0xff]
        %5278 = vst [vmem:[#allocation1] ss:$9 sm:$0xff] %v4998
        %5279 = vst [vmem:[%s5081] ss:$9 sm:$0xff] %v4826
        %5280 = vst [vmem:[%s5083] ss:$9 sm:$0xff] %v4999
        %v5281 = vld [vmem:[#allocation1] sm:$0xff]
        %5282 = vst [vmem:[#allocation1] ss:$9 sm:$0xff] %v5000
        %5283 = vst [vmem:[%s5081] ss:$9 sm:$0xff] %v5001
        %5284 = vst [vmem:[%s5083] ss:$9 sm:$0xff] %v5002
        %v5285 = vld [vmem:[#allocation1] sm:$0xff]
        %5286 = vst [vmem:[#allocation1] ss:$9 sm:$0xff] %v5003
        %5287 = vst [vmem:[%s5081] ss:$9 sm:$0xff] %v5004
        %5288 = vst [vmem:[%s5083] ss:$9 sm:$0xff] %v4827
        %v5289 = vld [vmem:[#allocation1] sm:$0xff]
        %5290 = vst [vmem:[#allocation1] ss:$9 sm:$0xff] %v5005
        %5291 = vst [vmem:[%s5081] ss:$9 sm:$0xff] %v5006
        %5292 = vst [vmem:[%s5083] ss:$9 sm:$0xff] %v5007
        %v5293 = vld [vmem:[#allocation1] sm:$0xff]
        %5294 = vst [vmem:[#allocation1] ss:$9 sm:$0xff] %v5008
        %5295 = vst [vmem:[%s5081] ss:$9 sm:$0xff] %v5009
        %5296 = vst [vmem:[%s5083] ss:$9 sm:$0xff] %v5010
        %v5297 = vld [vmem:[#allocation1] sm:$0xff]
        %5298 = vst [vmem:[#allocation1] ss:$9 sm:$0xff] %v5011
        %5299 = vst [vmem:[%s5081] ss:$9 sm:$0xff] %v4828
        %5300 = vst [vmem:[%s5083] ss:$9 sm:$0xff] %v5012
        %v5301 = vld [vmem:[#allocation1] sm:$0xff]
        %5302 = vst [vmem:[#allocation1] ss:$9 sm:$0xff] %v5013
        %5303 = vst [vmem:[%s5081] ss:$9 sm:$0xff] %v5014
        %5304 = vst [vmem:[%s5083] ss:$9 sm:$0xff] %v5015
        %v5305 = vld [vmem:[#allocation1] sm:$0xff]
        %5306 = vst [vmem:[#allocation1] ss:$9 sm:$0xff] %v5016
        %5307 = vst [vmem:[%s5081] ss:$9 sm:$0xff] %v5017
        %5308 = vst [vmem:[%s5083] ss:$9 sm:$0xff] %v5018
        %v5309 = vld [vmem:[#allocation1] sm:$0xff]
        %5310 = vst [vmem:[#allocation1] ss:$9 sm:$0xff] %v4829
        %5311 = vst [vmem:[%s5081] ss:$9 sm:$0xff] %v5019
        %5312 = vst [vmem:[%s5083] ss:$9 sm:$0xff] %v5020
        %v5313 = vld [vmem:[#allocation1] sm:$0xff]
        %5314 = vst [vmem:[#allocation1] ss:$9 sm:$0xff] %v5021
        %5315 = vst [vmem:[%s5081] ss:$9 sm:$0xff] %v5022
        %5316 = vst [vmem:[%s5083] ss:$9 sm:$0xff] %v5023
        %v5317 = vld [vmem:[#allocation1] sm:$0xff]
        %5318 = vst [vmem:[#allocation1] ss:$9 sm:$0xff] %v5024
        %5319 = vst [vmem:[%s5081] ss:$9 sm:$0xff] %v5025
        %5320 = vst [vmem:[%s5083] ss:$9 sm:$0xff] %v4830
        %v5321 = vld [vmem:[#allocation1] sm:$0xff]
        %5322 = vst [vmem:[#allocation1] ss:$9 sm:$0xff] %v5026
        %5323 = vst [vmem:[%s5081] ss:$9 sm:$0xff] %v5027
        %5324 = vst [vmem:[%s5083] ss:$9 sm:$0xff] %v5028
        %v5325 = vld [vmem:[#allocation1] sm:$0xff]
        %5326 = vst [vmem:[#allocation1] ss:$9 sm:$0xff] %v5029
        %5327 = vst [vmem:[%s5081] ss:$9 sm:$0xff] %v5030
        %5328 = vst [vmem:[%s5083] ss:$9 sm:$0xff] %v5031
        %v5329 = vld [vmem:[#allocation1] sm:$0xff]
        %5330 = vst [vmem:[#allocation1] ss:$9 sm:$0xff] %v4831
        %5331 = vst [vmem:[%s5081] ss:$9 sm:$0xff] %v5032
        %5332 = vst [vmem:[%s5083] ss:$9 sm:$0xff] %v5033
        %v5333 = vld [vmem:[#allocation1] sm:$0xff]
        %5334 = vst [vmem:[#allocation1] ss:$9 sm:$0xff] %v5034
        %5335 = vst [vmem:[%s5081] ss:$9 sm:$0xff] %v5035
        %5336 = vst [vmem:[%s5083] ss:$9 sm:$0xff] %v5036
        %v5337 = vld [vmem:[#allocation1] sm:$0xff]
        %5338 = vst [vmem:[#allocation1] ss:$9 sm:$0xff] %v5037
        %5339 = vst [vmem:[%s5081] ss:$9 sm:$0xff] %v5038
        %5340 = vst [vmem:[%s5083] ss:$9 sm:$0xff] %v4832
        %v5341 = vld [vmem:[#allocation1] sm:$0xff]
        %5342 = vst [vmem:[#allocation1] ss:$9 sm:$0xff] %v5039
        %5343 = vst [vmem:[%s5081] ss:$9 sm:$0xff] %v5040
        %5344 = vst [vmem:[%s5083] ss:$9 sm:$0xff] %v5041
        %v5345 = vld [vmem:[#allocation1] sm:$0xff]
        %5346 = vst [vmem:[#allocation1] ss:$9 sm:$0xff] %v5042
        %5347 = vst [vmem:[%s5081] ss:$9 sm:$0xff] %v5043
        %5348 = vst [vmem:[%s5083] ss:$9 sm:$0xff] %v5044
        %v5349 = vld [vmem:[#allocation1] sm:$0xff]
        %5350 = vst [vmem:[#allocation1] ss:$9 sm:$0xff] %v5045
        %5351 = vst [vmem:[%s5081] ss:$9 sm:$0xff] %v4833
        %5352 = vst [vmem:[%s5083] ss:$9 sm:$0xff] %v5046
        %v5353 = vld [vmem:[#allocation1] sm:$0xff]
        %5354 = vst [vmem:[#allocation1] ss:$9 sm:$0xff] %v5047
        %5355 = vst [vmem:[%s5081] ss:$9 sm:$0xff] %v5048
        %5356 = vst [vmem:[%s5083] ss:$9 sm:$0xff] %v5049
        %v5357 = vld [vmem:[#allocation1] sm:$0xff]
        %5358 = vst [vmem:[#allocation1] ss:$9 sm:$0xff] %v5050
        %5359 = vst [vmem:[%s5081] ss:$9 sm:$0xff] %v5051
        %5360 = vst [vmem:[%s5083] ss:$9 sm:$0xff] %v5052
        %v5361 = vld [vmem:[#allocation1] sm:$0xff]
        %5362 = vst [vmem:[#allocation1] ss:$9 sm:$0xff] %v5053
        %5363 = vst [vmem:[%s5081] ss:$9 sm:$0xff] %v5054
        %5364 = vst [vmem:[%s5083] ss:$9 sm:$0xff] %v5055
        %v5365 = vld [vmem:[#allocation1] sm:$0xff]
        %5366 = vst [vmem:[#allocation1] ss:$9 sm:$0xff] %v5056
        %5367 = vst [vmem:[%s5081] ss:$9 sm:$0xff] %v5057
        %5368 = vst [vmem:[%s5083] ss:$9 sm:$0xff] %v5058
        %v5369 = vld [vmem:[#allocation1] sm:$0xff]
        %5370 = vst [vmem:[#allocation1] ss:$9 sm:$0xff] %v5059
        %5371 = vst [vmem:[%s5081] ss:$9 sm:$0xff] %v4835
        %5372 = vst [vmem:[%s5083] ss:$9 sm:$0xff] %v5060
        %v5373 = vld [vmem:[#allocation1] sm:$0xff]
        %5374 = vst [vmem:[#allocation1] ss:$9 sm:$0xff] %v5061
        %5375 = vst [vmem:[%s5081] ss:$9 sm:$0xff] %v5062
        %5376 = vst [vmem:[%s5083] ss:$9 sm:$0xff] %v5063
        %v5377 = vld [vmem:[#allocation1] sm:$0xff]
        %5378 = vst [vmem:[#allocation1] ss:$9 sm:$0xff] %v5064
        %5379 = vst [vmem:[%s5081] ss:$9 sm:$0xff] %v5065
        %5380 = vst [vmem:[%s5083] ss:$9 sm:$0xff] %v5066
        %v5381 = vld [vmem:[#allocation1] sm:$0xff]
        %5382 = vst [vmem:[#allocation1] ss:$9 sm:$0xff] %v4836
        %5383 = vst [vmem:[%s5081] ss:$9 sm:$0xff] %v5067
        %5384 = vst [vmem:[%s5083] ss:$9 sm:$0xff] %v5068
        %v5385 = vld [vmem:[#allocation1] sm:$0xff]
        %5386 = vst [vmem:[#allocation1] ss:$9 sm:$0xff] %v5069
        %5387 = vst [vmem:[%s5081] ss:$9 sm:$0xff] %v5070
        %5388 = vst [vmem:[%s5083] ss:$9 sm:$0xff] %v5071
        %v5389 = vld [vmem:[#allocation1] sm:$0xff]
        %5390 = vst [vmem:[#allocation1] ss:$9 sm:$0xff] %v5072
        %5391 = vst [vmem:[%s5081] ss:$9 sm:$0xff] %v5073
        %5392 = vst [vmem:[%s5083] ss:$9 sm:$0xff] %v4837
        %v5393 = vld [vmem:[#allocation1] sm:$0xff]
        %5394 = vst [vmem:[#allocation1] ss:$9 sm:$0xff] %v5074
        %5395 = vst [vmem:[%s5081] ss:$9 sm:$0xff] %v5075
        %5396 = vst [vmem:[%s5083] ss:$9 sm:$0xff] %v5076
        %v5397 = vld [vmem:[#allocation1] sm:$0xff]
        %5398 = vst [vmem:[#allocation1] ss:$9 sm:$0xff] %v5077
        %5399 = vst [vmem:[%s5081] ss:$9 sm:$0xff] %v5078
        %5400 = vst [vmem:[%s5083] ss:$9 sm:$0xff] %v5079
        %v5401 = vld [vmem:[#allocation1] sm:$0xff]
        %vm5482 = vcmask 518144
        %v5483 = vsel %vm5482, %v5085, -inf
        %v5484 = vrot.slane %v5483, 4
        %v5485 = vmax.f32 %v5483, %v5484
        %v5486 = vrot.slane %v5485, 2
        %v5487 = vmax.f32 %v5485, %v5486
        %v5488 = vrot.slane %v5487, 1
        %v5489 = vmax.f32 %v5487, %v5488
        %v5490 = vsel %vm5482, %v5089, -inf
        %v5491 = vrot.slane %v5490, 4
        %v5492 = vmax.f32 %v5490, %v5491
        %v5493 = vrot.slane %v5492, 2
        %v5494 = vmax.f32 %v5492, %v5493
        %v5495 = vrot.slane %v5494, 1
        %v5496 = vmax.f32 %v5494, %v5495
        %v5497 = vsel %vm5482, %v5093, -inf
        %v5498 = vrot.slane %v5497, 4
        %v5499 = vmax.f32 %v5497, %v5498
        %v5500 = vrot.slane %v5499, 2
        %v5501 = vmax.f32 %v5499, %v5500
        %v5502 = vrot.slane %v5501, 1
        %v5503 = vmax.f32 %v5501, %v5502
        %v5504 = vsel %vm5482, %v5097, -inf
        %v5505 = vrot.slane %v5504, 4
        %v5506 = vmax.f32 %v5504, %v5505
        %v5507 = vrot.slane %v5506, 2
        %v5508 = vmax.f32 %v5506, %v5507
        %v5509 = vrot.slane %v5508, 1
        %v5510 = vmax.f32 %v5508, %v5509
        %v5511 = vsel %vm5482, %v5101, -inf
        %v5512 = vrot.slane %v5511, 4
        %v5513 = vmax.f32 %v5511, %v5512
        %v5514 = vrot.slane %v5513, 2
        %v5515 = vmax.f32 %v5513, %v5514
        %v5516 = vrot.slane %v5515, 1
        %v5517 = vmax.f32 %v5515, %v5516
        %v5518 = vsel %vm5482, %v5105, -inf
        %v5519 = vrot.slane %v5518, 4
        %v5520 = vmax.f32 %v5518, %v5519
        %v5521 = vrot.slane %v5520, 2
        %v5522 = vmax.f32 %v5520, %v5521
        %v5523 = vrot.slane %v5522, 1
        %v5524 = vmax.f32 %v5522, %v5523
        %v5525 = vsel %vm5482, %v5109, -inf
        %v5526 = vrot.slane %v5525, 4
        %v5527 = vmax.f32 %v5525, %v5526
        %v5528 = vrot.slane %v5527, 2
        %v5529 = vmax.f32 %v5527, %v5528
        %v5530 = vrot.slane %v5529, 1
        %v5531 = vmax.f32 %v5529, %v5530
        %v5532 = vsel %vm5482, %v5113, -inf
        %v5533 = vrot.slane %v5532, 4
        %v5534 = vmax.f32 %v5532, %v5533
        %v5535 = vrot.slane %v5534, 2
        %v5536 = vmax.f32 %v5534, %v5535
        %v5537 = vrot.slane %v5536, 1
        %v5538 = vmax.f32 %v5536, %v5537
        %v5539 = vsel %vm5482, %v5117, -inf
        %v5540 = vrot.slane %v5539, 4
        %v5541 = vmax.f32 %v5539, %v5540
        %v5542 = vrot.slane %v5541, 2
        %v5543 = vmax.f32 %v5541, %v5542
        %v5544 = vrot.slane %v5543, 1
        %v5545 = vmax.f32 %v5543, %v5544
        %v5546 = vsel %vm5482, %v5121, -inf
        %v5547 = vrot.slane %v5546, 4
        %v5548 = vmax.f32 %v5546, %v5547
        %v5549 = vrot.slane %v5548, 2
        %v5550 = vmax.f32 %v5548, %v5549
        %v5551 = vrot.slane %v5550, 1
        %v5552 = vmax.f32 %v5550, %v5551
        %v5553 = vsel %vm5482, %v5125, -inf
        %v5554 = vrot.slane %v5553, 4
        %v5555 = vmax.f32 %v5553, %v5554
        %v5556 = vrot.slane %v5555, 2
        %v5557 = vmax.f32 %v5555, %v5556
        %v5558 = vrot.slane %v5557, 1
        %v5559 = vmax.f32 %v5557, %v5558
        %v5560 = vsel %vm5482, %v5129, -inf
        %v5561 = vrot.slane %v5560, 4
        %v5562 = vmax.f32 %v5560, %v5561
        %v5563 = vrot.slane %v5562, 2
        %v5564 = vmax.f32 %v5562, %v5563
        %v5565 = vrot.slane %v5564, 1
        %v5566 = vmax.f32 %v5564, %v5565
        %v5567 = vsel %vm5482, %v5133, -inf
        %v5568 = vrot.slane %v5567, 4
        %v5569 = vmax.f32 %v5567, %v5568
        %v5570 = vrot.slane %v5569, 2
        %v5571 = vmax.f32 %v5569, %v5570
        %v5572 = vrot.slane %v5571, 1
        %v5573 = vmax.f32 %v5571, %v5572
        %v5574 = vsel %vm5482, %v5137, -inf
        %v5575 = vrot.slane %v5574, 4
        %v5576 = vmax.f32 %v5574, %v5575
        %v5577 = vrot.slane %v5576, 2
        %v5578 = vmax.f32 %v5576, %v5577
        %v5579 = vrot.slane %v5578, 1
        %v5580 = vmax.f32 %v5578, %v5579
        %v5581 = vsel %vm5482, %v5141, -inf
        %v5582 = vrot.slane %v5581, 4
        %v5583 = vmax.f32 %v5581, %v5582
        %v5584 = vrot.slane %v5583, 2
        %v5585 = vmax.f32 %v5583, %v5584
        %v5586 = vrot.slane %v5585, 1
        %v5587 = vmax.f32 %v5585, %v5586
        %v5588 = vsel %vm5482, %v5145, -inf
        %v5589 = vrot.slane %v5588, 4
        %v5590 = vmax.f32 %v5588, %v5589
        %v5591 = vrot.slane %v5590, 2
        %v5592 = vmax.f32 %v5590, %v5591
        %v5593 = vrot.slane %v5592, 1
        %v5594 = vmax.f32 %v5592, %v5593
        %v5595 = vsel %vm5482, %v5149, -inf
        %v5596 = vrot.slane %v5595, 4
        %v5597 = vmax.f32 %v5595, %v5596
        %v5598 = vrot.slane %v5597, 2
        %v5599 = vmax.f32 %v5597, %v5598
        %v5600 = vrot.slane %v5599, 1
        %v5601 = vmax.f32 %v5599, %v5600
        %v5602 = vsel %vm5482, %v5153, -inf
        %v5603 = vrot.slane %v5602, 4
        %v5604 = vmax.f32 %v5602, %v5603
        %v5605 = vrot.slane %v5604, 2
        %v5606 = vmax.f32 %v5604, %v5605
        %v5607 = vrot.slane %v5606, 1
        %v5608 = vmax.f32 %v5606, %v5607
        %v5609 = vsel %vm5482, %v5157, -inf
        %v5610 = vrot.slane %v5609, 4
        %v5611 = vmax.f32 %v5609, %v5610
        %v5612 = vrot.slane %v5611, 2
        %v5613 = vmax.f32 %v5611, %v5612
        %v5614 = vrot.slane %v5613, 1
        %v5615 = vmax.f32 %v5613, %v5614
        %v5616 = vsel %vm5482, %v5161, -inf
        %v5617 = vrot.slane %v5616, 4
        %v5618 = vmax.f32 %v5616, %v5617
        %v5619 = vrot.slane %v5618, 2
        %v5620 = vmax.f32 %v5618, %v5619
        %v5621 = vrot.slane %v5620, 1
        %v5622 = vmax.f32 %v5620, %v5621
        %v5623 = vsel %vm5482, %v5165, -inf
        %v5624 = vrot.slane %v5623, 4
        %v5625 = vmax.f32 %v5623, %v5624
        %v5626 = vrot.slane %v5625, 2
        %v5627 = vmax.f32 %v5625, %v5626
        %v5628 = vrot.slane %v5627, 1
        %v5629 = vmax.f32 %v5627, %v5628
        %v5630 = vsel %vm5482, %v5169, -inf
        %v5631 = vrot.slane %v5630, 4
        %v5632 = vmax.f32 %v5630, %v5631
        %v5633 = vrot.slane %v5632, 2
        %v5634 = vmax.f32 %v5632, %v5633
        %v5635 = vrot.slane %v5634, 1
        %v5636 = vmax.f32 %v5634, %v5635
        %v5637 = vsel %vm5482, %v5173, -inf
        %v5638 = vrot.slane %v5637, 4
        %v5639 = vmax.f32 %v5637, %v5638
        %v5640 = vrot.slane %v5639, 2
        %v5641 = vmax.f32 %v5639, %v5640
        %v5642 = vrot.slane %v5641, 1
        %v5643 = vmax.f32 %v5641, %v5642
        %v5644 = vsel %vm5482, %v5177, -inf
        %v5645 = vrot.slane %v5644, 4
        %v5646 = vmax.f32 %v5644, %v5645
        %v5647 = vrot.slane %v5646, 2
        %v5648 = vmax.f32 %v5646, %v5647
        %v5649 = vrot.slane %v5648, 1
        %v5650 = vmax.f32 %v5648, %v5649
        %v5651 = vsel %vm5482, %v5181, -inf
        %v5652 = vrot.slane %v5651, 4
        %v5653 = vmax.f32 %v5651, %v5652
        %v5654 = vrot.slane %v5653, 2
        %v5655 = vmax.f32 %v5653, %v5654
        %v5656 = vrot.slane %v5655, 1
        %v5657 = vmax.f32 %v5655, %v5656
        %v5658 = vsel %vm5482, %v5185, -inf
        %v5659 = vrot.slane %v5658, 4
        %v5660 = vmax.f32 %v5658, %v5659
        %v5661 = vrot.slane %v5660, 2
        %v5662 = vmax.f32 %v5660, %v5661
        %v5663 = vrot.slane %v5662, 1
        %v5664 = vmax.f32 %v5662, %v5663
        %v5665 = vsel %vm5482, %v5189, -inf
        %v5666 = vrot.slane %v5665, 4
        %v5667 = vmax.f32 %v5665, %v5666
        %v5668 = vrot.slane %v5667, 2
        %v5669 = vmax.f32 %v5667, %v5668
        %v5670 = vrot.slane %v5669, 1
        %v5671 = vmax.f32 %v5669, %v5670
        %v5672 = vsel %vm5482, %v5193, -inf
        %v5673 = vrot.slane %v5672, 4
        %v5674 = vmax.f32 %v5672, %v5673
        %v5675 = vrot.slane %v5674, 2
        %v5676 = vmax.f32 %v5674, %v5675
        %v5677 = vrot.slane %v5676, 1
        %v5678 = vmax.f32 %v5676, %v5677
        %v5679 = vsel %vm5482, %v5197, -inf
        %v5680 = vrot.slane %v5679, 4
        %v5681 = vmax.f32 %v5679, %v5680
        %v5682 = vrot.slane %v5681, 2
        %v5683 = vmax.f32 %v5681, %v5682
        %v5684 = vrot.slane %v5683, 1
        %v5685 = vmax.f32 %v5683, %v5684
        %v5686 = vsel %vm5482, %v5201, -inf
        %v5687 = vrot.slane %v5686, 4
        %v5688 = vmax.f32 %v5686, %v5687
        %v5689 = vrot.slane %v5688, 2
        %v5690 = vmax.f32 %v5688, %v5689
        %v5691 = vrot.slane %v5690, 1
        %v5692 = vmax.f32 %v5690, %v5691
        %v5693 = vsel %vm5482, %v5205, -inf
        %v5694 = vrot.slane %v5693, 4
        %v5695 = vmax.f32 %v5693, %v5694
        %v5696 = vrot.slane %v5695, 2
        %v5697 = vmax.f32 %v5695, %v5696
        %v5698 = vrot.slane %v5697, 1
        %v5699 = vmax.f32 %v5697, %v5698
        %v5700 = vsel %vm5482, %v5209, -inf
        %v5701 = vrot.slane %v5700, 4
        %v5702 = vmax.f32 %v5700, %v5701
        %v5703 = vrot.slane %v5702, 2
        %v5704 = vmax.f32 %v5702, %v5703
        %v5705 = vrot.slane %v5704, 1
        %v5706 = vmax.f32 %v5704, %v5705
        %v5707 = vsel %vm5482, %v5213, -inf
        %v5708 = vrot.slane %v5707, 4
        %v5709 = vmax.f32 %v5707, %v5708
        %v5710 = vrot.slane %v5709, 2
        %v5711 = vmax.f32 %v5709, %v5710
        %v5712 = vrot.slane %v5711, 1
        %v5713 = vmax.f32 %v5711, %v5712
        %v5714 = vsel %vm5482, %v5217, -inf
        %v5715 = vrot.slane %v5714, 4
        %v5716 = vmax.f32 %v5714, %v5715
        %v5717 = vrot.slane %v5716, 2
        %v5718 = vmax.f32 %v5716, %v5717
        %v5719 = vrot.slane %v5718, 1
        %v5720 = vmax.f32 %v5718, %v5719
        %v5721 = vsel %vm5482, %v5221, -inf
        %v5722 = vrot.slane %v5721, 4
        %v5723 = vmax.f32 %v5721, %v5722
        %v5724 = vrot.slane %v5723, 2
        %v5725 = vmax.f32 %v5723, %v5724
        %v5726 = vrot.slane %v5725, 1
        %v5727 = vmax.f32 %v5725, %v5726
        %v5728 = vsel %vm5482, %v5225, -inf
        %v5729 = vrot.slane %v5728, 4
        %v5730 = vmax.f32 %v5728, %v5729
        %v5731 = vrot.slane %v5730, 2
        %v5732 = vmax.f32 %v5730, %v5731
        %v5733 = vrot.slane %v5732, 1
        %v5734 = vmax.f32 %v5732, %v5733
        %v5735 = vsel %vm5482, %v5229, -inf
        %v5736 = vrot.slane %v5735, 4
        %v5737 = vmax.f32 %v5735, %v5736
        %v5738 = vrot.slane %v5737, 2
        %v5739 = vmax.f32 %v5737, %v5738
        %v5740 = vrot.slane %v5739, 1
        %v5741 = vmax.f32 %v5739, %v5740
        %v5742 = vsel %vm5482, %v5233, -inf
        %v5743 = vrot.slane %v5742, 4
        %v5744 = vmax.f32 %v5742, %v5743
        %v5745 = vrot.slane %v5744, 2
        %v5746 = vmax.f32 %v5744, %v5745
        %v5747 = vrot.slane %v5746, 1
        %v5748 = vmax.f32 %v5746, %v5747
        %v5749 = vsel %vm5482, %v5237, -inf
        %v5750 = vrot.slane %v5749, 4
        %v5751 = vmax.f32 %v5749, %v5750
        %v5752 = vrot.slane %v5751, 2
        %v5753 = vmax.f32 %v5751, %v5752
        %v5754 = vrot.slane %v5753, 1
        %v5755 = vmax.f32 %v5753, %v5754
        %v5756 = vsel %vm5482, %v5241, -inf
        %v5757 = vrot.slane %v5756, 4
        %v5758 = vmax.f32 %v5756, %v5757
        %v5759 = vrot.slane %v5758, 2
        %v5760 = vmax.f32 %v5758, %v5759
        %v5761 = vrot.slane %v5760, 1
        %v5762 = vmax.f32 %v5760, %v5761
        %v5763 = vsel %vm5482, %v5245, -inf
        %v5764 = vrot.slane %v5763, 4
        %v5765 = vmax.f32 %v5763, %v5764
        %v5766 = vrot.slane %v5765, 2
        %v5767 = vmax.f32 %v5765, %v5766
        %v5768 = vrot.slane %v5767, 1
        %v5769 = vmax.f32 %v5767, %v5768
        %v5770 = vsel %vm5482, %v5249, -inf
        %v5771 = vrot.slane %v5770, 4
        %v5772 = vmax.f32 %v5770, %v5771
        %v5773 = vrot.slane %v5772, 2
        %v5774 = vmax.f32 %v5772, %v5773
        %v5775 = vrot.slane %v5774, 1
        %v5776 = vmax.f32 %v5774, %v5775
        %v5777 = vsel %vm5482, %v5253, -inf
        %v5778 = vrot.slane %v5777, 4
        %v5779 = vmax.f32 %v5777, %v5778
        %v5780 = vrot.slane %v5779, 2
        %v5781 = vmax.f32 %v5779, %v5780
        %v5782 = vrot.slane %v5781, 1
        %v5783 = vmax.f32 %v5781, %v5782
        %v5784 = vsel %vm5482, %v5257, -inf
        %v5785 = vrot.slane %v5784, 4
        %v5786 = vmax.f32 %v5784, %v5785
        %v5787 = vrot.slane %v5786, 2
        %v5788 = vmax.f32 %v5786, %v5787
        %v5789 = vrot.slane %v5788, 1
        %v5790 = vmax.f32 %v5788, %v5789
        %v5791 = vsel %vm5482, %v5261, -inf
        %v5792 = vrot.slane %v5791, 4
        %v5793 = vmax.f32 %v5791, %v5792
        %v5794 = vrot.slane %v5793, 2
        %v5795 = vmax.f32 %v5793, %v5794
        %v5796 = vrot.slane %v5795, 1
        %v5797 = vmax.f32 %v5795, %v5796
        %v5798 = vsel %vm5482, %v5265, -inf
        %v5799 = vrot.slane %v5798, 4
        %v5800 = vmax.f32 %v5798, %v5799
        %v5801 = vrot.slane %v5800, 2
        %v5802 = vmax.f32 %v5800, %v5801
        %v5803 = vrot.slane %v5802, 1
        %v5804 = vmax.f32 %v5802, %v5803
        %v5805 = vsel %vm5482, %v5269, -inf
        %v5806 = vrot.slane %v5805, 4
        %v5807 = vmax.f32 %v5805, %v5806
        %v5808 = vrot.slane %v5807, 2
        %v5809 = vmax.f32 %v5807, %v5808
        %v5810 = vrot.slane %v5809, 1
        %v5811 = vmax.f32 %v5809, %v5810
        %v5812 = vsel %vm5482, %v5273, -inf
        %v5813 = vrot.slane %v5812, 4
        %v5814 = vmax.f32 %v5812, %v5813
        %v5815 = vrot.slane %v5814, 2
        %v5816 = vmax.f32 %v5814, %v5815
        %v5817 = vrot.slane %v5816, 1
        %v5818 = vmax.f32 %v5816, %v5817
        %v5819 = vsel %vm5482, %v5277, -inf
        %v5820 = vrot.slane %v5819, 4
        %v5821 = vmax.f32 %v5819, %v5820
        %v5822 = vrot.slane %v5821, 2
        %v5823 = vmax.f32 %v5821, %v5822
        %v5824 = vrot.slane %v5823, 1
        %v5825 = vmax.f32 %v5823, %v5824
        %v5826 = vsel %vm5482, %v5281, -inf
        %v5827 = vrot.slane %v5826, 4
        %v5828 = vmax.f32 %v5826, %v5827
        %v5829 = vrot.slane %v5828, 2
        %v5830 = vmax.f32 %v5828, %v5829
        %v5831 = vrot.slane %v5830, 1
        %v5832 = vmax.f32 %v5830, %v5831
        %v5833 = vsel %vm5482, %v5285, -inf
        %v5834 = vrot.slane %v5833, 4
        %v5835 = vmax.f32 %v5833, %v5834
        %v5836 = vrot.slane %v5835, 2
        %v5837 = vmax.f32 %v5835, %v5836
        %v5838 = vrot.slane %v5837, 1
        %v5839 = vmax.f32 %v5837, %v5838
        %v5840 = vsel %vm5482, %v5289, -inf
        %v5841 = vrot.slane %v5840, 4
        %v5842 = vmax.f32 %v5840, %v5841
        %v5843 = vrot.slane %v5842, 2
        %v5844 = vmax.f32 %v5842, %v5843
        %v5845 = vrot.slane %v5844, 1
        %v5846 = vmax.f32 %v5844, %v5845
        %v5847 = vsel %vm5482, %v5293, -inf
        %v5848 = vrot.slane %v5847, 4
        %v5849 = vmax.f32 %v5847, %v5848
        %v5850 = vrot.slane %v5849, 2
        %v5851 = vmax.f32 %v5849, %v5850
        %v5852 = vrot.slane %v5851, 1
        %v5853 = vmax.f32 %v5851, %v5852
        %v5854 = vsel %vm5482, %v5297, -inf
        %v5855 = vrot.slane %v5854, 4
        %v5856 = vmax.f32 %v5854, %v5855
        %v5857 = vrot.slane %v5856, 2
        %v5858 = vmax.f32 %v5856, %v5857
        %v5859 = vrot.slane %v5858, 1
        %v5860 = vmax.f32 %v5858, %v5859
        %v5861 = vsel %vm5482, %v5301, -inf
        %v5862 = vrot.slane %v5861, 4
        %v5863 = vmax.f32 %v5861, %v5862
        %v5864 = vrot.slane %v5863, 2
        %v5865 = vmax.f32 %v5863, %v5864
        %v5866 = vrot.slane %v5865, 1
        %v5867 = vmax.f32 %v5865, %v5866
        %v5868 = vsel %vm5482, %v5305, -inf
        %v5869 = vrot.slane %v5868, 4
        %v5870 = vmax.f32 %v5868, %v5869
        %v5871 = vrot.slane %v5870, 2
        %v5872 = vmax.f32 %v5870, %v5871
        %v5873 = vrot.slane %v5872, 1
        %v5874 = vmax.f32 %v5872, %v5873
        %v5875 = vsel %vm5482, %v5309, -inf
        %v5876 = vrot.slane %v5875, 4
        %v5877 = vmax.f32 %v5875, %v5876
        %v5878 = vrot.slane %v5877, 2
        %v5879 = vmax.f32 %v5877, %v5878
        %v5880 = vrot.slane %v5879, 1
        %v5881 = vmax.f32 %v5879, %v5880
        %v5882 = vsel %vm5482, %v5313, -inf
        %v5883 = vrot.slane %v5882, 4
        %v5884 = vmax.f32 %v5882, %v5883
        %v5885 = vrot.slane %v5884, 2
        %v5886 = vmax.f32 %v5884, %v5885
        %v5887 = vrot.slane %v5886, 1
        %v5888 = vmax.f32 %v5886, %v5887
        %v5889 = vsel %vm5482, %v5317, -inf
        %v5890 = vrot.slane %v5889, 4
        %v5891 = vmax.f32 %v5889, %v5890
        %v5892 = vrot.slane %v5891, 2
        %v5893 = vmax.f32 %v5891, %v5892
        %v5894 = vrot.slane %v5893, 1
        %v5895 = vmax.f32 %v5893, %v5894
        %v5896 = vsel %vm5482, %v5321, -inf
        %v5897 = vrot.slane %v5896, 4
        %v5898 = vmax.f32 %v5896, %v5897
        %v5899 = vrot.slane %v5898, 2
        %v5900 = vmax.f32 %v5898, %v5899
        %v5901 = vrot.slane %v5900, 1
        %v5902 = vmax.f32 %v5900, %v5901
        %v5903 = vsel %vm5482, %v5325, -inf
        %v5904 = vrot.slane %v5903, 4
        %v5905 = vmax.f32 %v5903, %v5904
        %v5906 = vrot.slane %v5905, 2
        %v5907 = vmax.f32 %v5905, %v5906
        %v5908 = vrot.slane %v5907, 1
        %v5909 = vmax.f32 %v5907, %v5908
        %v5910 = vsel %vm5482, %v5329, -inf
        %v5911 = vrot.slane %v5910, 4
        %v5912 = vmax.f32 %v5910, %v5911
        %v5913 = vrot.slane %v5912, 2
        %v5914 = vmax.f32 %v5912, %v5913
        %v5915 = vrot.slane %v5914, 1
        %v5916 = vmax.f32 %v5914, %v5915
        %v5917 = vsel %vm5482, %v5333, -inf
        %v5918 = vrot.slane %v5917, 4
        %v5919 = vmax.f32 %v5917, %v5918
        %v5920 = vrot.slane %v5919, 2
        %v5921 = vmax.f32 %v5919, %v5920
        %v5922 = vrot.slane %v5921, 1
        %v5923 = vmax.f32 %v5921, %v5922
        %v5924 = vsel %vm5482, %v5337, -inf
        %v5925 = vrot.slane %v5924, 4
        %v5926 = vmax.f32 %v5924, %v5925
        %v5927 = vrot.slane %v5926, 2
        %v5928 = vmax.f32 %v5926, %v5927
        %v5929 = vrot.slane %v5928, 1
        %v5930 = vmax.f32 %v5928, %v5929
        %v5931 = vsel %vm5482, %v5341, -inf
        %v5932 = vrot.slane %v5931, 4
        %v5933 = vmax.f32 %v5931, %v5932
        %v5934 = vrot.slane %v5933, 2
        %v5935 = vmax.f32 %v5933, %v5934
        %v5936 = vrot.slane %v5935, 1
        %v5937 = vmax.f32 %v5935, %v5936
        %v5938 = vsel %vm5482, %v5345, -inf
        %v5939 = vrot.slane %v5938, 4
        %v5940 = vmax.f32 %v5938, %v5939
        %v5941 = vrot.slane %v5940, 2
        %v5942 = vmax.f32 %v5940, %v5941
        %v5943 = vrot.slane %v5942, 1
        %v5944 = vmax.f32 %v5942, %v5943
        %v5945 = vsel %vm5482, %v5349, -inf
        %v5946 = vrot.slane %v5945, 4
        %v5947 = vmax.f32 %v5945, %v5946
        %v5948 = vrot.slane %v5947, 2
        %v5949 = vmax.f32 %v5947, %v5948
        %v5950 = vrot.slane %v5949, 1
        %v5951 = vmax.f32 %v5949, %v5950
        %v5952 = vsel %vm5482, %v5353, -inf
        %v5953 = vrot.slane %v5952, 4
        %v5954 = vmax.f32 %v5952, %v5953
        %v5955 = vrot.slane %v5954, 2
        %v5956 = vmax.f32 %v5954, %v5955
        %v5957 = vrot.slane %v5956, 1
        %v5958 = vmax.f32 %v5956, %v5957
        %v5959 = vsel %vm5482, %v5357, -inf
        %v5960 = vrot.slane %v5959, 4
        %v5961 = vmax.f32 %v5959, %v5960
        %v5962 = vrot.slane %v5961, 2
        %v5963 = vmax.f32 %v5961, %v5962
        %v5964 = vrot.slane %v5963, 1
        %v5965 = vmax.f32 %v5963, %v5964
        %v5966 = vsel %vm5482, %v5361, -inf
        %v5967 = vrot.slane %v5966, 4
        %v5968 = vmax.f32 %v5966, %v5967
        %v5969 = vrot.slane %v5968, 2
        %v5970 = vmax.f32 %v5968, %v5969
        %v5971 = vrot.slane %v5970, 1
        %v5972 = vmax.f32 %v5970, %v5971
        %v5973 = vsel %vm5482, %v5365, -inf
        %v5974 = vrot.slane %v5973, 4
        %v5975 = vmax.f32 %v5973, %v5974
        %v5976 = vrot.slane %v5975, 2
        %v5977 = vmax.f32 %v5975, %v5976
        %v5978 = vrot.slane %v5977, 1
        %v5979 = vmax.f32 %v5977, %v5978
        %v5980 = vsel %vm5482, %v5369, -inf
        %v5981 = vrot.slane %v5980, 4
        %v5982 = vmax.f32 %v5980, %v5981
        %v5983 = vrot.slane %v5982, 2
        %v5984 = vmax.f32 %v5982, %v5983
        %v5985 = vrot.slane %v5984, 1
        %v5986 = vmax.f32 %v5984, %v5985
        %v5987 = vsel %vm5482, %v5373, -inf
        %v5988 = vrot.slane %v5987, 4
        %v5989 = vmax.f32 %v5987, %v5988
        %v5990 = vrot.slane %v5989, 2
        %v5991 = vmax.f32 %v5989, %v5990
        %v5992 = vrot.slane %v5991, 1
        %v5993 = vmax.f32 %v5991, %v5992
        %v5994 = vsel %vm5482, %v5377, -inf
        %v5995 = vrot.slane %v5994, 4
        %v5996 = vmax.f32 %v5994, %v5995
        %v5997 = vrot.slane %v5996, 2
        %v5998 = vmax.f32 %v5996, %v5997
        %v5999 = vrot.slane %v5998, 1
        %v6000 = vmax.f32 %v5998, %v5999
        %v6001 = vsel %vm5482, %v5381, -inf
        %v6002 = vrot.slane %v6001, 4
        %v6003 = vmax.f32 %v6001, %v6002
        %v6004 = vrot.slane %v6003, 2
        %v6005 = vmax.f32 %v6003, %v6004
        %v6006 = vrot.slane %v6005, 1
        %v6007 = vmax.f32 %v6005, %v6006
        %v6008 = vsel %vm5482, %v5385, -inf
        %v6009 = vrot.slane %v6008, 4
        %v6010 = vmax.f32 %v6008, %v6009
        %v6011 = vrot.slane %v6010, 2
        %v6012 = vmax.f32 %v6010, %v6011
        %v6013 = vrot.slane %v6012, 1
        %v6014 = vmax.f32 %v6012, %v6013
        %v6015 = vsel %vm5482, %v5389, -inf
        %v6016 = vrot.slane %v6015, 4
        %v6017 = vmax.f32 %v6015, %v6016
        %v6018 = vrot.slane %v6017, 2
        %v6019 = vmax.f32 %v6017, %v6018
        %v6020 = vrot.slane %v6019, 1
        %v6021 = vmax.f32 %v6019, %v6020
        %v6022 = vsel %vm5482, %v5393, -inf
        %v6023 = vrot.slane %v6022, 4
        %v6024 = vmax.f32 %v6022, %v6023
        %v6025 = vrot.slane %v6024, 2
        %v6026 = vmax.f32 %v6024, %v6025
        %v6027 = vrot.slane %v6026, 1
        %v6028 = vmax.f32 %v6026, %v6027
        %v6029 = vsel %vm5482, %v5397, -inf
        %v6030 = vrot.slane %v6029, 4
        %v6031 = vmax.f32 %v6029, %v6030
        %v6032 = vrot.slane %v6031, 2
        %v6033 = vmax.f32 %v6031, %v6032
        %v6034 = vrot.slane %v6033, 1
        %v6035 = vmax.f32 %v6033, %v6034
        %v6036 = vsel %vm5482, %v5401, -inf
        %v6037 = vrot.slane %v6036, 4
        %v6038 = vmax.f32 %v6036, %v6037
        %v6039 = vrot.slane %v6038, 2
        %v6040 = vmax.f32 %v6038, %v6039
        %v6041 = vrot.slane %v6040, 1
        %v6042 = vmax.f32 %v6040, %v6041
        %v6123 = vsel %vm959, %v5496, %v5489
        %v6124 = vsel %vm962, %v5503, %v6123
        %v6125 = vsel %vm965, %v5510, %v6124
        %v6126 = vsel %vm968, %v5517, %v6125
        %v6127 = vsel %vm971, %v5524, %v6126
        %v6128 = vsel %vm974, %v5531, %v6127
        %v6129 = vsel %vm2175, %v5538, %v6128
        %v6130 = vsel %vm959, %v5552, %v5545
        %v6131 = vsel %vm959, %v5566, %v5559
        %v6132 = vsel %vm962, %v5573, %v6131
        %v6133 = vsel %vm965, %v5580, %v6132
        %v6134 = vsel %vm968, %v5587, %v6133
        %v6135 = vsel %vm971, %v5594, %v6134
        %v6136 = vsel %vm974, %v5601, %v6135
        %v6137 = vsel %vm2175, %v5608, %v6136
        %v6138 = vsel %vm959, %v5622, %v5615
        %v6139 = vsel %vm959, %v5636, %v5629
        %v6140 = vsel %vm962, %v5643, %v6139
        %v6141 = vsel %vm965, %v5650, %v6140
        %v6142 = vsel %vm968, %v5657, %v6141
        %v6143 = vsel %vm971, %v5664, %v6142
        %v6144 = vsel %vm974, %v5671, %v6143
        %v6145 = vsel %vm2175, %v5678, %v6144
        %v6146 = vsel %vm959, %v5692, %v5685
        %v6147 = vsel %vm959, %v5706, %v5699
        %v6148 = vsel %vm962, %v5713, %v6147
        %v6149 = vsel %vm965, %v5720, %v6148
        %v6150 = vsel %vm968, %v5727, %v6149
        %v6151 = vsel %vm971, %v5734, %v6150
        %v6152 = vsel %vm974, %v5741, %v6151
        %v6153 = vsel %vm2175, %v5748, %v6152
        %v6154 = vsel %vm959, %v5762, %v5755
        %v6155 = vsel %vm959, %v5776, %v5769
        %v6156 = vsel %vm962, %v5783, %v6155
        %v6157 = vsel %vm965, %v5790, %v6156
        %v6158 = vsel %vm968, %v5797, %v6157
        %v6159 = vsel %vm971, %v5804, %v6158
        %v6160 = vsel %vm974, %v5811, %v6159
        %v6161 = vsel %vm2175, %v5818, %v6160
        %v6162 = vsel %vm959, %v5832, %v5825
        %v6163 = vsel %vm959, %v5846, %v5839
        %v6164 = vsel %vm962, %v5853, %v6163
        %v6165 = vsel %vm965, %v5860, %v6164
        %v6166 = vsel %vm968, %v5867, %v6165
        %v6167 = vsel %vm971, %v5874, %v6166
        %v6168 = vsel %vm974, %v5881, %v6167
        %v6169 = vsel %vm2175, %v5888, %v6168
        %v6170 = vsel %vm959, %v5902, %v5895
        %v6171 = vsel %vm959, %v5916, %v5909
        %v6172 = vsel %vm962, %v5923, %v6171
        %v6173 = vsel %vm965, %v5930, %v6172
        %v6174 = vsel %vm968, %v5937, %v6173
        %v6175 = vsel %vm971, %v5944, %v6174
        %v6176 = vsel %vm974, %v5951, %v6175
        %v6177 = vsel %vm2175, %v5958, %v6176
        %v6178 = vsel %vm959, %v5972, %v5965
        %v6179 = vsel %vm959, %v5986, %v5979
        %v6180 = vsel %vm962, %v5993, %v6179
        %v6181 = vsel %vm965, %v6000, %v6180
        %v6182 = vsel %vm968, %v6007, %v6181
        %v6183 = vsel %vm971, %v6014, %v6182
        %v6184 = vsel %vm974, %v6021, %v6183
        %v6185 = vsel %vm2175, %v6028, %v6184
        %v6186 = vsel %vm959, %v6042, %v6035
        %v6188 = vrot.slane 0.0, 1
        %v6189 = vrot.slane 0.0, 2
        %v6190 = vrot.slane 0.0, 3
        %v6191 = vrot.slane 0.0, 4
        %v6192 = vrot.slane %v6129, 1
        %v6193 = vrot.slane %v6129, 2
        %v6194 = vrot.slane %v6129, 3
        %v6195 = vrot.slane %v6129, 4
        %v6196 = vrot.slane %v6137, 1
        %v6197 = vrot.slane %v6137, 2
        %v6198 = vrot.slane %v6137, 3
        %v6199 = vrot.slane %v6137, 4
        %v6200 = vrot.slane %v6145, 1
        %v6201 = vrot.slane %v6145, 2
        %v6202 = vrot.slane %v6145, 3
        %v6203 = vrot.slane %v6145, 4
        %v6204 = vrot.slane %v6153, 1
        %v6205 = vrot.slane %v6153, 2
        %v6206 = vrot.slane %v6153, 3
        %v6207 = vrot.slane %v6153, 4
        %v6208 = vrot.slane %v6161, 1
        %v6209 = vrot.slane %v6161, 2
        %v6210 = vrot.slane %v6161, 3
        %v6211 = vrot.slane %v6161, 4
        %v6212 = vrot.slane %v6169, 1
        %v6213 = vrot.slane %v6169, 2
        %v6214 = vrot.slane %v6169, 3
        %v6215 = vrot.slane %v6169, 4
        %v6216 = vrot.slane %v6177, 1
        %v6217 = vrot.slane %v6177, 2
        %v6218 = vrot.slane %v6177, 3
        %v6219 = vrot.slane %v6177, 4
        %6220 = vst [vmem:[#allocation1] sm:$0xff] 0.0
        %s6221 = scalar_lea.vmem [#allocation1], 1
        %v6222 = vld [vmem:[%s6221] ss:$9 sm:$0xff]
        %s6223 = scalar_lea.vmem [#allocation1], 2
        %v6224 = vld [vmem:[%s6223] ss:$9 sm:$0xff]
        %s6225 = scalar_lea.vmem [#allocation1], 3
        %v6226 = vld [vmem:[%s6225] ss:$9 sm:$0xff]
        %s6227 = scalar_lea.vmem [#allocation1], 4
        %v6228 = vld [vmem:[%s6227] ss:$9 sm:$0xff]
        %s6229 = scalar_lea.vmem [#allocation1], 5
        %v6230 = vld [vmem:[%s6229] ss:$9 sm:$0xff]
        %6231 = vst [vmem:[#allocation1] sm:$0xff] %v6129
        %v6232 = vld [vmem:[%s6221] ss:$9 sm:$0xff]
        %v6233 = vld [vmem:[%s6223] ss:$9 sm:$0xff]
        %v6234 = vld [vmem:[%s6225] ss:$9 sm:$0xff]
        %v6235 = vld [vmem:[%s6227] ss:$9 sm:$0xff]
        %v6236 = vld [vmem:[%s6229] ss:$9 sm:$0xff]
        %6237 = vst [vmem:[#allocation1] sm:$0xff] %v6137
        %v6238 = vld [vmem:[%s6221] ss:$9 sm:$0xff]
        %v6239 = vld [vmem:[%s6223] ss:$9 sm:$0xff]
        %v6240 = vld [vmem:[%s6225] ss:$9 sm:$0xff]
        %v6241 = vld [vmem:[%s6227] ss:$9 sm:$0xff]
        %v6242 = vld [vmem:[%s6229] ss:$9 sm:$0xff]
        %6243 = vst [vmem:[#allocation1] sm:$0xff] %v6145
        %v6244 = vld [vmem:[%s6221] ss:$9 sm:$0xff]
        %v6245 = vld [vmem:[%s6223] ss:$9 sm:$0xff]
        %v6246 = vld [vmem:[%s6225] ss:$9 sm:$0xff]
        %v6247 = vld [vmem:[%s6227] ss:$9 sm:$0xff]
        %v6248 = vld [vmem:[%s6229] ss:$9 sm:$0xff]
        %6249 = vst [vmem:[#allocation1] sm:$0xff] %v6153
        %v6250 = vld [vmem:[%s6221] ss:$9 sm:$0xff]
        %v6251 = vld [vmem:[%s6223] ss:$9 sm:$0xff]
        %v6252 = vld [vmem:[%s6225] ss:$9 sm:$0xff]
        %v6253 = vld [vmem:[%s6227] ss:$9 sm:$0xff]
        %v6254 = vld [vmem:[%s6229] ss:$9 sm:$0xff]
        %6255 = vst [vmem:[#allocation1] sm:$0xff] %v6161
        %v6256 = vld [vmem:[%s6221] ss:$9 sm:$0xff]
        %v6257 = vld [vmem:[%s6223] ss:$9 sm:$0xff]
        %v6258 = vld [vmem:[%s6225] ss:$9 sm:$0xff]
        %v6259 = vld [vmem:[%s6227] ss:$9 sm:$0xff]
        %v6260 = vld [vmem:[%s6229] ss:$9 sm:$0xff]
        %6261 = vst [vmem:[#allocation1] sm:$0xff] %v6169
        %v6262 = vld [vmem:[%s6221] ss:$9 sm:$0xff]
        %v6263 = vld [vmem:[%s6223] ss:$9 sm:$0xff]
        %v6264 = vld [vmem:[%s6225] ss:$9 sm:$0xff]
        %v6265 = vld [vmem:[%s6227] ss:$9 sm:$0xff]
        %v6266 = vld [vmem:[%s6229] ss:$9 sm:$0xff]
        %6267 = vst [vmem:[#allocation1] sm:$0xff] %v6177
        %v6268 = vld [vmem:[%s6221] ss:$9 sm:$0xff]
        %v6269 = vld [vmem:[%s6223] ss:$9 sm:$0xff]
        %v6270 = vld [vmem:[%s6225] ss:$9 sm:$0xff]
        %v6271 = vld [vmem:[%s6227] ss:$9 sm:$0xff]
        %v6272 = vld [vmem:[%s6229] ss:$9 sm:$0xff]
        %6273 = vst [vmem:[#allocation1] sm:$0xff] 0.0
        %s6274 = scalar_lea.vmem [#allocation1], 2
        %v6275 = vld [vmem:[%s6274] ss:$9 sm:$0xff]
        %s6276 = scalar_lea.vmem [#allocation1], 3
        %v6277 = vld [vmem:[%s6276] ss:$9 sm:$0xff]
        %s6278 = scalar_lea.vmem [#allocation1], 4
        %v6279 = vld [vmem:[%s6278] ss:$9 sm:$0xff]
        %s6280 = scalar_lea.vmem [#allocation1], 5
        %v6281 = vld [vmem:[%s6280] ss:$9 sm:$0xff]
        %s6282 = scalar_lea.vmem [#allocation1], 6
        %v6283 = vld [vmem:[%s6282] ss:$9 sm:$0xff]
        %6284 = vst [vmem:[#allocation1] sm:$0xff] %v6129
        %v6285 = vld [vmem:[%s6274] ss:$9 sm:$0xff]
        %v6286 = vld [vmem:[%s6276] ss:$9 sm:$0xff]
        %v6287 = vld [vmem:[%s6278] ss:$9 sm:$0xff]
        %v6288 = vld [vmem:[%s6280] ss:$9 sm:$0xff]
        %v6289 = vld [vmem:[%s6282] ss:$9 sm:$0xff]
        %6290 = vst [vmem:[#allocation1] sm:$0xff] %v6137
        %v6291 = vld [vmem:[%s6274] ss:$9 sm:$0xff]
        %v6292 = vld [vmem:[%s6276] ss:$9 sm:$0xff]
        %v6293 = vld [vmem:[%s6278] ss:$9 sm:$0xff]
        %v6294 = vld [vmem:[%s6280] ss:$9 sm:$0xff]
        %v6295 = vld [vmem:[%s6282] ss:$9 sm:$0xff]
        %6296 = vst [vmem:[#allocation1] sm:$0xff] %v6145
        %v6297 = vld [vmem:[%s6274] ss:$9 sm:$0xff]
        %v6298 = vld [vmem:[%s6276] ss:$9 sm:$0xff]
        %v6299 = vld [vmem:[%s6278] ss:$9 sm:$0xff]
        %v6300 = vld [vmem:[%s6280] ss:$9 sm:$0xff]
        %v6301 = vld [vmem:[%s6282] ss:$9 sm:$0xff]
        %6302 = vst [vmem:[#allocation1] sm:$0xff] %v6153
        %v6303 = vld [vmem:[%s6274] ss:$9 sm:$0xff]
        %v6304 = vld [vmem:[%s6276] ss:$9 sm:$0xff]
        %v6305 = vld [vmem:[%s6278] ss:$9 sm:$0xff]
        %v6306 = vld [vmem:[%s6280] ss:$9 sm:$0xff]
        %v6307 = vld [vmem:[%s6282] ss:$9 sm:$0xff]
        %6308 = vst [vmem:[#allocation1] sm:$0xff] %v6161
        %v6309 = vld [vmem:[%s6274] ss:$9 sm:$0xff]
        %v6310 = vld [vmem:[%s6276] ss:$9 sm:$0xff]
        %v6311 = vld [vmem:[%s6278] ss:$9 sm:$0xff]
        %v6312 = vld [vmem:[%s6280] ss:$9 sm:$0xff]
        %v6313 = vld [vmem:[%s6282] ss:$9 sm:$0xff]
        %6314 = vst [vmem:[#allocation1] sm:$0xff] %v6169
        %v6315 = vld [vmem:[%s6274] ss:$9 sm:$0xff]
        %v6316 = vld [vmem:[%s6276] ss:$9 sm:$0xff]
        %v6317 = vld [vmem:[%s6278] ss:$9 sm:$0xff]
        %v6318 = vld [vmem:[%s6280] ss:$9 sm:$0xff]
        %v6319 = vld [vmem:[%s6282] ss:$9 sm:$0xff]
        %6320 = vst [vmem:[#allocation1] sm:$0xff] %v6177
        %v6321 = vld [vmem:[%s6274] ss:$9 sm:$0xff]
        %v6322 = vld [vmem:[%s6276] ss:$9 sm:$0xff]
        %v6323 = vld [vmem:[%s6278] ss:$9 sm:$0xff]
        %v6324 = vld [vmem:[%s6280] ss:$9 sm:$0xff]
        %v6325 = vld [vmem:[%s6282] ss:$9 sm:$0xff]
        %6326 = vst [vmem:[#allocation1] sm:$0xff] 0.0
        %s6327 = scalar_lea.vmem [#allocation1], 3
        %v6328 = vld [vmem:[%s6327] ss:$9 sm:$0xff]
        %s6329 = scalar_lea.vmem [#allocation1], 4
        %v6330 = vld [vmem:[%s6329] ss:$9 sm:$0xff]
        %s6331 = scalar_lea.vmem [#allocation1], 5
        %v6332 = vld [vmem:[%s6331] ss:$9 sm:$0xff]
        %s6333 = scalar_lea.vmem [#allocation1], 6
        %v6334 = vld [vmem:[%s6333] ss:$9 sm:$0xff]
        %s6335 = scalar_lea.vmem [#allocation1], 7
        %v6336 = vld [vmem:[%s6335] ss:$9 sm:$0xff]
        %6337 = vst [vmem:[#allocation1] sm:$0xff] %v6129
        %v6338 = vld [vmem:[%s6327] ss:$9 sm:$0xff]
        %v6339 = vld [vmem:[%s6329] ss:$9 sm:$0xff]
        %v6340 = vld [vmem:[%s6331] ss:$9 sm:$0xff]
        %v6341 = vld [vmem:[%s6333] ss:$9 sm:$0xff]
        %v6342 = vld [vmem:[%s6335] ss:$9 sm:$0xff]
        %6343 = vst [vmem:[#allocation1] sm:$0xff] %v6137
        %v6344 = vld [vmem:[%s6327] ss:$9 sm:$0xff]
        %v6345 = vld [vmem:[%s6329] ss:$9 sm:$0xff]
        %v6346 = vld [vmem:[%s6331] ss:$9 sm:$0xff]
        %v6347 = vld [vmem:[%s6333] ss:$9 sm:$0xff]
        %v6348 = vld [vmem:[%s6335] ss:$9 sm:$0xff]
        %6349 = vst [vmem:[#allocation1] sm:$0xff] %v6145
        %v6350 = vld [vmem:[%s6327] ss:$9 sm:$0xff]
        %v6351 = vld [vmem:[%s6329] ss:$9 sm:$0xff]
        %v6352 = vld [vmem:[%s6331] ss:$9 sm:$0xff]
        %v6353 = vld [vmem:[%s6333] ss:$9 sm:$0xff]
        %v6354 = vld [vmem:[%s6335] ss:$9 sm:$0xff]
        %6355 = vst [vmem:[#allocation1] sm:$0xff] %v6153
        %v6356 = vld [vmem:[%s6327] ss:$9 sm:$0xff]
        %v6357 = vld [vmem:[%s6329] ss:$9 sm:$0xff]
        %v6358 = vld [vmem:[%s6331] ss:$9 sm:$0xff]
        %v6359 = vld [vmem:[%s6333] ss:$9 sm:$0xff]
        %v6360 = vld [vmem:[%s6335] ss:$9 sm:$0xff]
        %6361 = vst [vmem:[#allocation1] sm:$0xff] %v6161
        %v6362 = vld [vmem:[%s6327] ss:$9 sm:$0xff]
        %v6363 = vld [vmem:[%s6329] ss:$9 sm:$0xff]
        %v6364 = vld [vmem:[%s6331] ss:$9 sm:$0xff]
        %v6365 = vld [vmem:[%s6333] ss:$9 sm:$0xff]
        %v6366 = vld [vmem:[%s6335] ss:$9 sm:$0xff]
        %6367 = vst [vmem:[#allocation1] sm:$0xff] %v6169
        %v6368 = vld [vmem:[%s6327] ss:$9 sm:$0xff]
        %v6369 = vld [vmem:[%s6329] ss:$9 sm:$0xff]
        %v6370 = vld [vmem:[%s6331] ss:$9 sm:$0xff]
        %v6371 = vld [vmem:[%s6333] ss:$9 sm:$0xff]
        %v6372 = vld [vmem:[%s6335] ss:$9 sm:$0xff]
        %6373 = vst [vmem:[#allocation1] sm:$0xff] %v6177
        %v6374 = vld [vmem:[%s6327] ss:$9 sm:$0xff]
        %v6375 = vld [vmem:[%s6329] ss:$9 sm:$0xff]
        %v6376 = vld [vmem:[%s6331] ss:$9 sm:$0xff]
        %v6377 = vld [vmem:[%s6333] ss:$9 sm:$0xff]
        %v6378 = vld [vmem:[%s6335] ss:$9 sm:$0xff]
        %6379 = vst [vmem:[#allocation1] sm:$0xff] 0.0
        %s6380 = scalar_lea.vmem [#allocation1], 4
        %v6381 = vld [vmem:[%s6380] ss:$9 sm:$0xff]
        %s6382 = scalar_lea.vmem [#allocation1], 5
        %v6383 = vld [vmem:[%s6382] ss:$9 sm:$0xff]
        %s6384 = scalar_lea.vmem [#allocation1], 6
        %v6385 = vld [vmem:[%s6384] ss:$9 sm:$0xff]
        %s6386 = scalar_lea.vmem [#allocation1], 7
        %v6387 = vld [vmem:[%s6386] ss:$9 sm:$0xff]
        %6388 = vst [vmem:[#allocation1] sm:$0xff] 0.0
        %v6389 = vld [vmem:[#allocation1] ss:$9 sm:$0xff]
        %6390 = vst [vmem:[#allocation1] sm:$0xff] %v6129
        %v6391 = vld [vmem:[%s6380] ss:$9 sm:$0xff]
        %v6392 = vld [vmem:[%s6382] ss:$9 sm:$0xff]
        %v6393 = vld [vmem:[%s6384] ss:$9 sm:$0xff]
        %v6394 = vld [vmem:[%s6386] ss:$9 sm:$0xff]
        %6395 = vst [vmem:[#allocation1] sm:$0xff] %v6130
        %v6396 = vld [vmem:[#allocation1] ss:$9 sm:$0xff]
        %6397 = vst [vmem:[#allocation1] sm:$0xff] %v6137
        %v6398 = vld [vmem:[%s6380] ss:$9 sm:$0xff]
        %v6399 = vld [vmem:[%s6382] ss:$9 sm:$0xff]
        %v6400 = vld [vmem:[%s6384] ss:$9 sm:$0xff]
        %v6401 = vld [vmem:[%s6386] ss:$9 sm:$0xff]
        %6402 = vst [vmem:[#allocation1] sm:$0xff] %v6138
        %v6403 = vld [vmem:[#allocation1] ss:$9 sm:$0xff]
        %6404 = vst [vmem:[#allocation1] sm:$0xff] %v6145
        %v6405 = vld [vmem:[%s6380] ss:$9 sm:$0xff]
        %v6406 = vld [vmem:[%s6382] ss:$9 sm:$0xff]
        %v6407 = vld [vmem:[%s6384] ss:$9 sm:$0xff]
        %v6408 = vld [vmem:[%s6386] ss:$9 sm:$0xff]
        %6409 = vst [vmem:[#allocation1] sm:$0xff] %v6146
        %v6410 = vld [vmem:[#allocation1] ss:$9 sm:$0xff]
        %6411 = vst [vmem:[#allocation1] sm:$0xff] %v6153
        %v6412 = vld [vmem:[%s6380] ss:$9 sm:$0xff]
        %v6413 = vld [vmem:[%s6382] ss:$9 sm:$0xff]
        %v6414 = vld [vmem:[%s6384] ss:$9 sm:$0xff]
        %v6415 = vld [vmem:[%s6386] ss:$9 sm:$0xff]
        %6416 = vst [vmem:[#allocation1] sm:$0xff] %v6154
        %v6417 = vld [vmem:[#allocation1] ss:$9 sm:$0xff]
        %6418 = vst [vmem:[#allocation1] sm:$0xff] %v6161
        %v6419 = vld [vmem:[%s6380] ss:$9 sm:$0xff]
        %v6420 = vld [vmem:[%s6382] ss:$9 sm:$0xff]
        %v6421 = vld [vmem:[%s6384] ss:$9 sm:$0xff]
        %v6422 = vld [vmem:[%s6386] ss:$9 sm:$0xff]
        %6423 = vst [vmem:[#allocation1] sm:$0xff] %v6162
        %v6424 = vld [vmem:[#allocation1] ss:$9 sm:$0xff]
        %6425 = vst [vmem:[#allocation1] sm:$0xff] %v6169
        %v6426 = vld [vmem:[%s6380] ss:$9 sm:$0xff]
        %v6427 = vld [vmem:[%s6382] ss:$9 sm:$0xff]
        %v6428 = vld [vmem:[%s6384] ss:$9 sm:$0xff]
        %v6429 = vld [vmem:[%s6386] ss:$9 sm:$0xff]
        %6430 = vst [vmem:[#allocation1] sm:$0xff] %v6170
        %v6431 = vld [vmem:[#allocation1] ss:$9 sm:$0xff]
        %6432 = vst [vmem:[#allocation1] sm:$0xff] %v6177
        %v6433 = vld [vmem:[%s6380] ss:$9 sm:$0xff]
        %v6434 = vld [vmem:[%s6382] ss:$9 sm:$0xff]
        %v6435 = vld [vmem:[%s6384] ss:$9 sm:$0xff]
        %v6436 = vld [vmem:[%s6386] ss:$9 sm:$0xff]
        %6437 = vst [vmem:[#allocation1] sm:$0xff] %v6178
        %v6438 = vld [vmem:[#allocation1] ss:$9 sm:$0xff]
        %6439 = vst [vmem:[#allocation1] sm:$0xff] 0.0
        %s6440 = scalar_lea.vmem [#allocation1], 5
        %v6441 = vld [vmem:[%s6440] ss:$9 sm:$0xff]
        %s6442 = scalar_lea.vmem [#allocation1], 6
        %v6443 = vld [vmem:[%s6442] ss:$9 sm:$0xff]
        %s6444 = scalar_lea.vmem [#allocation1], 7
        %v6445 = vld [vmem:[%s6444] ss:$9 sm:$0xff]
        %6446 = vst [vmem:[#allocation1] sm:$0xff] 0.0
        %v6447 = vld [vmem:[#allocation1] ss:$9 sm:$0xff]
        %s6448 = scalar_lea.vmem [#allocation1], 1
        %v6449 = vld [vmem:[%s6448] ss:$9 sm:$0xff]
        %6450 = vst [vmem:[#allocation1] sm:$0xff] %v6129
        %v6451 = vld [vmem:[%s6440] ss:$9 sm:$0xff]
        %v6452 = vld [vmem:[%s6442] ss:$9 sm:$0xff]
        %v6453 = vld [vmem:[%s6444] ss:$9 sm:$0xff]
        %6454 = vst [vmem:[#allocation1] sm:$0xff] %v6130
        %v6455 = vld [vmem:[#allocation1] ss:$9 sm:$0xff]
        %v6456 = vld [vmem:[%s6448] ss:$9 sm:$0xff]
        %6457 = vst [vmem:[#allocation1] sm:$0xff] %v6137
        %v6458 = vld [vmem:[%s6440] ss:$9 sm:$0xff]
        %v6459 = vld [vmem:[%s6442] ss:$9 sm:$0xff]
        %v6460 = vld [vmem:[%s6444] ss:$9 sm:$0xff]
        %6461 = vst [vmem:[#allocation1] sm:$0xff] %v6138
        %v6462 = vld [vmem:[#allocation1] ss:$9 sm:$0xff]
        %v6463 = vld [vmem:[%s6448] ss:$9 sm:$0xff]
        %6464 = vst [vmem:[#allocation1] sm:$0xff] %v6145
        %v6465 = vld [vmem:[%s6440] ss:$9 sm:$0xff]
        %v6466 = vld [vmem:[%s6442] ss:$9 sm:$0xff]
        %v6467 = vld [vmem:[%s6444] ss:$9 sm:$0xff]
        %6468 = vst [vmem:[#allocation1] sm:$0xff] %v6146
        %v6469 = vld [vmem:[#allocation1] ss:$9 sm:$0xff]
        %v6470 = vld [vmem:[%s6448] ss:$9 sm:$0xff]
        %6471 = vst [vmem:[#allocation1] sm:$0xff] %v6153
        %v6472 = vld [vmem:[%s6440] ss:$9 sm:$0xff]
        %v6473 = vld [vmem:[%s6442] ss:$9 sm:$0xff]
        %v6474 = vld [vmem:[%s6444] ss:$9 sm:$0xff]
        %6475 = vst [vmem:[#allocation1] sm:$0xff] %v6154
        %v6476 = vld [vmem:[#allocation1] ss:$9 sm:$0xff]
        %v6477 = vld [vmem:[%s6448] ss:$9 sm:$0xff]
        %6478 = vst [vmem:[#allocation1] sm:$0xff] %v6161
        %v6479 = vld [vmem:[%s6440] ss:$9 sm:$0xff]
        %v6480 = vld [vmem:[%s6442] ss:$9 sm:$0xff]
        %v6481 = vld [vmem:[%s6444] ss:$9 sm:$0xff]
        %6482 = vst [vmem:[#allocation1] sm:$0xff] %v6162
        %v6483 = vld [vmem:[#allocation1] ss:$9 sm:$0xff]
        %v6484 = vld [vmem:[%s6448] ss:$9 sm:$0xff]
        %6485 = vst [vmem:[#allocation1] sm:$0xff] %v6169
        %v6486 = vld [vmem:[%s6440] ss:$9 sm:$0xff]
        %v6487 = vld [vmem:[%s6442] ss:$9 sm:$0xff]
        %v6488 = vld [vmem:[%s6444] ss:$9 sm:$0xff]
        %6489 = vst [vmem:[#allocation1] sm:$0xff] %v6170
        %v6490 = vld [vmem:[#allocation1] ss:$9 sm:$0xff]
        %v6491 = vld [vmem:[%s6448] ss:$9 sm:$0xff]
        %6492 = vst [vmem:[#allocation1] sm:$0xff] %v6177
        %v6493 = vld [vmem:[%s6440] ss:$9 sm:$0xff]
        %v6494 = vld [vmem:[%s6442] ss:$9 sm:$0xff]
        %v6495 = vld [vmem:[%s6444] ss:$9 sm:$0xff]
        %6496 = vst [vmem:[#allocation1] sm:$0xff] %v6178
        %v6497 = vld [vmem:[#allocation1] ss:$9 sm:$0xff]
        %v6498 = vld [vmem:[%s6448] ss:$9 sm:$0xff]
        %v6499 = vrot.slane %v6185, 1
        %v6500 = vrot.slane %v6185, 2
        %v6501 = vrot.slane %v6185, 3
        %v6502 = vrot.slane %v6185, 4
        %6503 = vst [vmem:[#allocation1] sm:$0xff] %v6129
        %s6504 = scalar_lea.vmem [#allocation1], 1
        %v6505 = vld [vmem:[%s6504] ss:$9 sm:$0xff]
        %s6506 = scalar_lea.vmem [#allocation1], 2
        %v6507 = vld [vmem:[%s6506] ss:$9 sm:$0xff]
        %s6508 = scalar_lea.vmem [#allocation1], 3
        %v6509 = vld [vmem:[%s6508] ss:$9 sm:$0xff]
        %s6510 = scalar_lea.vmem [#allocation1], 4
        %v6511 = vld [vmem:[%s6510] ss:$9 sm:$0xff]
        %s6512 = scalar_lea.vmem [#allocation1], 5
        %v6513 = vld [vmem:[%s6512] ss:$9 sm:$0xff]
        %6514 = vst [vmem:[#allocation1] sm:$0xff] %v6137
        %v6515 = vld [vmem:[%s6504] ss:$9 sm:$0xff]
        %v6516 = vld [vmem:[%s6506] ss:$9 sm:$0xff]
        %v6517 = vld [vmem:[%s6508] ss:$9 sm:$0xff]
        %v6518 = vld [vmem:[%s6510] ss:$9 sm:$0xff]
        %v6519 = vld [vmem:[%s6512] ss:$9 sm:$0xff]
        %6520 = vst [vmem:[#allocation1] sm:$0xff] %v6145
        %v6521 = vld [vmem:[%s6504] ss:$9 sm:$0xff]
        %v6522 = vld [vmem:[%s6506] ss:$9 sm:$0xff]
        %v6523 = vld [vmem:[%s6508] ss:$9 sm:$0xff]
        %v6524 = vld [vmem:[%s6510] ss:$9 sm:$0xff]
        %v6525 = vld [vmem:[%s6512] ss:$9 sm:$0xff]
        %6526 = vst [vmem:[#allocation1] sm:$0xff] %v6153
        %v6527 = vld [vmem:[%s6504] ss:$9 sm:$0xff]
        %v6528 = vld [vmem:[%s6506] ss:$9 sm:$0xff]
        %v6529 = vld [vmem:[%s6508] ss:$9 sm:$0xff]
        %v6530 = vld [vmem:[%s6510] ss:$9 sm:$0xff]
        %v6531 = vld [vmem:[%s6512] ss:$9 sm:$0xff]
        %6532 = vst [vmem:[#allocation1] sm:$0xff] %v6161
        %v6533 = vld [vmem:[%s6504] ss:$9 sm:$0xff]
        %v6534 = vld [vmem:[%s6506] ss:$9 sm:$0xff]
        %v6535 = vld [vmem:[%s6508] ss:$9 sm:$0xff]
        %v6536 = vld [vmem:[%s6510] ss:$9 sm:$0xff]
        %v6537 = vld [vmem:[%s6512] ss:$9 sm:$0xff]
        %6538 = vst [vmem:[#allocation1] sm:$0xff] %v6169
        %v6539 = vld [vmem:[%s6504] ss:$9 sm:$0xff]
        %v6540 = vld [vmem:[%s6506] ss:$9 sm:$0xff]
        %v6541 = vld [vmem:[%s6508] ss:$9 sm:$0xff]
        %v6542 = vld [vmem:[%s6510] ss:$9 sm:$0xff]
        %v6543 = vld [vmem:[%s6512] ss:$9 sm:$0xff]
        %6544 = vst [vmem:[#allocation1] sm:$0xff] %v6177
        %v6545 = vld [vmem:[%s6504] ss:$9 sm:$0xff]
        %v6546 = vld [vmem:[%s6506] ss:$9 sm:$0xff]
        %v6547 = vld [vmem:[%s6508] ss:$9 sm:$0xff]
        %v6548 = vld [vmem:[%s6510] ss:$9 sm:$0xff]
        %v6549 = vld [vmem:[%s6512] ss:$9 sm:$0xff]
        %6550 = vst [vmem:[#allocation1] sm:$0xff] %v6185
        %v6551 = vld [vmem:[%s6504] ss:$9 sm:$0xff]
        %v6552 = vld [vmem:[%s6506] ss:$9 sm:$0xff]
        %v6553 = vld [vmem:[%s6508] ss:$9 sm:$0xff]
        %v6554 = vld [vmem:[%s6510] ss:$9 sm:$0xff]
        %v6555 = vld [vmem:[%s6512] ss:$9 sm:$0xff]
        %6556 = vst [vmem:[#allocation1] sm:$0xff] %v6129
        %s6557 = scalar_lea.vmem [#allocation1], 2
        %v6558 = vld [vmem:[%s6557] ss:$9 sm:$0xff]
        %s6559 = scalar_lea.vmem [#allocation1], 3
        %v6560 = vld [vmem:[%s6559] ss:$9 sm:$0xff]
        %s6561 = scalar_lea.vmem [#allocation1], 4
        %v6562 = vld [vmem:[%s6561] ss:$9 sm:$0xff]
        %s6563 = scalar_lea.vmem [#allocation1], 5
        %v6564 = vld [vmem:[%s6563] ss:$9 sm:$0xff]
        %s6565 = scalar_lea.vmem [#allocation1], 6
        %v6566 = vld [vmem:[%s6565] ss:$9 sm:$0xff]
        %6567 = vst [vmem:[#allocation1] sm:$0xff] %v6137
        %v6568 = vld [vmem:[%s6557] ss:$9 sm:$0xff]
        %v6569 = vld [vmem:[%s6559] ss:$9 sm:$0xff]
        %v6570 = vld [vmem:[%s6561] ss:$9 sm:$0xff]
        %v6571 = vld [vmem:[%s6563] ss:$9 sm:$0xff]
        %v6572 = vld [vmem:[%s6565] ss:$9 sm:$0xff]
        %6573 = vst [vmem:[#allocation1] sm:$0xff] %v6145
        %v6574 = vld [vmem:[%s6557] ss:$9 sm:$0xff]
        %v6575 = vld [vmem:[%s6559] ss:$9 sm:$0xff]
        %v6576 = vld [vmem:[%s6561] ss:$9 sm:$0xff]
        %v6577 = vld [vmem:[%s6563] ss:$9 sm:$0xff]
        %v6578 = vld [vmem:[%s6565] ss:$9 sm:$0xff]
        %6579 = vst [vmem:[#allocation1] sm:$0xff] %v6153
        %v6580 = vld [vmem:[%s6557] ss:$9 sm:$0xff]
        %v6581 = vld [vmem:[%s6559] ss:$9 sm:$0xff]
        %v6582 = vld [vmem:[%s6561] ss:$9 sm:$0xff]
        %v6583 = vld [vmem:[%s6563] ss:$9 sm:$0xff]
        %v6584 = vld [vmem:[%s6565] ss:$9 sm:$0xff]
        %6585 = vst [vmem:[#allocation1] sm:$0xff] %v6161
        %v6586 = vld [vmem:[%s6557] ss:$9 sm:$0xff]
        %v6587 = vld [vmem:[%s6559] ss:$9 sm:$0xff]
        %v6588 = vld [vmem:[%s6561] ss:$9 sm:$0xff]
        %v6589 = vld [vmem:[%s6563] ss:$9 sm:$0xff]
        %v6590 = vld [vmem:[%s6565] ss:$9 sm:$0xff]
        %6591 = vst [vmem:[#allocation1] sm:$0xff] %v6169
        %v6592 = vld [vmem:[%s6557] ss:$9 sm:$0xff]
        %v6593 = vld [vmem:[%s6559] ss:$9 sm:$0xff]
        %v6594 = vld [vmem:[%s6561] ss:$9 sm:$0xff]
        %v6595 = vld [vmem:[%s6563] ss:$9 sm:$0xff]
        %v6596 = vld [vmem:[%s6565] ss:$9 sm:$0xff]
        %6597 = vst [vmem:[#allocation1] sm:$0xff] %v6177
        %v6598 = vld [vmem:[%s6557] ss:$9 sm:$0xff]
        %v6599 = vld [vmem:[%s6559] ss:$9 sm:$0xff]
        %v6600 = vld [vmem:[%s6561] ss:$9 sm:$0xff]
        %v6601 = vld [vmem:[%s6563] ss:$9 sm:$0xff]
        %v6602 = vld [vmem:[%s6565] ss:$9 sm:$0xff]
        %6603 = vst [vmem:[#allocation1] sm:$0xff] %v6185
        %v6604 = vld [vmem:[%s6557] ss:$9 sm:$0xff]
        %v6605 = vld [vmem:[%s6559] ss:$9 sm:$0xff]
        %v6606 = vld [vmem:[%s6561] ss:$9 sm:$0xff]
        %v6607 = vld [vmem:[%s6563] ss:$9 sm:$0xff]
        %v6608 = vld [vmem:[%s6565] ss:$9 sm:$0xff]
        %6609 = vst [vmem:[#allocation1] sm:$0xff] %v6129
        %s6610 = scalar_lea.vmem [#allocation1], 3
        %v6611 = vld [vmem:[%s6610] ss:$9 sm:$0xff]
        %s6612 = scalar_lea.vmem [#allocation1], 4
        %v6613 = vld [vmem:[%s6612] ss:$9 sm:$0xff]
        %s6614 = scalar_lea.vmem [#allocation1], 5
        %v6615 = vld [vmem:[%s6614] ss:$9 sm:$0xff]
        %s6616 = scalar_lea.vmem [#allocation1], 6
        %v6617 = vld [vmem:[%s6616] ss:$9 sm:$0xff]
        %s6618 = scalar_lea.vmem [#allocation1], 7
        %v6619 = vld [vmem:[%s6618] ss:$9 sm:$0xff]
        %6620 = vst [vmem:[#allocation1] sm:$0xff] %v6137
        %v6621 = vld [vmem:[%s6610] ss:$9 sm:$0xff]
        %v6622 = vld [vmem:[%s6612] ss:$9 sm:$0xff]
        %v6623 = vld [vmem:[%s6614] ss:$9 sm:$0xff]
        %v6624 = vld [vmem:[%s6616] ss:$9 sm:$0xff]
        %v6625 = vld [vmem:[%s6618] ss:$9 sm:$0xff]
        %6626 = vst [vmem:[#allocation1] sm:$0xff] %v6145
        %v6627 = vld [vmem:[%s6610] ss:$9 sm:$0xff]
        %v6628 = vld [vmem:[%s6612] ss:$9 sm:$0xff]
        %v6629 = vld [vmem:[%s6614] ss:$9 sm:$0xff]
        %v6630 = vld [vmem:[%s6616] ss:$9 sm:$0xff]
        %v6631 = vld [vmem:[%s6618] ss:$9 sm:$0xff]
        %6632 = vst [vmem:[#allocation1] sm:$0xff] %v6153
        %v6633 = vld [vmem:[%s6610] ss:$9 sm:$0xff]
        %v6634 = vld [vmem:[%s6612] ss:$9 sm:$0xff]
        %v6635 = vld [vmem:[%s6614] ss:$9 sm:$0xff]
        %v6636 = vld [vmem:[%s6616] ss:$9 sm:$0xff]
        %v6637 = vld [vmem:[%s6618] ss:$9 sm:$0xff]
        %6638 = vst [vmem:[#allocation1] sm:$0xff] %v6161
        %v6639 = vld [vmem:[%s6610] ss:$9 sm:$0xff]
        %v6640 = vld [vmem:[%s6612] ss:$9 sm:$0xff]
        %v6641 = vld [vmem:[%s6614] ss:$9 sm:$0xff]
        %v6642 = vld [vmem:[%s6616] ss:$9 sm:$0xff]
        %v6643 = vld [vmem:[%s6618] ss:$9 sm:$0xff]
        %6644 = vst [vmem:[#allocation1] sm:$0xff] %v6169
        %v6645 = vld [vmem:[%s6610] ss:$9 sm:$0xff]
        %v6646 = vld [vmem:[%s6612] ss:$9 sm:$0xff]
        %v6647 = vld [vmem:[%s6614] ss:$9 sm:$0xff]
        %v6648 = vld [vmem:[%s6616] ss:$9 sm:$0xff]
        %v6649 = vld [vmem:[%s6618] ss:$9 sm:$0xff]
        %6650 = vst [vmem:[#allocation1] sm:$0xff] %v6177
        %v6651 = vld [vmem:[%s6610] ss:$9 sm:$0xff]
        %v6652 = vld [vmem:[%s6612] ss:$9 sm:$0xff]
        %v6653 = vld [vmem:[%s6614] ss:$9 sm:$0xff]
        %v6654 = vld [vmem:[%s6616] ss:$9 sm:$0xff]
        %v6655 = vld [vmem:[%s6618] ss:$9 sm:$0xff]
        %6656 = vst [vmem:[#allocation1] sm:$0xff] %v6185
        %v6657 = vld [vmem:[%s6610] ss:$9 sm:$0xff]
        %v6658 = vld [vmem:[%s6612] ss:$9 sm:$0xff]
        %v6659 = vld [vmem:[%s6614] ss:$9 sm:$0xff]
        %v6660 = vld [vmem:[%s6616] ss:$9 sm:$0xff]
        %v6661 = vld [vmem:[%s6618] ss:$9 sm:$0xff]
        %6662 = vst [vmem:[#allocation1] sm:$0xff] %v6129
        %s6663 = scalar_lea.vmem [#allocation1], 4
        %v6664 = vld [vmem:[%s6663] ss:$9 sm:$0xff]
        %s6665 = scalar_lea.vmem [#allocation1], 5
        %v6666 = vld [vmem:[%s6665] ss:$9 sm:$0xff]
        %s6667 = scalar_lea.vmem [#allocation1], 6
        %v6668 = vld [vmem:[%s6667] ss:$9 sm:$0xff]
        %s6669 = scalar_lea.vmem [#allocation1], 7
        %v6670 = vld [vmem:[%s6669] ss:$9 sm:$0xff]
        %6671 = vst [vmem:[#allocation1] sm:$0xff] %v6130
        %v6672 = vld [vmem:[#allocation1] ss:$9 sm:$0xff]
        %6673 = vst [vmem:[#allocation1] sm:$0xff] %v6137
        %v6674 = vld [vmem:[%s6663] ss:$9 sm:$0xff]
        %v6675 = vld [vmem:[%s6665] ss:$9 sm:$0xff]
        %v6676 = vld [vmem:[%s6667] ss:$9 sm:$0xff]
        %v6677 = vld [vmem:[%s6669] ss:$9 sm:$0xff]
        %6678 = vst [vmem:[#allocation1] sm:$0xff] %v6138
        %v6679 = vld [vmem:[#allocation1] ss:$9 sm:$0xff]
        %6680 = vst [vmem:[#allocation1] sm:$0xff] %v6145
        %v6681 = vld [vmem:[%s6663] ss:$9 sm:$0xff]
        %v6682 = vld [vmem:[%s6665] ss:$9 sm:$0xff]
        %v6683 = vld [vmem:[%s6667] ss:$9 sm:$0xff]
        %v6684 = vld [vmem:[%s6669] ss:$9 sm:$0xff]
        %6685 = vst [vmem:[#allocation1] sm:$0xff] %v6146
        %v6686 = vld [vmem:[#allocation1] ss:$9 sm:$0xff]
        %6687 = vst [vmem:[#allocation1] sm:$0xff] %v6153
        %v6688 = vld [vmem:[%s6663] ss:$9 sm:$0xff]
        %v6689 = vld [vmem:[%s6665] ss:$9 sm:$0xff]
        %v6690 = vld [vmem:[%s6667] ss:$9 sm:$0xff]
        %v6691 = vld [vmem:[%s6669] ss:$9 sm:$0xff]
        %6692 = vst [vmem:[#allocation1] sm:$0xff] %v6154
        %v6693 = vld [vmem:[#allocation1] ss:$9 sm:$0xff]
        %6694 = vst [vmem:[#allocation1] sm:$0xff] %v6161
        %v6695 = vld [vmem:[%s6663] ss:$9 sm:$0xff]
        %v6696 = vld [vmem:[%s6665] ss:$9 sm:$0xff]
        %v6697 = vld [vmem:[%s6667] ss:$9 sm:$0xff]
        %v6698 = vld [vmem:[%s6669] ss:$9 sm:$0xff]
        %6699 = vst [vmem:[#allocation1] sm:$0xff] %v6162
        %v6700 = vld [vmem:[#allocation1] ss:$9 sm:$0xff]
        %6701 = vst [vmem:[#allocation1] sm:$0xff] %v6169
        %v6702 = vld [vmem:[%s6663] ss:$9 sm:$0xff]
        %v6703 = vld [vmem:[%s6665] ss:$9 sm:$0xff]
        %v6704 = vld [vmem:[%s6667] ss:$9 sm:$0xff]
        %v6705 = vld [vmem:[%s6669] ss:$9 sm:$0xff]
        %6706 = vst [vmem:[#allocation1] sm:$0xff] %v6170
        %v6707 = vld [vmem:[#allocation1] ss:$9 sm:$0xff]
        %6708 = vst [vmem:[#allocation1] sm:$0xff] %v6177
        %v6709 = vld [vmem:[%s6663] ss:$9 sm:$0xff]
        %v6710 = vld [vmem:[%s6665] ss:$9 sm:$0xff]
        %v6711 = vld [vmem:[%s6667] ss:$9 sm:$0xff]
        %v6712 = vld [vmem:[%s6669] ss:$9 sm:$0xff]
        %6713 = vst [vmem:[#allocation1] sm:$0xff] %v6178
        %v6714 = vld [vmem:[#allocation1] ss:$9 sm:$0xff]
        %6715 = vst [vmem:[#allocation1] sm:$0xff] %v6185
        %v6716 = vld [vmem:[%s6663] ss:$9 sm:$0xff]
        %v6717 = vld [vmem:[%s6665] ss:$9 sm:$0xff]
        %v6718 = vld [vmem:[%s6667] ss:$9 sm:$0xff]
        %v6719 = vld [vmem:[%s6669] ss:$9 sm:$0xff]
        %6720 = vst [vmem:[#allocation1] sm:$0xff] %v6186
        %v6721 = vld [vmem:[#allocation1] ss:$9 sm:$0xff]
        %6722 = vst [vmem:[#allocation1] sm:$0xff] %v6129
        %s6723 = scalar_lea.vmem [#allocation1], 5
        %v6724 = vld [vmem:[%s6723] ss:$9 sm:$0xff]
        %s6725 = scalar_lea.vmem [#allocation1], 6
        %v6726 = vld [vmem:[%s6725] ss:$9 sm:$0xff]
        %s6727 = scalar_lea.vmem [#allocation1], 7
        %v6728 = vld [vmem:[%s6727] ss:$9 sm:$0xff]
        %6729 = vst [vmem:[#allocation1] sm:$0xff] %v6130
        %v6730 = vld [vmem:[#allocation1] ss:$9 sm:$0xff]
        %s6731 = scalar_lea.vmem [#allocation1], 1
        %v6732 = vld [vmem:[%s6731] ss:$9 sm:$0xff]
        %6733 = vst [vmem:[#allocation1] sm:$0xff] %v6137
        %v6734 = vld [vmem:[%s6723] ss:$9 sm:$0xff]
        %v6735 = vld [vmem:[%s6725] ss:$9 sm:$0xff]
        %v6736 = vld [vmem:[%s6727] ss:$9 sm:$0xff]
        %6737 = vst [vmem:[#allocation1] sm:$0xff] %v6138
        %v6738 = vld [vmem:[#allocation1] ss:$9 sm:$0xff]
        %v6739 = vld [vmem:[%s6731] ss:$9 sm:$0xff]
        %6740 = vst [vmem:[#allocation1] sm:$0xff] %v6145
        %v6741 = vld [vmem:[%s6723] ss:$9 sm:$0xff]
        %v6742 = vld [vmem:[%s6725] ss:$9 sm:$0xff]
        %v6743 = vld [vmem:[%s6727] ss:$9 sm:$0xff]
        %6744 = vst [vmem:[#allocation1] sm:$0xff] %v6146
        %v6745 = vld [vmem:[#allocation1] ss:$9 sm:$0xff]
        %v6746 = vld [vmem:[%s6731] ss:$9 sm:$0xff]
        %6747 = vst [vmem:[#allocation1] sm:$0xff] %v6153
        %v6748 = vld [vmem:[%s6723] ss:$9 sm:$0xff]
        %v6749 = vld [vmem:[%s6725] ss:$9 sm:$0xff]
        %v6750 = vld [vmem:[%s6727] ss:$9 sm:$0xff]
        %6751 = vst [vmem:[#allocation1] sm:$0xff] %v6154
        %v6752 = vld [vmem:[#allocation1] ss:$9 sm:$0xff]
        %v6753 = vld [vmem:[%s6731] ss:$9 sm:$0xff]
        %6754 = vst [vmem:[#allocation1] sm:$0xff] %v6161
        %v6755 = vld [vmem:[%s6723] ss:$9 sm:$0xff]
        %v6756 = vld [vmem:[%s6725] ss:$9 sm:$0xff]
        %v6757 = vld [vmem:[%s6727] ss:$9 sm:$0xff]
        %6758 = vst [vmem:[#allocation1] sm:$0xff] %v6162
        %v6759 = vld [vmem:[#allocation1] ss:$9 sm:$0xff]
        %v6760 = vld [vmem:[%s6731] ss:$9 sm:$0xff]
        %6761 = vst [vmem:[#allocation1] sm:$0xff] %v6169
        %v6762 = vld [vmem:[%s6723] ss:$9 sm:$0xff]
        %v6763 = vld [vmem:[%s6725] ss:$9 sm:$0xff]
        %v6764 = vld [vmem:[%s6727] ss:$9 sm:$0xff]
        %6765 = vst [vmem:[#allocation1] sm:$0xff] %v6170
        %v6766 = vld [vmem:[#allocation1] ss:$9 sm:$0xff]
        %v6767 = vld [vmem:[%s6731] ss:$9 sm:$0xff]
        %6768 = vst [vmem:[#allocation1] sm:$0xff] %v6177
        %v6769 = vld [vmem:[%s6723] ss:$9 sm:$0xff]
        %v6770 = vld [vmem:[%s6725] ss:$9 sm:$0xff]
        %v6771 = vld [vmem:[%s6727] ss:$9 sm:$0xff]
        %6772 = vst [vmem:[#allocation1] sm:$0xff] %v6178
        %v6773 = vld [vmem:[#allocation1] ss:$9 sm:$0xff]
        %v6774 = vld [vmem:[%s6731] ss:$9 sm:$0xff]
        %6775 = vst [vmem:[#allocation1] sm:$0xff] %v6185
        %v6776 = vld [vmem:[%s6723] ss:$9 sm:$0xff]
        %v6777 = vld [vmem:[%s6725] ss:$9 sm:$0xff]
        %v6778 = vld [vmem:[%s6727] ss:$9 sm:$0xff]
        %6779 = vst [vmem:[#allocation1] sm:$0xff] %v6186
        %v6780 = vld [vmem:[#allocation1] ss:$9 sm:$0xff]
        %v6781 = vld [vmem:[%s6731] ss:$9 sm:$0xff]
        %6782 = vst [vmem:[#allocation1] sm:$0xff] %v6137
        %s6783 = scalar_lea.vmem [#allocation1], 1
        %v6784 = vld [vmem:[%s6783] ss:$9 sm:$0xff]
        %s6785 = scalar_lea.vmem [#allocation1], 2
        %v6786 = vld [vmem:[%s6785] ss:$9 sm:$0xff]
        %s6787 = scalar_lea.vmem [#allocation1], 3
        %v6788 = vld [vmem:[%s6787] ss:$9 sm:$0xff]
        %s6789 = scalar_lea.vmem [#allocation1], 4
        %v6790 = vld [vmem:[%s6789] ss:$9 sm:$0xff]
        %s6791 = scalar_lea.vmem [#allocation1], 5
        %v6792 = vld [vmem:[%s6791] ss:$9 sm:$0xff]
        %6793 = vst [vmem:[#allocation1] sm:$0xff] %v6145
        %v6794 = vld [vmem:[%s6783] ss:$9 sm:$0xff]
        %v6795 = vld [vmem:[%s6785] ss:$9 sm:$0xff]
        %v6796 = vld [vmem:[%s6787] ss:$9 sm:$0xff]
        %v6797 = vld [vmem:[%s6789] ss:$9 sm:$0xff]
        %v6798 = vld [vmem:[%s6791] ss:$9 sm:$0xff]
        %6799 = vst [vmem:[#allocation1] sm:$0xff] %v6153
        %v6800 = vld [vmem:[%s6783] ss:$9 sm:$0xff]
        %v6801 = vld [vmem:[%s6785] ss:$9 sm:$0xff]
        %v6802 = vld [vmem:[%s6787] ss:$9 sm:$0xff]
        %v6803 = vld [vmem:[%s6789] ss:$9 sm:$0xff]
        %v6804 = vld [vmem:[%s6791] ss:$9 sm:$0xff]
        %6805 = vst [vmem:[#allocation1] sm:$0xff] %v6161
        %v6806 = vld [vmem:[%s6783] ss:$9 sm:$0xff]
        %v6807 = vld [vmem:[%s6785] ss:$9 sm:$0xff]
        %v6808 = vld [vmem:[%s6787] ss:$9 sm:$0xff]
        %v6809 = vld [vmem:[%s6789] ss:$9 sm:$0xff]
        %v6810 = vld [vmem:[%s6791] ss:$9 sm:$0xff]
        %6811 = vst [vmem:[#allocation1] sm:$0xff] %v6169
        %v6812 = vld [vmem:[%s6783] ss:$9 sm:$0xff]
        %v6813 = vld [vmem:[%s6785] ss:$9 sm:$0xff]
        %v6814 = vld [vmem:[%s6787] ss:$9 sm:$0xff]
        %v6815 = vld [vmem:[%s6789] ss:$9 sm:$0xff]
        %v6816 = vld [vmem:[%s6791] ss:$9 sm:$0xff]
        %6817 = vst [vmem:[#allocation1] sm:$0xff] %v6177
        %v6818 = vld [vmem:[%s6783] ss:$9 sm:$0xff]
        %v6819 = vld [vmem:[%s6785] ss:$9 sm:$0xff]
        %v6820 = vld [vmem:[%s6787] ss:$9 sm:$0xff]
        %v6821 = vld [vmem:[%s6789] ss:$9 sm:$0xff]
        %v6822 = vld [vmem:[%s6791] ss:$9 sm:$0xff]
        %6823 = vst [vmem:[#allocation1] sm:$0xff] %v6185
        %v6824 = vld [vmem:[%s6783] ss:$9 sm:$0xff]
        %v6825 = vld [vmem:[%s6785] ss:$9 sm:$0xff]
        %v6826 = vld [vmem:[%s6787] ss:$9 sm:$0xff]
        %v6827 = vld [vmem:[%s6789] ss:$9 sm:$0xff]
        %v6828 = vld [vmem:[%s6791] ss:$9 sm:$0xff]
        %6829 = vst [vmem:[#allocation1] sm:$0xff] 0.0
        %v6830 = vld [vmem:[%s6783] ss:$9 sm:$0xff]
        %v6831 = vld [vmem:[%s6785] ss:$9 sm:$0xff]
        %v6832 = vld [vmem:[%s6787] ss:$9 sm:$0xff]
        %v6833 = vld [vmem:[%s6789] ss:$9 sm:$0xff]
        %v6834 = vld [vmem:[%s6791] ss:$9 sm:$0xff]
        %6835 = vst [vmem:[#allocation1] sm:$0xff] %v6137
        %s6836 = scalar_lea.vmem [#allocation1], 2
        %v6837 = vld [vmem:[%s6836] ss:$9 sm:$0xff]
        %s6838 = scalar_lea.vmem [#allocation1], 3
        %v6839 = vld [vmem:[%s6838] ss:$9 sm:$0xff]
        %s6840 = scalar_lea.vmem [#allocation1], 4
        %v6841 = vld [vmem:[%s6840] ss:$9 sm:$0xff]
        %s6842 = scalar_lea.vmem [#allocation1], 5
        %v6843 = vld [vmem:[%s6842] ss:$9 sm:$0xff]
        %s6844 = scalar_lea.vmem [#allocation1], 6
        %v6845 = vld [vmem:[%s6844] ss:$9 sm:$0xff]
        %6846 = vst [vmem:[#allocation1] sm:$0xff] %v6145
        %v6847 = vld [vmem:[%s6836] ss:$9 sm:$0xff]
        %v6848 = vld [vmem:[%s6838] ss:$9 sm:$0xff]
        %v6849 = vld [vmem:[%s6840] ss:$9 sm:$0xff]
        %v6850 = vld [vmem:[%s6842] ss:$9 sm:$0xff]
        %v6851 = vld [vmem:[%s6844] ss:$9 sm:$0xff]
        %6852 = vst [vmem:[#allocation1] sm:$0xff] %v6153
        %v6853 = vld [vmem:[%s6836] ss:$9 sm:$0xff]
        %v6854 = vld [vmem:[%s6838] ss:$9 sm:$0xff]
        %v6855 = vld [vmem:[%s6840] ss:$9 sm:$0xff]
        %v6856 = vld [vmem:[%s6842] ss:$9 sm:$0xff]
        %v6857 = vld [vmem:[%s6844] ss:$9 sm:$0xff]
        %6858 = vst [vmem:[#allocation1] sm:$0xff] %v6161
        %v6859 = vld [vmem:[%s6836] ss:$9 sm:$0xff]
        %v6860 = vld [vmem:[%s6838] ss:$9 sm:$0xff]
        %v6861 = vld [vmem:[%s6840] ss:$9 sm:$0xff]
        %v6862 = vld [vmem:[%s6842] ss:$9 sm:$0xff]
        %v6863 = vld [vmem:[%s6844] ss:$9 sm:$0xff]
        %6864 = vst [vmem:[#allocation1] sm:$0xff] %v6169
        %v6865 = vld [vmem:[%s6836] ss:$9 sm:$0xff]
        %v6866 = vld [vmem:[%s6838] ss:$9 sm:$0xff]
        %v6867 = vld [vmem:[%s6840] ss:$9 sm:$0xff]
        %v6868 = vld [vmem:[%s6842] ss:$9 sm:$0xff]
        %v6869 = vld [vmem:[%s6844] ss:$9 sm:$0xff]
        %6870 = vst [vmem:[#allocation1] sm:$0xff] %v6177
        %v6871 = vld [vmem:[%s6836] ss:$9 sm:$0xff]
        %v6872 = vld [vmem:[%s6838] ss:$9 sm:$0xff]
        %v6873 = vld [vmem:[%s6840] ss:$9 sm:$0xff]
        %v6874 = vld [vmem:[%s6842] ss:$9 sm:$0xff]
        %v6875 = vld [vmem:[%s6844] ss:$9 sm:$0xff]
        %6876 = vst [vmem:[#allocation1] sm:$0xff] %v6185
        %v6877 = vld [vmem:[%s6836] ss:$9 sm:$0xff]
        %v6878 = vld [vmem:[%s6838] ss:$9 sm:$0xff]
        %v6879 = vld [vmem:[%s6840] ss:$9 sm:$0xff]
        %v6880 = vld [vmem:[%s6842] ss:$9 sm:$0xff]
        %v6881 = vld [vmem:[%s6844] ss:$9 sm:$0xff]
        %6882 = vst [vmem:[#allocation1] sm:$0xff] 0.0
        %v6883 = vld [vmem:[%s6836] ss:$9 sm:$0xff]
        %v6884 = vld [vmem:[%s6838] ss:$9 sm:$0xff]
        %v6885 = vld [vmem:[%s6840] ss:$9 sm:$0xff]
        %v6886 = vld [vmem:[%s6842] ss:$9 sm:$0xff]
        %v6887 = vld [vmem:[%s6844] ss:$9 sm:$0xff]
        %6888 = vst [vmem:[#allocation1] sm:$0xff] %v6137
        %s6889 = scalar_lea.vmem [#allocation1], 3
        %v6890 = vld [vmem:[%s6889] ss:$9 sm:$0xff]
        %s6891 = scalar_lea.vmem [#allocation1], 4
        %v6892 = vld [vmem:[%s6891] ss:$9 sm:$0xff]
        %s6893 = scalar_lea.vmem [#allocation1], 5
        %v6894 = vld [vmem:[%s6893] ss:$9 sm:$0xff]
        %s6895 = scalar_lea.vmem [#allocation1], 6
        %v6896 = vld [vmem:[%s6895] ss:$9 sm:$0xff]
        %s6897 = scalar_lea.vmem [#allocation1], 7
        %v6898 = vld [vmem:[%s6897] ss:$9 sm:$0xff]
        %6899 = vst [vmem:[#allocation1] sm:$0xff] %v6145
        %v6900 = vld [vmem:[%s6889] ss:$9 sm:$0xff]
        %v6901 = vld [vmem:[%s6891] ss:$9 sm:$0xff]
        %v6902 = vld [vmem:[%s6893] ss:$9 sm:$0xff]
        %v6903 = vld [vmem:[%s6895] ss:$9 sm:$0xff]
        %v6904 = vld [vmem:[%s6897] ss:$9 sm:$0xff]
        %6905 = vst [vmem:[#allocation1] sm:$0xff] %v6153
        %v6906 = vld [vmem:[%s6889] ss:$9 sm:$0xff]
        %v6907 = vld [vmem:[%s6891] ss:$9 sm:$0xff]
        %v6908 = vld [vmem:[%s6893] ss:$9 sm:$0xff]
        %v6909 = vld [vmem:[%s6895] ss:$9 sm:$0xff]
        %v6910 = vld [vmem:[%s6897] ss:$9 sm:$0xff]
        %6911 = vst [vmem:[#allocation1] sm:$0xff] %v6161
        %v6912 = vld [vmem:[%s6889] ss:$9 sm:$0xff]
        %v6913 = vld [vmem:[%s6891] ss:$9 sm:$0xff]
        %v6914 = vld [vmem:[%s6893] ss:$9 sm:$0xff]
        %v6915 = vld [vmem:[%s6895] ss:$9 sm:$0xff]
        %v6916 = vld [vmem:[%s6897] ss:$9 sm:$0xff]
        %6917 = vst [vmem:[#allocation1] sm:$0xff] %v6169
        %v6918 = vld [vmem:[%s6889] ss:$9 sm:$0xff]
        %v6919 = vld [vmem:[%s6891] ss:$9 sm:$0xff]
        %v6920 = vld [vmem:[%s6893] ss:$9 sm:$0xff]
        %v6921 = vld [vmem:[%s6895] ss:$9 sm:$0xff]
        %v6922 = vld [vmem:[%s6897] ss:$9 sm:$0xff]
        %6923 = vst [vmem:[#allocation1] sm:$0xff] %v6177
        %v6924 = vld [vmem:[%s6889] ss:$9 sm:$0xff]
        %v6925 = vld [vmem:[%s6891] ss:$9 sm:$0xff]
        %v6926 = vld [vmem:[%s6893] ss:$9 sm:$0xff]
        %v6927 = vld [vmem:[%s6895] ss:$9 sm:$0xff]
        %v6928 = vld [vmem:[%s6897] ss:$9 sm:$0xff]
        %6929 = vst [vmem:[#allocation1] sm:$0xff] %v6185
        %v6930 = vld [vmem:[%s6889] ss:$9 sm:$0xff]
        %v6931 = vld [vmem:[%s6891] ss:$9 sm:$0xff]
        %v6932 = vld [vmem:[%s6893] ss:$9 sm:$0xff]
        %v6933 = vld [vmem:[%s6895] ss:$9 sm:$0xff]
        %v6934 = vld [vmem:[%s6897] ss:$9 sm:$0xff]
        %6935 = vst [vmem:[#allocation1] sm:$0xff] 0.0
        %v6936 = vld [vmem:[%s6889] ss:$9 sm:$0xff]
        %v6937 = vld [vmem:[%s6891] ss:$9 sm:$0xff]
        %v6938 = vld [vmem:[%s6893] ss:$9 sm:$0xff]
        %v6939 = vld [vmem:[%s6895] ss:$9 sm:$0xff]
        %v6940 = vld [vmem:[%s6897] ss:$9 sm:$0xff]
        %6941 = vst [vmem:[#allocation1] sm:$0xff] %v6137
        %s6942 = scalar_lea.vmem [#allocation1], 4
        %v6943 = vld [vmem:[%s6942] ss:$9 sm:$0xff]
        %s6944 = scalar_lea.vmem [#allocation1], 5
        %v6945 = vld [vmem:[%s6944] ss:$9 sm:$0xff]
        %s6946 = scalar_lea.vmem [#allocation1], 6
        %v6947 = vld [vmem:[%s6946] ss:$9 sm:$0xff]
        %s6948 = scalar_lea.vmem [#allocation1], 7
        %v6949 = vld [vmem:[%s6948] ss:$9 sm:$0xff]
        %6950 = vst [vmem:[#allocation1] sm:$0xff] %v6138
        %v6951 = vld [vmem:[#allocation1] ss:$9 sm:$0xff]
        %6952 = vst [vmem:[#allocation1] sm:$0xff] %v6145
        %v6953 = vld [vmem:[%s6942] ss:$9 sm:$0xff]
        %v6954 = vld [vmem:[%s6944] ss:$9 sm:$0xff]
        %v6955 = vld [vmem:[%s6946] ss:$9 sm:$0xff]
        %v6956 = vld [vmem:[%s6948] ss:$9 sm:$0xff]
        %6957 = vst [vmem:[#allocation1] sm:$0xff] %v6146
        %v6958 = vld [vmem:[#allocation1] ss:$9 sm:$0xff]
        %6959 = vst [vmem:[#allocation1] sm:$0xff] %v6153
        %v6960 = vld [vmem:[%s6942] ss:$9 sm:$0xff]
        %v6961 = vld [vmem:[%s6944] ss:$9 sm:$0xff]
        %v6962 = vld [vmem:[%s6946] ss:$9 sm:$0xff]
        %v6963 = vld [vmem:[%s6948] ss:$9 sm:$0xff]
        %6964 = vst [vmem:[#allocation1] sm:$0xff] %v6154
        %v6965 = vld [vmem:[#allocation1] ss:$9 sm:$0xff]
        %6966 = vst [vmem:[#allocation1] sm:$0xff] %v6161
        %v6967 = vld [vmem:[%s6942] ss:$9 sm:$0xff]
        %v6968 = vld [vmem:[%s6944] ss:$9 sm:$0xff]
        %v6969 = vld [vmem:[%s6946] ss:$9 sm:$0xff]
        %v6970 = vld [vmem:[%s6948] ss:$9 sm:$0xff]
        %6971 = vst [vmem:[#allocation1] sm:$0xff] %v6162
        %v6972 = vld [vmem:[#allocation1] ss:$9 sm:$0xff]
        %6973 = vst [vmem:[#allocation1] sm:$0xff] %v6169
        %v6974 = vld [vmem:[%s6942] ss:$9 sm:$0xff]
        %v6975 = vld [vmem:[%s6944] ss:$9 sm:$0xff]
        %v6976 = vld [vmem:[%s6946] ss:$9 sm:$0xff]
        %v6977 = vld [vmem:[%s6948] ss:$9 sm:$0xff]
        %6978 = vst [vmem:[#allocation1] sm:$0xff] %v6170
        %v6979 = vld [vmem:[#allocation1] ss:$9 sm:$0xff]
        %6980 = vst [vmem:[#allocation1] sm:$0xff] %v6177
        %v6981 = vld [vmem:[%s6942] ss:$9 sm:$0xff]
        %v6982 = vld [vmem:[%s6944] ss:$9 sm:$0xff]
        %v6983 = vld [vmem:[%s6946] ss:$9 sm:$0xff]
        %v6984 = vld [vmem:[%s6948] ss:$9 sm:$0xff]
        %6985 = vst [vmem:[#allocation1] sm:$0xff] %v6178
        %v6986 = vld [vmem:[#allocation1] ss:$9 sm:$0xff]
        %6987 = vst [vmem:[#allocation1] sm:$0xff] %v6185
        %v6988 = vld [vmem:[%s6942] ss:$9 sm:$0xff]
        %v6989 = vld [vmem:[%s6944] ss:$9 sm:$0xff]
        %v6990 = vld [vmem:[%s6946] ss:$9 sm:$0xff]
        %v6991 = vld [vmem:[%s6948] ss:$9 sm:$0xff]
        %6992 = vst [vmem:[#allocation1] sm:$0xff] %v6186
        %v6993 = vld [vmem:[#allocation1] ss:$9 sm:$0xff]
        %6994 = vst [vmem:[#allocation1] sm:$0xff] 0.0
        %v6995 = vld [vmem:[%s6942] ss:$9 sm:$0xff]
        %v6996 = vld [vmem:[%s6944] ss:$9 sm:$0xff]
        %v6997 = vld [vmem:[%s6946] ss:$9 sm:$0xff]
        %v6998 = vld [vmem:[%s6948] ss:$9 sm:$0xff]
        %6999 = vst [vmem:[#allocation1] sm:$0xff] 0.0
        %v7000 = vld [vmem:[#allocation1] ss:$9 sm:$0xff]
        %7001 = vst [vmem:[#allocation1] sm:$0xff] %v6137
        %s7002 = scalar_lea.vmem [#allocation1], 5
        %v7003 = vld [vmem:[%s7002] ss:$9 sm:$0xff]
        %s7004 = scalar_lea.vmem [#allocation1], 6
        %v7005 = vld [vmem:[%s7004] ss:$9 sm:$0xff]
        %s7006 = scalar_lea.vmem [#allocation1], 7
        %v7007 = vld [vmem:[%s7006] ss:$9 sm:$0xff]
        %7008 = vst [vmem:[#allocation1] sm:$0xff] %v6138
        %v7009 = vld [vmem:[#allocation1] ss:$9 sm:$0xff]
        %s7010 = scalar_lea.vmem [#allocation1], 1
        %v7011 = vld [vmem:[%s7010] ss:$9 sm:$0xff]
        %7012 = vst [vmem:[#allocation1] sm:$0xff] %v6145
        %v7013 = vld [vmem:[%s7002] ss:$9 sm:$0xff]
        %v7014 = vld [vmem:[%s7004] ss:$9 sm:$0xff]
        %v7015 = vld [vmem:[%s7006] ss:$9 sm:$0xff]
        %7016 = vst [vmem:[#allocation1] sm:$0xff] %v6146
        %v7017 = vld [vmem:[#allocation1] ss:$9 sm:$0xff]
        %v7018 = vld [vmem:[%s7010] ss:$9 sm:$0xff]
        %7019 = vst [vmem:[#allocation1] sm:$0xff] %v6153
        %v7020 = vld [vmem:[%s7002] ss:$9 sm:$0xff]
        %v7021 = vld [vmem:[%s7004] ss:$9 sm:$0xff]
        %v7022 = vld [vmem:[%s7006] ss:$9 sm:$0xff]
        %7023 = vst [vmem:[#allocation1] sm:$0xff] %v6154
        %v7024 = vld [vmem:[#allocation1] ss:$9 sm:$0xff]
        %v7025 = vld [vmem:[%s7010] ss:$9 sm:$0xff]
        %7026 = vst [vmem:[#allocation1] sm:$0xff] %v6161
        %v7027 = vld [vmem:[%s7002] ss:$9 sm:$0xff]
        %v7028 = vld [vmem:[%s7004] ss:$9 sm:$0xff]
        %v7029 = vld [vmem:[%s7006] ss:$9 sm:$0xff]
        %7030 = vst [vmem:[#allocation1] sm:$0xff] %v6162
        %v7031 = vld [vmem:[#allocation1] ss:$9 sm:$0xff]
        %v7032 = vld [vmem:[%s7010] ss:$9 sm:$0xff]
        %7033 = vst [vmem:[#allocation1] sm:$0xff] %v6169
        %v7034 = vld [vmem:[%s7002] ss:$9 sm:$0xff]
        %v7035 = vld [vmem:[%s7004] ss:$9 sm:$0xff]
        %v7036 = vld [vmem:[%s7006] ss:$9 sm:$0xff]
        %7037 = vst [vmem:[#allocation1] sm:$0xff] %v6170
        %v7038 = vld [vmem:[#allocation1] ss:$9 sm:$0xff]
        %v7039 = vld [vmem:[%s7010] ss:$9 sm:$0xff]
        %7040 = vst [vmem:[#allocation1] sm:$0xff] %v6177
        %v7041 = vld [vmem:[%s7002] ss:$9 sm:$0xff]
        %v7042 = vld [vmem:[%s7004] ss:$9 sm:$0xff]
        %v7043 = vld [vmem:[%s7006] ss:$9 sm:$0xff]
        %7044 = vst [vmem:[#allocation1] sm:$0xff] %v6178
        %v7045 = vld [vmem:[#allocation1] ss:$9 sm:$0xff]
        %v7046 = vld [vmem:[%s7010] ss:$9 sm:$0xff]
        %7047 = vst [vmem:[#allocation1] sm:$0xff] %v6185
        %v7048 = vld [vmem:[%s7002] ss:$9 sm:$0xff]
        %v7049 = vld [vmem:[%s7004] ss:$9 sm:$0xff]
        %v7050 = vld [vmem:[%s7006] ss:$9 sm:$0xff]
        %7051 = vst [vmem:[#allocation1] sm:$0xff] %v6186
        %v7052 = vld [vmem:[#allocation1] ss:$9 sm:$0xff]
        %v7053 = vld [vmem:[%s7010] ss:$9 sm:$0xff]
        %7054 = vst [vmem:[#allocation1] sm:$0xff] 0.0
        %v7055 = vld [vmem:[%s7002] ss:$9 sm:$0xff]
        %v7056 = vld [vmem:[%s7004] ss:$9 sm:$0xff]
        %v7057 = vld [vmem:[%s7006] ss:$9 sm:$0xff]
        %7058 = vst [vmem:[#allocation1] sm:$0xff] 0.0
        %v7059 = vld [vmem:[#allocation1] ss:$9 sm:$0xff]
        %v7060 = vld [vmem:[%s7010] ss:$9 sm:$0xff]
        %7061 = vst [vmem:[#allocation1] ss:$9 sm:$0xff] 0.0
        %s7062 = scalar_lea.vmem [#allocation1], 1
        %7063 = vst [vmem:[%s7062] ss:$9 sm:$0xff] %v6188
        %s7064 = scalar_lea.vmem [#allocation1], 2
        %7065 = vst [vmem:[%s7064] ss:$9 sm:$0xff] %v6189
        %s7066 = scalar_lea.vmem [#allocation1], 3
        %7067 = vst [vmem:[%s7066] ss:$9 sm:$0xff] %v6190
        %s7068 = scalar_lea.vmem [#allocation1], 4
        %7069 = vst [vmem:[%s7068] ss:$9 sm:$0xff] %v6191
        %s7070 = scalar_lea.vmem [#allocation1], 5
        %7071 = vst [vmem:[%s7070] ss:$9 sm:$0xff] %v6129
        %s7072 = scalar_lea.vmem [#allocation1], 6
        %7073 = vst [vmem:[%s7072] ss:$9 sm:$0xff] %v6192
        %s7074 = scalar_lea.vmem [#allocation1], 7
        %7075 = vst [vmem:[%s7074] ss:$9 sm:$0xff] %v6193
        %v7076 = vld [vmem:[#allocation1] sm:$0xff]
        %7077 = vst [vmem:[#allocation1] ss:$9 sm:$0xff] %v6194
        %7078 = vst [vmem:[%s7062] ss:$9 sm:$0xff] %v6195
        %7079 = vst [vmem:[%s7064] ss:$9 sm:$0xff] %v6137
        %7080 = vst [vmem:[%s7066] ss:$9 sm:$0xff] %v6196
        %7081 = vst [vmem:[%s7068] ss:$9 sm:$0xff] %v6197
        %7082 = vst [vmem:[%s7070] ss:$9 sm:$0xff] %v6198
        %7083 = vst [vmem:[%s7072] ss:$9 sm:$0xff] %v6199
        %7084 = vst [vmem:[%s7074] ss:$9 sm:$0xff] %v6145
        %v7085 = vld [vmem:[#allocation1] sm:$0xff]
        %7086 = vst [vmem:[#allocation1] ss:$9 sm:$0xff] %v6200
        %7087 = vst [vmem:[%s7062] ss:$9 sm:$0xff] %v6201
        %7088 = vst [vmem:[%s7064] ss:$9 sm:$0xff] %v6202
        %7089 = vst [vmem:[%s7066] ss:$9 sm:$0xff] %v6203
        %7090 = vst [vmem:[%s7068] ss:$9 sm:$0xff] %v6153
        %7091 = vst [vmem:[%s7070] ss:$9 sm:$0xff] %v6204
        %7092 = vst [vmem:[%s7072] ss:$9 sm:$0xff] %v6205
        %7093 = vst [vmem:[%s7074] ss:$9 sm:$0xff] %v6206
        %v7094 = vld [vmem:[#allocation1] sm:$0xff]
        %7095 = vst [vmem:[#allocation1] ss:$9 sm:$0xff] %v6207
        %7096 = vst [vmem:[%s7062] ss:$9 sm:$0xff] %v6161
        %7097 = vst [vmem:[%s7064] ss:$9 sm:$0xff] %v6208
        %7098 = vst [vmem:[%s7066] ss:$9 sm:$0xff] %v6209
        %7099 = vst [vmem:[%s7068] ss:$9 sm:$0xff] %v6210
        %7100 = vst [vmem:[%s7070] ss:$9 sm:$0xff] %v6211
        %7101 = vst [vmem:[%s7072] ss:$9 sm:$0xff] %v6169
        %7102 = vst [vmem:[%s7074] ss:$9 sm:$0xff] %v6212
        %v7103 = vld [vmem:[#allocation1] sm:$0xff]
        %7104 = vst [vmem:[#allocation1] ss:$9 sm:$0xff] %v6213
        %7105 = vst [vmem:[%s7062] ss:$9 sm:$0xff] %v6214
        %7106 = vst [vmem:[%s7064] ss:$9 sm:$0xff] %v6215
        %7107 = vst [vmem:[%s7066] ss:$9 sm:$0xff] %v6177
        %7108 = vst [vmem:[%s7068] ss:$9 sm:$0xff] %v6216
        %7109 = vst [vmem:[%s7070] ss:$9 sm:$0xff] %v6217
        %7110 = vst [vmem:[%s7072] ss:$9 sm:$0xff] %v6218
        %7111 = vst [vmem:[%s7074] ss:$9 sm:$0xff] %v6219
        %v7112 = vld [vmem:[#allocation1] sm:$0xff]
        %7118 = vst [vmem:[#allocation1] ss:$9 sm:$0xff] %v6222
        %s7119 = scalar_lea.vmem [#allocation1], 1
        %7120 = vst [vmem:[%s7119] ss:$9 sm:$0xff] %v6224
        %s7121 = scalar_lea.vmem [#allocation1], 2
        %7122 = vst [vmem:[%s7121] ss:$9 sm:$0xff] %v6226
        %s7123 = scalar_lea.vmem [#allocation1], 3
        %7124 = vst [vmem:[%s7123] ss:$9 sm:$0xff] %v6228
        %s7125 = scalar_lea.vmem [#allocation1], 4
        %7126 = vst [vmem:[%s7125] ss:$9 sm:$0xff] %v6230
        %s7127 = scalar_lea.vmem [#allocation1], 5
        %7128 = vst [vmem:[%s7127] ss:$9 sm:$0xff] %v6232
        %s7129 = scalar_lea.vmem [#allocation1], 6
        %7130 = vst [vmem:[%s7129] ss:$9 sm:$0xff] %v6233
        %s7131 = scalar_lea.vmem [#allocation1], 7
        %7132 = vst [vmem:[%s7131] ss:$9 sm:$0xff] %v6234
        %v7133 = vld [vmem:[#allocation1] sm:$0xff]
        %7134 = vst [vmem:[#allocation1] ss:$9 sm:$0xff] %v6235
        %7135 = vst [vmem:[%s7119] ss:$9 sm:$0xff] %v6236
        %7136 = vst [vmem:[%s7121] ss:$9 sm:$0xff] %v6238
        %7137 = vst [vmem:[%s7123] ss:$9 sm:$0xff] %v6239
        %7138 = vst [vmem:[%s7125] ss:$9 sm:$0xff] %v6240
        %7139 = vst [vmem:[%s7127] ss:$9 sm:$0xff] %v6241
        %7140 = vst [vmem:[%s7129] ss:$9 sm:$0xff] %v6242
        %7141 = vst [vmem:[%s7131] ss:$9 sm:$0xff] %v6244
        %v7142 = vld [vmem:[#allocation1] sm:$0xff]
        %7143 = vst [vmem:[#allocation1] ss:$9 sm:$0xff] %v6245
        %7144 = vst [vmem:[%s7119] ss:$9 sm:$0xff] %v6246
        %7145 = vst [vmem:[%s7121] ss:$9 sm:$0xff] %v6247
        %7146 = vst [vmem:[%s7123] ss:$9 sm:$0xff] %v6248
        %7147 = vst [vmem:[%s7125] ss:$9 sm:$0xff] %v6250
        %7148 = vst [vmem:[%s7127] ss:$9 sm:$0xff] %v6251
        %7149 = vst [vmem:[%s7129] ss:$9 sm:$0xff] %v6252
        %7150 = vst [vmem:[%s7131] ss:$9 sm:$0xff] %v6253
        %v7151 = vld [vmem:[#allocation1] sm:$0xff]
        %7152 = vst [vmem:[#allocation1] ss:$9 sm:$0xff] %v6254
        %7153 = vst [vmem:[%s7119] ss:$9 sm:$0xff] %v6256
        %7154 = vst [vmem:[%s7121] ss:$9 sm:$0xff] %v6257
        %7155 = vst [vmem:[%s7123] ss:$9 sm:$0xff] %v6258
        %7156 = vst [vmem:[%s7125] ss:$9 sm:$0xff] %v6259
        %7157 = vst [vmem:[%s7127] ss:$9 sm:$0xff] %v6260
        %7158 = vst [vmem:[%s7129] ss:$9 sm:$0xff] %v6262
        %7159 = vst [vmem:[%s7131] ss:$9 sm:$0xff] %v6263
        %v7160 = vld [vmem:[#allocation1] sm:$0xff]
        %7161 = vst [vmem:[#allocation1] ss:$9 sm:$0xff] %v6264
        %7162 = vst [vmem:[%s7119] ss:$9 sm:$0xff] %v6265
        %7163 = vst [vmem:[%s7121] ss:$9 sm:$0xff] %v6266
        %7164 = vst [vmem:[%s7123] ss:$9 sm:$0xff] %v6268
        %7165 = vst [vmem:[%s7125] ss:$9 sm:$0xff] %v6269
        %7166 = vst [vmem:[%s7127] ss:$9 sm:$0xff] %v6270
        %7167 = vst [vmem:[%s7129] ss:$9 sm:$0xff] %v6271
        %7168 = vst [vmem:[%s7131] ss:$9 sm:$0xff] %v6272
        %v7169 = vld [vmem:[#allocation1] sm:$0xff]
        %7170 = vrot.lane.b32.xlu0 %v7133, 64
        %v7171 = vpop.permute.xlu0 %7170
        %7172 = vrot.lane.b32.xlu0 %v7142, 64
        %v7173 = vpop.permute.xlu0 %7172
        %7174 = vrot.lane.b32.xlu0 %v7151, 64
        %v7175 = vpop.permute.xlu0 %7174
        %7176 = vrot.lane.b32.xlu0 %v7160, 64
        %v7177 = vpop.permute.xlu0 %7176
        %7178 = vrot.lane.b32.xlu0 %v7169, 64
        %v7179 = vpop.permute.xlu0 %7178
        %7185 = vst [vmem:[#allocation1] ss:$9 sm:$0xff] %v6275
        %s7186 = scalar_lea.vmem [#allocation1], 1
        %7187 = vst [vmem:[%s7186] ss:$9 sm:$0xff] %v6277
        %s7188 = scalar_lea.vmem [#allocation1], 2
        %7189 = vst [vmem:[%s7188] ss:$9 sm:$0xff] %v6279
        %s7190 = scalar_lea.vmem [#allocation1], 3
        %7191 = vst [vmem:[%s7190] ss:$9 sm:$0xff] %v6281
        %s7192 = scalar_lea.vmem [#allocation1], 4
        %7193 = vst [vmem:[%s7192] ss:$9 sm:$0xff] %v6283
        %s7194 = scalar_lea.vmem [#allocation1], 5
        %7195 = vst [vmem:[%s7194] ss:$9 sm:$0xff] %v6285
        %s7196 = scalar_lea.vmem [#allocation1], 6
        %7197 = vst [vmem:[%s7196] ss:$9 sm:$0xff] %v6286
        %s7198 = scalar_lea.vmem [#allocation1], 7
        %7199 = vst [vmem:[%s7198] ss:$9 sm:$0xff] %v6287
        %v7200 = vld [vmem:[#allocation1] sm:$0xff]
        %7201 = vst [vmem:[#allocation1] ss:$9 sm:$0xff] %v6288
        %7202 = vst [vmem:[%s7186] ss:$9 sm:$0xff] %v6289
        %7203 = vst [vmem:[%s7188] ss:$9 sm:$0xff] %v6291
        %7204 = vst [vmem:[%s7190] ss:$9 sm:$0xff] %v6292
        %7205 = vst [vmem:[%s7192] ss:$9 sm:$0xff] %v6293
        %7206 = vst [vmem:[%s7194] ss:$9 sm:$0xff] %v6294
        %7207 = vst [vmem:[%s7196] ss:$9 sm:$0xff] %v6295
        %7208 = vst [vmem:[%s7198] ss:$9 sm:$0xff] %v6297
        %v7209 = vld [vmem:[#allocation1] sm:$0xff]
        %7210 = vst [vmem:[#allocation1] ss:$9 sm:$0xff] %v6298
        %7211 = vst [vmem:[%s7186] ss:$9 sm:$0xff] %v6299
        %7212 = vst [vmem:[%s7188] ss:$9 sm:$0xff] %v6300
        %7213 = vst [vmem:[%s7190] ss:$9 sm:$0xff] %v6301
        %7214 = vst [vmem:[%s7192] ss:$9 sm:$0xff] %v6303
        %7215 = vst [vmem:[%s7194] ss:$9 sm:$0xff] %v6304
        %7216 = vst [vmem:[%s7196] ss:$9 sm:$0xff] %v6305
        %7217 = vst [vmem:[%s7198] ss:$9 sm:$0xff] %v6306
        %v7218 = vld [vmem:[#allocation1] sm:$0xff]
        %7219 = vst [vmem:[#allocation1] ss:$9 sm:$0xff] %v6307
        %7220 = vst [vmem:[%s7186] ss:$9 sm:$0xff] %v6309
        %7221 = vst [vmem:[%s7188] ss:$9 sm:$0xff] %v6310
        %7222 = vst [vmem:[%s7190] ss:$9 sm:$0xff] %v6311
        %7223 = vst [vmem:[%s7192] ss:$9 sm:$0xff] %v6312
        %7224 = vst [vmem:[%s7194] ss:$9 sm:$0xff] %v6313
        %7225 = vst [vmem:[%s7196] ss:$9 sm:$0xff] %v6315
        %7226 = vst [vmem:[%s7198] ss:$9 sm:$0xff] %v6316
        %v7227 = vld [vmem:[#allocation1] sm:$0xff]
        %7228 = vst [vmem:[#allocation1] ss:$9 sm:$0xff] %v6317
        %7229 = vst [vmem:[%s7186] ss:$9 sm:$0xff] %v6318
        %7230 = vst [vmem:[%s7188] ss:$9 sm:$0xff] %v6319
        %7231 = vst [vmem:[%s7190] ss:$9 sm:$0xff] %v6321
        %7232 = vst [vmem:[%s7192] ss:$9 sm:$0xff] %v6322
        %7233 = vst [vmem:[%s7194] ss:$9 sm:$0xff] %v6323
        %7234 = vst [vmem:[%s7196] ss:$9 sm:$0xff] %v6324
        %7235 = vst [vmem:[%s7198] ss:$9 sm:$0xff] %v6325
        %v7236 = vld [vmem:[#allocation1] sm:$0xff]
        %7242 = vst [vmem:[#allocation1] ss:$9 sm:$0xff] %v6328
        %s7243 = scalar_lea.vmem [#allocation1], 1
        %7244 = vst [vmem:[%s7243] ss:$9 sm:$0xff] %v6330
        %s7245 = scalar_lea.vmem [#allocation1], 2
        %7246 = vst [vmem:[%s7245] ss:$9 sm:$0xff] %v6332
        %s7247 = scalar_lea.vmem [#allocation1], 3
        %7248 = vst [vmem:[%s7247] ss:$9 sm:$0xff] %v6334
        %s7249 = scalar_lea.vmem [#allocation1], 4
        %7250 = vst [vmem:[%s7249] ss:$9 sm:$0xff] %v6336
        %s7251 = scalar_lea.vmem [#allocation1], 5
        %7252 = vst [vmem:[%s7251] ss:$9 sm:$0xff] %v6338
        %s7253 = scalar_lea.vmem [#allocation1], 6
        %7254 = vst [vmem:[%s7253] ss:$9 sm:$0xff] %v6339
        %s7255 = scalar_lea.vmem [#allocation1], 7
        %7256 = vst [vmem:[%s7255] ss:$9 sm:$0xff] %v6340
        %v7257 = vld [vmem:[#allocation1] sm:$0xff]
        %7258 = vst [vmem:[#allocation1] ss:$9 sm:$0xff] %v6341
        %7259 = vst [vmem:[%s7243] ss:$9 sm:$0xff] %v6342
        %7260 = vst [vmem:[%s7245] ss:$9 sm:$0xff] %v6344
        %7261 = vst [vmem:[%s7247] ss:$9 sm:$0xff] %v6345
        %7262 = vst [vmem:[%s7249] ss:$9 sm:$0xff] %v6346
        %7263 = vst [vmem:[%s7251] ss:$9 sm:$0xff] %v6347
        %7264 = vst [vmem:[%s7253] ss:$9 sm:$0xff] %v6348
        %7265 = vst [vmem:[%s7255] ss:$9 sm:$0xff] %v6350
        %v7266 = vld [vmem:[#allocation1] sm:$0xff]
        %7267 = vst [vmem:[#allocation1] ss:$9 sm:$0xff] %v6351
        %7268 = vst [vmem:[%s7243] ss:$9 sm:$0xff] %v6352
        %7269 = vst [vmem:[%s7245] ss:$9 sm:$0xff] %v6353
        %7270 = vst [vmem:[%s7247] ss:$9 sm:$0xff] %v6354
        %7271 = vst [vmem:[%s7249] ss:$9 sm:$0xff] %v6356
        %7272 = vst [vmem:[%s7251] ss:$9 sm:$0xff] %v6357
        %7273 = vst [vmem:[%s7253] ss:$9 sm:$0xff] %v6358
        %7274 = vst [vmem:[%s7255] ss:$9 sm:$0xff] %v6359
        %v7275 = vld [vmem:[#allocation1] sm:$0xff]
        %7276 = vst [vmem:[#allocation1] ss:$9 sm:$0xff] %v6360
        %7277 = vst [vmem:[%s7243] ss:$9 sm:$0xff] %v6362
        %7278 = vst [vmem:[%s7245] ss:$9 sm:$0xff] %v6363
        %7279 = vst [vmem:[%s7247] ss:$9 sm:$0xff] %v6364
        %7280 = vst [vmem:[%s7249] ss:$9 sm:$0xff] %v6365
        %7281 = vst [vmem:[%s7251] ss:$9 sm:$0xff] %v6366
        %7282 = vst [vmem:[%s7253] ss:$9 sm:$0xff] %v6368
        %7283 = vst [vmem:[%s7255] ss:$9 sm:$0xff] %v6369
        %v7284 = vld [vmem:[#allocation1] sm:$0xff]
        %7285 = vst [vmem:[#allocation1] ss:$9 sm:$0xff] %v6370
        %7286 = vst [vmem:[%s7243] ss:$9 sm:$0xff] %v6371
        %7287 = vst [vmem:[%s7245] ss:$9 sm:$0xff] %v6372
        %7288 = vst [vmem:[%s7247] ss:$9 sm:$0xff] %v6374
        %7289 = vst [vmem:[%s7249] ss:$9 sm:$0xff] %v6375
        %7290 = vst [vmem:[%s7251] ss:$9 sm:$0xff] %v6376
        %7291 = vst [vmem:[%s7253] ss:$9 sm:$0xff] %v6377
        %7292 = vst [vmem:[%s7255] ss:$9 sm:$0xff] %v6378
        %v7293 = vld [vmem:[#allocation1] sm:$0xff]
        %7294 = vrot.lane.b32.xlu0 %v7257, 64
        %v7295 = vpop.permute.xlu0 %7294
        %7296 = vrot.lane.b32.xlu0 %v7266, 64
        %v7297 = vpop.permute.xlu0 %7296
        %7298 = vrot.lane.b32.xlu0 %v7275, 64
        %v7299 = vpop.permute.xlu0 %7298
        %7300 = vrot.lane.b32.xlu0 %v7284, 64
        %v7301 = vpop.permute.xlu0 %7300
        %7302 = vrot.lane.b32.xlu0 %v7293, 64
        %v7303 = vpop.permute.xlu0 %7302
        %7309 = vst [vmem:[#allocation1] ss:$9 sm:$0xff] %v6381
        %s7310 = scalar_lea.vmem [#allocation1], 1
        %7311 = vst [vmem:[%s7310] ss:$9 sm:$0xff] %v6383
        %s7312 = scalar_lea.vmem [#allocation1], 2
        %7313 = vst [vmem:[%s7312] ss:$9 sm:$0xff] %v6385
        %s7314 = scalar_lea.vmem [#allocation1], 3
        %7315 = vst [vmem:[%s7314] ss:$9 sm:$0xff] %v6387
        %s7316 = scalar_lea.vmem [#allocation1], 4
        %7317 = vst [vmem:[%s7316] ss:$9 sm:$0xff] %v6389
        %s7318 = scalar_lea.vmem [#allocation1], 5
        %7319 = vst [vmem:[%s7318] ss:$9 sm:$0xff] %v6391
        %s7320 = scalar_lea.vmem [#allocation1], 6
        %7321 = vst [vmem:[%s7320] ss:$9 sm:$0xff] %v6392
        %s7322 = scalar_lea.vmem [#allocation1], 7
        %7323 = vst [vmem:[%s7322] ss:$9 sm:$0xff] %v6393
        %v7324 = vld [vmem:[#allocation1] sm:$0xff]
        %7325 = vst [vmem:[#allocation1] ss:$9 sm:$0xff] %v6394
        %7326 = vst [vmem:[%s7310] ss:$9 sm:$0xff] %v6396
        %7327 = vst [vmem:[%s7312] ss:$9 sm:$0xff] %v6398
        %7328 = vst [vmem:[%s7314] ss:$9 sm:$0xff] %v6399
        %7329 = vst [vmem:[%s7316] ss:$9 sm:$0xff] %v6400
        %7330 = vst [vmem:[%s7318] ss:$9 sm:$0xff] %v6401
        %7331 = vst [vmem:[%s7320] ss:$9 sm:$0xff] %v6403
        %7332 = vst [vmem:[%s7322] ss:$9 sm:$0xff] %v6405
        %v7333 = vld [vmem:[#allocation1] sm:$0xff]
        %7334 = vst [vmem:[#allocation1] ss:$9 sm:$0xff] %v6406
        %7335 = vst [vmem:[%s7310] ss:$9 sm:$0xff] %v6407
        %7336 = vst [vmem:[%s7312] ss:$9 sm:$0xff] %v6408
        %7337 = vst [vmem:[%s7314] ss:$9 sm:$0xff] %v6410
        %7338 = vst [vmem:[%s7316] ss:$9 sm:$0xff] %v6412
        %7339 = vst [vmem:[%s7318] ss:$9 sm:$0xff] %v6413
        %7340 = vst [vmem:[%s7320] ss:$9 sm:$0xff] %v6414
        %7341 = vst [vmem:[%s7322] ss:$9 sm:$0xff] %v6415
        %v7342 = vld [vmem:[#allocation1] sm:$0xff]
        %7343 = vst [vmem:[#allocation1] ss:$9 sm:$0xff] %v6417
        %7344 = vst [vmem:[%s7310] ss:$9 sm:$0xff] %v6419
        %7345 = vst [vmem:[%s7312] ss:$9 sm:$0xff] %v6420
        %7346 = vst [vmem:[%s7314] ss:$9 sm:$0xff] %v6421
        %7347 = vst [vmem:[%s7316] ss:$9 sm:$0xff] %v6422
        %7348 = vst [vmem:[%s7318] ss:$9 sm:$0xff] %v6424
        %7349 = vst [vmem:[%s7320] ss:$9 sm:$0xff] %v6426
        %7350 = vst [vmem:[%s7322] ss:$9 sm:$0xff] %v6427
        %v7351 = vld [vmem:[#allocation1] sm:$0xff]
        %7352 = vst [vmem:[#allocation1] ss:$9 sm:$0xff] %v6428
        %7353 = vst [vmem:[%s7310] ss:$9 sm:$0xff] %v6429
        %7354 = vst [vmem:[%s7312] ss:$9 sm:$0xff] %v6431
        %7355 = vst [vmem:[%s7314] ss:$9 sm:$0xff] %v6433
        %7356 = vst [vmem:[%s7316] ss:$9 sm:$0xff] %v6434
        %7357 = vst [vmem:[%s7318] ss:$9 sm:$0xff] %v6435
        %7358 = vst [vmem:[%s7320] ss:$9 sm:$0xff] %v6436
        %7359 = vst [vmem:[%s7322] ss:$9 sm:$0xff] %v6438
        %v7360 = vld [vmem:[#allocation1] sm:$0xff]
        %7366 = vst [vmem:[#allocation1] ss:$9 sm:$0xff] %v6441
        %s7367 = scalar_lea.vmem [#allocation1], 1
        %7368 = vst [vmem:[%s7367] ss:$9 sm:$0xff] %v6443
        %s7369 = scalar_lea.vmem [#allocation1], 2
        %7370 = vst [vmem:[%s7369] ss:$9 sm:$0xff] %v6445
        %s7371 = scalar_lea.vmem [#allocation1], 3
        %7372 = vst [vmem:[%s7371] ss:$9 sm:$0xff] %v6447
        %s7373 = scalar_lea.vmem [#allocation1], 4
        %7374 = vst [vmem:[%s7373] ss:$9 sm:$0xff] %v6449
        %s7375 = scalar_lea.vmem [#allocation1], 5
        %7376 = vst [vmem:[%s7375] ss:$9 sm:$0xff] %v6451
        %s7377 = scalar_lea.vmem [#allocation1], 6
        %7378 = vst [vmem:[%s7377] ss:$9 sm:$0xff] %v6452
        %s7379 = scalar_lea.vmem [#allocation1], 7
        %7380 = vst [vmem:[%s7379] ss:$9 sm:$0xff] %v6453
        %v7381 = vld [vmem:[#allocation1] sm:$0xff]
        %7382 = vst [vmem:[#allocation1] ss:$9 sm:$0xff] %v6455
        %7383 = vst [vmem:[%s7367] ss:$9 sm:$0xff] %v6456
        %7384 = vst [vmem:[%s7369] ss:$9 sm:$0xff] %v6458
        %7385 = vst [vmem:[%s7371] ss:$9 sm:$0xff] %v6459
        %7386 = vst [vmem:[%s7373] ss:$9 sm:$0xff] %v6460
        %7387 = vst [vmem:[%s7375] ss:$9 sm:$0xff] %v6462
        %7388 = vst [vmem:[%s7377] ss:$9 sm:$0xff] %v6463
        %7389 = vst [vmem:[%s7379] ss:$9 sm:$0xff] %v6465
        %v7390 = vld [vmem:[#allocation1] sm:$0xff]
        %7391 = vst [vmem:[#allocation1] ss:$9 sm:$0xff] %v6466
        %7392 = vst [vmem:[%s7367] ss:$9 sm:$0xff] %v6467
        %7393 = vst [vmem:[%s7369] ss:$9 sm:$0xff] %v6469
        %7394 = vst [vmem:[%s7371] ss:$9 sm:$0xff] %v6470
        %7395 = vst [vmem:[%s7373] ss:$9 sm:$0xff] %v6472
        %7396 = vst [vmem:[%s7375] ss:$9 sm:$0xff] %v6473
        %7397 = vst [vmem:[%s7377] ss:$9 sm:$0xff] %v6474
        %7398 = vst [vmem:[%s7379] ss:$9 sm:$0xff] %v6476
        %v7399 = vld [vmem:[#allocation1] sm:$0xff]
        %7400 = vst [vmem:[#allocation1] ss:$9 sm:$0xff] %v6477
        %7401 = vst [vmem:[%s7367] ss:$9 sm:$0xff] %v6479
        %7402 = vst [vmem:[%s7369] ss:$9 sm:$0xff] %v6480
        %7403 = vst [vmem:[%s7371] ss:$9 sm:$0xff] %v6481
        %7404 = vst [vmem:[%s7373] ss:$9 sm:$0xff] %v6483
        %7405 = vst [vmem:[%s7375] ss:$9 sm:$0xff] %v6484
        %7406 = vst [vmem:[%s7377] ss:$9 sm:$0xff] %v6486
        %7407 = vst [vmem:[%s7379] ss:$9 sm:$0xff] %v6487
        %v7408 = vld [vmem:[#allocation1] sm:$0xff]
        %7409 = vst [vmem:[#allocation1] ss:$9 sm:$0xff] %v6488
        %7410 = vst [vmem:[%s7367] ss:$9 sm:$0xff] %v6490
        %7411 = vst [vmem:[%s7369] ss:$9 sm:$0xff] %v6491
        %7412 = vst [vmem:[%s7371] ss:$9 sm:$0xff] %v6493
        %7413 = vst [vmem:[%s7373] ss:$9 sm:$0xff] %v6494
        %7414 = vst [vmem:[%s7375] ss:$9 sm:$0xff] %v6495
        %7415 = vst [vmem:[%s7377] ss:$9 sm:$0xff] %v6497
        %7416 = vst [vmem:[%s7379] ss:$9 sm:$0xff] %v6498
        %v7417 = vld [vmem:[#allocation1] sm:$0xff]
        %7418 = vrot.lane.b32.xlu0 %v7381, 64
        %v7419 = vpop.permute.xlu0 %7418
        %7420 = vrot.lane.b32.xlu0 %v7390, 64
        %v7421 = vpop.permute.xlu0 %7420
        %7422 = vrot.lane.b32.xlu0 %v7399, 64
        %v7423 = vpop.permute.xlu0 %7422
        %7424 = vrot.lane.b32.xlu0 %v7408, 64
        %v7425 = vpop.permute.xlu0 %7424
        %7426 = vrot.lane.b32.xlu0 %v7417, 64
        %v7427 = vpop.permute.xlu0 %7426
        %7433 = vst [vmem:[#allocation1] ss:$9 sm:$0xff] %v6129
        %s7434 = scalar_lea.vmem [#allocation1], 1
        %7435 = vst [vmem:[%s7434] ss:$9 sm:$0xff] %v6192
        %s7436 = scalar_lea.vmem [#allocation1], 2
        %7437 = vst [vmem:[%s7436] ss:$9 sm:$0xff] %v6193
        %s7438 = scalar_lea.vmem [#allocation1], 3
        %7439 = vst [vmem:[%s7438] ss:$9 sm:$0xff] %v6194
        %s7440 = scalar_lea.vmem [#allocation1], 4
        %7441 = vst [vmem:[%s7440] ss:$9 sm:$0xff] %v6195
        %s7442 = scalar_lea.vmem [#allocation1], 5
        %7443 = vst [vmem:[%s7442] ss:$9 sm:$0xff] %v6137
        %s7444 = scalar_lea.vmem [#allocation1], 6
        %7445 = vst [vmem:[%s7444] ss:$9 sm:$0xff] %v6196
        %s7446 = scalar_lea.vmem [#allocation1], 7
        %7447 = vst [vmem:[%s7446] ss:$9 sm:$0xff] %v6197
        %v7448 = vld [vmem:[#allocation1] sm:$0xff]
        %7449 = vst [vmem:[#allocation1] ss:$9 sm:$0xff] %v6198
        %7450 = vst [vmem:[%s7434] ss:$9 sm:$0xff] %v6199
        %7451 = vst [vmem:[%s7436] ss:$9 sm:$0xff] %v6145
        %7452 = vst [vmem:[%s7438] ss:$9 sm:$0xff] %v6200
        %7453 = vst [vmem:[%s7440] ss:$9 sm:$0xff] %v6201
        %7454 = vst [vmem:[%s7442] ss:$9 sm:$0xff] %v6202
        %7455 = vst [vmem:[%s7444] ss:$9 sm:$0xff] %v6203
        %7456 = vst [vmem:[%s7446] ss:$9 sm:$0xff] %v6153
        %v7457 = vld [vmem:[#allocation1] sm:$0xff]
        %7458 = vst [vmem:[#allocation1] ss:$9 sm:$0xff] %v6204
        %7459 = vst [vmem:[%s7434] ss:$9 sm:$0xff] %v6205
        %7460 = vst [vmem:[%s7436] ss:$9 sm:$0xff] %v6206
        %7461 = vst [vmem:[%s7438] ss:$9 sm:$0xff] %v6207
        %7462 = vst [vmem:[%s7440] ss:$9 sm:$0xff] %v6161
        %7463 = vst [vmem:[%s7442] ss:$9 sm:$0xff] %v6208
        %7464 = vst [vmem:[%s7444] ss:$9 sm:$0xff] %v6209
        %7465 = vst [vmem:[%s7446] ss:$9 sm:$0xff] %v6210
        %v7466 = vld [vmem:[#allocation1] sm:$0xff]
        %7467 = vst [vmem:[#allocation1] ss:$9 sm:$0xff] %v6211
        %7468 = vst [vmem:[%s7434] ss:$9 sm:$0xff] %v6169
        %7469 = vst [vmem:[%s7436] ss:$9 sm:$0xff] %v6212
        %7470 = vst [vmem:[%s7438] ss:$9 sm:$0xff] %v6213
        %7471 = vst [vmem:[%s7440] ss:$9 sm:$0xff] %v6214
        %7472 = vst [vmem:[%s7442] ss:$9 sm:$0xff] %v6215
        %7473 = vst [vmem:[%s7444] ss:$9 sm:$0xff] %v6177
        %7474 = vst [vmem:[%s7446] ss:$9 sm:$0xff] %v6216
        %v7475 = vld [vmem:[#allocation1] sm:$0xff]
        %7476 = vst [vmem:[#allocation1] ss:$9 sm:$0xff] %v6217
        %7477 = vst [vmem:[%s7434] ss:$9 sm:$0xff] %v6218
        %7478 = vst [vmem:[%s7436] ss:$9 sm:$0xff] %v6219
        %7479 = vst [vmem:[%s7438] ss:$9 sm:$0xff] %v6185
        %7480 = vst [vmem:[%s7440] ss:$9 sm:$0xff] %v6499
        %7481 = vst [vmem:[%s7442] ss:$9 sm:$0xff] %v6500
        %7482 = vst [vmem:[%s7444] ss:$9 sm:$0xff] %v6501
        %7483 = vst [vmem:[%s7446] ss:$9 sm:$0xff] %v6502
        %v7484 = vld [vmem:[#allocation1] sm:$0xff]
        %7490 = vst [vmem:[#allocation1] ss:$9 sm:$0xff] %v6505
        %s7491 = scalar_lea.vmem [#allocation1], 1
        %7492 = vst [vmem:[%s7491] ss:$9 sm:$0xff] %v6507
        %s7493 = scalar_lea.vmem [#allocation1], 2
        %7494 = vst [vmem:[%s7493] ss:$9 sm:$0xff] %v6509
        %s7495 = scalar_lea.vmem [#allocation1], 3
        %7496 = vst [vmem:[%s7495] ss:$9 sm:$0xff] %v6511
        %s7497 = scalar_lea.vmem [#allocation1], 4
        %7498 = vst [vmem:[%s7497] ss:$9 sm:$0xff] %v6513
        %s7499 = scalar_lea.vmem [#allocation1], 5
        %7500 = vst [vmem:[%s7499] ss:$9 sm:$0xff] %v6515
        %s7501 = scalar_lea.vmem [#allocation1], 6
        %7502 = vst [vmem:[%s7501] ss:$9 sm:$0xff] %v6516
        %s7503 = scalar_lea.vmem [#allocation1], 7
        %7504 = vst [vmem:[%s7503] ss:$9 sm:$0xff] %v6517
        %v7505 = vld [vmem:[#allocation1] sm:$0xff]
        %7506 = vst [vmem:[#allocation1] ss:$9 sm:$0xff] %v6518
        %7507 = vst [vmem:[%s7491] ss:$9 sm:$0xff] %v6519
        %7508 = vst [vmem:[%s7493] ss:$9 sm:$0xff] %v6521
        %7509 = vst [vmem:[%s7495] ss:$9 sm:$0xff] %v6522
        %7510 = vst [vmem:[%s7497] ss:$9 sm:$0xff] %v6523
        %7511 = vst [vmem:[%s7499] ss:$9 sm:$0xff] %v6524
        %7512 = vst [vmem:[%s7501] ss:$9 sm:$0xff] %v6525
        %7513 = vst [vmem:[%s7503] ss:$9 sm:$0xff] %v6527
        %v7514 = vld [vmem:[#allocation1] sm:$0xff]
        %7515 = vst [vmem:[#allocation1] ss:$9 sm:$0xff] %v6528
        %7516 = vst [vmem:[%s7491] ss:$9 sm:$0xff] %v6529
        %7517 = vst [vmem:[%s7493] ss:$9 sm:$0xff] %v6530
        %7518 = vst [vmem:[%s7495] ss:$9 sm:$0xff] %v6531
        %7519 = vst [vmem:[%s7497] ss:$9 sm:$0xff] %v6533
        %7520 = vst [vmem:[%s7499] ss:$9 sm:$0xff] %v6534
        %7521 = vst [vmem:[%s7501] ss:$9 sm:$0xff] %v6535
        %7522 = vst [vmem:[%s7503] ss:$9 sm:$0xff] %v6536
        %v7523 = vld [vmem:[#allocation1] sm:$0xff]
        %7524 = vst [vmem:[#allocation1] ss:$9 sm:$0xff] %v6537
        %7525 = vst [vmem:[%s7491] ss:$9 sm:$0xff] %v6539
        %7526 = vst [vmem:[%s7493] ss:$9 sm:$0xff] %v6540
        %7527 = vst [vmem:[%s7495] ss:$9 sm:$0xff] %v6541
        %7528 = vst [vmem:[%s7497] ss:$9 sm:$0xff] %v6542
        %7529 = vst [vmem:[%s7499] ss:$9 sm:$0xff] %v6543
        %7530 = vst [vmem:[%s7501] ss:$9 sm:$0xff] %v6545
        %7531 = vst [vmem:[%s7503] ss:$9 sm:$0xff] %v6546
        %v7532 = vld [vmem:[#allocation1] sm:$0xff]
        %7533 = vst [vmem:[#allocation1] ss:$9 sm:$0xff] %v6547
        %7534 = vst [vmem:[%s7491] ss:$9 sm:$0xff] %v6548
        %7535 = vst [vmem:[%s7493] ss:$9 sm:$0xff] %v6549
        %7536 = vst [vmem:[%s7495] ss:$9 sm:$0xff] %v6551
        %7537 = vst [vmem:[%s7497] ss:$9 sm:$0xff] %v6552
        %7538 = vst [vmem:[%s7499] ss:$9 sm:$0xff] %v6553
        %7539 = vst [vmem:[%s7501] ss:$9 sm:$0xff] %v6554
        %7540 = vst [vmem:[%s7503] ss:$9 sm:$0xff] %v6555
        %v7541 = vld [vmem:[#allocation1] sm:$0xff]
        %7542 = vrot.lane.b32.xlu0 %v7505, 64
        %v7543 = vpop.permute.xlu0 %7542
        %7544 = vrot.lane.b32.xlu0 %v7514, 64
        %v7545 = vpop.permute.xlu0 %7544
        %7546 = vrot.lane.b32.xlu0 %v7523, 64
        %v7547 = vpop.permute.xlu0 %7546
        %7548 = vrot.lane.b32.xlu0 %v7532, 64
        %v7549 = vpop.permute.xlu0 %7548
        %7550 = vrot.lane.b32.xlu0 %v7541, 64
        %v7551 = vpop.permute.xlu0 %7550
        %7557 = vst [vmem:[#allocation1] ss:$9 sm:$0xff] %v6558
        %s7558 = scalar_lea.vmem [#allocation1], 1
        %7559 = vst [vmem:[%s7558] ss:$9 sm:$0xff] %v6560
        %s7560 = scalar_lea.vmem [#allocation1], 2
        %7561 = vst [vmem:[%s7560] ss:$9 sm:$0xff] %v6562
        %s7562 = scalar_lea.vmem [#allocation1], 3
        %7563 = vst [vmem:[%s7562] ss:$9 sm:$0xff] %v6564
        %s7564 = scalar_lea.vmem [#allocation1], 4
        %7565 = vst [vmem:[%s7564] ss:$9 sm:$0xff] %v6566
        %s7566 = scalar_lea.vmem [#allocation1], 5
        %7567 = vst [vmem:[%s7566] ss:$9 sm:$0xff] %v6568
        %s7568 = scalar_lea.vmem [#allocation1], 6
        %7569 = vst [vmem:[%s7568] ss:$9 sm:$0xff] %v6569
        %s7570 = scalar_lea.vmem [#allocation1], 7
        %7571 = vst [vmem:[%s7570] ss:$9 sm:$0xff] %v6570
        %v7572 = vld [vmem:[#allocation1] sm:$0xff]
        %7573 = vst [vmem:[#allocation1] ss:$9 sm:$0xff] %v6571
        %7574 = vst [vmem:[%s7558] ss:$9 sm:$0xff] %v6572
        %7575 = vst [vmem:[%s7560] ss:$9 sm:$0xff] %v6574
        %7576 = vst [vmem:[%s7562] ss:$9 sm:$0xff] %v6575
        %7577 = vst [vmem:[%s7564] ss:$9 sm:$0xff] %v6576
        %7578 = vst [vmem:[%s7566] ss:$9 sm:$0xff] %v6577
        %7579 = vst [vmem:[%s7568] ss:$9 sm:$0xff] %v6578
        %7580 = vst [vmem:[%s7570] ss:$9 sm:$0xff] %v6580
        %v7581 = vld [vmem:[#allocation1] sm:$0xff]
        %7582 = vst [vmem:[#allocation1] ss:$9 sm:$0xff] %v6581
        %7583 = vst [vmem:[%s7558] ss:$9 sm:$0xff] %v6582
        %7584 = vst [vmem:[%s7560] ss:$9 sm:$0xff] %v6583
        %7585 = vst [vmem:[%s7562] ss:$9 sm:$0xff] %v6584
        %7586 = vst [vmem:[%s7564] ss:$9 sm:$0xff] %v6586
        %7587 = vst [vmem:[%s7566] ss:$9 sm:$0xff] %v6587
        %7588 = vst [vmem:[%s7568] ss:$9 sm:$0xff] %v6588
        %7589 = vst [vmem:[%s7570] ss:$9 sm:$0xff] %v6589
        %v7590 = vld [vmem:[#allocation1] sm:$0xff]
        %7591 = vst [vmem:[#allocation1] ss:$9 sm:$0xff] %v6590
        %7592 = vst [vmem:[%s7558] ss:$9 sm:$0xff] %v6592
        %7593 = vst [vmem:[%s7560] ss:$9 sm:$0xff] %v6593
        %7594 = vst [vmem:[%s7562] ss:$9 sm:$0xff] %v6594
        %7595 = vst [vmem:[%s7564] ss:$9 sm:$0xff] %v6595
        %7596 = vst [vmem:[%s7566] ss:$9 sm:$0xff] %v6596
        %7597 = vst [vmem:[%s7568] ss:$9 sm:$0xff] %v6598
        %7598 = vst [vmem:[%s7570] ss:$9 sm:$0xff] %v6599
        %v7599 = vld [vmem:[#allocation1] sm:$0xff]
        %7600 = vst [vmem:[#allocation1] ss:$9 sm:$0xff] %v6600
        %7601 = vst [vmem:[%s7558] ss:$9 sm:$0xff] %v6601
        %7602 = vst [vmem:[%s7560] ss:$9 sm:$0xff] %v6602
        %7603 = vst [vmem:[%s7562] ss:$9 sm:$0xff] %v6604
        %7604 = vst [vmem:[%s7564] ss:$9 sm:$0xff] %v6605
        %7605 = vst [vmem:[%s7566] ss:$9 sm:$0xff] %v6606
        %7606 = vst [vmem:[%s7568] ss:$9 sm:$0xff] %v6607
        %7607 = vst [vmem:[%s7570] ss:$9 sm:$0xff] %v6608
        %v7608 = vld [vmem:[#allocation1] sm:$0xff]
        %7614 = vst [vmem:[#allocation1] ss:$9 sm:$0xff] %v6611
        %s7615 = scalar_lea.vmem [#allocation1], 1
        %7616 = vst [vmem:[%s7615] ss:$9 sm:$0xff] %v6613
        %s7617 = scalar_lea.vmem [#allocation1], 2
        %7618 = vst [vmem:[%s7617] ss:$9 sm:$0xff] %v6615
        %s7619 = scalar_lea.vmem [#allocation1], 3
        %7620 = vst [vmem:[%s7619] ss:$9 sm:$0xff] %v6617
        %s7621 = scalar_lea.vmem [#allocation1], 4
        %7622 = vst [vmem:[%s7621] ss:$9 sm:$0xff] %v6619
        %s7623 = scalar_lea.vmem [#allocation1], 5
        %7624 = vst [vmem:[%s7623] ss:$9 sm:$0xff] %v6621
        %s7625 = scalar_lea.vmem [#allocation1], 6
        %7626 = vst [vmem:[%s7625] ss:$9 sm:$0xff] %v6622
        %s7627 = scalar_lea.vmem [#allocation1], 7
        %7628 = vst [vmem:[%s7627] ss:$9 sm:$0xff] %v6623
        %v7629 = vld [vmem:[#allocation1] sm:$0xff]
        %7630 = vst [vmem:[#allocation1] ss:$9 sm:$0xff] %v6624
        %7631 = vst [vmem:[%s7615] ss:$9 sm:$0xff] %v6625
        %7632 = vst [vmem:[%s7617] ss:$9 sm:$0xff] %v6627
        %7633 = vst [vmem:[%s7619] ss:$9 sm:$0xff] %v6628
        %7634 = vst [vmem:[%s7621] ss:$9 sm:$0xff] %v6629
        %7635 = vst [vmem:[%s7623] ss:$9 sm:$0xff] %v6630
        %7636 = vst [vmem:[%s7625] ss:$9 sm:$0xff] %v6631
        %7637 = vst [vmem:[%s7627] ss:$9 sm:$0xff] %v6633
        %v7638 = vld [vmem:[#allocation1] sm:$0xff]
        %7639 = vst [vmem:[#allocation1] ss:$9 sm:$0xff] %v6634
        %7640 = vst [vmem:[%s7615] ss:$9 sm:$0xff] %v6635
        %7641 = vst [vmem:[%s7617] ss:$9 sm:$0xff] %v6636
        %7642 = vst [vmem:[%s7619] ss:$9 sm:$0xff] %v6637
        %7643 = vst [vmem:[%s7621] ss:$9 sm:$0xff] %v6639
        %7644 = vst [vmem:[%s7623] ss:$9 sm:$0xff] %v6640
        %7645 = vst [vmem:[%s7625] ss:$9 sm:$0xff] %v6641
        %7646 = vst [vmem:[%s7627] ss:$9 sm:$0xff] %v6642
        %v7647 = vld [vmem:[#allocation1] sm:$0xff]
        %7648 = vst [vmem:[#allocation1] ss:$9 sm:$0xff] %v6643
        %7649 = vst [vmem:[%s7615] ss:$9 sm:$0xff] %v6645
        %7650 = vst [vmem:[%s7617] ss:$9 sm:$0xff] %v6646
        %7651 = vst [vmem:[%s7619] ss:$9 sm:$0xff] %v6647
        %7652 = vst [vmem:[%s7621] ss:$9 sm:$0xff] %v6648
        %7653 = vst [vmem:[%s7623] ss:$9 sm:$0xff] %v6649
        %7654 = vst [vmem:[%s7625] ss:$9 sm:$0xff] %v6651
        %7655 = vst [vmem:[%s7627] ss:$9 sm:$0xff] %v6652
        %v7656 = vld [vmem:[#allocation1] sm:$0xff]
        %7657 = vst [vmem:[#allocation1] ss:$9 sm:$0xff] %v6653
        %7658 = vst [vmem:[%s7615] ss:$9 sm:$0xff] %v6654
        %7659 = vst [vmem:[%s7617] ss:$9 sm:$0xff] %v6655
        %7660 = vst [vmem:[%s7619] ss:$9 sm:$0xff] %v6657
        %7661 = vst [vmem:[%s7621] ss:$9 sm:$0xff] %v6658
        %7662 = vst [vmem:[%s7623] ss:$9 sm:$0xff] %v6659
        %7663 = vst [vmem:[%s7625] ss:$9 sm:$0xff] %v6660
        %7664 = vst [vmem:[%s7627] ss:$9 sm:$0xff] %v6661
        %v7665 = vld [vmem:[#allocation1] sm:$0xff]
        %7666 = vrot.lane.b32.xlu0 %v7629, 64
        %v7667 = vpop.permute.xlu0 %7666
        %7668 = vrot.lane.b32.xlu0 %v7638, 64
        %v7669 = vpop.permute.xlu0 %7668
        %7670 = vrot.lane.b32.xlu0 %v7647, 64
        %v7671 = vpop.permute.xlu0 %7670
        %7672 = vrot.lane.b32.xlu0 %v7656, 64
        %v7673 = vpop.permute.xlu0 %7672
        %7674 = vrot.lane.b32.xlu0 %v7665, 64
        %v7675 = vpop.permute.xlu0 %7674
        %7681 = vst [vmem:[#allocation1] ss:$9 sm:$0xff] %v6664
        %s7682 = scalar_lea.vmem [#allocation1], 1
        %7683 = vst [vmem:[%s7682] ss:$9 sm:$0xff] %v6666
        %s7684 = scalar_lea.vmem [#allocation1], 2
        %7685 = vst [vmem:[%s7684] ss:$9 sm:$0xff] %v6668
        %s7686 = scalar_lea.vmem [#allocation1], 3
        %7687 = vst [vmem:[%s7686] ss:$9 sm:$0xff] %v6670
        %s7688 = scalar_lea.vmem [#allocation1], 4
        %7689 = vst [vmem:[%s7688] ss:$9 sm:$0xff] %v6672
        %s7690 = scalar_lea.vmem [#allocation1], 5
        %7691 = vst [vmem:[%s7690] ss:$9 sm:$0xff] %v6674
        %s7692 = scalar_lea.vmem [#allocation1], 6
        %7693 = vst [vmem:[%s7692] ss:$9 sm:$0xff] %v6675
        %s7694 = scalar_lea.vmem [#allocation1], 7
        %7695 = vst [vmem:[%s7694] ss:$9 sm:$0xff] %v6676
        %v7696 = vld [vmem:[#allocation1] sm:$0xff]
        %7697 = vst [vmem:[#allocation1] ss:$9 sm:$0xff] %v6677
        %7698 = vst [vmem:[%s7682] ss:$9 sm:$0xff] %v6679
        %7699 = vst [vmem:[%s7684] ss:$9 sm:$0xff] %v6681
        %7700 = vst [vmem:[%s7686] ss:$9 sm:$0xff] %v6682
        %7701 = vst [vmem:[%s7688] ss:$9 sm:$0xff] %v6683
        %7702 = vst [vmem:[%s7690] ss:$9 sm:$0xff] %v6684
        %7703 = vst [vmem:[%s7692] ss:$9 sm:$0xff] %v6686
        %7704 = vst [vmem:[%s7694] ss:$9 sm:$0xff] %v6688
        %v7705 = vld [vmem:[#allocation1] sm:$0xff]
        %7706 = vst [vmem:[#allocation1] ss:$9 sm:$0xff] %v6689
        %7707 = vst [vmem:[%s7682] ss:$9 sm:$0xff] %v6690
        %7708 = vst [vmem:[%s7684] ss:$9 sm:$0xff] %v6691
        %7709 = vst [vmem:[%s7686] ss:$9 sm:$0xff] %v6693
        %7710 = vst [vmem:[%s7688] ss:$9 sm:$0xff] %v6695
        %7711 = vst [vmem:[%s7690] ss:$9 sm:$0xff] %v6696
        %7712 = vst [vmem:[%s7692] ss:$9 sm:$0xff] %v6697
        %7713 = vst [vmem:[%s7694] ss:$9 sm:$0xff] %v6698
        %v7714 = vld [vmem:[#allocation1] sm:$0xff]
        %7715 = vst [vmem:[#allocation1] ss:$9 sm:$0xff] %v6700
        %7716 = vst [vmem:[%s7682] ss:$9 sm:$0xff] %v6702
        %7717 = vst [vmem:[%s7684] ss:$9 sm:$0xff] %v6703
        %7718 = vst [vmem:[%s7686] ss:$9 sm:$0xff] %v6704
        %7719 = vst [vmem:[%s7688] ss:$9 sm:$0xff] %v6705
        %7720 = vst [vmem:[%s7690] ss:$9 sm:$0xff] %v6707
        %7721 = vst [vmem:[%s7692] ss:$9 sm:$0xff] %v6709
        %7722 = vst [vmem:[%s7694] ss:$9 sm:$0xff] %v6710
        %v7723 = vld [vmem:[#allocation1] sm:$0xff]
        %7724 = vst [vmem:[#allocation1] ss:$9 sm:$0xff] %v6711
        %7725 = vst [vmem:[%s7682] ss:$9 sm:$0xff] %v6712
        %7726 = vst [vmem:[%s7684] ss:$9 sm:$0xff] %v6714
        %7727 = vst [vmem:[%s7686] ss:$9 sm:$0xff] %v6716
        %7728 = vst [vmem:[%s7688] ss:$9 sm:$0xff] %v6717
        %7729 = vst [vmem:[%s7690] ss:$9 sm:$0xff] %v6718
        %7730 = vst [vmem:[%s7692] ss:$9 sm:$0xff] %v6719
        %7731 = vst [vmem:[%s7694] ss:$9 sm:$0xff] %v6721
        %v7732 = vld [vmem:[#allocation1] sm:$0xff]
        %7738 = vst [vmem:[#allocation1] ss:$9 sm:$0xff] %v6724
        %s7739 = scalar_lea.vmem [#allocation1], 1
        %7740 = vst [vmem:[%s7739] ss:$9 sm:$0xff] %v6726
        %s7741 = scalar_lea.vmem [#allocation1], 2
        %7742 = vst [vmem:[%s7741] ss:$9 sm:$0xff] %v6728
        %s7743 = scalar_lea.vmem [#allocation1], 3
        %7744 = vst [vmem:[%s7743] ss:$9 sm:$0xff] %v6730
        %s7745 = scalar_lea.vmem [#allocation1], 4
        %7746 = vst [vmem:[%s7745] ss:$9 sm:$0xff] %v6732
        %s7747 = scalar_lea.vmem [#allocation1], 5
        %7748 = vst [vmem:[%s7747] ss:$9 sm:$0xff] %v6734
        %s7749 = scalar_lea.vmem [#allocation1], 6
        %7750 = vst [vmem:[%s7749] ss:$9 sm:$0xff] %v6735
        %s7751 = scalar_lea.vmem [#allocation1], 7
        %7752 = vst [vmem:[%s7751] ss:$9 sm:$0xff] %v6736
        %v7753 = vld [vmem:[#allocation1] sm:$0xff]
        %7754 = vst [vmem:[#allocation1] ss:$9 sm:$0xff] %v6738
        %7755 = vst [vmem:[%s7739] ss:$9 sm:$0xff] %v6739
        %7756 = vst [vmem:[%s7741] ss:$9 sm:$0xff] %v6741
        %7757 = vst [vmem:[%s7743] ss:$9 sm:$0xff] %v6742
        %7758 = vst [vmem:[%s7745] ss:$9 sm:$0xff] %v6743
        %7759 = vst [vmem:[%s7747] ss:$9 sm:$0xff] %v6745
        %7760 = vst [vmem:[%s7749] ss:$9 sm:$0xff] %v6746
        %7761 = vst [vmem:[%s7751] ss:$9 sm:$0xff] %v6748
        %v7762 = vld [vmem:[#allocation1] sm:$0xff]
        %7763 = vst [vmem:[#allocation1] ss:$9 sm:$0xff] %v6749
        %7764 = vst [vmem:[%s7739] ss:$9 sm:$0xff] %v6750
        %7765 = vst [vmem:[%s7741] ss:$9 sm:$0xff] %v6752
        %7766 = vst [vmem:[%s7743] ss:$9 sm:$0xff] %v6753
        %7767 = vst [vmem:[%s7745] ss:$9 sm:$0xff] %v6755
        %7768 = vst [vmem:[%s7747] ss:$9 sm:$0xff] %v6756
        %7769 = vst [vmem:[%s7749] ss:$9 sm:$0xff] %v6757
        %7770 = vst [vmem:[%s7751] ss:$9 sm:$0xff] %v6759
        %v7771 = vld [vmem:[#allocation1] sm:$0xff]
        %7772 = vst [vmem:[#allocation1] ss:$9 sm:$0xff] %v6760
        %7773 = vst [vmem:[%s7739] ss:$9 sm:$0xff] %v6762
        %7774 = vst [vmem:[%s7741] ss:$9 sm:$0xff] %v6763
        %7775 = vst [vmem:[%s7743] ss:$9 sm:$0xff] %v6764
        %7776 = vst [vmem:[%s7745] ss:$9 sm:$0xff] %v6766
        %7777 = vst [vmem:[%s7747] ss:$9 sm:$0xff] %v6767
        %7778 = vst [vmem:[%s7749] ss:$9 sm:$0xff] %v6769
        %7779 = vst [vmem:[%s7751] ss:$9 sm:$0xff] %v6770
        %v7780 = vld [vmem:[#allocation1] sm:$0xff]
        %7781 = vst [vmem:[#allocation1] ss:$9 sm:$0xff] %v6771
        %7782 = vst [vmem:[%s7739] ss:$9 sm:$0xff] %v6773
        %7783 = vst [vmem:[%s7741] ss:$9 sm:$0xff] %v6774
        %7784 = vst [vmem:[%s7743] ss:$9 sm:$0xff] %v6776
        %7785 = vst [vmem:[%s7745] ss:$9 sm:$0xff] %v6777
        %7786 = vst [vmem:[%s7747] ss:$9 sm:$0xff] %v6778
        %7787 = vst [vmem:[%s7749] ss:$9 sm:$0xff] %v6780
        %7788 = vst [vmem:[%s7751] ss:$9 sm:$0xff] %v6781
        %v7789 = vld [vmem:[#allocation1] sm:$0xff]
        %7790 = vrot.lane.b32.xlu0 %v7753, 64
        %v7791 = vpop.permute.xlu0 %7790
        %7792 = vrot.lane.b32.xlu0 %v7762, 64
        %v7793 = vpop.permute.xlu0 %7792
        %7794 = vrot.lane.b32.xlu0 %v7771, 64
        %v7795 = vpop.permute.xlu0 %7794
        %7796 = vrot.lane.b32.xlu0 %v7780, 64
        %v7797 = vpop.permute.xlu0 %7796
        %7798 = vrot.lane.b32.xlu0 %v7789, 64
        %v7799 = vpop.permute.xlu0 %7798
        %7805 = vst [vmem:[#allocation1] ss:$9 sm:$0xff] %v6137
        %s7806 = scalar_lea.vmem [#allocation1], 1
        %7807 = vst [vmem:[%s7806] ss:$9 sm:$0xff] %v6196
        %s7808 = scalar_lea.vmem [#allocation1], 2
        %7809 = vst [vmem:[%s7808] ss:$9 sm:$0xff] %v6197
        %s7810 = scalar_lea.vmem [#allocation1], 3
        %7811 = vst [vmem:[%s7810] ss:$9 sm:$0xff] %v6198
        %s7812 = scalar_lea.vmem [#allocation1], 4
        %7813 = vst [vmem:[%s7812] ss:$9 sm:$0xff] %v6199
        %s7814 = scalar_lea.vmem [#allocation1], 5
        %7815 = vst [vmem:[%s7814] ss:$9 sm:$0xff] %v6145
        %s7816 = scalar_lea.vmem [#allocation1], 6
        %7817 = vst [vmem:[%s7816] ss:$9 sm:$0xff] %v6200
        %s7818 = scalar_lea.vmem [#allocation1], 7
        %7819 = vst [vmem:[%s7818] ss:$9 sm:$0xff] %v6201
        %v7820 = vld [vmem:[#allocation1] sm:$0xff]
        %7821 = vst [vmem:[#allocation1] ss:$9 sm:$0xff] %v6202
        %7822 = vst [vmem:[%s7806] ss:$9 sm:$0xff] %v6203
        %7823 = vst [vmem:[%s7808] ss:$9 sm:$0xff] %v6153
        %7824 = vst [vmem:[%s7810] ss:$9 sm:$0xff] %v6204
        %7825 = vst [vmem:[%s7812] ss:$9 sm:$0xff] %v6205
        %7826 = vst [vmem:[%s7814] ss:$9 sm:$0xff] %v6206
        %7827 = vst [vmem:[%s7816] ss:$9 sm:$0xff] %v6207
        %7828 = vst [vmem:[%s7818] ss:$9 sm:$0xff] %v6161
        %v7829 = vld [vmem:[#allocation1] sm:$0xff]
        %7830 = vst [vmem:[#allocation1] ss:$9 sm:$0xff] %v6208
        %7831 = vst [vmem:[%s7806] ss:$9 sm:$0xff] %v6209
        %7832 = vst [vmem:[%s7808] ss:$9 sm:$0xff] %v6210
        %7833 = vst [vmem:[%s7810] ss:$9 sm:$0xff] %v6211
        %7834 = vst [vmem:[%s7812] ss:$9 sm:$0xff] %v6169
        %7835 = vst [vmem:[%s7814] ss:$9 sm:$0xff] %v6212
        %7836 = vst [vmem:[%s7816] ss:$9 sm:$0xff] %v6213
        %7837 = vst [vmem:[%s7818] ss:$9 sm:$0xff] %v6214
        %v7838 = vld [vmem:[#allocation1] sm:$0xff]
        %7839 = vst [vmem:[#allocation1] ss:$9 sm:$0xff] %v6215
        %7840 = vst [vmem:[%s7806] ss:$9 sm:$0xff] %v6177
        %7841 = vst [vmem:[%s7808] ss:$9 sm:$0xff] %v6216
        %7842 = vst [vmem:[%s7810] ss:$9 sm:$0xff] %v6217
        %7843 = vst [vmem:[%s7812] ss:$9 sm:$0xff] %v6218
        %7844 = vst [vmem:[%s7814] ss:$9 sm:$0xff] %v6219
        %7845 = vst [vmem:[%s7816] ss:$9 sm:$0xff] %v6185
        %7846 = vst [vmem:[%s7818] ss:$9 sm:$0xff] %v6499
        %v7847 = vld [vmem:[#allocation1] sm:$0xff]
        %7848 = vst [vmem:[#allocation1] ss:$9 sm:$0xff] %v6500
        %7849 = vst [vmem:[%s7806] ss:$9 sm:$0xff] %v6501
        %7850 = vst [vmem:[%s7808] ss:$9 sm:$0xff] %v6502
        %7851 = vst [vmem:[%s7810] ss:$9 sm:$0xff] 0.0
        %7852 = vst [vmem:[%s7812] ss:$9 sm:$0xff] %v6188
        %7853 = vst [vmem:[%s7814] ss:$9 sm:$0xff] %v6189
        %7854 = vst [vmem:[%s7816] ss:$9 sm:$0xff] %v6190
        %7855 = vst [vmem:[%s7818] ss:$9 sm:$0xff] %v6191
        %v7856 = vld [vmem:[#allocation1] sm:$0xff]
        %7862 = vst [vmem:[#allocation1] ss:$9 sm:$0xff] %v6784
        %s7863 = scalar_lea.vmem [#allocation1], 1
        %7864 = vst [vmem:[%s7863] ss:$9 sm:$0xff] %v6786
        %s7865 = scalar_lea.vmem [#allocation1], 2
        %7866 = vst [vmem:[%s7865] ss:$9 sm:$0xff] %v6788
        %s7867 = scalar_lea.vmem [#allocation1], 3
        %7868 = vst [vmem:[%s7867] ss:$9 sm:$0xff] %v6790
        %s7869 = scalar_lea.vmem [#allocation1], 4
        %7870 = vst [vmem:[%s7869] ss:$9 sm:$0xff] %v6792
        %s7871 = scalar_lea.vmem [#allocation1], 5
        %7872 = vst [vmem:[%s7871] ss:$9 sm:$0xff] %v6794
        %s7873 = scalar_lea.vmem [#allocation1], 6
        %7874 = vst [vmem:[%s7873] ss:$9 sm:$0xff] %v6795
        %s7875 = scalar_lea.vmem [#allocation1], 7
        %7876 = vst [vmem:[%s7875] ss:$9 sm:$0xff] %v6796
        %v7877 = vld [vmem:[#allocation1] sm:$0xff]
        %7878 = vst [vmem:[#allocation1] ss:$9 sm:$0xff] %v6797
        %7879 = vst [vmem:[%s7863] ss:$9 sm:$0xff] %v6798
        %7880 = vst [vmem:[%s7865] ss:$9 sm:$0xff] %v6800
        %7881 = vst [vmem:[%s7867] ss:$9 sm:$0xff] %v6801
        %7882 = vst [vmem:[%s7869] ss:$9 sm:$0xff] %v6802
        %7883 = vst [vmem:[%s7871] ss:$9 sm:$0xff] %v6803
        %7884 = vst [vmem:[%s7873] ss:$9 sm:$0xff] %v6804
        %7885 = vst [vmem:[%s7875] ss:$9 sm:$0xff] %v6806
        %v7886 = vld [vmem:[#allocation1] sm:$0xff]
        %7887 = vst [vmem:[#allocation1] ss:$9 sm:$0xff] %v6807
        %7888 = vst [vmem:[%s7863] ss:$9 sm:$0xff] %v6808
        %7889 = vst [vmem:[%s7865] ss:$9 sm:$0xff] %v6809
        %7890 = vst [vmem:[%s7867] ss:$9 sm:$0xff] %v6810
        %7891 = vst [vmem:[%s7869] ss:$9 sm:$0xff] %v6812
        %7892 = vst [vmem:[%s7871] ss:$9 sm:$0xff] %v6813
        %7893 = vst [vmem:[%s7873] ss:$9 sm:$0xff] %v6814
        %7894 = vst [vmem:[%s7875] ss:$9 sm:$0xff] %v6815
        %v7895 = vld [vmem:[#allocation1] sm:$0xff]
        %7896 = vst [vmem:[#allocation1] ss:$9 sm:$0xff] %v6816
        %7897 = vst [vmem:[%s7863] ss:$9 sm:$0xff] %v6818
        %7898 = vst [vmem:[%s7865] ss:$9 sm:$0xff] %v6819
        %7899 = vst [vmem:[%s7867] ss:$9 sm:$0xff] %v6820
        %7900 = vst [vmem:[%s7869] ss:$9 sm:$0xff] %v6821
        %7901 = vst [vmem:[%s7871] ss:$9 sm:$0xff] %v6822
        %7902 = vst [vmem:[%s7873] ss:$9 sm:$0xff] %v6824
        %7903 = vst [vmem:[%s7875] ss:$9 sm:$0xff] %v6825
        %v7904 = vld [vmem:[#allocation1] sm:$0xff]
        %7905 = vst [vmem:[#allocation1] ss:$9 sm:$0xff] %v6826
        %7906 = vst [vmem:[%s7863] ss:$9 sm:$0xff] %v6827
        %7907 = vst [vmem:[%s7865] ss:$9 sm:$0xff] %v6828
        %7908 = vst [vmem:[%s7867] ss:$9 sm:$0xff] %v6830
        %7909 = vst [vmem:[%s7869] ss:$9 sm:$0xff] %v6831
        %7910 = vst [vmem:[%s7871] ss:$9 sm:$0xff] %v6832
        %7911 = vst [vmem:[%s7873] ss:$9 sm:$0xff] %v6833
        %7912 = vst [vmem:[%s7875] ss:$9 sm:$0xff] %v6834
        %v7913 = vld [vmem:[#allocation1] sm:$0xff]
        %7914 = vrot.lane.b32.xlu0 %v7877, 64
        %v7915 = vpop.permute.xlu0 %7914
        %7916 = vrot.lane.b32.xlu0 %v7886, 64
        %v7917 = vpop.permute.xlu0 %7916
        %7918 = vrot.lane.b32.xlu0 %v7895, 64
        %v7919 = vpop.permute.xlu0 %7918
        %7920 = vrot.lane.b32.xlu0 %v7904, 64
        %v7921 = vpop.permute.xlu0 %7920
        %7922 = vrot.lane.b32.xlu0 %v7913, 64
        %v7923 = vpop.permute.xlu0 %7922
        %7929 = vst [vmem:[#allocation1] ss:$9 sm:$0xff] %v6837
        %s7930 = scalar_lea.vmem [#allocation1], 1
        %7931 = vst [vmem:[%s7930] ss:$9 sm:$0xff] %v6839
        %s7932 = scalar_lea.vmem [#allocation1], 2
        %7933 = vst [vmem:[%s7932] ss:$9 sm:$0xff] %v6841
        %s7934 = scalar_lea.vmem [#allocation1], 3
        %7935 = vst [vmem:[%s7934] ss:$9 sm:$0xff] %v6843
        %s7936 = scalar_lea.vmem [#allocation1], 4
        %7937 = vst [vmem:[%s7936] ss:$9 sm:$0xff] %v6845
        %s7938 = scalar_lea.vmem [#allocation1], 5
        %7939 = vst [vmem:[%s7938] ss:$9 sm:$0xff] %v6847
        %s7940 = scalar_lea.vmem [#allocation1], 6
        %7941 = vst [vmem:[%s7940] ss:$9 sm:$0xff] %v6848
        %s7942 = scalar_lea.vmem [#allocation1], 7
        %7943 = vst [vmem:[%s7942] ss:$9 sm:$0xff] %v6849
        %v7944 = vld [vmem:[#allocation1] sm:$0xff]
        %7945 = vst [vmem:[#allocation1] ss:$9 sm:$0xff] %v6850
        %7946 = vst [vmem:[%s7930] ss:$9 sm:$0xff] %v6851
        %7947 = vst [vmem:[%s7932] ss:$9 sm:$0xff] %v6853
        %7948 = vst [vmem:[%s7934] ss:$9 sm:$0xff] %v6854
        %7949 = vst [vmem:[%s7936] ss:$9 sm:$0xff] %v6855
        %7950 = vst [vmem:[%s7938] ss:$9 sm:$0xff] %v6856
        %7951 = vst [vmem:[%s7940] ss:$9 sm:$0xff] %v6857
        %7952 = vst [vmem:[%s7942] ss:$9 sm:$0xff] %v6859
        %v7953 = vld [vmem:[#allocation1] sm:$0xff]
        %7954 = vst [vmem:[#allocation1] ss:$9 sm:$0xff] %v6860
        %7955 = vst [vmem:[%s7930] ss:$9 sm:$0xff] %v6861
        %7956 = vst [vmem:[%s7932] ss:$9 sm:$0xff] %v6862
        %7957 = vst [vmem:[%s7934] ss:$9 sm:$0xff] %v6863
        %7958 = vst [vmem:[%s7936] ss:$9 sm:$0xff] %v6865
        %7959 = vst [vmem:[%s7938] ss:$9 sm:$0xff] %v6866
        %7960 = vst [vmem:[%s7940] ss:$9 sm:$0xff] %v6867
        %7961 = vst [vmem:[%s7942] ss:$9 sm:$0xff] %v6868
        %v7962 = vld [vmem:[#allocation1] sm:$0xff]
        %7963 = vst [vmem:[#allocation1] ss:$9 sm:$0xff] %v6869
        %7964 = vst [vmem:[%s7930] ss:$9 sm:$0xff] %v6871
        %7965 = vst [vmem:[%s7932] ss:$9 sm:$0xff] %v6872
        %7966 = vst [vmem:[%s7934] ss:$9 sm:$0xff] %v6873
        %7967 = vst [vmem:[%s7936] ss:$9 sm:$0xff] %v6874
        %7968 = vst [vmem:[%s7938] ss:$9 sm:$0xff] %v6875
        %7969 = vst [vmem:[%s7940] ss:$9 sm:$0xff] %v6877
        %7970 = vst [vmem:[%s7942] ss:$9 sm:$0xff] %v6878
        %v7971 = vld [vmem:[#allocation1] sm:$0xff]
        %7972 = vst [vmem:[#allocation1] ss:$9 sm:$0xff] %v6879
        %7973 = vst [vmem:[%s7930] ss:$9 sm:$0xff] %v6880
        %7974 = vst [vmem:[%s7932] ss:$9 sm:$0xff] %v6881
        %7975 = vst [vmem:[%s7934] ss:$9 sm:$0xff] %v6883
        %7976 = vst [vmem:[%s7936] ss:$9 sm:$0xff] %v6884
        %7977 = vst [vmem:[%s7938] ss:$9 sm:$0xff] %v6885
        %7978 = vst [vmem:[%s7940] ss:$9 sm:$0xff] %v6886
        %7979 = vst [vmem:[%s7942] ss:$9 sm:$0xff] %v6887
        %v7980 = vld [vmem:[#allocation1] sm:$0xff]
        %7986 = vst [vmem:[#allocation1] ss:$9 sm:$0xff] %v6890
        %s7987 = scalar_lea.vmem [#allocation1], 1
        %7988 = vst [vmem:[%s7987] ss:$9 sm:$0xff] %v6892
        %s7989 = scalar_lea.vmem [#allocation1], 2
        %7990 = vst [vmem:[%s7989] ss:$9 sm:$0xff] %v6894
        %s7991 = scalar_lea.vmem [#allocation1], 3
        %7992 = vst [vmem:[%s7991] ss:$9 sm:$0xff] %v6896
        %s7993 = scalar_lea.vmem [#allocation1], 4
        %7994 = vst [vmem:[%s7993] ss:$9 sm:$0xff] %v6898
        %s7995 = scalar_lea.vmem [#allocation1], 5
        %7996 = vst [vmem:[%s7995] ss:$9 sm:$0xff] %v6900
        %s7997 = scalar_lea.vmem [#allocation1], 6
        %7998 = vst [vmem:[%s7997] ss:$9 sm:$0xff] %v6901
        %s7999 = scalar_lea.vmem [#allocation1], 7
        %8000 = vst [vmem:[%s7999] ss:$9 sm:$0xff] %v6902
        %v8001 = vld [vmem:[#allocation1] sm:$0xff]
        %8002 = vst [vmem:[#allocation1] ss:$9 sm:$0xff] %v6903
        %8003 = vst [vmem:[%s7987] ss:$9 sm:$0xff] %v6904
        %8004 = vst [vmem:[%s7989] ss:$9 sm:$0xff] %v6906
        %8005 = vst [vmem:[%s7991] ss:$9 sm:$0xff] %v6907
        %8006 = vst [vmem:[%s7993] ss:$9 sm:$0xff] %v6908
        %8007 = vst [vmem:[%s7995] ss:$9 sm:$0xff] %v6909
        %8008 = vst [vmem:[%s7997] ss:$9 sm:$0xff] %v6910
        %8009 = vst [vmem:[%s7999] ss:$9 sm:$0xff] %v6912
        %v8010 = vld [vmem:[#allocation1] sm:$0xff]
        %8011 = vst [vmem:[#allocation1] ss:$9 sm:$0xff] %v6913
        %8012 = vst [vmem:[%s7987] ss:$9 sm:$0xff] %v6914
        %8013 = vst [vmem:[%s7989] ss:$9 sm:$0xff] %v6915
        %8014 = vst [vmem:[%s7991] ss:$9 sm:$0xff] %v6916
        %8015 = vst [vmem:[%s7993] ss:$9 sm:$0xff] %v6918
        %8016 = vst [vmem:[%s7995] ss:$9 sm:$0xff] %v6919
        %8017 = vst [vmem:[%s7997] ss:$9 sm:$0xff] %v6920
        %8018 = vst [vmem:[%s7999] ss:$9 sm:$0xff] %v6921
        %v8019 = vld [vmem:[#allocation1] sm:$0xff]
        %8020 = vst [vmem:[#allocation1] ss:$9 sm:$0xff] %v6922
        %8021 = vst [vmem:[%s7987] ss:$9 sm:$0xff] %v6924
        %8022 = vst [vmem:[%s7989] ss:$9 sm:$0xff] %v6925
        %8023 = vst [vmem:[%s7991] ss:$9 sm:$0xff] %v6926
        %8024 = vst [vmem:[%s7993] ss:$9 sm:$0xff] %v6927
        %8025 = vst [vmem:[%s7995] ss:$9 sm:$0xff] %v6928
        %8026 = vst [vmem:[%s7997] ss:$9 sm:$0xff] %v6930
        %8027 = vst [vmem:[%s7999] ss:$9 sm:$0xff] %v6931
        %v8028 = vld [vmem:[#allocation1] sm:$0xff]
        %8029 = vst [vmem:[#allocation1] ss:$9 sm:$0xff] %v6932
        %8030 = vst [vmem:[%s7987] ss:$9 sm:$0xff] %v6933
        %8031 = vst [vmem:[%s7989] ss:$9 sm:$0xff] %v6934
        %8032 = vst [vmem:[%s7991] ss:$9 sm:$0xff] %v6936
        %8033 = vst [vmem:[%s7993] ss:$9 sm:$0xff] %v6937
        %8034 = vst [vmem:[%s7995] ss:$9 sm:$0xff] %v6938
        %8035 = vst [vmem:[%s7997] ss:$9 sm:$0xff] %v6939
        %8036 = vst [vmem:[%s7999] ss:$9 sm:$0xff] %v6940
        %v8037 = vld [vmem:[#allocation1] sm:$0xff]
        %8038 = vrot.lane.b32.xlu0 %v8001, 64
        %v8039 = vpop.permute.xlu0 %8038
        %8040 = vrot.lane.b32.xlu0 %v8010, 64
        %v8041 = vpop.permute.xlu0 %8040
        %8042 = vrot.lane.b32.xlu0 %v8019, 64
        %v8043 = vpop.permute.xlu0 %8042
        %8044 = vrot.lane.b32.xlu0 %v8028, 64
        %v8045 = vpop.permute.xlu0 %8044
        %8046 = vrot.lane.b32.xlu0 %v8037, 64
        %v8047 = vpop.permute.xlu0 %8046
        %vm8053 = vcmask 523264
        %v8054 = vsel %vm8053, %v7076, %v7171
        %v8055 = vsel %vm8053, %v7085, %v7173
        %v8056 = vsel %vm8053, %v7094, %v7175
        %v8057 = vsel %vm8053, %v7103, %v7177
        %v8058 = vsel %vm8053, %v7112, %v7179
        %v8059 = vsel %vm8053, %v7200, %v7295
        %v8060 = vsel %vm8053, %v7209, %v7297
        %v8061 = vsel %vm8053, %v7218, %v7299
        %v8062 = vsel %vm8053, %v7227, %v7301
        %v8063 = vsel %vm8053, %v7236, %v7303
        %v8064 = vsel %vm8053, %v7324, %v7419
        %v8065 = vsel %vm8053, %v7333, %v7421
        %v8066 = vsel %vm8053, %v7342, %v7423
        %v8067 = vsel %vm8053, %v7351, %v7425
        %v8068 = vsel %vm8053, %v7360, %v7427
        %v8069 = vsel %vm8053, %v7448, %v7543
        %v8070 = vsel %vm8053, %v7457, %v7545
        %v8071 = vsel %vm8053, %v7466, %v7547
        %v8072 = vsel %vm8053, %v7475, %v7549
        %v8073 = vsel %vm8053, %v7484, %v7551
        %v8074 = vsel %vm8053, %v7572, %v7667
        %v8075 = vsel %vm8053, %v7581, %v7669
        %v8076 = vsel %vm8053, %v7590, %v7671
        %v8077 = vsel %vm8053, %v7599, %v7673
        %v8078 = vsel %vm8053, %v7608, %v7675
        %v8079 = vsel %vm8053, %v7696, %v7791
        %v8080 = vsel %vm8053, %v7705, %v7793
        %v8081 = vsel %vm8053, %v7714, %v7795
        %v8082 = vsel %vm8053, %v7723, %v7797
        %v8083 = vsel %vm8053, %v7732, %v7799
        %v8084 = vsel %vm8053, %v7820, %v7915
        %v8085 = vsel %vm8053, %v7829, %v7917
        %v8086 = vsel %vm8053, %v7838, %v7919
        %v8087 = vsel %vm8053, %v7847, %v7921
        %v8088 = vsel %vm8053, %v7856, %v7923
        %v8089 = vsel %vm8053, %v7944, %v8039
        %v8090 = vsel %vm8053, %v7953, %v8041
        %v8091 = vsel %vm8053, %v7962, %v8043
        %v8092 = vsel %vm8053, %v7971, %v8045
        %v8093 = vsel %vm8053, %v7980, %v8047
        %8094 = vst [vmem:[#allocation1] ss:$9 sm:$0xff] %v6943
        %s8095 = scalar_lea.vmem [#allocation1], 1
        %8096 = vst [vmem:[%s8095] ss:$9 sm:$0xff] %v6945
        %s8097 = scalar_lea.vmem [#allocation1], 2
        %8098 = vst [vmem:[%s8097] ss:$9 sm:$0xff] %v6947
        %s8099 = scalar_lea.vmem [#allocation1], 3
        %8100 = vst [vmem:[%s8099] ss:$9 sm:$0xff] %v6949
        %s8101 = scalar_lea.vmem [#allocation1], 4
        %8102 = vst [vmem:[%s8101] ss:$9 sm:$0xff] %v6951
        %s8103 = scalar_lea.vmem [#allocation1], 5
        %8104 = vst [vmem:[%s8103] ss:$9 sm:$0xff] %v6953
        %s8105 = scalar_lea.vmem [#allocation1], 6
        %8106 = vst [vmem:[%s8105] ss:$9 sm:$0xff] %v6954
        %s8107 = scalar_lea.vmem [#allocation1], 7
        %8108 = vst [vmem:[%s8107] ss:$9 sm:$0xff] %v6955
        %v8109 = vld [vmem:[#allocation1] sm:$0xff]
        %8110 = vst [vmem:[#allocation1] ss:$9 sm:$0xff] %v6956
        %8111 = vst [vmem:[%s8095] ss:$9 sm:$0xff] %v6958
        %8112 = vst [vmem:[%s8097] ss:$9 sm:$0xff] %v6960
        %8113 = vst [vmem:[%s8099] ss:$9 sm:$0xff] %v6961
        %8114 = vst [vmem:[%s8101] ss:$9 sm:$0xff] %v6962
        %8115 = vst [vmem:[%s8103] ss:$9 sm:$0xff] %v6963
        %8116 = vst [vmem:[%s8105] ss:$9 sm:$0xff] %v6965
        %8117 = vst [vmem:[%s8107] ss:$9 sm:$0xff] %v6967
        %v8118 = vld [vmem:[#allocation1] sm:$0xff]
        %8119 = vst [vmem:[#allocation1] ss:$9 sm:$0xff] %v6968
        %8120 = vst [vmem:[%s8095] ss:$9 sm:$0xff] %v6969
        %8121 = vst [vmem:[%s8097] ss:$9 sm:$0xff] %v6970
        %8122 = vst [vmem:[%s8099] ss:$9 sm:$0xff] %v6972
        %8123 = vst [vmem:[%s8101] ss:$9 sm:$0xff] %v6974
        %8124 = vst [vmem:[%s8103] ss:$9 sm:$0xff] %v6975
        %8125 = vst [vmem:[%s8105] ss:$9 sm:$0xff] %v6976
        %8126 = vst [vmem:[%s8107] ss:$9 sm:$0xff] %v6977
        %v8127 = vld [vmem:[#allocation1] sm:$0xff]
        %8128 = vst [vmem:[#allocation1] ss:$9 sm:$0xff] %v6979
        %8129 = vst [vmem:[%s8095] ss:$9 sm:$0xff] %v6981
        %8130 = vst [vmem:[%s8097] ss:$9 sm:$0xff] %v6982
        %8131 = vst [vmem:[%s8099] ss:$9 sm:$0xff] %v6983
        %8132 = vst [vmem:[%s8101] ss:$9 sm:$0xff] %v6984
        %8133 = vst [vmem:[%s8103] ss:$9 sm:$0xff] %v6986
        %8134 = vst [vmem:[%s8105] ss:$9 sm:$0xff] %v6988
        %8135 = vst [vmem:[%s8107] ss:$9 sm:$0xff] %v6989
        %v8136 = vld [vmem:[#allocation1] sm:$0xff]
        %8137 = vst [vmem:[#allocation1] ss:$9 sm:$0xff] %v6990
        %8138 = vst [vmem:[%s8095] ss:$9 sm:$0xff] %v6991
        %8139 = vst [vmem:[%s8097] ss:$9 sm:$0xff] %v6993
        %8140 = vst [vmem:[%s8099] ss:$9 sm:$0xff] %v6995
        %8141 = vst [vmem:[%s8101] ss:$9 sm:$0xff] %v6996
        %8142 = vst [vmem:[%s8103] ss:$9 sm:$0xff] %v6997
        %8143 = vst [vmem:[%s8105] ss:$9 sm:$0xff] %v6998
        %8144 = vst [vmem:[%s8107] ss:$9 sm:$0xff] %v7000
        %v8145 = vld [vmem:[#allocation1] sm:$0xff]
        %8151 = vst [vmem:[#allocation1] ss:$9 sm:$0xff] %v7003
        %s8152 = scalar_lea.vmem [#allocation1], 1
        %8153 = vst [vmem:[%s8152] ss:$9 sm:$0xff] %v7005
        %s8154 = scalar_lea.vmem [#allocation1], 2
        %8155 = vst [vmem:[%s8154] ss:$9 sm:$0xff] %v7007
        %s8156 = scalar_lea.vmem [#allocation1], 3
        %8157 = vst [vmem:[%s8156] ss:$9 sm:$0xff] %v7009
        %s8158 = scalar_lea.vmem [#allocation1], 4
        %8159 = vst [vmem:[%s8158] ss:$9 sm:$0xff] %v7011
        %s8160 = scalar_lea.vmem [#allocation1], 5
        %8161 = vst [vmem:[%s8160] ss:$9 sm:$0xff] %v7013
        %s8162 = scalar_lea.vmem [#allocation1], 6
        %8163 = vst [vmem:[%s8162] ss:$9 sm:$0xff] %v7014
        %s8164 = scalar_lea.vmem [#allocation1], 7
        %8165 = vst [vmem:[%s8164] ss:$9 sm:$0xff] %v7015
        %v8166 = vld [vmem:[#allocation1] sm:$0xff]
        %8167 = vst [vmem:[#allocation1] ss:$9 sm:$0xff] %v7017
        %8168 = vst [vmem:[%s8152] ss:$9 sm:$0xff] %v7018
        %8169 = vst [vmem:[%s8154] ss:$9 sm:$0xff] %v7020
        %8170 = vst [vmem:[%s8156] ss:$9 sm:$0xff] %v7021
        %8171 = vst [vmem:[%s8158] ss:$9 sm:$0xff] %v7022
        %8172 = vst [vmem:[%s8160] ss:$9 sm:$0xff] %v7024
        %8173 = vst [vmem:[%s8162] ss:$9 sm:$0xff] %v7025
        %8174 = vst [vmem:[%s8164] ss:$9 sm:$0xff] %v7027
        %v8175 = vld [vmem:[#allocation1] sm:$0xff]
        %8176 = vst [vmem:[#allocation1] ss:$9 sm:$0xff] %v7028
        %8177 = vst [vmem:[%s8152] ss:$9 sm:$0xff] %v7029
        %8178 = vst [vmem:[%s8154] ss:$9 sm:$0xff] %v7031
        %8179 = vst [vmem:[%s8156] ss:$9 sm:$0xff] %v7032
        %8180 = vst [vmem:[%s8158] ss:$9 sm:$0xff] %v7034
        %8181 = vst [vmem:[%s8160] ss:$9 sm:$0xff] %v7035
        %8182 = vst [vmem:[%s8162] ss:$9 sm:$0xff] %v7036
        %8183 = vst [vmem:[%s8164] ss:$9 sm:$0xff] %v7038
        %v8184 = vld [vmem:[#allocation1] sm:$0xff]
        %8185 = vst [vmem:[#allocation1] ss:$9 sm:$0xff] %v7039
        %8186 = vst [vmem:[%s8152] ss:$9 sm:$0xff] %v7041
        %8187 = vst [vmem:[%s8154] ss:$9 sm:$0xff] %v7042
        %8188 = vst [vmem:[%s8156] ss:$9 sm:$0xff] %v7043
        %8189 = vst [vmem:[%s8158] ss:$9 sm:$0xff] %v7045
        %8190 = vst [vmem:[%s8160] ss:$9 sm:$0xff] %v7046
        %8191 = vst [vmem:[%s8162] ss:$9 sm:$0xff] %v7048
        %8192 = vst [vmem:[%s8164] ss:$9 sm:$0xff] %v7049
        %v8193 = vld [vmem:[#allocation1] sm:$0xff]
        %8194 = vst [vmem:[#allocation1] ss:$9 sm:$0xff] %v7050
        %8195 = vst [vmem:[%s8152] ss:$9 sm:$0xff] %v7052
        %8196 = vst [vmem:[%s8154] ss:$9 sm:$0xff] %v7053
        %8197 = vst [vmem:[%s8156] ss:$9 sm:$0xff] %v7055
        %8198 = vst [vmem:[%s8158] ss:$9 sm:$0xff] %v7056
        %8199 = vst [vmem:[%s8160] ss:$9 sm:$0xff] %v7057
        %8200 = vst [vmem:[%s8162] ss:$9 sm:$0xff] %v7059
        %8201 = vst [vmem:[%s8164] ss:$9 sm:$0xff] %v7060
        %v8202 = vld [vmem:[#allocation1] sm:$0xff]
        %8203 = vrot.lane.b32.xlu0 %v8166, 64
        %v8204 = vpop.permute.xlu0 %8203
        %8205 = vrot.lane.b32.xlu0 %v8175, 64
        %v8206 = vpop.permute.xlu0 %8205
        %8207 = vrot.lane.b32.xlu0 %v8184, 64
        %v8208 = vpop.permute.xlu0 %8207
        %8209 = vrot.lane.b32.xlu0 %v8193, 64
        %v8210 = vpop.permute.xlu0 %8209
        %8211 = vrot.lane.b32.xlu0 %v8202, 64
        %v8212 = vpop.permute.xlu0 %8211
        %v8218 = vsel %vm8053, %v8109, %v8204
        %v8219 = vsel %vm8053, %v8118, %v8206
        %v8220 = vsel %vm8053, %v8127, %v8208
        %v8221 = vsel %vm8053, %v8136, %v8210
        %v8222 = vsel %vm8053, %v8145, %v8212
        %v8223 = vld [vmem:[%s5] sm:$0xff]
        %v8224 = vld [vmem:[%s5 + $0x8] sm:$0xff]
        %v8225 = vld [vmem:[%s5 + $0x10] sm:$0xff]
        %v8226 = vld [vmem:[%s5 + $0x18] sm:$0xff]
        %v8227 = vld [vmem:[%s5 + $0x20] sm:$0xff]
        %v8228 = vld [vmem:[%s5 + $0x28] sm:$0xff]
        %v8229 = vld [vmem:[%s5 + $0x30] sm:$0xff]
        %v8230 = vld [vmem:[%s5 + $0x38] sm:$0xff]
        %v8231 = vld [vmem:[%s5 + $0x40] sm:$0xff]
        %v8232 = vld [vmem:[%s5 + $0x48] sm:$0xff]
        %v8233 = vld [vmem:[%s5 + $0x50] sm:$0xff]
        %v8234 = vld [vmem:[%s5 + $0x58] sm:$0xff]
        %v8235 = vld [vmem:[%s5 + $0x60] sm:$0xff]
        %v8236 = vld [vmem:[%s5 + $0x68] sm:$0xff]
        %v8237 = vld [vmem:[%s5 + $0x70] sm:$0xff]
        %v8238 = vld [vmem:[%s5 + $0x78] sm:$0xff]
        %v8239 = vld [vmem:[%s5 + $0x80] sm:$0xff]
        %v8240 = vld [vmem:[%s5 + $0x88] sm:$0xff]
        %v8241 = vld [vmem:[%s5 + $0x90] sm:$0xff]
        %v8242 = vld [vmem:[%s5 + $0x98] sm:$0xff]
        %v8243 = vld [vmem:[%s5 + $0xa0] sm:$0xff]
        %v8244 = vld [vmem:[%s5 + $0xa8] sm:$0xff]
        %v8245 = vld [vmem:[%s5 + $0xb0] sm:$0xff]
        %v8246 = vld [vmem:[%s5 + $0xb8] sm:$0xff]
        %v8247 = vld [vmem:[%s5 + $0xc0] sm:$0xff]
        %v8248 = vld [vmem:[%s5 + $0xc8] sm:$0xff]
        %v8249 = vld [vmem:[%s5 + $0xd0] sm:$0xff]
        %v8250 = vld [vmem:[%s5 + $0xd8] sm:$0xff]
        %v8251 = vld [vmem:[%s5 + $0xe0] sm:$0xff]
        %v8252 = vld [vmem:[%s5 + $0xe8] sm:$0xff]
        %v8253 = vld [vmem:[%s5 + $0xf0] sm:$0xff]
        %v8254 = vld [vmem:[%s5 + $0xf8] sm:$0xff]
        %v8255 = vld [vmem:[%s5 + $0x100] sm:$0xff]
        %v8256 = vld [vmem:[%s5 + $0x108] sm:$0xff]
        %v8257 = vld [vmem:[%s5 + $0x110] sm:$0xff]
        %v8258 = vld [vmem:[%s5 + $0x118] sm:$0xff]
        %v8259 = vld [vmem:[%s5 + $0x120] sm:$0xff]
        %v8260 = vld [vmem:[%s5 + $0x128] sm:$0xff]
        %v8261 = vld [vmem:[%s5 + $0x130] sm:$0xff]
        %v8262 = vld [vmem:[%s5 + $0x138] sm:$0xff]
        %v8263 = vld [vmem:[%s5 + $0x140] sm:$0xff]
        %v8264 = vld [vmem:[%s5 + $0x148] sm:$0xff]
        %v8265 = vld [vmem:[%s5 + $0x150] sm:$0xff]
        %v8266 = vld [vmem:[%s5 + $0x158] sm:$0xff]
        %v8267 = vld [vmem:[%s5 + $0x160] sm:$0xff]
        %v8268 = vld [vmem:[%s5 + $0x168] sm:$0xff]
        %v8269 = vld [vmem:[%s5 + $0x170] sm:$0xff]
        %v8270 = vld [vmem:[%s5 + $0x178] sm:$0xff]
        %v8271 = vld [vmem:[%s5 + $0x180] sm:$0xff]
        %v8272 = vld [vmem:[%s5 + $0x188] sm:$0xff]
        %v8273 = vld [vmem:[%s5 + $0x190] sm:$0xff]
        %v8274 = vld [vmem:[%s5 + $0x198] sm:$0xff]
        %v8275 = vld [vmem:[%s5 + $0x1a0] sm:$0xff]
        %v8276 = vld [vmem:[%s5 + $0x1a8] sm:$0xff]
        %v8277 = vld [vmem:[%s5 + $0x1b0] sm:$0xff]
        %v8278 = vld [vmem:[%s5 + $0x1b8] sm:$0xff]
        %v8279 = vld [vmem:[%s5 + $0x1c0] sm:$0xff]
        %v8280 = vld [vmem:[%s5 + $0x1c8] sm:$0xff]
        %v8281 = vld [vmem:[%s5 + $0x1d0] sm:$0xff]
        %v8282 = vld [vmem:[%s5 + $0x1d8] sm:$0xff]
        %v8283 = vld [vmem:[%s5 + $0x1e0] sm:$0xff]
        %v8284 = vld [vmem:[%s5 + $0x1e8] sm:$0xff]
        %v8285 = vld [vmem:[%s5 + $0x1f0] sm:$0xff]
        %v8286 = vld [vmem:[%s5 + $0x1f8] sm:$0xff]
        %v8287 = vld [vmem:[%s5 + $0x200] sm:$0xff]
        %v8288 = vld [vmem:[%s5 + $0x208] sm:$0xff]
        %v8289 = vld [vmem:[%s5 + $0x210] sm:$0xff]
        %v8290 = vld [vmem:[%s5 + $0x218] sm:$0xff]
        %v8291 = vld [vmem:[%s5 + $0x220] sm:$0xff]
        %v8292 = vld [vmem:[%s5 + $0x228] sm:$0xff]
        %v8293 = vld [vmem:[%s5 + $0x230] sm:$0xff]
        %v8294 = vld [vmem:[%s5 + $0x238] sm:$0xff]
        %v8295 = vld [vmem:[%s5 + $0x240] sm:$0xff]
        %v8296 = vld [vmem:[%s5 + $0x248] sm:$0xff]
        %v8297 = vld [vmem:[%s5 + $0x250] sm:$0xff]
        %v8298 = vld [vmem:[%s5 + $0x258] sm:$0xff]
        %v8299 = vld [vmem:[%s5 + $0x260] sm:$0xff]
        %v8300 = vld [vmem:[%s5 + $0x268] sm:$0xff]
        %v8301 = vld [vmem:[%s5 + $0x270] sm:$0xff]
        %v8302 = vld [vmem:[%s5 + $0x278] sm:$0xff]
        %v8303 = vld [vmem:[%s5 + $0x280] sm:$0xff]
        %v8304 = vld [vmem:[%s5 + $0x288] sm:$0xff]
        %v8305 = vld [vmem:[%s5 + $0x290] sm:$0xff]
        %v8306 = vld [vmem:[%s5 + $0x298] sm:$0xff]
        %v8307 = vld [vmem:[%s5 + $0x2a0] sm:$0xff]
        %v8308 = vld [vmem:[%s5 + $0x2a8] sm:$0xff]
        %v8309 = vld [vmem:[%s5 + $0x2b0] sm:$0xff]
        %v8310 = vld [vmem:[%s5 + $0x2b8] sm:$0xff]
        %v8311 = vld [vmem:[%s5 + $0x2c0] sm:$0xff]
        %v8312 = vld [vmem:[%s5 + $0x2c8] sm:$0xff]
        %v8313 = vld [vmem:[%s5 + $0x2d0] sm:$0xff]
        %v8314 = vld [vmem:[%s5 + $0x2d8] sm:$0xff]
        %v8315 = vld [vmem:[%s5 + $0x2e0] sm:$0xff]
        %v8316 = vld [vmem:[%s5 + $0x2e8] sm:$0xff]
        %v8317 = vld [vmem:[%s5 + $0x2f0] sm:$0xff]
        %v8318 = vld [vmem:[%s5 + $0x2f8] sm:$0xff]
        %v8319 = vld [vmem:[%s5 + $0x300] sm:$0xff]
        %v8320 = vld [vmem:[%s5 + $0x308] sm:$0xff]
        %v8321 = vld [vmem:[%s5 + $0x310] sm:$0xff]
        %v8322 = vld [vmem:[%s5 + $0x318] sm:$0xff]
        %v8323 = vld [vmem:[%s5 + $0x320] sm:$0xff]
        %v8324 = vld [vmem:[%s5 + $0x328] sm:$0xff]
        %v8325 = vld [vmem:[%s5 + $0x330] sm:$0xff]
        %v8326 = vld [vmem:[%s5 + $0x338] sm:$0xff]
        %v8327 = vld [vmem:[%s5 + $0x340] sm:$0xff]
        %v8328 = vld [vmem:[%s5 + $0x348] sm:$0xff]
        %v8329 = vld [vmem:[%s5 + $0x350] sm:$0xff]
        %v8330 = vld [vmem:[%s5 + $0x358] sm:$0xff]
        %v8331 = vld [vmem:[%s5 + $0x360] sm:$0xff]
        %v8332 = vld [vmem:[%s5 + $0x368] sm:$0xff]
        %v8333 = vld [vmem:[%s5 + $0x370] sm:$0xff]
        %v8334 = vld [vmem:[%s5 + $0x378] sm:$0xff]
        %v8335 = vld [vmem:[%s5 + $0x380] sm:$0xff]
        %v8336 = vld [vmem:[%s5 + $0x388] sm:$0xff]
        %v8337 = vld [vmem:[%s5 + $0x390] sm:$0xff]
        %v8338 = vld [vmem:[%s5 + $0x398] sm:$0xff]
        %v8339 = vld [vmem:[%s5 + $0x3a0] sm:$0xff]
        %v8340 = vld [vmem:[%s5 + $0x3a8] sm:$0xff]
        %v8341 = vld [vmem:[%s5 + $0x3b0] sm:$0xff]
        %v8342 = vld [vmem:[%s5 + $0x3b8] sm:$0xff]
        %v8343 = vld [vmem:[%s5 + $0x3c0] sm:$0xff]
        %v8344 = vld [vmem:[%s5 + $0x3c8] sm:$0xff]
        %v8345 = vld [vmem:[%s5 + $0x3d0] sm:$0xff]
        %v8346 = vld [vmem:[%s5 + $0x3d8] sm:$0xff]
        %v8347 = vld [vmem:[%s5 + $0x3e0] sm:$0xff]
        %v8348 = vld [vmem:[%s5 + $0x3e8] sm:$0xff]
        %v8349 = vld [vmem:[%s5 + $0x3f0] sm:$0xff]
        %v8350 = vld [vmem:[%s5 + $0x3f8] sm:$0xff]
        %v8351 = vld [vmem:[%s5 + $0x400] sm:$0xff]
        %v8352 = vld [vmem:[%s5 + $0x408] sm:$0xff]
        %v8353 = vld [vmem:[%s5 + $0x410] sm:$0xff]
        %v8354 = vld [vmem:[%s5 + $0x418] sm:$0xff]
        %v8355 = vld [vmem:[%s5 + $0x420] sm:$0xff]
        %v8356 = vld [vmem:[%s5 + $0x428] sm:$0xff]
        %v8357 = vld [vmem:[%s5 + $0x430] sm:$0xff]
        %v8358 = vld [vmem:[%s5 + $0x438] sm:$0xff]
        %v8359 = vld [vmem:[%s5 + $0x440] sm:$0xff]
        %v8360 = vld [vmem:[%s5 + $0x448] sm:$0xff]
        %v8361 = vld [vmem:[%s5 + $0x450] sm:$0xff]
        %v8362 = vld [vmem:[%s5 + $0x458] sm:$0xff]
        %v8363 = vld [vmem:[%s5 + $0x460] sm:$0xff]
        %v8364 = vld [vmem:[%s5 + $0x468] sm:$0xff]
        %v8365 = vld [vmem:[%s5 + $0x470] sm:$0xff]
        %v8366 = vld [vmem:[%s5 + $0x478] sm:$0xff]
        %v8367 = vld [vmem:[%s6] sm:$0x1]
        %v8369 = vperm.slane %v8367, 0
        %8371 = vmatpush.msra.mxu0 %v8238
        %8372 = vmatpush.msra.mxu0 %v8237
        %8373 = vmatpush.msra.mxu0 %v8236
        %8374 = vmatpush.msra.mxu0 %v8235
        %8375 = vmatpush.msra.mxu0 %v8234
        %8376 = vmatpush.msra.mxu0 %v8233
        %8377 = vmatpush.msra.mxu0 %v8232
        %8378 = vmatpush.msra.mxu0 %v8231
        %8379 = vmatpush.msra.mxu0 %v8230
        %8380 = vmatpush.msra.mxu0 %v8229
        %8381 = vmatpush.msra.mxu0 %v8228
        %8382 = vmatpush.msra.mxu0 %v8227
        %8383 = vmatpush.msra.mxu0 %v8226
        %8384 = vmatpush.msra.mxu0 %v8225
        %8385 = vmatpush.msra.mxu0 %v8224
        %8386 = vmatpush.msra.mxu0 %v8223
        %8387 = vmatmul.f32.gmra.mxu0 %v8054
        %v8388 = vpop.f32.mrf.mxu0
        %v8389 = vadd.f32 %v8369, %v8388
        %8390 = vmatmul.f32.gmra.mxu0 %v8055
        %v8391 = vpop.f32.mrf.mxu0
        %v8392 = vadd.f32 %v8369, %v8391
        %8393 = vmatmul.f32.gmra.mxu0 %v8056
        %v8394 = vpop.f32.mrf.mxu0
        %v8395 = vadd.f32 %v8369, %v8394
        %8396 = vmatmul.f32.gmra.mxu0 %v8057
        %v8397 = vpop.f32.mrf.mxu0
        %v8398 = vadd.f32 %v8369, %v8397
        %8399 = vmatmul.f32.gmra.mxu0 %v8058
        %v8400 = vpop.f32.mrf.mxu0
        %v8401 = vadd.f32 %v8369, %v8400
        %8402 = vdwg.mxu0
        %8403 = vmatpush.msra.mxu0 %v8254
        %8404 = vmatpush.msra.mxu0 %v8253
        %8405 = vmatpush.msra.mxu0 %v8252
        %8406 = vmatpush.msra.mxu0 %v8251
        %8407 = vmatpush.msra.mxu0 %v8250
        %8408 = vmatpush.msra.mxu0 %v8249
        %8409 = vmatpush.msra.mxu0 %v8248
        %8410 = vmatpush.msra.mxu0 %v8247
        %8411 = vmatpush.msra.mxu0 %v8246
        %8412 = vmatpush.msra.mxu0 %v8245
        %8413 = vmatpush.msra.mxu0 %v8244
        %8414 = vmatpush.msra.mxu0 %v8243
        %8415 = vmatpush.msra.mxu0 %v8242
        %8416 = vmatpush.msra.mxu0 %v8241
        %8417 = vmatpush.msra.mxu0 %v8240
        %8418 = vmatpush.msra.mxu0 %v8239
        %8419 = vmatmul.f32.gmra.mxu0 %v8059
        %v8420 = vpop.f32.mrf.mxu0
        %v8421 = vadd.f32 %v8389, %v8420
        %8422 = vmatmul.f32.gmra.mxu0 %v8060
        %v8423 = vpop.f32.mrf.mxu0
        %v8424 = vadd.f32 %v8392, %v8423
        %8425 = vmatmul.f32.gmra.mxu0 %v8061
        %v8426 = vpop.f32.mrf.mxu0
        %v8427 = vadd.f32 %v8395, %v8426
        %8428 = vmatmul.f32.gmra.mxu0 %v8062
        %v8429 = vpop.f32.mrf.mxu0
        %v8430 = vadd.f32 %v8398, %v8429
        %8431 = vmatmul.f32.gmra.mxu0 %v8063
        %v8432 = vpop.f32.mrf.mxu0
        %v8433 = vadd.f32 %v8401, %v8432
        %8434 = vdwg.mxu0
        %8435 = vmatpush.msra.mxu0 %v8270
        %8436 = vmatpush.msra.mxu0 %v8269
        %8437 = vmatpush.msra.mxu0 %v8268
        %8438 = vmatpush.msra.mxu0 %v8267
        %8439 = vmatpush.msra.mxu0 %v8266
        %8440 = vmatpush.msra.mxu0 %v8265
        %8441 = vmatpush.msra.mxu0 %v8264
        %8442 = vmatpush.msra.mxu0 %v8263
        %8443 = vmatpush.msra.mxu0 %v8262
        %8444 = vmatpush.msra.mxu0 %v8261
        %8445 = vmatpush.msra.mxu0 %v8260
        %8446 = vmatpush.msra.mxu0 %v8259
        %8447 = vmatpush.msra.mxu0 %v8258
        %8448 = vmatpush.msra.mxu0 %v8257
        %8449 = vmatpush.msra.mxu0 %v8256
        %8450 = vmatpush.msra.mxu0 %v8255
        %8451 = vmatmul.f32.gmra.mxu0 %v8064
        %v8452 = vpop.f32.mrf.mxu0
        %v8453 = vadd.f32 %v8421, %v8452
        %8454 = vmatmul.f32.gmra.mxu0 %v8065
        %v8455 = vpop.f32.mrf.mxu0
        %v8456 = vadd.f32 %v8424, %v8455
        %8457 = vmatmul.f32.gmra.mxu0 %v8066
        %v8458 = vpop.f32.mrf.mxu0
        %v8459 = vadd.f32 %v8427, %v8458
        %8460 = vmatmul.f32.gmra.mxu0 %v8067
        %v8461 = vpop.f32.mrf.mxu0
        %v8462 = vadd.f32 %v8430, %v8461
        %8463 = vmatmul.f32.gmra.mxu0 %v8068
        %v8464 = vpop.f32.mrf.mxu0
        %v8465 = vadd.f32 %v8433, %v8464
        %8466 = vdwg.mxu0
        %8467 = vmatpush.msra.mxu0 %v8286
        %8468 = vmatpush.msra.mxu0 %v8285
        %8469 = vmatpush.msra.mxu0 %v8284
        %8470 = vmatpush.msra.mxu0 %v8283
        %8471 = vmatpush.msra.mxu0 %v8282
        %8472 = vmatpush.msra.mxu0 %v8281
        %8473 = vmatpush.msra.mxu0 %v8280
        %8474 = vmatpush.msra.mxu0 %v8279
        %8475 = vmatpush.msra.mxu0 %v8278
        %8476 = vmatpush.msra.mxu0 %v8277
        %8477 = vmatpush.msra.mxu0 %v8276
        %8478 = vmatpush.msra.mxu0 %v8275
        %8479 = vmatpush.msra.mxu0 %v8274
        %8480 = vmatpush.msra.mxu0 %v8273
        %8481 = vmatpush.msra.mxu0 %v8272
        %8482 = vmatpush.msra.mxu0 %v8271
        %8483 = vmatmul.f32.gmra.mxu0 %v8069
        %v8484 = vpop.f32.mrf.mxu0
        %v8485 = vadd.f32 %v8453, %v8484
        %8486 = vmatmul.f32.gmra.mxu0 %v8070
        %v8487 = vpop.f32.mrf.mxu0
        %v8488 = vadd.f32 %v8456, %v8487
        %8489 = vmatmul.f32.gmra.mxu0 %v8071
        %v8490 = vpop.f32.mrf.mxu0
        %v8491 = vadd.f32 %v8459, %v8490
        %8492 = vmatmul.f32.gmra.mxu0 %v8072
        %v8493 = vpop.f32.mrf.mxu0
        %v8494 = vadd.f32 %v8462, %v8493
        %8495 = vmatmul.f32.gmra.mxu0 %v8073
        %v8496 = vpop.f32.mrf.mxu0
        %v8497 = vadd.f32 %v8465, %v8496
        %8498 = vdwg.mxu0
        %8499 = vmatpush.msra.mxu0 %v8302
        %8500 = vmatpush.msra.mxu0 %v8301
        %8501 = vmatpush.msra.mxu0 %v8300
        %8502 = vmatpush.msra.mxu0 %v8299
        %8503 = vmatpush.msra.mxu0 %v8298
        %8504 = vmatpush.msra.mxu0 %v8297
        %8505 = vmatpush.msra.mxu0 %v8296
        %8506 = vmatpush.msra.mxu0 %v8295
        %8507 = vmatpush.msra.mxu0 %v8294
        %8508 = vmatpush.msra.mxu0 %v8293
        %8509 = vmatpush.msra.mxu0 %v8292
        %8510 = vmatpush.msra.mxu0 %v8291
        %8511 = vmatpush.msra.mxu0 %v8290
        %8512 = vmatpush.msra.mxu0 %v8289
        %8513 = vmatpush.msra.mxu0 %v8288
        %8514 = vmatpush.msra.mxu0 %v8287
        %8515 = vmatmul.f32.gmra.mxu0 %v8074
        %v8516 = vpop.f32.mrf.mxu0
        %v8517 = vadd.f32 %v8485, %v8516
        %8518 = vmatmul.f32.gmra.mxu0 %v8075
        %v8519 = vpop.f32.mrf.mxu0
        %v8520 = vadd.f32 %v8488, %v8519
        %8521 = vmatmul.f32.gmra.mxu0 %v8076
        %v8522 = vpop.f32.mrf.mxu0
        %v8523 = vadd.f32 %v8491, %v8522
        %8524 = vmatmul.f32.gmra.mxu0 %v8077
        %v8525 = vpop.f32.mrf.mxu0
        %v8526 = vadd.f32 %v8494, %v8525
        %8527 = vmatmul.f32.gmra.mxu0 %v8078
        %v8528 = vpop.f32.mrf.mxu0
        %v8529 = vadd.f32 %v8497, %v8528
        %8530 = vdwg.mxu0
        %8531 = vmatpush.msra.mxu0 %v8318
        %8532 = vmatpush.msra.mxu0 %v8317
        %8533 = vmatpush.msra.mxu0 %v8316
        %8534 = vmatpush.msra.mxu0 %v8315
        %8535 = vmatpush.msra.mxu0 %v8314
        %8536 = vmatpush.msra.mxu0 %v8313
        %8537 = vmatpush.msra.mxu0 %v8312
        %8538 = vmatpush.msra.mxu0 %v8311
        %8539 = vmatpush.msra.mxu0 %v8310
        %8540 = vmatpush.msra.mxu0 %v8309
        %8541 = vmatpush.msra.mxu0 %v8308
        %8542 = vmatpush.msra.mxu0 %v8307
        %8543 = vmatpush.msra.mxu0 %v8306
        %8544 = vmatpush.msra.mxu0 %v8305
        %8545 = vmatpush.msra.mxu0 %v8304
        %8546 = vmatpush.msra.mxu0 %v8303
        %8547 = vmatmul.f32.gmra.mxu0 %v8079
        %v8548 = vpop.f32.mrf.mxu0
        %v8549 = vadd.f32 %v8517, %v8548
        %8550 = vmatmul.f32.gmra.mxu0 %v8080
        %v8551 = vpop.f32.mrf.mxu0
        %v8552 = vadd.f32 %v8520, %v8551
        %8553 = vmatmul.f32.gmra.mxu0 %v8081
        %v8554 = vpop.f32.mrf.mxu0
        %v8555 = vadd.f32 %v8523, %v8554
        %8556 = vmatmul.f32.gmra.mxu0 %v8082
        %v8557 = vpop.f32.mrf.mxu0
        %v8558 = vadd.f32 %v8526, %v8557
        %8559 = vmatmul.f32.gmra.mxu0 %v8083
        %v8560 = vpop.f32.mrf.mxu0
        %v8561 = vadd.f32 %v8529, %v8560
        %8562 = vdwg.mxu0
        %8563 = vmatpush.msra.mxu0 %v8334
        %8564 = vmatpush.msra.mxu0 %v8333
        %8565 = vmatpush.msra.mxu0 %v8332
        %8566 = vmatpush.msra.mxu0 %v8331
        %8567 = vmatpush.msra.mxu0 %v8330
        %8568 = vmatpush.msra.mxu0 %v8329
        %8569 = vmatpush.msra.mxu0 %v8328
        %8570 = vmatpush.msra.mxu0 %v8327
        %8571 = vmatpush.msra.mxu0 %v8326
        %8572 = vmatpush.msra.mxu0 %v8325
        %8573 = vmatpush.msra.mxu0 %v8324
        %8574 = vmatpush.msra.mxu0 %v8323
        %8575 = vmatpush.msra.mxu0 %v8322
        %8576 = vmatpush.msra.mxu0 %v8321
        %8577 = vmatpush.msra.mxu0 %v8320
        %8578 = vmatpush.msra.mxu0 %v8319
        %8579 = vmatmul.f32.gmra.mxu0 %v8084
        %v8580 = vpop.f32.mrf.mxu0
        %v8581 = vadd.f32 %v8549, %v8580
        %8582 = vmatmul.f32.gmra.mxu0 %v8085
        %v8583 = vpop.f32.mrf.mxu0
        %v8584 = vadd.f32 %v8552, %v8583
        %8585 = vmatmul.f32.gmra.mxu0 %v8086
        %v8586 = vpop.f32.mrf.mxu0
        %v8587 = vadd.f32 %v8555, %v8586
        %8588 = vmatmul.f32.gmra.mxu0 %v8087
        %v8589 = vpop.f32.mrf.mxu0
        %v8590 = vadd.f32 %v8558, %v8589
        %8591 = vmatmul.f32.gmra.mxu0 %v8088
        %v8592 = vpop.f32.mrf.mxu0
        %v8593 = vadd.f32 %v8561, %v8592
        %8594 = vdwg.mxu0
        %8595 = vmatpush.msra.mxu0 %v8350
        %8596 = vmatpush.msra.mxu0 %v8349
        %8597 = vmatpush.msra.mxu0 %v8348
        %8598 = vmatpush.msra.mxu0 %v8347
        %8599 = vmatpush.msra.mxu0 %v8346
        %8600 = vmatpush.msra.mxu0 %v8345
        %8601 = vmatpush.msra.mxu0 %v8344
        %8602 = vmatpush.msra.mxu0 %v8343
        %8603 = vmatpush.msra.mxu0 %v8342
        %8604 = vmatpush.msra.mxu0 %v8341
        %8605 = vmatpush.msra.mxu0 %v8340
        %8606 = vmatpush.msra.mxu0 %v8339
        %8607 = vmatpush.msra.mxu0 %v8338
        %8608 = vmatpush.msra.mxu0 %v8337
        %8609 = vmatpush.msra.mxu0 %v8336
        %8610 = vmatpush.msra.mxu0 %v8335
        %8611 = vmatmul.f32.gmra.mxu0 %v8089
        %v8612 = vpop.f32.mrf.mxu0
        %v8613 = vadd.f32 %v8581, %v8612
        %8614 = vmatmul.f32.gmra.mxu0 %v8090
        %v8615 = vpop.f32.mrf.mxu0
        %v8616 = vadd.f32 %v8584, %v8615
        %8617 = vmatmul.f32.gmra.mxu0 %v8091
        %v8618 = vpop.f32.mrf.mxu0
        %v8619 = vadd.f32 %v8587, %v8618
        %8620 = vmatmul.f32.gmra.mxu0 %v8092
        %v8621 = vpop.f32.mrf.mxu0
        %v8622 = vadd.f32 %v8590, %v8621
        %8623 = vmatmul.f32.gmra.mxu0 %v8093
        %v8624 = vpop.f32.mrf.mxu0
        %v8625 = vadd.f32 %v8593, %v8624
        %8626 = vdwg.mxu0
        %8627 = vmatpush.msra.mxu0 %v8366
        %8628 = vmatpush.msra.mxu0 %v8365
        %8629 = vmatpush.msra.mxu0 %v8364
        %8630 = vmatpush.msra.mxu0 %v8363
        %8631 = vmatpush.msra.mxu0 %v8362
        %8632 = vmatpush.msra.mxu0 %v8361
        %8633 = vmatpush.msra.mxu0 %v8360
        %8634 = vmatpush.msra.mxu0 %v8359
        %8635 = vmatpush.msra.mxu0 %v8358
        %8636 = vmatpush.msra.mxu0 %v8357
        %8637 = vmatpush.msra.mxu0 %v8356
        %8638 = vmatpush.msra.mxu0 %v8355
        %8639 = vmatpush.msra.mxu0 %v8354
        %8640 = vmatpush.msra.mxu0 %v8353
        %8641 = vmatpush.msra.mxu0 %v8352
        %8642 = vmatpush.msra.mxu0 %v8351
        %8643 = vmatmul.f32.gmra.mxu0 %v8218
        %v8644 = vpop.f32.mrf.mxu0
        %v8645 = vadd.f32 %v8613, %v8644
        %8646 = vmatmul.f32.gmra.mxu0 %v8219
        %v8647 = vpop.f32.mrf.mxu0
        %v8648 = vadd.f32 %v8616, %v8647
        %8649 = vmatmul.f32.gmra.mxu0 %v8220
        %v8650 = vpop.f32.mrf.mxu0
        %v8651 = vadd.f32 %v8619, %v8650
        %8652 = vmatmul.f32.gmra.mxu0 %v8221
        %v8653 = vpop.f32.mrf.mxu0
        %v8654 = vadd.f32 %v8622, %v8653
        %8655 = vmatmul.f32.gmra.mxu0 %v8222
        %v8656 = vpop.f32.mrf.mxu0
        %v8657 = vadd.f32 %v8625, %v8656
        %8658 = vdwg.mxu0
        %v8659 = vmax.f32 %v8645, 0.0
        %v8660 = vmax.f32 %v8648, 0.0
        %v8661 = vmax.f32 %v8651, 0.0
        %v8662 = vmax.f32 %v8654, 0.0
        %v8663 = vmax.f32 %v8657, 0.0
        %v8669 = vrot.slane %v8659, 1
        %v8670 = vrot.slane %v8659, 2
        %v8671 = vrot.slane %v8659, 5
        %v8672 = vrot.slane %v8659, 6
        %v8673 = vrot.slane %v8659, 7
        %v8674 = vrot.slane %v8660, 2
        %v8675 = vrot.slane %v8660, 3
        %v8676 = vrot.slane %v8660, 4
        %v8677 = vrot.slane %v8660, 7
        %v8678 = vrot.slane %v8661, 1
        %v8679 = vrot.slane %v8661, 4
        %v8680 = vrot.slane %v8661, 5
        %v8681 = vrot.slane %v8661, 6
        %v8682 = vrot.slane %v8662, 1
        %v8683 = vrot.slane %v8662, 2
        %v8684 = vrot.slane %v8662, 3
        %v8685 = vrot.slane %v8662, 6
        %v8686 = vrot.slane %v8662, 7
        %v8687 = vrot.slane %v8663, 3
        %v8688 = vrot.slane %v8663, 4
        %v8689 = vrot.slane %v8663, 5
        %8690 = vst [vmem:[#allocation1] ss:$9 sm:$0xff] %v8659
        %s8691 = scalar_lea.vmem [#allocation1], 1
        %8692 = vst [vmem:[%s8691] ss:$9 sm:$0xff] %v8669
        %s8693 = scalar_lea.vmem [#allocation1], 2
        %8694 = vst [vmem:[%s8693] ss:$9 sm:$0xff] %v8670
        %v8695 = vld [vmem:[#allocation1] sm:$0xff]
        %8696 = vst [vmem:[#allocation1] ss:$9 sm:$0xff] %v8671
        %8697 = vst [vmem:[%s8691] ss:$9 sm:$0xff] %v8672
        %8698 = vst [vmem:[%s8693] ss:$9 sm:$0xff] %v8673
        %v8699 = vld [vmem:[#allocation1] sm:$0xff]
        %8700 = vst [vmem:[#allocation1] ss:$9 sm:$0xff] %v8674
        %8701 = vst [vmem:[%s8691] ss:$9 sm:$0xff] %v8675
        %8702 = vst [vmem:[%s8693] ss:$9 sm:$0xff] %v8676
        %v8703 = vld [vmem:[#allocation1] sm:$0xff]
        %8704 = vst [vmem:[#allocation1] ss:$9 sm:$0xff] %v8677
        %8705 = vst [vmem:[%s8691] ss:$9 sm:$0xff] %v8661
        %8706 = vst [vmem:[%s8693] ss:$9 sm:$0xff] %v8678
        %v8707 = vld [vmem:[#allocation1] sm:$0xff]
        %8708 = vst [vmem:[#allocation1] ss:$9 sm:$0xff] %v8679
        %8709 = vst [vmem:[%s8691] ss:$9 sm:$0xff] %v8680
        %8710 = vst [vmem:[%s8693] ss:$9 sm:$0xff] %v8681
        %v8711 = vld [vmem:[#allocation1] sm:$0xff]
        %8712 = vst [vmem:[#allocation1] ss:$9 sm:$0xff] %v8682
        %8713 = vst [vmem:[%s8691] ss:$9 sm:$0xff] %v8683
        %8714 = vst [vmem:[%s8693] ss:$9 sm:$0xff] %v8684
        %v8715 = vld [vmem:[#allocation1] sm:$0xff]
        %8716 = vst [vmem:[#allocation1] ss:$9 sm:$0xff] %v8685
        %8717 = vst [vmem:[%s8691] ss:$9 sm:$0xff] %v8686
        %8718 = vst [vmem:[%s8693] ss:$9 sm:$0xff] %v8663
        %v8719 = vld [vmem:[#allocation1] sm:$0xff]
        %8720 = vst [vmem:[#allocation1] ss:$9 sm:$0xff] %v8687
        %8721 = vst [vmem:[%s8691] ss:$9 sm:$0xff] %v8688
        %8722 = vst [vmem:[%s8693] ss:$9 sm:$0xff] %v8689
        %v8723 = vld [vmem:[#allocation1] sm:$0xff]
        %v8732 = vsel %vm5482, %v8695, -inf
        %v8733 = vrot.slane %v8732, 4
        %v8734 = vmax.f32 %v8732, %v8733
        %v8735 = vrot.slane %v8734, 2
        %v8736 = vmax.f32 %v8734, %v8735
        %v8737 = vrot.slane %v8736, 1
        %v8738 = vmax.f32 %v8736, %v8737
        %v8739 = vsel %vm5482, %v8699, -inf
        %v8740 = vrot.slane %v8739, 4
        %v8741 = vmax.f32 %v8739, %v8740
        %v8742 = vrot.slane %v8741, 2
        %v8743 = vmax.f32 %v8741, %v8742
        %v8744 = vrot.slane %v8743, 1
        %v8745 = vmax.f32 %v8743, %v8744
        %v8746 = vsel %vm5482, %v8703, -inf
        %v8747 = vrot.slane %v8746, 4
        %v8748 = vmax.f32 %v8746, %v8747
        %v8749 = vrot.slane %v8748, 2
        %v8750 = vmax.f32 %v8748, %v8749
        %v8751 = vrot.slane %v8750, 1
        %v8752 = vmax.f32 %v8750, %v8751
        %v8753 = vsel %vm5482, %v8707, -inf
        %v8754 = vrot.slane %v8753, 4
        %v8755 = vmax.f32 %v8753, %v8754
        %v8756 = vrot.slane %v8755, 2
        %v8757 = vmax.f32 %v8755, %v8756
        %v8758 = vrot.slane %v8757, 1
        %v8759 = vmax.f32 %v8757, %v8758
        %v8760 = vsel %vm5482, %v8711, -inf
        %v8761 = vrot.slane %v8760, 4
        %v8762 = vmax.f32 %v8760, %v8761
        %v8763 = vrot.slane %v8762, 2
        %v8764 = vmax.f32 %v8762, %v8763
        %v8765 = vrot.slane %v8764, 1
        %v8766 = vmax.f32 %v8764, %v8765
        %v8767 = vsel %vm5482, %v8715, -inf
        %v8768 = vrot.slane %v8767, 4
        %v8769 = vmax.f32 %v8767, %v8768
        %v8770 = vrot.slane %v8769, 2
        %v8771 = vmax.f32 %v8769, %v8770
        %v8772 = vrot.slane %v8771, 1
        %v8773 = vmax.f32 %v8771, %v8772
        %v8774 = vsel %vm5482, %v8719, -inf
        %v8775 = vrot.slane %v8774, 4
        %v8776 = vmax.f32 %v8774, %v8775
        %v8777 = vrot.slane %v8776, 2
        %v8778 = vmax.f32 %v8776, %v8777
        %v8779 = vrot.slane %v8778, 1
        %v8780 = vmax.f32 %v8778, %v8779
        %v8781 = vsel %vm5482, %v8723, -inf
        %v8782 = vrot.slane %v8781, 4
        %v8783 = vmax.f32 %v8781, %v8782
        %v8784 = vrot.slane %v8783, 2
        %v8785 = vmax.f32 %v8783, %v8784
        %v8786 = vrot.slane %v8785, 1
        %v8787 = vmax.f32 %v8785, %v8786
        %v8788 = vadd.f32 %v8738, 0.0
        %v8789 = vadd.f32 %v8745, 0.0
        %v8790 = vadd.f32 %v8752, 0.0
        %v8791 = vadd.f32 %v8759, 0.0
        %v8792 = vadd.f32 %v8766, 0.0
        %v8793 = vadd.f32 %v8773, 0.0
        %v8794 = vadd.f32 %v8780, 0.0
        %v8795 = vadd.f32 %v8787, 0.0
        %v8804 = vsel %vm959, %v8789, %v8788
        %v8805 = vsel %vm962, %v8790, %v8804
        %v8806 = vsel %vm965, %v8791, %v8805
        %v8807 = vsel %vm968, %v8792, %v8806
        %v8808 = vsel %vm971, %v8793, %v8807
        %v8809 = vsel %vm974, %v8794, %v8808
        %v8810 = vsel %vm2175, %v8795, %v8809
        %8812 = vst.msk [vmem:[%s271] sm:$0xff] %vm8053, %v8810
        %s8813 = sand.u32 %s181, 1
        %s8814 = scalar_lea.sflag [#allocation3], %s8813
        %s8815 = sand.u32 %s181, 1
        %s8816 = smul.addr %s8815, 8
        %s8817 = scalar_lea.vmem [#allocation2], %s8816
        // Predicated region
        $region49: #{cnn_block_forward.1} parent=47 // pred_check
          %p8818 = pneg %p191
        $region50: #{cnn_block_forward.1} parent=47 // pred_check_branch
          %8820 = sbr.rel (%p8818) target = $region52
        $region51: #{cnn_block_forward.1} parent=47 // pred_region
          %8822 = vsyncadd %s8814, 0
          %s8823 = smul.addr %s21, 8
          %s8824 = scalar_lea.hbm %s7, %s8823
          %s8826 = sshll.u32 %s8817, 4
          %s8827 = int_to_ptr.vmem [resolvable:$true] %s8826
          %s8828 = sshll.u32 %s8824, 4
          %s8829 = int_to_ptr.hbm [resolvable:$true] %s8828
          %8831 = dma.vmem_to_hbm [thread:$0]  %s8827, 128, %s8829, %s8814
        $region52: #{cnn_block_forward.1} parent=47 // pred_fallthru
          _
      $region48: #{cnn_block_forward.1} parent=5 // pred_fallthru
        _
      %p8832 = scmp.le.s32.totalorder 2, %s16
      // Predicated region
      $region53: #{cnn_block_forward.1} parent=5 // pred_check
        %p8833 = pneg %p8832
      $region54: #{cnn_block_forward.1} parent=5 // pred_check_branch
        %8835 = sbr.rel (%p8833) target = $region56
      $region55: #{cnn_block_forward.1} parent=5 // pred_region
        %s8836 = ssub.s32 %s16, 2
        // Predicated region
        $region57: #{cnn_block_forward.1} parent=55 // pred_check
          %p8837 = pneg %p197
        $region58: #{cnn_block_forward.1} parent=55 // pred_check_branch
          %8839 = sbr.rel (%p8837) target = $region60
        $region59: #{cnn_block_forward.1} parent=55 // pred_region
          %s8840 = sand.u32 %s182, 1
          %s8841 = scalar_lea.sflag [#allocation3], %s8840
          %s8842 = sand.u32 %s182, 1
          %s8843 = smul.addr %s8842, 8
          %s8844 = scalar_lea.vmem [#allocation2], %s8843
          %8846 = dma.done %s8841, 128
        $region60: #{cnn_block_forward.1} parent=55 // pred_fallthru
          _
      $region56: #{cnn_block_forward.1} parent=5 // pred_fallthru
        _
    $region6: #{cnn_block_forward.1} parent=1 // loop_footer
      %s20 = sadd.s32 1, %s16
    $region7: #{cnn_block_forward.1} parent=1 // loop_footer_branch
      %15 = sbr.rel target = $region3
    $region8: #{cnn_block_forward.1} parent=1 // loop_exit
      _
    %8847 = vsyncpa [#allocation3], 1
    %s8848 = scalar_lea.sflag [#allocation3], 1
    %8849 = vsyncpa %s8848, 1

</llo_original>
